<compile_context>
chip_gen: v6e
topology: v6e:2x2x1
jax: 0.10.0
libtpu: 0.0.40
codegen_flags: <defaults>
</compile_context>

<pallas_src>
import functools
import math

import jax
import jax.numpy as jnp
import numpy as np
from jax.experimental import pallas as pl
from jax.experimental.pallas import tpu as pltpu

_MXU_DTYPE = jnp.bfloat16  # MXU inputs for the big (R,D)x(D,N) matmuls; acc stays f32.


def _rmsnorm(v, g, eps):
    ms = jnp.mean(v * v, axis=-1, keepdims=True)
    return v * jax.lax.rsqrt(ms + eps) * g


def _decoder_kernel(x_ref, pos_ref, mask_ref, wqkv_ref, wo_ref, w1_ref, w2_ref,
                    g1_ref, g2_ref, gout_ref, whead_ref,
                    tok_ref, xout_ref,
                    *, num_heads, head_dim, eps, n_layers, num_q, codebook, seq_len):
    R, D = x_ref.shape                      # R = b_blk * L rows
    L = seq_len
    b_blk = R // L
    H = num_heads * head_dim
    G = 3 * num_heads
    HB = num_heads * b_blk

    # Positional embedding add (pos already tiled to (R, D) in the wrapper).
    x = x_ref[...].astype(jnp.float32) + pos_ref[...]                   # (R, D) f32

    # Hoisted causal-mask broadcast (computed once, reused by every layer).
    mask_b = jnp.broadcast_to(mask_ref[...], (HB, L, L))                 # f32

    for layer in range(n_layers):           # n_layers == 2: keep unrolled.
        # ---- attention sub-block ----
        h = _rmsnorm(x, g1_ref[layer], eps)                              # f32
        qkv = jnp.dot(h.astype(_MXU_DTYPE), wqkv_ref[layer],            # bf16 x bf16 -> f32
                      preferred_element_type=jnp.float32)                # (R, 3H)
        # Head split: one transpose for Q|K|V together, then contiguous reshapes.
        qkv_t = pltpu.einshape("rgd->grd", qkv.reshape(R, G, head_dim))  # (G, R, Dh)
        qb = qkv_t[0:num_heads].reshape(HB, L, head_dim)                 # 1/sqrt(Dh) folded in Q
        kb = qkv_t[num_heads:2 * num_heads].reshape(HB, L, head_dim)
        vb = qkv_t[2 * num_heads:3 * num_heads].reshape(HB, L, head_dim)

        s = jnp.einsum("bqd,bkd->bqk", qb, kb,
                       preferred_element_type=jnp.float32) + mask_b      # (HB, L, L) f32
        m = jnp.max(s, axis=-1, keepdims=True)
        p = jnp.exp(s - m)
        p = p * pl.reciprocal(jnp.sum(p, axis=-1, keepdims=True), approx=True)
        ctx = jnp.einsum("bqk,bkd->bqd", p, vb,
                         preferred_element_type=jnp.float32)             # (HB, L, Dh) f32
        attn = pltpu.einshape("hrd->rhd",
                              ctx.reshape(num_heads, R, head_dim)).reshape(R, H)
        x = x + jnp.dot(attn.astype(_MXU_DTYPE), wo_ref[layer],
                        preferred_element_type=jnp.float32)

        # ---- MLP sub-block (SiLU) ----
        h2 = _rmsnorm(x, g2_ref[layer], eps)
        z = jnp.dot(h2.astype(_MXU_DTYPE), w1_ref[layer],
                    preferred_element_type=jnp.float32)                  # (R, 4D)
        z = z * jax.nn.sigmoid(z)
        x = x + jnp.dot(z.astype(_MXU_DTYPE), w2_ref[layer],
                        preferred_element_type=jnp.float32)

    # ---- output norm + lm_head (f32 for argmax fidelity) + per-quantizer argmax ----
    xo = _rmsnorm(x, gout_ref[...], eps)                                 # (R, D)
    logits = jnp.dot(xo, whead_ref[...], preferred_element_type=jnp.float32)  # (R, num_q*C)
    toks = []
    for qi in range(num_q):
        lg = logits[:, qi * codebook:(qi + 1) * codebook]                # (R, C)
        mx = jnp.max(lg, axis=-1, keepdims=True)
        col = jax.lax.broadcasted_iota(jnp.int32, lg.shape, 1).astype(jnp.float32)
        first = jnp.min(jnp.where(lg == mx, col, jnp.float32(codebook)),
                        axis=-1, keepdims=True)                          # first argmax (torch tie-break)
        toks.append(first)
    tok = jnp.concatenate(toks, axis=-1).astype(jnp.int32)               # (R, num_q)

    tok_ref[...] = tok
    xout_ref[...] = xo.astype(xout_ref.dtype)


def _const_spec(shape):
    zeros = (0,) * len(shape)
    return pl.BlockSpec(shape, lambda b: zeros)


def _num_grid_steps(batch):
    """2 grid steps only on 2-TensorCore chips (v7x); serial loop otherwise."""
    try:
        kind = jax.devices()[0].device_kind.lower()
    except Exception:
        kind = ""
    two_tc = ("v7" in kind) or ("tpu7" in kind)
    return 2 if (two_tc and batch >= 2 and batch % 2 == 0) else 1


def temporal_depth_decoder_transformer(x, params, *, num_heads, head_dim, eps,
                                       num_quantizers, codebook_size):
    B, L, D = x.shape
    H = num_heads * head_dim
    n_layers = params["wq"].shape[0]

    # One-time weight prep: fuse Q|K|V, fold 1/sqrt(head_dim) into the Q columns,
    # pre-cast the big weights to bf16 (halves DMA bytes, no in-kernel packs).
    wqkv = jnp.concatenate(
        [params["wq"] * (1.0 / math.sqrt(head_dim)), params["wk"], params["wv"]],
        axis=-1).astype(_MXU_DTYPE)
    wo = params["wo"].astype(_MXU_DTYPE)
    w1 = params["w1"].astype(_MXU_DTYPE)
    w2 = params["w2"].astype(_MXU_DTYPE)
    w_head = params["w_head"].astype(jnp.float32)            # f32: argmax fidelity
    g1 = params["g1"][:, None, :]
    g2 = params["g2"][:, None, :]
    g_out = params["g_out"][None, :]

    if L > 1:
        mask = jnp.where(jnp.triu(jnp.ones((L, L), dtype=bool), k=1),
                         -1e9, 0.0).astype(jnp.float32)
    else:
        mask = jnp.zeros((L, L), jnp.float32)

    n_steps = _num_grid_steps(B)
    b_blk = B // n_steps
    r_blk = b_blk * L

    x_flat = x.reshape(B * L, D)
    pos_tiled = jnp.tile(params["pos"][:L], (b_blk, 1)).astype(jnp.float32)  # (r_blk, D)

    kernel = functools.partial(
        _decoder_kernel, num_heads=num_heads, head_dim=head_dim, eps=eps,
        n_layers=n_layers, num_q=num_quantizers, codebook=codebook_size, seq_len=L)

    out_shape = (jax.ShapeDtypeStruct((B * L, num_quantizers), jnp.int32),
                 jax.ShapeDtypeStruct((B * L, D), x.dtype))
    out_specs = (pl.BlockSpec((r_blk, num_quantizers), lambda b: (b, 0)),
                 pl.BlockSpec((r_blk, D), lambda b: (b, 0)))

    tokens_flat, x_out_flat = pl.pallas_call(
        kernel,
        out_shape=out_shape,
        grid=(n_steps,),
        in_specs=[
            pl.BlockSpec((r_blk, D), lambda b: (b, 0)),       # x (row chunk)
            _const_spec((r_blk, D)),                          # positional embedding (tiled)
            _const_spec((L, L)),                              # additive causal mask
            _const_spec((n_layers, D, 3 * H)),                # fused Wqkv (bf16)
            _const_spec((n_layers, H, D)),                    # Wo (bf16)
            _const_spec((n_layers, D, 4 * D)),                # W1 (bf16)
            _const_spec((n_layers, 4 * D, D)),                # W2 (bf16)
            _const_spec((n_layers, 1, D)),                    # ln1 gains
            _const_spec((n_layers, 1, D)),                    # ln2 gains
            _const_spec((1, D)),                              # ln_out gain
            _const_spec((D, num_quantizers * codebook_size)), # lm_head (f32)
        ],
        out_specs=out_specs,
        compiler_params=pltpu.CompilerParams(dimension_semantics=("parallel",)),
    )(x_flat, pos_tiled, mask, wqkv, wo, w1, w2, g1, g2, g_out, w_head)

    return (tokens_flat.reshape(B, L, num_quantizers),
            x_out_flat.reshape(B, L, D))


def reference_forward(x, params, *, num_heads, head_dim, eps, num_quantizers, codebook_size):
    """Pure-JAX f32 reference mirroring the PyTorch module (dropout = identity)."""
    B, L, D = x.shape
    x = x + params["pos"][:L][None]
    if L > 1:
        mask = jnp.where(jnp.triu(jnp.ones((L, L), dtype=bool), k=1),
                         -1e9, 0.0).astype(jnp.float32)
    else:
        mask = jnp.zeros((L, L), jnp.float32)
    scale = math.sqrt(head_dim)
    n_layers = params["wq"].shape[0]

    def rms(v, g):
        return v * jax.lax.rsqrt(jnp.mean(v * v, axis=-1, keepdims=True) + eps) * g

    for l in range(n_layers):
        h = rms(x, params["g1"][l])
        q = (h @ params["wq"][l]).reshape(B, L, num_heads, head_dim).transpose(0, 2, 1, 3)
        k = (h @ params["wk"][l]).reshape(B, L, num_heads, head_dim).transpose(0, 2, 1, 3)
        v = (h @ params["wv"][l]).reshape(B, L, num_heads, head_dim).transpose(0, 2, 1, 3)
        s = jnp.einsum("bhld,bhmd->bhlm", q, k) / scale + mask
        p = jax.nn.softmax(s, axis=-1)
        o = jnp.einsum("bhlm,bhmd->bhld", p, v).transpose(0, 2, 1, 3).reshape(B, L, -1)
        x = x + o @ params["wo"][l]
        h2 = rms(x, params["g2"][l])
        z = h2 @ params["w1"][l]
        x = x + (z * jax.nn.sigmoid(z)) @ params["w2"][l]

    x = rms(x, params["g_out"])
    logits = (x @ params["w_head"]).reshape(B, L, num_quantizers, codebook_size)
    tokens = jnp.argmax(logits, axis=-1).astype(jnp.int32)
    return tokens, x


if __name__ == "__main__":
    # decoder_audio_hidden_dim=32, num_heads=4, head_dim=8, 2 layers,
    # codebook_size=16, num_quantizers=2, max_position_embeddings=16, B=4, L=8.
    B, L, D = 4, 8, 32
    num_heads, head_dim = 4, 8
    n_layers = 2
    num_q, codebook = 2, 16
    max_pos = 16
    eps = 1e-6
    H = num_heads * head_dim

    key = jax.random.PRNGKey(0)
    ks = jax.random.split(key, 9)
    sD = 1.0 / math.sqrt(D)
    params = {
        "pos": 0.02 * jax.random.normal(ks[0], (max_pos, D), jnp.float32),
        "wq": jax.random.normal(ks[1], (n_layers, D, H), jnp.float32) * sD,
        "wk": jax.random.normal(ks[2], (n_layers, D, H), jnp.float32) * sD,
        "wv": jax.random.normal(ks[3], (n_layers, D, H), jnp.float32) * sD,
        "wo": jax.random.normal(ks[4], (n_layers, H, D), jnp.float32) / math.sqrt(H),
        "w1": jax.random.normal(ks[5], (n_layers, D, 4 * D), jnp.float32) * sD,
        "w2": jax.random.normal(ks[6], (n_layers, 4 * D, D), jnp.float32) / math.sqrt(4 * D),
        "g1": jnp.ones((n_layers, D), jnp.float32),
        "g2": jnp.ones((n_layers, D), jnp.float32),
        "g_out": jnp.ones((D,), jnp.float32),
        "w_head": jax.random.normal(ks[7], (D, num_q * codebook), jnp.float32) * sD,
    }
    x = jax.random.normal(ks[8], (B, L, D), jnp.float32)

    tok, x_out = temporal_depth_decoder_transformer(
        x, params, num_heads=num_heads, head_dim=head_dim, eps=eps,
        num_quantizers=num_q, codebook_size=codebook)
    tok = jax.block_until_ready(tok)
    x_out = jax.block_until_ready(x_out)

    tok_ref, x_ref = reference_forward(
        x, params, num_heads=num_heads, head_dim=head_dim, eps=eps,
        num_quantizers=num_q, codebook_size=codebook)

    # Tolerance reflects bf16 MXU inputs on the residual-stream matmuls vs f32 reference.
    np.testing.assert_allclose(np.asarray(x_out), np.asarray(x_ref), rtol=5e-2, atol=5e-2)
    assert tok.shape == (B, L, num_q) and tok.dtype == jnp.int32
    assert bool(jnp.all((tok >= 0) & (tok < codebook)))
    # Token argmax can legitimately flip on near-ties under bf16; require broad agreement.
    assert float(jnp.mean((tok == tok_ref).astype(jnp.float32))) >= 0.8
    print("KERNEL_OK")
</pallas_src>

<mosaic_0001>
module attributes {stable_mosaic.version = 11 : i64} {
  func.func @_decoder_kernel(%arg0: i32, %arg1: memref<32x32xf32, #tpu.memory_space<vmem>>, %arg2: memref<32x32xf32, #tpu.memory_space<vmem>>, %arg3: memref<8x8xf32, #tpu.memory_space<vmem>>, %arg4: memref<2x32x96xbf16, #tpu.memory_space<vmem>>, %arg5: memref<2x32x32xbf16, #tpu.memory_space<vmem>>, %arg6: memref<2x32x128xbf16, #tpu.memory_space<vmem>>, %arg7: memref<2x128x32xbf16, #tpu.memory_space<vmem>>, %arg8: memref<2x1x32xf32, #tpu.memory_space<vmem>>, %arg9: memref<2x1x32xf32, #tpu.memory_space<vmem>>, %arg10: memref<1x32xf32, #tpu.memory_space<vmem>>, %arg11: memref<32x32xf32, #tpu.memory_space<vmem>>, %arg12: memref<32x2xi32, #tpu.memory_space<vmem>>, %arg13: memref<32x32xf32, #tpu.memory_space<vmem>>) attributes {dimension_semantics = [#tpu.dimension_semantics<parallel>], iteration_bounds = array<i64: 1>, scalar_prefetch = 0 : i64, scratch_operands = 0 : i64, tpu.core_type = #tpu.core_type<tc>, window_params = [{transform_indices = @transform_0, window_bounds = array<i64: 32, 32>}, {pipeline_mode = #tpu.pipeline_mode<synchronous>, transform_indices = @transform_1, window_bounds = array<i64: 32, 32>}, {pipeline_mode = #tpu.pipeline_mode<synchronous>, transform_indices = @transform_2, window_bounds = array<i64: 8, 8>}, {pipeline_mode = #tpu.pipeline_mode<synchronous>, transform_indices = @transform_3, window_bounds = array<i64: 2, 32, 96>}, {pipeline_mode = #tpu.pipeline_mode<synchronous>, transform_indices = @transform_4, window_bounds = array<i64: 2, 32, 32>}, {pipeline_mode = #tpu.pipeline_mode<synchronous>, transform_indices = @transform_5, window_bounds = array<i64: 2, 32, 128>}, {pipeline_mode = #tpu.pipeline_mode<synchronous>, transform_indices = @transform_6, window_bounds = array<i64: 2, 128, 32>}, {pipeline_mode = #tpu.pipeline_mode<synchronous>, transform_indices = @transform_7, window_bounds = array<i64: 2, 1, 32>}, {pipeline_mode = #tpu.pipeline_mode<synchronous>, transform_indices = @transform_8, window_bounds = array<i64: 2, 1, 32>}, {pipeline_mode = #tpu.pipeline_mode<synchronous>, transform_indices = @transform_9, window_bounds = array<i64: 1, 32>}, {pipeline_mode = #tpu.pipeline_mode<synchronous>, transform_indices = @transform_10, window_bounds = array<i64: 32, 32>}, {transform_indices = @transform_11, window_bounds = array<i64: 32, 2>}, {transform_indices = @transform_12, window_bounds = array<i64: 32, 32>}]} {
    %c0 = arith.constant 0 : index
    %c0_0 = arith.constant 0 : index
    %0 = vector.load %arg1[%c0, %c0_0] : memref<32x32xf32, #tpu.memory_space<vmem>>, vector<32x32xf32>
    %c0_1 = arith.constant 0 : index
    %c0_2 = arith.constant 0 : index
    %1 = vector.load %arg2[%c0_1, %c0_2] : memref<32x32xf32, #tpu.memory_space<vmem>>, vector<32x32xf32>
    %2 = arith.addf %0, %1 : vector<32x32xf32>
    %c0_3 = arith.constant 0 : index
    %c0_4 = arith.constant 0 : index
    %3 = vector.load %arg3[%c0_3, %c0_4] : memref<8x8xf32, #tpu.memory_space<vmem>>, vector<8x8xf32>
    %4 = vector.shape_cast %3 : vector<8x8xf32> to vector<1x8x8xf32>
    %5 = vector.broadcast %4 : vector<1x8x8xf32> to vector<16x8x8xf32>
    %c0_5 = arith.constant 0 : index
    %c0_6 = arith.constant 0 : index
    %c0_7 = arith.constant 0 : index
    %6 = vector.load %arg8[%c0_5, %c0_6, %c0_7] : memref<2x1x32xf32, #tpu.memory_space<vmem>>, vector<1x1x32xf32>
    %7 = vector.shape_cast %6 : vector<1x1x32xf32> to vector<1x32xf32>
    %8 = arith.mulf %2, %2 : vector<32x32xf32>
    %cst = arith.constant dense<0.000000e+00> : vector<32xf32>
    %9 = vector.multi_reduction <add>, %8, %cst [1] : vector<32x32xf32> to vector<32xf32>
    %10 = vector.shape_cast %9 : vector<32xf32> to vector<32x1xf32>
    %cst_8 = arith.constant 3.200000e+01 : f32
    %11 = vector.broadcast %cst_8 : f32 to vector<32x1xf32>
    %12 = arith.divf %10, %11 : vector<32x1xf32>
    %cst_9 = arith.constant 9.99999997E-7 : f32
    %13 = vector.broadcast %cst_9 : f32 to vector<32x1xf32>
    %14 = arith.addf %12, %13 : vector<32x1xf32>
    %15 = math.rsqrt %14 : vector<32x1xf32>
    %16 = vector.broadcast %15 : vector<32x1xf32> to vector<32x32xf32>
    %17 = arith.mulf %2, %16 : vector<32x32xf32>
    %18 = vector.broadcast %7 : vector<1x32xf32> to vector<32x32xf32>
    %19 = arith.mulf %17, %18 : vector<32x32xf32>
    %20 = arith.truncf %19 : vector<32x32xf32> to vector<32x32xbf16>
    %c0_10 = arith.constant 0 : index
    %c0_11 = arith.constant 0 : index
    %c0_12 = arith.constant 0 : index
    %21 = vector.load %arg4[%c0_10, %c0_11, %c0_12] : memref<2x32x96xbf16, #tpu.memory_space<vmem>>, vector<1x32x96xbf16>
    %22 = vector.shape_cast %21 : vector<1x32x96xbf16> to vector<32x96xbf16>
    %cst_13 = arith.constant dense<0.000000e+00> : vector<32x96xf32>
    %23 = tpu.matmul %20, %22, %cst_13 {dimension_numbers = #tpu.dot_dimension_numbers<[1], [0], [0], [1], [0, 0, 1, 1], [], []>} : vector<32x32xbf16>, vector<32x96xbf16>, vector<32x96xf32> -> vector<32x96xf32>
    %24 = vector.shape_cast %23 : vector<32x96xf32> to vector<32x12x8xf32>
    %25 = tpu.transpose %24, [1, 0, 2] : vector<32x12x8xf32> -> vector<12x32x8xf32>
    %26 = vector.extract_strided_slice %25 {offsets = [0, 0, 0], sizes = [4, 32, 8], strides = [1, 1, 1]} : vector<12x32x8xf32> to vector<4x32x8xf32>
    %27 = vector.shape_cast %26 : vector<4x32x8xf32> to vector<16x8x8xf32>
    %28 = vector.extract_strided_slice %25 {offsets = [4, 0, 0], sizes = [4, 32, 8], strides = [1, 1, 1]} : vector<12x32x8xf32> to vector<4x32x8xf32>
    %29 = vector.shape_cast %28 : vector<4x32x8xf32> to vector<16x8x8xf32>
    %30 = vector.extract_strided_slice %25 {offsets = [8, 0, 0], sizes = [4, 32, 8], strides = [1, 1, 1]} : vector<12x32x8xf32> to vector<4x32x8xf32>
    %31 = vector.shape_cast %30 : vector<4x32x8xf32> to vector<16x8x8xf32>
    "tpu.trace_start"() <{level = 10 : i32, message = "bqd,bkd->bqk"}> : () -> ()
    %cst_14 = arith.constant dense<0.000000e+00> : vector<16x8x8xf32>
    %32 = tpu.matmul %27, %29, %cst_14 {dimension_numbers = #tpu.dot_dimension_numbers<[2], [2], [1], [1], [0, 0, 0, 1, 1, 1], [0], [0]>} : vector<16x8x8xf32>, vector<16x8x8xf32>, vector<16x8x8xf32> -> vector<16x8x8xf32>
    "tpu.trace_stop"() : () -> ()
    %33 = arith.addf %32, %5 : vector<16x8x8xf32>
    %cst_15 = arith.constant dense<0xFF800000> : vector<16x8xf32>
    %34 = vector.multi_reduction <maximumf>, %33, %cst_15 [2] : vector<16x8x8xf32> to vector<16x8xf32>
    %35 = vector.shape_cast %34 : vector<16x8xf32> to vector<16x8x1xf32>
    %36 = vector.broadcast %35 : vector<16x8x1xf32> to vector<16x8x8xf32>
    %37 = arith.subf %33, %36 : vector<16x8x8xf32>
    %38 = math.exp %37 : vector<16x8x8xf32>
    %cst_16 = arith.constant dense<0.000000e+00> : vector<16x8xf32>
    %39 = vector.multi_reduction <add>, %38, %cst_16 [2] : vector<16x8x8xf32> to vector<16x8xf32>
    %40 = vector.shape_cast %39 : vector<16x8xf32> to vector<16x8x1xf32>
    %41 = tpu.reciprocal %40 {approx = true} : vector<16x8x1xf32> -> vector<16x8x1xf32>
    %42 = vector.broadcast %41 : vector<16x8x1xf32> to vector<16x8x8xf32>
    %43 = arith.mulf %38, %42 : vector<16x8x8xf32>
    "tpu.trace_start"() <{level = 10 : i32, message = "bqk,bkd->bqd"}> : () -> ()
    %cst_17 = arith.constant dense<0.000000e+00> : vector<16x8x8xf32>
    %44 = tpu.matmul %43, %31, %cst_17 {dimension_numbers = #tpu.dot_dimension_numbers<[2], [1], [1], [2], [0, 0, 0, 1, 1, 2], [0], [0]>} : vector<16x8x8xf32>, vector<16x8x8xf32>, vector<16x8x8xf32> -> vector<16x8x8xf32>
    "tpu.trace_stop"() : () -> ()
    %45 = vector.shape_cast %44 : vector<16x8x8xf32> to vector<4x32x8xf32>
    %46 = tpu.transpose %45, [1, 0, 2] : vector<4x32x8xf32> -> vector<32x4x8xf32>
    %47 = vector.shape_cast %46 : vector<32x4x8xf32> to vector<32x32xf32>
    %48 = arith.truncf %47 : vector<32x32xf32> to vector<32x32xbf16>
    %c0_18 = arith.constant 0 : index
    %c0_19 = arith.constant 0 : index
    %c0_20 = arith.constant 0 : index
    %49 = vector.load %arg5[%c0_18, %c0_19, %c0_20] : memref<2x32x32xbf16, #tpu.memory_space<vmem>>, vector<1x32x32xbf16>
    %50 = vector.shape_cast %49 : vector<1x32x32xbf16> to vector<32x32xbf16>
    %cst_21 = arith.constant dense<0.000000e+00> : vector<32x32xf32>
    %51 = tpu.matmul %48, %50, %cst_21 {dimension_numbers = #tpu.dot_dimension_numbers<[1], [0], [0], [1], [0, 0, 1, 1], [], []>} : vector<32x32xbf16>, vector<32x32xbf16>, vector<32x32xf32> -> vector<32x32xf32>
    %52 = arith.addf %2, %51 : vector<32x32xf32>
    %c0_22 = arith.constant 0 : index
    %c0_23 = arith.constant 0 : index
    %c0_24 = arith.constant 0 : index
    %53 = vector.load %arg9[%c0_22, %c0_23, %c0_24] : memref<2x1x32xf32, #tpu.memory_space<vmem>>, vector<1x1x32xf32>
    %54 = vector.shape_cast %53 : vector<1x1x32xf32> to vector<1x32xf32>
    %55 = arith.mulf %52, %52 : vector<32x32xf32>
    %cst_25 = arith.constant dense<0.000000e+00> : vector<32xf32>
    %56 = vector.multi_reduction <add>, %55, %cst_25 [1] : vector<32x32xf32> to vector<32xf32>
    %57 = vector.shape_cast %56 : vector<32xf32> to vector<32x1xf32>
    %cst_26 = arith.constant 3.200000e+01 : f32
    %58 = vector.broadcast %cst_26 : f32 to vector<32x1xf32>
    %59 = arith.divf %57, %58 : vector<32x1xf32>
    %cst_27 = arith.constant 9.99999997E-7 : f32
    %60 = vector.broadcast %cst_27 : f32 to vector<32x1xf32>
    %61 = arith.addf %59, %60 : vector<32x1xf32>
    %62 = math.rsqrt %61 : vector<32x1xf32>
    %63 = vector.broadcast %62 : vector<32x1xf32> to vector<32x32xf32>
    %64 = arith.mulf %52, %63 : vector<32x32xf32>
    %65 = vector.broadcast %54 : vector<1x32xf32> to vector<32x32xf32>
    %66 = arith.mulf %64, %65 : vector<32x32xf32>
    %67 = arith.truncf %66 : vector<32x32xf32> to vector<32x32xbf16>
    %c0_28 = arith.constant 0 : index
    %c0_29 = arith.constant 0 : index
    %c0_30 = arith.constant 0 : index
    %68 = vector.load %arg6[%c0_28, %c0_29, %c0_30] : memref<2x32x128xbf16, #tpu.memory_space<vmem>>, vector<1x32x128xbf16>
    %69 = vector.shape_cast %68 : vector<1x32x128xbf16> to vector<32x128xbf16>
    %cst_31 = arith.constant dense<0.000000e+00> : vector<32x128xf32>
    %70 = tpu.matmul %67, %69, %cst_31 {dimension_numbers = #tpu.dot_dimension_numbers<[1], [0], [0], [1], [0, 0, 1, 1], [], []>} : vector<32x32xbf16>, vector<32x128xbf16>, vector<32x128xf32> -> vector<32x128xf32>
    %71 = arith.negf %70 : vector<32x128xf32>
    %72 = math.exp %71 : vector<32x128xf32>
    %cst_32 = arith.constant 1.000000e+00 : f32
    %73 = vector.broadcast %cst_32 : f32 to vector<32x128xf32>
    %74 = arith.addf %73, %72 : vector<32x128xf32>
    %75 = arith.divf %73, %74 : vector<32x128xf32>
    %76 = arith.mulf %70, %75 : vector<32x128xf32>
    %77 = arith.truncf %76 : vector<32x128xf32> to vector<32x128xbf16>
    %c0_33 = arith.constant 0 : index
    %c0_34 = arith.constant 0 : index
    %c0_35 = arith.constant 0 : index
    %78 = vector.load %arg7[%c0_33, %c0_34, %c0_35] : memref<2x128x32xbf16, #tpu.memory_space<vmem>>, vector<1x128x32xbf16>
    %79 = vector.shape_cast %78 : vector<1x128x32xbf16> to vector<128x32xbf16>
    %cst_36 = arith.constant dense<0.000000e+00> : vector<32x32xf32>
    %80 = tpu.matmul %77, %79, %cst_36 {dimension_numbers = #tpu.dot_dimension_numbers<[1], [0], [0], [1], [0, 0, 1, 1], [], []>} : vector<32x128xbf16>, vector<128x32xbf16>, vector<32x32xf32> -> vector<32x32xf32>
    %81 = arith.addf %52, %80 : vector<32x32xf32>
    %c1 = arith.constant 1 : index
    %c0_37 = arith.constant 0 : index
    %c0_38 = arith.constant 0 : index
    %82 = vector.load %arg8[%c1, %c0_37, %c0_38] : memref<2x1x32xf32, #tpu.memory_space<vmem>>, vector<1x1x32xf32>
    %83 = vector.shape_cast %82 : vector<1x1x32xf32> to vector<1x32xf32>
    %84 = arith.mulf %81, %81 : vector<32x32xf32>
    %cst_39 = arith.constant dense<0.000000e+00> : vector<32xf32>
    %85 = vector.multi_reduction <add>, %84, %cst_39 [1] : vector<32x32xf32> to vector<32xf32>
    %86 = vector.shape_cast %85 : vector<32xf32> to vector<32x1xf32>
    %cst_40 = arith.constant 3.200000e+01 : f32
    %87 = vector.broadcast %cst_40 : f32 to vector<32x1xf32>
    %88 = arith.divf %86, %87 : vector<32x1xf32>
    %cst_41 = arith.constant 9.99999997E-7 : f32
    %89 = vector.broadcast %cst_41 : f32 to vector<32x1xf32>
    %90 = arith.addf %88, %89 : vector<32x1xf32>
    %91 = math.rsqrt %90 : vector<32x1xf32>
    %92 = vector.broadcast %91 : vector<32x1xf32> to vector<32x32xf32>
    %93 = arith.mulf %81, %92 : vector<32x32xf32>
    %94 = vector.broadcast %83 : vector<1x32xf32> to vector<32x32xf32>
    %95 = arith.mulf %93, %94 : vector<32x32xf32>
    %96 = arith.truncf %95 : vector<32x32xf32> to vector<32x32xbf16>
    %c1_42 = arith.constant 1 : index
    %c0_43 = arith.constant 0 : index
    %c0_44 = arith.constant 0 : index
    %97 = vector.load %arg4[%c1_42, %c0_43, %c0_44] : memref<2x32x96xbf16, #tpu.memory_space<vmem>>, vector<1x32x96xbf16>
    %98 = vector.shape_cast %97 : vector<1x32x96xbf16> to vector<32x96xbf16>
    %cst_45 = arith.constant dense<0.000000e+00> : vector<32x96xf32>
    %99 = tpu.matmul %96, %98, %cst_45 {dimension_numbers = #tpu.dot_dimension_numbers<[1], [0], [0], [1], [0, 0, 1, 1], [], []>} : vector<32x32xbf16>, vector<32x96xbf16>, vector<32x96xf32> -> vector<32x96xf32>
    %100 = vector.shape_cast %99 : vector<32x96xf32> to vector<32x12x8xf32>
    %101 = tpu.transpose %100, [1, 0, 2] : vector<32x12x8xf32> -> vector<12x32x8xf32>
    %102 = vector.extract_strided_slice %101 {offsets = [0, 0, 0], sizes = [4, 32, 8], strides = [1, 1, 1]} : vector<12x32x8xf32> to vector<4x32x8xf32>
    %103 = vector.shape_cast %102 : vector<4x32x8xf32> to vector<16x8x8xf32>
    %104 = vector.extract_strided_slice %101 {offsets = [4, 0, 0], sizes = [4, 32, 8], strides = [1, 1, 1]} : vector<12x32x8xf32> to vector<4x32x8xf32>
    %105 = vector.shape_cast %104 : vector<4x32x8xf32> to vector<16x8x8xf32>
    %106 = vector.extract_strided_slice %101 {offsets = [8, 0, 0], sizes = [4, 32, 8], strides = [1, 1, 1]} : vector<12x32x8xf32> to vector<4x32x8xf32>
    %107 = vector.shape_cast %106 : vector<4x32x8xf32> to vector<16x8x8xf32>
    "tpu.trace_start"() <{level = 10 : i32, message = "bqd,bkd->bqk"}> : () -> ()
    %cst_46 = arith.constant dense<0.000000e+00> : vector<16x8x8xf32>
    %108 = tpu.matmul %103, %105, %cst_46 {dimension_numbers = #tpu.dot_dimension_numbers<[2], [2], [1], [1], [0, 0, 0, 1, 1, 1], [0], [0]>} : vector<16x8x8xf32>, vector<16x8x8xf32>, vector<16x8x8xf32> -> vector<16x8x8xf32>
    "tpu.trace_stop"() : () -> ()
    %109 = arith.addf %108, %5 : vector<16x8x8xf32>
    %cst_47 = arith.constant dense<0xFF800000> : vector<16x8xf32>
    %110 = vector.multi_reduction <maximumf>, %109, %cst_47 [2] : vector<16x8x8xf32> to vector<16x8xf32>
    %111 = vector.shape_cast %110 : vector<16x8xf32> to vector<16x8x1xf32>
    %112 = vector.broadcast %111 : vector<16x8x1xf32> to vector<16x8x8xf32>
    %113 = arith.subf %109, %112 : vector<16x8x8xf32>
    %114 = math.exp %113 : vector<16x8x8xf32>
    %cst_48 = arith.constant dense<0.000000e+00> : vector<16x8xf32>
    %115 = vector.multi_reduction <add>, %114, %cst_48 [2] : vector<16x8x8xf32> to vector<16x8xf32>
    %116 = vector.shape_cast %115 : vector<16x8xf32> to vector<16x8x1xf32>
    %117 = tpu.reciprocal %116 {approx = true} : vector<16x8x1xf32> -> vector<16x8x1xf32>
    %118 = vector.broadcast %117 : vector<16x8x1xf32> to vector<16x8x8xf32>
    %119 = arith.mulf %114, %118 : vector<16x8x8xf32>
    "tpu.trace_start"() <{level = 10 : i32, message = "bqk,bkd->bqd"}> : () -> ()
    %cst_49 = arith.constant dense<0.000000e+00> : vector<16x8x8xf32>
    %120 = tpu.matmul %119, %107, %cst_49 {dimension_numbers = #tpu.dot_dimension_numbers<[2], [1], [1], [2], [0, 0, 0, 1, 1, 2], [0], [0]>} : vector<16x8x8xf32>, vector<16x8x8xf32>, vector<16x8x8xf32> -> vector<16x8x8xf32>
    "tpu.trace_stop"() : () -> ()
    %121 = vector.shape_cast %120 : vector<16x8x8xf32> to vector<4x32x8xf32>
    %122 = tpu.transpose %121, [1, 0, 2] : vector<4x32x8xf32> -> vector<32x4x8xf32>
    %123 = vector.shape_cast %122 : vector<32x4x8xf32> to vector<32x32xf32>
    %124 = arith.truncf %123 : vector<32x32xf32> to vector<32x32xbf16>
    %c1_50 = arith.constant 1 : index
    %c0_51 = arith.constant 0 : index
    %c0_52 = arith.constant 0 : index
    %125 = vector.load %arg5[%c1_50, %c0_51, %c0_52] : memref<2x32x32xbf16, #tpu.memory_space<vmem>>, vector<1x32x32xbf16>
    %126 = vector.shape_cast %125 : vector<1x32x32xbf16> to vector<32x32xbf16>
    %cst_53 = arith.constant dense<0.000000e+00> : vector<32x32xf32>
    %127 = tpu.matmul %124, %126, %cst_53 {dimension_numbers = #tpu.dot_dimension_numbers<[1], [0], [0], [1], [0, 0, 1, 1], [], []>} : vector<32x32xbf16>, vector<32x32xbf16>, vector<32x32xf32> -> vector<32x32xf32>
    %128 = arith.addf %81, %127 : vector<32x32xf32>
    %c1_54 = arith.constant 1 : index
    %c0_55 = arith.constant 0 : index
    %c0_56 = arith.constant 0 : index
    %129 = vector.load %arg9[%c1_54, %c0_55, %c0_56] : memref<2x1x32xf32, #tpu.memory_space<vmem>>, vector<1x1x32xf32>
    %130 = vector.shape_cast %129 : vector<1x1x32xf32> to vector<1x32xf32>
    %131 = arith.mulf %128, %128 : vector<32x32xf32>
    %cst_57 = arith.constant dense<0.000000e+00> : vector<32xf32>
    %132 = vector.multi_reduction <add>, %131, %cst_57 [1] : vector<32x32xf32> to vector<32xf32>
    %133 = vector.shape_cast %132 : vector<32xf32> to vector<32x1xf32>
    %cst_58 = arith.constant 3.200000e+01 : f32
    %134 = vector.broadcast %cst_58 : f32 to vector<32x1xf32>
    %135 = arith.divf %133, %134 : vector<32x1xf32>
    %cst_59 = arith.constant 9.99999997E-7 : f32
    %136 = vector.broadcast %cst_59 : f32 to vector<32x1xf32>
    %137 = arith.addf %135, %136 : vector<32x1xf32>
    %138 = math.rsqrt %137 : vector<32x1xf32>
    %139 = vector.broadcast %138 : vector<32x1xf32> to vector<32x32xf32>
    %140 = arith.mulf %128, %139 : vector<32x32xf32>
    %141 = vector.broadcast %130 : vector<1x32xf32> to vector<32x32xf32>
    %142 = arith.mulf %140, %141 : vector<32x32xf32>
    %143 = arith.truncf %142 : vector<32x32xf32> to vector<32x32xbf16>
    %c1_60 = arith.constant 1 : index
    %c0_61 = arith.constant 0 : index
    %c0_62 = arith.constant 0 : index
    %144 = vector.load %arg6[%c1_60, %c0_61, %c0_62] : memref<2x32x128xbf16, #tpu.memory_space<vmem>>, vector<1x32x128xbf16>
    %145 = vector.shape_cast %144 : vector<1x32x128xbf16> to vector<32x128xbf16>
    %cst_63 = arith.constant dense<0.000000e+00> : vector<32x128xf32>
    %146 = tpu.matmul %143, %145, %cst_63 {dimension_numbers = #tpu.dot_dimension_numbers<[1], [0], [0], [1], [0, 0, 1, 1], [], []>} : vector<32x32xbf16>, vector<32x128xbf16>, vector<32x128xf32> -> vector<32x128xf32>
    %147 = arith.negf %146 : vector<32x128xf32>
    %148 = math.exp %147 : vector<32x128xf32>
    %cst_64 = arith.constant 1.000000e+00 : f32
    %149 = vector.broadcast %cst_64 : f32 to vector<32x128xf32>
    %150 = arith.addf %149, %148 : vector<32x128xf32>
    %151 = arith.divf %149, %150 : vector<32x128xf32>
    %152 = arith.mulf %146, %151 : vector<32x128xf32>
    %153 = arith.truncf %152 : vector<32x128xf32> to vector<32x128xbf16>
    %c1_65 = arith.constant 1 : index
    %c0_66 = arith.constant 0 : index
    %c0_67 = arith.constant 0 : index
    %154 = vector.load %arg7[%c1_65, %c0_66, %c0_67] : memref<2x128x32xbf16, #tpu.memory_space<vmem>>, vector<1x128x32xbf16>
    %155 = vector.shape_cast %154 : vector<1x128x32xbf16> to vector<128x32xbf16>
    %cst_68 = arith.constant dense<0.000000e+00> : vector<32x32xf32>
    %156 = tpu.matmul %153, %155, %cst_68 {dimension_numbers = #tpu.dot_dimension_numbers<[1], [0], [0], [1], [0, 0, 1, 1], [], []>} : vector<32x128xbf16>, vector<128x32xbf16>, vector<32x32xf32> -> vector<32x32xf32>
    %157 = arith.addf %128, %156 : vector<32x32xf32>
    %c0_69 = arith.constant 0 : index
    %c0_70 = arith.constant 0 : index
    %158 = vector.load %arg10[%c0_69, %c0_70] : memref<1x32xf32, #tpu.memory_space<vmem>>, vector<1x32xf32>
    %159 = arith.mulf %157, %157 : vector<32x32xf32>
    %cst_71 = arith.constant dense<0.000000e+00> : vector<32xf32>
    %160 = vector.multi_reduction <add>, %159, %cst_71 [1] : vector<32x32xf32> to vector<32xf32>
    %161 = vector.shape_cast %160 : vector<32xf32> to vector<32x1xf32>
    %cst_72 = arith.constant 3.200000e+01 : f32
    %162 = vector.broadcast %cst_72 : f32 to vector<32x1xf32>
    %163 = arith.divf %161, %162 : vector<32x1xf32>
    %cst_73 = arith.constant 9.99999997E-7 : f32
    %164 = vector.broadcast %cst_73 : f32 to vector<32x1xf32>
    %165 = arith.addf %163, %164 : vector<32x1xf32>
    %166 = math.rsqrt %165 : vector<32x1xf32>
    %167 = vector.broadcast %166 : vector<32x1xf32> to vector<32x32xf32>
    %168 = arith.mulf %157, %167 : vector<32x32xf32>
    %169 = vector.broadcast %158 : vector<1x32xf32> to vector<32x32xf32>
    %170 = arith.mulf %168, %169 : vector<32x32xf32>
    %c0_74 = arith.constant 0 : index
    %c0_75 = arith.constant 0 : index
    %171 = vector.load %arg11[%c0_74, %c0_75] : memref<32x32xf32, #tpu.memory_space<vmem>>, vector<32x32xf32>
    %cst_76 = arith.constant dense<0.000000e+00> : vector<32x32xf32>
    %172 = tpu.matmul %170, %171, %cst_76 {dimension_numbers = #tpu.dot_dimension_numbers<[1], [0], [0], [1], [0, 0, 1, 1], [], []>} : vector<32x32xf32>, vector<32x32xf32>, vector<32x32xf32> -> vector<32x32xf32>
    %173 = vector.extract_strided_slice %172 {offsets = [0, 0], sizes = [32, 16], strides = [1, 1]} : vector<32x32xf32> to vector<32x16xf32>
    %cst_77 = arith.constant dense<0xFF800000> : vector<32xf32>
    %174 = vector.multi_reduction <maximumf>, %173, %cst_77 [1] : vector<32x16xf32> to vector<32xf32>
    %175 = vector.shape_cast %174 : vector<32xf32> to vector<32x1xf32>
    %176 = tpu.iota {dimensions = array<i32: 1>} : vector<32x16xi32>
    %177 = arith.sitofp %176 : vector<32x16xi32> to vector<32x16xf32>
    %178 = vector.broadcast %175 : vector<32x1xf32> to vector<32x16xf32>
    %179 = arith.cmpf oeq, %173, %178 : vector<32x16xf32>
    %cst_78 = arith.constant 1.600000e+01 : f32
    %180 = vector.broadcast %cst_78 : f32 to vector<32x16xf32>
    %181 = arith.select %179, %177, %180 : vector<32x16xi1>, vector<32x16xf32>
    %cst_79 = arith.constant dense<0x7F800000> : vector<32xf32>
    %182 = vector.multi_reduction <minimumf>, %181, %cst_79 [1] : vector<32x16xf32> to vector<32xf32>
    %183 = vector.shape_cast %182 : vector<32xf32> to vector<32x1xf32>
    %184 = vector.extract_strided_slice %172 {offsets = [0, 16], sizes = [32, 16], strides = [1, 1]} : vector<32x32xf32> to vector<32x16xf32>
    %cst_80 = arith.constant dense<0xFF800000> : vector<32xf32>
    %185 = vector.multi_reduction <maximumf>, %184, %cst_80 [1] : vector<32x16xf32> to vector<32xf32>
    %186 = vector.shape_cast %185 : vector<32xf32> to vector<32x1xf32>
    %187 = tpu.iota {dimensions = array<i32: 1>} : vector<32x16xi32>
    %188 = arith.sitofp %187 : vector<32x16xi32> to vector<32x16xf32>
    %189 = vector.broadcast %186 : vector<32x1xf32> to vector<32x16xf32>
    %190 = arith.cmpf oeq, %184, %189 : vector<32x16xf32>
    %cst_81 = arith.constant 1.600000e+01 : f32
    %191 = vector.broadcast %cst_81 : f32 to vector<32x16xf32>
    %192 = arith.select %190, %188, %191 : vector<32x16xi1>, vector<32x16xf32>
    %cst_82 = arith.constant dense<0x7F800000> : vector<32xf32>
    %193 = vector.multi_reduction <minimumf>, %192, %cst_82 [1] : vector<32x16xf32> to vector<32xf32>
    %194 = vector.shape_cast %193 : vector<32xf32> to vector<32x1xf32>
    %195 = tpu.concatenate %183, %194 in 1 : vector<32x1xf32>, vector<32x1xf32> -> vector<32x2xf32>
    %196 = arith.fptosi %195 : vector<32x2xf32> to vector<32x2xi32>
    %c0_83 = arith.constant 0 : index
    %c0_84 = arith.constant 0 : index
    %197 = vector.load %arg12[%c0_83, %c0_84] : memref<32x2xi32, #tpu.memory_space<vmem>>, vector<32x2xi32>
    tpu.vector_store %arg12[%c0_83, %c0_84], %196 {strides = array<i32>} : memref<32x2xi32, #tpu.memory_space<vmem>>, vector<32x2xi32>,
    %c0_85 = arith.constant 0 : index
    %c0_86 = arith.constant 0 : index
    %198 = vector.load %arg13[%c0_85, %c0_86] : memref<32x32xf32, #tpu.memory_space<vmem>>, vector<32x32xf32>
    tpu.vector_store %arg13[%c0_85, %c0_86], %170 {strides = array<i32>} : memref<32x32xf32, #tpu.memory_space<vmem>>, vector<32x32xf32>,
    return
  }
  func.func @transform_0(%arg0: i32) -> (i32, i32) {
    %c0_i32 = arith.constant 0 : i32
    %c0_i32_0 = arith.constant 0 : i32
    return %arg0, %c0_i32 : i32, i32
  }
  func.func @transform_1(%arg0: i32) -> (i32, i32) {
    %c0_i32 = arith.constant 0 : i32
    %c0_i32_0 = arith.constant 0 : i32
    %c0_i32_1 = arith.constant 0 : i32
    return %c0_i32, %c0_i32_0 : i32, i32
  }
  func.func @transform_2(%arg0: i32) -> (i32, i32) {
    %c0_i32 = arith.constant 0 : i32
    %c0_i32_0 = arith.constant 0 : i32
    %c0_i32_1 = arith.constant 0 : i32
    return %c0_i32, %c0_i32_0 : i32, i32
  }
  func.func @transform_3(%arg0: i32) -> (i32, i32, i32) {
    %c0_i32 = arith.constant 0 : i32
    %c0_i32_0 = arith.constant 0 : i32
    %c0_i32_1 = arith.constant 0 : i32
    %c0_i32_2 = arith.constant 0 : i32
    return %c0_i32, %c0_i32_0, %c0_i32_1 : i32, i32, i32
  }
  func.func @transform_4(%arg0: i32) -> (i32, i32, i32) {
    %c0_i32 = arith.constant 0 : i32
    %c0_i32_0 = arith.constant 0 : i32
    %c0_i32_1 = arith.constant 0 : i32
    %c0_i32_2 = arith.constant 0 : i32
    return %c0_i32, %c0_i32_0, %c0_i32_1 : i32, i32, i32
  }
  func.func @transform_5(%arg0: i32) -> (i32, i32, i32) {
    %c0_i32 = arith.constant 0 : i32
    %c0_i32_0 = arith.constant 0 : i32
    %c0_i32_1 = arith.constant 0 : i32
    %c0_i32_2 = arith.constant 0 : i32
    return %c0_i32, %c0_i32_0, %c0_i32_1 : i32, i32, i32
  }
  func.func @transform_6(%arg0: i32) -> (i32, i32, i32) {
    %c0_i32 = arith.constant 0 : i32
    %c0_i32_0 = arith.constant 0 : i32
    %c0_i32_1 = arith.constant 0 : i32
    %c0_i32_2 = arith.constant 0 : i32
    return %c0_i32, %c0_i32_0, %c0_i32_1 : i32, i32, i32
  }
  func.func @transform_7(%arg0: i32) -> (i32, i32, i32) {
    %c0_i32 = arith.constant 0 : i32
    %c0_i32_0 = arith.constant 0 : i32
    %c0_i32_1 = arith.constant 0 : i32
    %c0_i32_2 = arith.constant 0 : i32
    return %c0_i32, %c0_i32_0, %c0_i32_1 : i32, i32, i32
  }
  func.func @transform_8(%arg0: i32) -> (i32, i32, i32) {
    %c0_i32 = arith.constant 0 : i32
    %c0_i32_0 = arith.constant 0 : i32
    %c0_i32_1 = arith.constant 0 : i32
    %c0_i32_2 = arith.constant 0 : i32
    return %c0_i32, %c0_i32_0, %c0_i32_1 : i32, i32, i32
  }
  func.func @transform_9(%arg0: i32) -> (i32, i32) {
    %c0_i32 = arith.constant 0 : i32
    %c0_i32_0 = arith.constant 0 : i32
    %c0_i32_1 = arith.constant 0 : i32
    return %c0_i32, %c0_i32_0 : i32, i32
  }
  func.func @transform_10(%arg0: i32) -> (i32, i32) {
    %c0_i32 = arith.constant 0 : i32
    %c0_i32_0 = arith.constant 0 : i32
    %c0_i32_1 = arith.constant 0 : i32
    return %c0_i32, %c0_i32_0 : i32, i32
  }
  func.func @transform_11(%arg0: i32) -> (i32, i32) {
    %c0_i32 = arith.constant 0 : i32
    %c0_i32_0 = arith.constant 0 : i32
    return %arg0, %c0_i32 : i32, i32
  }
  func.func @transform_12(%arg0: i32) -> (i32, i32) {
    %c0_i32 = arith.constant 0 : i32
    %c0_i32_0 = arith.constant 0 : i32
    return %arg0, %c0_i32 : i32, i32
  }
}

</mosaic_0001>

<llo_original>
// kernel: tpu_custom_call.1
$region0: #{tpu_custom_call.1}
  #allocation0 [shape = 'u32[]', space=smem, size = 0x4, offset = 0x4, fixed_abs, tag = 'smem constant byte address 0x4 - core index']
  #allocation1 [shape = 'u32[144,128]{1,0:T(1,128)}', space=vmem, size = 0x12000, scoped, tag = 'internal scratch']
  %s0 = inlined_call_operand.vmem [shape: f32[32,32], index: 0, kind: input, shape index: {}]
  %s1 = inlined_call_operand.vmem [shape: f32[32,32], index: 1, kind: input, shape index: {}]
  %s2 = inlined_call_operand.hbm [shape: f32[8,8], index: 2, kind: input, shape index: {}]
  %s3 = inlined_call_operand.vmem [shape: bf16[2,32,96], index: 3, kind: input, shape index: {}]
  %s4 = inlined_call_operand.vmem [shape: bf16[2,32,32], index: 4, kind: input, shape index: {}]
  %s5 = inlined_call_operand.vmem [shape: bf16[2,32,128], index: 5, kind: input, shape index: {}]
  %s6 = inlined_call_operand.vmem [shape: bf16[2,128,32], index: 6, kind: input, shape index: {}]
  %s7 = inlined_call_operand.vmem [shape: f32[2,1,32], index: 7, kind: input, shape index: {}]
  %s8 = inlined_call_operand.vmem [shape: f32[2,1,32], index: 8, kind: input, shape index: {}]
  %s9 = inlined_call_operand.vmem [shape: f32[1,32], index: 9, kind: input, shape index: {}]
  %s10 = inlined_call_operand.hbm [shape: f32[32,32], index: 10, kind: input, shape index: {}]
  %s11 = inlined_call_operand.vmem [shape: s32[32,2], index: 11, kind: output, shape index: {0}]
  %s12 = inlined_call_operand.hbm [shape: f32[32,32], index: 12, kind: output, shape index: {1}]
  %13 = xla_tuple %s11, %s12
  %s14 = sld [smem:[#allocation0]]
  $region70: #{tpu_custom_call.1} parent=0
    _
  %s16 = ssub.s32 1, %s14
  %s17 = scalar_select 0, %s16, %s14
  $region1: #{tpu_custom_call.1} parent=0
    #allocation2 [shape = 'u8[4096]{0}', space=vmem, size = 0x1000, scoped, tag = 'input window, operand 2, single buffered']
    #allocation3 [shape = 's32[1]{0}', space=sflag, size = 0x4, scoped, tag = 'scoped memory for tpu_custom_call.1']
    #allocation4 [shape = 's32[1]{0}', space=sflag, size = 0x4, scoped, tag = 'scoped memory for tpu_custom_call.1']
    #allocation5 [shape = 'u8[16384]{0}', space=vmem, size = 0x4000, scoped, tag = 'input window, operand 10, single buffered']
    #allocation6 [shape = 's32[1]{0}', space=sflag, size = 0x4, scoped, tag = 'scoped memory for tpu_custom_call.1']
    #allocation7 [shape = 'u8[16384]{0}', space=vmem, size = 0x4000, scoped, tag = 'output window, operand 1, single buffered']
    %18 = vsyncpa [#allocation3], 0
    %19 = vsyncpa [#allocation6], 0
    %20 = vsyncpa [#allocation4], 0
    // Predicated region
    $region2: #{tpu_custom_call.1} parent=1 // pred_check
      _
    $region3: #{tpu_custom_call.1} parent=1 // pred_check_branch
      %22 = sbr.rel (0) target = $region5
    $region4: #{tpu_custom_call.1} parent=1 // pred_region
      _
    $region5: #{tpu_custom_call.1} parent=1 // pred_fallthru
      _
    // Predicated region
    $region6: #{tpu_custom_call.1} parent=1 // pred_check
      _
    $region7: #{tpu_custom_call.1} parent=1 // pred_check_branch
      %24 = sbr.rel (0) target = $region9
    $region8: #{tpu_custom_call.1} parent=1 // pred_region
      _
    $region9: #{tpu_custom_call.1} parent=1 // pred_fallthru
      _
    // Predicated region
    $region10: #{tpu_custom_call.1} parent=1 // pred_check
      _
    $region11: #{tpu_custom_call.1} parent=1 // pred_check_branch
      %26 = sbr.rel (0) target = $region13
    $region12: #{tpu_custom_call.1} parent=1 // pred_region
      %s28 = ssub.s32 128, 128
      %29 = vsyncadd [#allocation3], %s28
      %s31 = sshll.u32 [#allocation2], 4
      %s32 = int_to_ptr.vmem [resolvable:$true] %s31
      %34 = dma.hbm_to_vmem [thread:$0]  %s2, 128, %s32, [#allocation3]
    $region13: #{tpu_custom_call.1} parent=1 // pred_fallthru
      _
    // Predicated region
    $region14: #{tpu_custom_call.1} parent=1 // pred_check
      _
    $region15: #{tpu_custom_call.1} parent=1 // pred_check_branch
      %36 = sbr.rel (0) target = $region17
    $region16: #{tpu_custom_call.1} parent=1 // pred_region
      _
    $region17: #{tpu_custom_call.1} parent=1 // pred_fallthru
      _
    // Predicated region
    $region18: #{tpu_custom_call.1} parent=1 // pred_check
      _
    $region19: #{tpu_custom_call.1} parent=1 // pred_check_branch
      %38 = sbr.rel (0) target = $region21
    $region20: #{tpu_custom_call.1} parent=1 // pred_region
      _
    $region21: #{tpu_custom_call.1} parent=1 // pred_fallthru
      _
    // Predicated region
    $region22: #{tpu_custom_call.1} parent=1 // pred_check
      _
    $region23: #{tpu_custom_call.1} parent=1 // pred_check_branch
      %40 = sbr.rel (0) target = $region25
    $region24: #{tpu_custom_call.1} parent=1 // pred_region
      _
    $region25: #{tpu_custom_call.1} parent=1 // pred_fallthru
      _
    // Predicated region
    $region26: #{tpu_custom_call.1} parent=1 // pred_check
      _
    $region27: #{tpu_custom_call.1} parent=1 // pred_check_branch
      %42 = sbr.rel (0) target = $region29
    $region28: #{tpu_custom_call.1} parent=1 // pred_region
      _
    $region29: #{tpu_custom_call.1} parent=1 // pred_fallthru
      _
    // Predicated region
    $region30: #{tpu_custom_call.1} parent=1 // pred_check
      _
    $region31: #{tpu_custom_call.1} parent=1 // pred_check_branch
      %44 = sbr.rel (0) target = $region33
    $region32: #{tpu_custom_call.1} parent=1 // pred_region
      _
    $region33: #{tpu_custom_call.1} parent=1 // pred_fallthru
      _
    // Predicated region
    $region34: #{tpu_custom_call.1} parent=1 // pred_check
      _
    $region35: #{tpu_custom_call.1} parent=1 // pred_check_branch
      %46 = sbr.rel (0) target = $region37
    $region36: #{tpu_custom_call.1} parent=1 // pred_region
      _
    $region37: #{tpu_custom_call.1} parent=1 // pred_fallthru
      _
    // Predicated region
    $region38: #{tpu_custom_call.1} parent=1 // pred_check
      _
    $region39: #{tpu_custom_call.1} parent=1 // pred_check_branch
      %48 = sbr.rel (0) target = $region41
    $region40: #{tpu_custom_call.1} parent=1 // pred_region
      _
    $region41: #{tpu_custom_call.1} parent=1 // pred_fallthru
      _
    // Predicated region
    $region42: #{tpu_custom_call.1} parent=1 // pred_check
      _
    $region43: #{tpu_custom_call.1} parent=1 // pred_check_branch
      %50 = sbr.rel (0) target = $region45
    $region44: #{tpu_custom_call.1} parent=1 // pred_region
      %s52 = ssub.s32 512, 512
      %53 = vsyncadd [#allocation6], %s52
      %s54 = sshll.u32 [#allocation5], 4
      %s55 = int_to_ptr.vmem [resolvable:$true] %s54
      %60 = dma.hbm_to_vmem [thread:$0]  %s10, 512, %s55, [#allocation6], 128, 128, 8
    $region45: #{tpu_custom_call.1} parent=1 // pred_fallthru
      _
    // Predicated region
    $region46: #{tpu_custom_call.1} parent=1 // pred_check
      _
    $region47: #{tpu_custom_call.1} parent=1 // pred_check_branch
      %62 = sbr.rel (0) target = $region49
    $region48: #{tpu_custom_call.1} parent=1 // pred_region
      %63 = dma.done [#allocation3], 128
    $region49: #{tpu_custom_call.1} parent=1 // pred_fallthru
      _
    // Predicated region
    $region50: #{tpu_custom_call.1} parent=1 // pred_check
      _
    $region51: #{tpu_custom_call.1} parent=1 // pred_check_branch
      %65 = sbr.rel (0) target = $region53
    $region52: #{tpu_custom_call.1} parent=1 // pred_region
      %66 = dma.done [#allocation6], 512
    $region53: #{tpu_custom_call.1} parent=1 // pred_fallthru
      _
    %v68 = vld [vmem:[%s0] sm:$0xff]
    %v69 = vld [vmem:[%s0 + $0x8] sm:$0xff]
    %v70 = vld [vmem:[%s0 + $0x10] sm:$0xff]
    %v71 = vld [vmem:[%s0 + $0x18] sm:$0xff]
    %v72 = vld [vmem:[%s1] sm:$0xff]
    %v73 = vld [vmem:[%s1 + $0x8] sm:$0xff]
    %v74 = vld [vmem:[%s1 + $0x10] sm:$0xff]
    %v75 = vld [vmem:[%s1 + $0x18] sm:$0xff]
    %v76 = vadd.f32 %v68, %v72
    %v77 = vadd.f32 %v69, %v73
    %v78 = vadd.f32 %v70, %v74
    %v79 = vadd.f32 %v71, %v75
    %v80 = vld [vmem:[#allocation2] sm:$0xff]
    %v81 = vld [vmem:[%s7] sm:$0x1]
    %v82 = vmul.f32 %v76, %v76
    %v83 = vmul.f32 %v77, %v77
    %v84 = vmul.f32 %v78, %v78
    %v85 = vmul.f32 %v79, %v79
    %vm86 = vcmask 261120
    %v87 = vsel %vm86, %v82, 0.0
    %88 = vadd.xlane.f32.xlu0 %v87
    %v89 = vpop.xlane.xlu0 %88
    %v90 = vsel %vm86, %v83, 0.0
    %91 = vadd.xlane.f32.xlu0 %v90
    %v92 = vpop.xlane.xlu0 %91
    %v93 = vsel %vm86, %v84, 0.0
    %94 = vadd.xlane.f32.xlu0 %v93
    %v95 = vpop.xlane.xlu0 %94
    %v96 = vsel %vm86, %v85, 0.0
    %97 = vadd.xlane.f32.xlu0 %v96
    %v98 = vpop.xlane.xlu0 %97
    %v99 = vrcp.pop 32.0
    %v100 = vmul.f32 %v89, %v99
    %v101 = vmul.f32 %v92, %v99
    %v102 = vmul.f32 %v95, %v99
    %v103 = vmul.f32 %v98, %v99
    %v104 = vadd.f32 %v100, 1e-06
    %v105 = vadd.f32 %v101, 1e-06
    %v106 = vadd.f32 %v102, 1e-06
    %v107 = vadd.f32 %v103, 1e-06
    %v108 = vrsqrt.pop %v104
    %v109 = vrsqrt.pop %v105
    %v110 = vrsqrt.pop %v106
    %v111 = vrsqrt.pop %v107
    %v112 = vmul.f32 %v76, %v108
    %v113 = vmul.f32 %v77, %v109
    %v114 = vmul.f32 %v78, %v110
    %v115 = vmul.f32 %v79, %v111
    %v117 = vlaneseq
    %v118 = vshrl.u32 %v117, 7
    %v119 = vsub.s32 0, %v118
    %v120 = vrot.slane %v81, %v119
    %v122 = vmul.f32 %v112, %v120
    %v123 = vmul.f32 %v113, %v120
    %v124 = vmul.f32 %v114, %v120
    %v125 = vmul.f32 %v115, %v120
    %v126 = vpack.c.bf16 %v123, %v122
    %v127 = vpack.c.bf16 %v125, %v124
    %v128 = vld [vmem:[%s3] sm:$0xf]
    %v129 = vld [vmem:[%s3 + $0x4] sm:$0xf]
    %v130 = vld [vmem:[%s3 + $0x8] sm:$0xf]
    %v131 = vld [vmem:[%s3 + $0xc] sm:$0xf]
    %v136 = vunpack.c.l.b16 %v128
    %v137 = vunpack.c.l.b16 %v129
    %v138 = vunpack.c.l.b16 %v130
    %v139 = vunpack.c.l.b16 %v131
    %v140 = vpack.c.b16 %v137, %v136
    %v141 = vpack.c.b16 %v139, %v138
    %v145 = vsel %vm86, %v126, 0
    %v148 = vsel %vm86, %v127, 0
    %150 = vmatprep.subr.bf16.mxu0 0
    %151 = vmatpush1.bf16.msra.mxu0 0
    %152 = vmatprep.subr.bf16.mxu0 0
    %153 = vmatpush1.bf16.msra.mxu0 0
    %154 = vmatprep.subr.bf16.mxu0 0
    %155 = vmatpush1.bf16.msra.mxu0 0
    %156 = vmatprep.subr.bf16.mxu0 0
    %157 = vmatpush1.bf16.msra.mxu0 0
    %158 = vmatprep.subr.bf16.mxu0 0
    %159 = vmatpush1.bf16.msra.mxu0 0
    %160 = vmatprep.subr.bf16.mxu0 0
    %161 = vmatpush1.bf16.msra.mxu0 0
    %162 = vmatprep.subr.bf16.mxu0 0
    %163 = vmatpush1.bf16.msra.mxu0 %v141
    %164 = vmatprep.subr.bf16.mxu0 0
    %165 = vmatpush1.bf16.msra.mxu0 %v140
    %166 = vmatprep.subr.bf16.mxu0 0
    %167 = vmatpush2.bf16.msra.mxu0 0
    %168 = vmatprep.subr.bf16.mxu0 0
    %169 = vmatpush2.bf16.msra.mxu0 0
    %170 = vmatprep.subr.bf16.mxu0 0
    %171 = vmatpush2.bf16.msra.mxu0 0
    %172 = vmatprep.subr.bf16.mxu0 0
    %173 = vmatpush2.bf16.msra.mxu0 0
    %174 = vmatprep.subr.bf16.mxu0 0
    %175 = vmatpush2.bf16.msra.mxu0 0
    %176 = vmatprep.subr.bf16.mxu0 0
    %177 = vmatpush2.bf16.msra.mxu0 0
    %178 = vmatprep.subr.bf16.mxu0 0
    %179 = vmatpush2.bf16.msra.mxu0 0
    %180 = vmatprep.subr.bf16.mxu0 0
    %181 = vmatpush2.bf16.msra.mxu0 0
    %182 = vmatprep.mubr.bf16.mxu0 0
    %183 = vmatmul.mubr.bf16.gmra.mxu0 %v145
    %v184 = vpop.f32.mrf.mxu0
    %v185 = vadd.f32 0.0, %v184
    %v186 = vpop.f32.mrf.mxu0
    %v187 = vpop.f32.mrf.mxu0
    %v188 = vadd.f32 0.0, %v187
    %v189 = vpop.f32.mrf.mxu0
    %190 = vmatprep.mubr.bf16.mxu0 0
    %191 = vmatmul.mubr.bf16.gmra.mxu0 %v148
    %v192 = vpop.f32.mrf.mxu0
    %v193 = vadd.f32 0.0, %v192
    %v194 = vpop.f32.mrf.mxu0
    %v195 = vpop.f32.mrf.mxu0
    %v196 = vadd.f32 0.0, %v195
    %v197 = vpop.f32.mrf.mxu0
    %198 = vdwg.mxu0
    %203 = vrot.lane.b32.xlu0 %v185, 120
    %v204 = vpop.permute.xlu0 %203
    %205 = vrot.lane.b32.xlu0 %v188, 120
    %v206 = vpop.permute.xlu0 %205
    %207 = vrot.lane.b32.xlu0 %v193, 120
    %v208 = vpop.permute.xlu0 %207
    %209 = vrot.lane.b32.xlu0 %v196, 120
    %v210 = vpop.permute.xlu0 %209
    %215 = vrot.lane.b32.xlu0 %v185, 112
    %v216 = vpop.permute.xlu0 %215
    %217 = vrot.lane.b32.xlu0 %v188, 112
    %v218 = vpop.permute.xlu0 %217
    %219 = vrot.lane.b32.xlu0 %v193, 112
    %v220 = vpop.permute.xlu0 %219
    %221 = vrot.lane.b32.xlu0 %v196, 112
    %v222 = vpop.permute.xlu0 %221
    %227 = vrot.lane.b32.xlu0 %v185, 104
    %v228 = vpop.permute.xlu0 %227
    %229 = vrot.lane.b32.xlu0 %v188, 104
    %v230 = vpop.permute.xlu0 %229
    %231 = vrot.lane.b32.xlu0 %v193, 104
    %v232 = vpop.permute.xlu0 %231
    %233 = vrot.lane.b32.xlu0 %v196, 104
    %v234 = vpop.permute.xlu0 %233
    %239 = vrot.lane.b32.xlu0 %v185, 96
    %v240 = vpop.permute.xlu0 %239
    %241 = vrot.lane.b32.xlu0 %v188, 96
    %v242 = vpop.permute.xlu0 %241
    %243 = vrot.lane.b32.xlu0 %v193, 96
    %v244 = vpop.permute.xlu0 %243
    %245 = vrot.lane.b32.xlu0 %v196, 96
    %v246 = vpop.permute.xlu0 %245
    %251 = vrot.lane.b32.xlu0 %v185, 88
    %v252 = vpop.permute.xlu0 %251
    %253 = vrot.lane.b32.xlu0 %v188, 88
    %v254 = vpop.permute.xlu0 %253
    %255 = vrot.lane.b32.xlu0 %v193, 88
    %v256 = vpop.permute.xlu0 %255
    %257 = vrot.lane.b32.xlu0 %v196, 88
    %v258 = vpop.permute.xlu0 %257
    %263 = vrot.lane.b32.xlu0 %v185, 80
    %v264 = vpop.permute.xlu0 %263
    %265 = vrot.lane.b32.xlu0 %v188, 80
    %v266 = vpop.permute.xlu0 %265
    %267 = vrot.lane.b32.xlu0 %v193, 80
    %v268 = vpop.permute.xlu0 %267
    %269 = vrot.lane.b32.xlu0 %v196, 80
    %v270 = vpop.permute.xlu0 %269
    %275 = vrot.lane.b32.xlu0 %v185, 72
    %v276 = vpop.permute.xlu0 %275
    %277 = vrot.lane.b32.xlu0 %v188, 72
    %v278 = vpop.permute.xlu0 %277
    %279 = vrot.lane.b32.xlu0 %v193, 72
    %v280 = vpop.permute.xlu0 %279
    %281 = vrot.lane.b32.xlu0 %v196, 72
    %v282 = vpop.permute.xlu0 %281
    %287 = vrot.lane.b32.xlu0 %v185, 64
    %v288 = vpop.permute.xlu0 %287
    %289 = vrot.lane.b32.xlu0 %v188, 64
    %v290 = vpop.permute.xlu0 %289
    %291 = vrot.lane.b32.xlu0 %v193, 64
    %v292 = vpop.permute.xlu0 %291
    %293 = vrot.lane.b32.xlu0 %v196, 64
    %v294 = vpop.permute.xlu0 %293
    %299 = vrot.lane.b32.xlu0 %v185, 56
    %v300 = vpop.permute.xlu0 %299
    %301 = vrot.lane.b32.xlu0 %v188, 56
    %v302 = vpop.permute.xlu0 %301
    %303 = vrot.lane.b32.xlu0 %v193, 56
    %v304 = vpop.permute.xlu0 %303
    %305 = vrot.lane.b32.xlu0 %v196, 56
    %v306 = vpop.permute.xlu0 %305
    %311 = vrot.lane.b32.xlu0 %v185, 48
    %v312 = vpop.permute.xlu0 %311
    %313 = vrot.lane.b32.xlu0 %v188, 48
    %v314 = vpop.permute.xlu0 %313
    %315 = vrot.lane.b32.xlu0 %v193, 48
    %v316 = vpop.permute.xlu0 %315
    %317 = vrot.lane.b32.xlu0 %v196, 48
    %v318 = vpop.permute.xlu0 %317
    %323 = vrot.lane.b32.xlu0 %v185, 40
    %v324 = vpop.permute.xlu0 %323
    %325 = vrot.lane.b32.xlu0 %v188, 40
    %v326 = vpop.permute.xlu0 %325
    %327 = vrot.lane.b32.xlu0 %v193, 40
    %v328 = vpop.permute.xlu0 %327
    %329 = vrot.lane.b32.xlu0 %v196, 40
    %v330 = vpop.permute.xlu0 %329
    %v335 = vcombine.low %v185, %v216
    %v336 = vcombine.high %v185, %v216
    %v338 = vunpack.c.l.s4 1983009808
    %v339 = vunpack.c.0.s8 %v338
    %v340 = vlaneseq
    %v341 = vshrl.u32 %v340, 7
    %v342 = vsub.s32 %v339, %v341
    %v343 = vrot.slane %v335, %v342
    %v345 = vunpack.c.l.s4 1983009808
    %v346 = vunpack.c.0.s8 %v345
    %v347 = vlaneseq
    %v348 = vshrl.u32 %v347, 7
    %v349 = vsub.s32 %v346, %v348
    %v350 = vrot.slane %v336, %v349
    %v351 = vcombine.low %v204, %v228
    %v352 = vcombine.high %v204, %v228
    %v354 = vunpack.c.l.s4 1983009808
    %v355 = vunpack.c.0.s8 %v354
    %v356 = vlaneseq
    %v357 = vshrl.u32 %v356, 7
    %v358 = vsub.s32 %v355, %v357
    %v359 = vrot.slane %v351, %v358
    %v361 = vunpack.c.l.s4 1983009808
    %v362 = vunpack.c.0.s8 %v361
    %v363 = vlaneseq
    %v364 = vshrl.u32 %v363, 7
    %v365 = vsub.s32 %v362, %v364
    %v366 = vrot.slane %v352, %v365
    %v367 = vcombine.low %v240, %v264
    %v368 = vcombine.high %v240, %v264
    %v370 = vunpack.c.l.s4 1983009808
    %v371 = vunpack.c.0.s8 %v370
    %v372 = vlaneseq
    %v373 = vshrl.u32 %v372, 7
    %v374 = vsub.s32 %v371, %v373
    %v375 = vrot.slane %v367, %v374
    %v377 = vunpack.c.l.s4 1983009808
    %v378 = vunpack.c.0.s8 %v377
    %v379 = vlaneseq
    %v380 = vshrl.u32 %v379, 7
    %v381 = vsub.s32 %v378, %v380
    %v382 = vrot.slane %v368, %v381
    %v383 = vcombine.low %v252, %v276
    %v384 = vcombine.high %v252, %v276
    %v386 = vunpack.c.l.s4 1983009808
    %v387 = vunpack.c.0.s8 %v386
    %v388 = vlaneseq
    %v389 = vshrl.u32 %v388, 7
    %v390 = vsub.s32 %v387, %v389
    %v391 = vrot.slane %v383, %v390
    %v393 = vunpack.c.l.s4 1983009808
    %v394 = vunpack.c.0.s8 %v393
    %v395 = vlaneseq
    %v396 = vshrl.u32 %v395, 7
    %v397 = vsub.s32 %v394, %v396
    %v398 = vrot.slane %v384, %v397
    %v399 = vcombine.low %v343, %v359
    %v400 = vcombine.high %v343, %v359
    %v402 = vunpack.c.l.s4 1934713408
    %v403 = vunpack.c.0.s8 %v402
    %v404 = vlaneseq
    %v405 = vshrl.u32 %v404, 7
    %v406 = vsub.s32 %v403, %v405
    %v407 = vrot.slane %v399, %v406
    %v409 = vunpack.c.l.s4 1934713408
    %v410 = vunpack.c.0.s8 %v409
    %v411 = vlaneseq
    %v412 = vshrl.u32 %v411, 7
    %v413 = vsub.s32 %v410, %v412
    %v414 = vrot.slane %v400, %v413
    %v415 = vcombine.low %v350, %v366
    %v416 = vcombine.high %v350, %v366
    %v418 = vunpack.c.l.s4 1934713408
    %v419 = vunpack.c.0.s8 %v418
    %v420 = vlaneseq
    %v421 = vshrl.u32 %v420, 7
    %v422 = vsub.s32 %v419, %v421
    %v423 = vrot.slane %v415, %v422
    %v425 = vunpack.c.l.s4 1934713408
    %v426 = vunpack.c.0.s8 %v425
    %v427 = vlaneseq
    %v428 = vshrl.u32 %v427, 7
    %v429 = vsub.s32 %v426, %v428
    %v430 = vrot.slane %v416, %v429
    %v431 = vcombine.low %v375, %v391
    %v432 = vcombine.high %v375, %v391
    %v434 = vunpack.c.l.s4 1934713408
    %v435 = vunpack.c.0.s8 %v434
    %v436 = vlaneseq
    %v437 = vshrl.u32 %v436, 7
    %v438 = vsub.s32 %v435, %v437
    %v439 = vrot.slane %v431, %v438
    %v441 = vunpack.c.l.s4 1934713408
    %v442 = vunpack.c.0.s8 %v441
    %v443 = vlaneseq
    %v444 = vshrl.u32 %v443, 7
    %v445 = vsub.s32 %v442, %v444
    %v446 = vrot.slane %v432, %v445
    %v447 = vcombine.low %v382, %v398
    %v448 = vcombine.high %v382, %v398
    %v450 = vunpack.c.l.s4 1934713408
    %v451 = vunpack.c.0.s8 %v450
    %v452 = vlaneseq
    %v453 = vshrl.u32 %v452, 7
    %v454 = vsub.s32 %v451, %v453
    %v455 = vrot.slane %v447, %v454
    %v457 = vunpack.c.l.s4 1934713408
    %v458 = vunpack.c.0.s8 %v457
    %v459 = vlaneseq
    %v460 = vshrl.u32 %v459, 7
    %v461 = vsub.s32 %v458, %v460
    %v462 = vrot.slane %v448, %v461
    %v463 = vcombine.low %v407, %v439
    %v464 = vcombine.high %v407, %v439
    %v465 = vcombine.low %v414, %v446
    %v466 = vcombine.high %v414, %v446
    %v467 = vcombine.low %v423, %v455
    %v468 = vcombine.high %v423, %v455
    %v469 = vcombine.low %v430, %v462
    %v470 = vcombine.high %v430, %v462
    %v471 = vcombine.low %v288, %v312
    %v472 = vcombine.high %v288, %v312
    %v474 = vunpack.c.l.s4 1983009808
    %v475 = vunpack.c.0.s8 %v474
    %v476 = vlaneseq
    %v477 = vshrl.u32 %v476, 7
    %v478 = vsub.s32 %v475, %v477
    %v479 = vrot.slane %v471, %v478
    %v481 = vunpack.c.l.s4 1983009808
    %v482 = vunpack.c.0.s8 %v481
    %v483 = vlaneseq
    %v484 = vshrl.u32 %v483, 7
    %v485 = vsub.s32 %v482, %v484
    %v486 = vrot.slane %v472, %v485
    %v487 = vcombine.low %v300, %v324
    %v488 = vcombine.high %v300, %v324
    %v490 = vunpack.c.l.s4 1983009808
    %v491 = vunpack.c.0.s8 %v490
    %v492 = vlaneseq
    %v493 = vshrl.u32 %v492, 7
    %v494 = vsub.s32 %v491, %v493
    %v495 = vrot.slane %v487, %v494
    %v497 = vunpack.c.l.s4 1983009808
    %v498 = vunpack.c.0.s8 %v497
    %v499 = vlaneseq
    %v500 = vshrl.u32 %v499, 7
    %v501 = vsub.s32 %v498, %v500
    %v502 = vrot.slane %v488, %v501
    %v503 = vcombine.low %v479, %v495
    %v504 = vcombine.high %v479, %v495
    %v506 = vunpack.c.l.s4 1934713408
    %v507 = vunpack.c.0.s8 %v506
    %v508 = vlaneseq
    %v509 = vshrl.u32 %v508, 7
    %v510 = vsub.s32 %v507, %v509
    %v511 = vrot.slane %v503, %v510
    %v513 = vunpack.c.l.s4 1934713408
    %v514 = vunpack.c.0.s8 %v513
    %v515 = vlaneseq
    %v516 = vshrl.u32 %v515, 7
    %v517 = vsub.s32 %v514, %v516
    %v518 = vrot.slane %v504, %v517
    %v519 = vcombine.low %v486, %v502
    %v520 = vcombine.high %v486, %v502
    %v522 = vunpack.c.l.s4 1934713408
    %v523 = vunpack.c.0.s8 %v522
    %v524 = vlaneseq
    %v525 = vshrl.u32 %v524, 7
    %v526 = vsub.s32 %v523, %v525
    %v527 = vrot.slane %v519, %v526
    %v529 = vunpack.c.l.s4 1934713408
    %v530 = vunpack.c.0.s8 %v529
    %v531 = vlaneseq
    %v532 = vshrl.u32 %v531, 7
    %v533 = vsub.s32 %v530, %v532
    %v534 = vrot.slane %v520, %v533
    %v535 = vcombine.high %v511, 0.0
    %v536 = vcombine.high %v518, 0.0
    %v537 = vcombine.high %v527, 0.0
    %v538 = vcombine.high %v534, 0.0
    %v539 = vcombine.low %v188, %v218
    %v540 = vcombine.high %v188, %v218
    %v542 = vunpack.c.l.s4 1983009808
    %v543 = vunpack.c.0.s8 %v542
    %v544 = vlaneseq
    %v545 = vshrl.u32 %v544, 7
    %v546 = vsub.s32 %v543, %v545
    %v547 = vrot.slane %v539, %v546
    %v549 = vunpack.c.l.s4 1983009808
    %v550 = vunpack.c.0.s8 %v549
    %v551 = vlaneseq
    %v552 = vshrl.u32 %v551, 7
    %v553 = vsub.s32 %v550, %v552
    %v554 = vrot.slane %v540, %v553
    %v555 = vcombine.low %v206, %v230
    %v556 = vcombine.high %v206, %v230
    %v558 = vunpack.c.l.s4 1983009808
    %v559 = vunpack.c.0.s8 %v558
    %v560 = vlaneseq
    %v561 = vshrl.u32 %v560, 7
    %v562 = vsub.s32 %v559, %v561
    %v563 = vrot.slane %v555, %v562
    %v565 = vunpack.c.l.s4 1983009808
    %v566 = vunpack.c.0.s8 %v565
    %v567 = vlaneseq
    %v568 = vshrl.u32 %v567, 7
    %v569 = vsub.s32 %v566, %v568
    %v570 = vrot.slane %v556, %v569
    %v571 = vcombine.low %v242, %v266
    %v572 = vcombine.high %v242, %v266
    %v574 = vunpack.c.l.s4 1983009808
    %v575 = vunpack.c.0.s8 %v574
    %v576 = vlaneseq
    %v577 = vshrl.u32 %v576, 7
    %v578 = vsub.s32 %v575, %v577
    %v579 = vrot.slane %v571, %v578
    %v581 = vunpack.c.l.s4 1983009808
    %v582 = vunpack.c.0.s8 %v581
    %v583 = vlaneseq
    %v584 = vshrl.u32 %v583, 7
    %v585 = vsub.s32 %v582, %v584
    %v586 = vrot.slane %v572, %v585
    %v587 = vcombine.low %v254, %v278
    %v588 = vcombine.high %v254, %v278
    %v590 = vunpack.c.l.s4 1983009808
    %v591 = vunpack.c.0.s8 %v590
    %v592 = vlaneseq
    %v593 = vshrl.u32 %v592, 7
    %v594 = vsub.s32 %v591, %v593
    %v595 = vrot.slane %v587, %v594
    %v597 = vunpack.c.l.s4 1983009808
    %v598 = vunpack.c.0.s8 %v597
    %v599 = vlaneseq
    %v600 = vshrl.u32 %v599, 7
    %v601 = vsub.s32 %v598, %v600
    %v602 = vrot.slane %v588, %v601
    %v603 = vcombine.low %v547, %v563
    %v604 = vcombine.high %v547, %v563
    %v606 = vunpack.c.l.s4 1934713408
    %v607 = vunpack.c.0.s8 %v606
    %v608 = vlaneseq
    %v609 = vshrl.u32 %v608, 7
    %v610 = vsub.s32 %v607, %v609
    %v611 = vrot.slane %v603, %v610
    %v613 = vunpack.c.l.s4 1934713408
    %v614 = vunpack.c.0.s8 %v613
    %v615 = vlaneseq
    %v616 = vshrl.u32 %v615, 7
    %v617 = vsub.s32 %v614, %v616
    %v618 = vrot.slane %v604, %v617
    %v619 = vcombine.low %v554, %v570
    %v620 = vcombine.high %v554, %v570
    %v622 = vunpack.c.l.s4 1934713408
    %v623 = vunpack.c.0.s8 %v622
    %v624 = vlaneseq
    %v625 = vshrl.u32 %v624, 7
    %v626 = vsub.s32 %v623, %v625
    %v627 = vrot.slane %v619, %v626
    %v629 = vunpack.c.l.s4 1934713408
    %v630 = vunpack.c.0.s8 %v629
    %v631 = vlaneseq
    %v632 = vshrl.u32 %v631, 7
    %v633 = vsub.s32 %v630, %v632
    %v634 = vrot.slane %v620, %v633
    %v635 = vcombine.low %v579, %v595
    %v636 = vcombine.high %v579, %v595
    %v638 = vunpack.c.l.s4 1934713408
    %v639 = vunpack.c.0.s8 %v638
    %v640 = vlaneseq
    %v641 = vshrl.u32 %v640, 7
    %v642 = vsub.s32 %v639, %v641
    %v643 = vrot.slane %v635, %v642
    %v645 = vunpack.c.l.s4 1934713408
    %v646 = vunpack.c.0.s8 %v645
    %v647 = vlaneseq
    %v648 = vshrl.u32 %v647, 7
    %v649 = vsub.s32 %v646, %v648
    %v650 = vrot.slane %v636, %v649
    %v651 = vcombine.low %v586, %v602
    %v652 = vcombine.high %v586, %v602
    %v654 = vunpack.c.l.s4 1934713408
    %v655 = vunpack.c.0.s8 %v654
    %v656 = vlaneseq
    %v657 = vshrl.u32 %v656, 7
    %v658 = vsub.s32 %v655, %v657
    %v659 = vrot.slane %v651, %v658
    %v661 = vunpack.c.l.s4 1934713408
    %v662 = vunpack.c.0.s8 %v661
    %v663 = vlaneseq
    %v664 = vshrl.u32 %v663, 7
    %v665 = vsub.s32 %v662, %v664
    %v666 = vrot.slane %v652, %v665
    %v667 = vcombine.low %v611, %v643
    %v668 = vcombine.high %v611, %v643
    %v669 = vcombine.low %v618, %v650
    %v670 = vcombine.high %v618, %v650
    %v671 = vcombine.low %v627, %v659
    %v672 = vcombine.high %v627, %v659
    %v673 = vcombine.low %v634, %v666
    %v674 = vcombine.high %v634, %v666
    %v675 = vcombine.low %v290, %v314
    %v676 = vcombine.high %v290, %v314
    %v678 = vunpack.c.l.s4 1983009808
    %v679 = vunpack.c.0.s8 %v678
    %v680 = vlaneseq
    %v681 = vshrl.u32 %v680, 7
    %v682 = vsub.s32 %v679, %v681
    %v683 = vrot.slane %v675, %v682
    %v685 = vunpack.c.l.s4 1983009808
    %v686 = vunpack.c.0.s8 %v685
    %v687 = vlaneseq
    %v688 = vshrl.u32 %v687, 7
    %v689 = vsub.s32 %v686, %v688
    %v690 = vrot.slane %v676, %v689
    %v691 = vcombine.low %v302, %v326
    %v692 = vcombine.high %v302, %v326
    %v694 = vunpack.c.l.s4 1983009808
    %v695 = vunpack.c.0.s8 %v694
    %v696 = vlaneseq
    %v697 = vshrl.u32 %v696, 7
    %v698 = vsub.s32 %v695, %v697
    %v699 = vrot.slane %v691, %v698
    %v701 = vunpack.c.l.s4 1983009808
    %v702 = vunpack.c.0.s8 %v701
    %v703 = vlaneseq
    %v704 = vshrl.u32 %v703, 7
    %v705 = vsub.s32 %v702, %v704
    %v706 = vrot.slane %v692, %v705
    %v707 = vcombine.low %v683, %v699
    %v708 = vcombine.high %v683, %v699
    %v710 = vunpack.c.l.s4 1934713408
    %v711 = vunpack.c.0.s8 %v710
    %v712 = vlaneseq
    %v713 = vshrl.u32 %v712, 7
    %v714 = vsub.s32 %v711, %v713
    %v715 = vrot.slane %v707, %v714
    %v717 = vunpack.c.l.s4 1934713408
    %v718 = vunpack.c.0.s8 %v717
    %v719 = vlaneseq
    %v720 = vshrl.u32 %v719, 7
    %v721 = vsub.s32 %v718, %v720
    %v722 = vrot.slane %v708, %v721
    %v723 = vcombine.low %v690, %v706
    %v724 = vcombine.high %v690, %v706
    %v726 = vunpack.c.l.s4 1934713408
    %v727 = vunpack.c.0.s8 %v726
    %v728 = vlaneseq
    %v729 = vshrl.u32 %v728, 7
    %v730 = vsub.s32 %v727, %v729
    %v731 = vrot.slane %v723, %v730
    %v733 = vunpack.c.l.s4 1934713408
    %v734 = vunpack.c.0.s8 %v733
    %v735 = vlaneseq
    %v736 = vshrl.u32 %v735, 7
    %v737 = vsub.s32 %v734, %v736
    %v738 = vrot.slane %v724, %v737
    %v739 = vcombine.high %v715, 0.0
    %v740 = vcombine.high %v722, 0.0
    %v741 = vcombine.high %v731, 0.0
    %v742 = vcombine.high %v738, 0.0
    %v743 = vcombine.low %v193, %v220
    %v744 = vcombine.high %v193, %v220
    %v746 = vunpack.c.l.s4 1983009808
    %v747 = vunpack.c.0.s8 %v746
    %v748 = vlaneseq
    %v749 = vshrl.u32 %v748, 7
    %v750 = vsub.s32 %v747, %v749
    %v751 = vrot.slane %v743, %v750
    %v753 = vunpack.c.l.s4 1983009808
    %v754 = vunpack.c.0.s8 %v753
    %v755 = vlaneseq
    %v756 = vshrl.u32 %v755, 7
    %v757 = vsub.s32 %v754, %v756
    %v758 = vrot.slane %v744, %v757
    %v759 = vcombine.low %v208, %v232
    %v760 = vcombine.high %v208, %v232
    %v762 = vunpack.c.l.s4 1983009808
    %v763 = vunpack.c.0.s8 %v762
    %v764 = vlaneseq
    %v765 = vshrl.u32 %v764, 7
    %v766 = vsub.s32 %v763, %v765
    %v767 = vrot.slane %v759, %v766
    %v769 = vunpack.c.l.s4 1983009808
    %v770 = vunpack.c.0.s8 %v769
    %v771 = vlaneseq
    %v772 = vshrl.u32 %v771, 7
    %v773 = vsub.s32 %v770, %v772
    %v774 = vrot.slane %v760, %v773
    %v775 = vcombine.low %v244, %v268
    %v776 = vcombine.high %v244, %v268
    %v778 = vunpack.c.l.s4 1983009808
    %v779 = vunpack.c.0.s8 %v778
    %v780 = vlaneseq
    %v781 = vshrl.u32 %v780, 7
    %v782 = vsub.s32 %v779, %v781
    %v783 = vrot.slane %v775, %v782
    %v785 = vunpack.c.l.s4 1983009808
    %v786 = vunpack.c.0.s8 %v785
    %v787 = vlaneseq
    %v788 = vshrl.u32 %v787, 7
    %v789 = vsub.s32 %v786, %v788
    %v790 = vrot.slane %v776, %v789
    %v791 = vcombine.low %v256, %v280
    %v792 = vcombine.high %v256, %v280
    %v794 = vunpack.c.l.s4 1983009808
    %v795 = vunpack.c.0.s8 %v794
    %v796 = vlaneseq
    %v797 = vshrl.u32 %v796, 7
    %v798 = vsub.s32 %v795, %v797
    %v799 = vrot.slane %v791, %v798
    %v801 = vunpack.c.l.s4 1983009808
    %v802 = vunpack.c.0.s8 %v801
    %v803 = vlaneseq
    %v804 = vshrl.u32 %v803, 7
    %v805 = vsub.s32 %v802, %v804
    %v806 = vrot.slane %v792, %v805
    %v807 = vcombine.low %v751, %v767
    %v808 = vcombine.high %v751, %v767
    %v810 = vunpack.c.l.s4 1934713408
    %v811 = vunpack.c.0.s8 %v810
    %v812 = vlaneseq
    %v813 = vshrl.u32 %v812, 7
    %v814 = vsub.s32 %v811, %v813
    %v815 = vrot.slane %v807, %v814
    %v817 = vunpack.c.l.s4 1934713408
    %v818 = vunpack.c.0.s8 %v817
    %v819 = vlaneseq
    %v820 = vshrl.u32 %v819, 7
    %v821 = vsub.s32 %v818, %v820
    %v822 = vrot.slane %v808, %v821
    %v823 = vcombine.low %v758, %v774
    %v824 = vcombine.high %v758, %v774
    %v826 = vunpack.c.l.s4 1934713408
    %v827 = vunpack.c.0.s8 %v826
    %v828 = vlaneseq
    %v829 = vshrl.u32 %v828, 7
    %v830 = vsub.s32 %v827, %v829
    %v831 = vrot.slane %v823, %v830
    %v833 = vunpack.c.l.s4 1934713408
    %v834 = vunpack.c.0.s8 %v833
    %v835 = vlaneseq
    %v836 = vshrl.u32 %v835, 7
    %v837 = vsub.s32 %v834, %v836
    %v838 = vrot.slane %v824, %v837
    %v839 = vcombine.low %v783, %v799
    %v840 = vcombine.high %v783, %v799
    %v842 = vunpack.c.l.s4 1934713408
    %v843 = vunpack.c.0.s8 %v842
    %v844 = vlaneseq
    %v845 = vshrl.u32 %v844, 7
    %v846 = vsub.s32 %v843, %v845
    %v847 = vrot.slane %v839, %v846
    %v849 = vunpack.c.l.s4 1934713408
    %v850 = vunpack.c.0.s8 %v849
    %v851 = vlaneseq
    %v852 = vshrl.u32 %v851, 7
    %v853 = vsub.s32 %v850, %v852
    %v854 = vrot.slane %v840, %v853
    %v855 = vcombine.low %v790, %v806
    %v856 = vcombine.high %v790, %v806
    %v858 = vunpack.c.l.s4 1934713408
    %v859 = vunpack.c.0.s8 %v858
    %v860 = vlaneseq
    %v861 = vshrl.u32 %v860, 7
    %v862 = vsub.s32 %v859, %v861
    %v863 = vrot.slane %v855, %v862
    %v865 = vunpack.c.l.s4 1934713408
    %v866 = vunpack.c.0.s8 %v865
    %v867 = vlaneseq
    %v868 = vshrl.u32 %v867, 7
    %v869 = vsub.s32 %v866, %v868
    %v870 = vrot.slane %v856, %v869
    %v871 = vcombine.low %v815, %v847
    %v872 = vcombine.high %v815, %v847
    %v873 = vcombine.low %v822, %v854
    %v874 = vcombine.high %v822, %v854
    %v875 = vcombine.low %v831, %v863
    %v876 = vcombine.high %v831, %v863
    %v877 = vcombine.low %v838, %v870
    %v878 = vcombine.high %v838, %v870
    %v879 = vcombine.low %v292, %v316
    %v880 = vcombine.high %v292, %v316
    %v882 = vunpack.c.l.s4 1983009808
    %v883 = vunpack.c.0.s8 %v882
    %v884 = vlaneseq
    %v885 = vshrl.u32 %v884, 7
    %v886 = vsub.s32 %v883, %v885
    %v887 = vrot.slane %v879, %v886
    %v889 = vunpack.c.l.s4 1983009808
    %v890 = vunpack.c.0.s8 %v889
    %v891 = vlaneseq
    %v892 = vshrl.u32 %v891, 7
    %v893 = vsub.s32 %v890, %v892
    %v894 = vrot.slane %v880, %v893
    %v895 = vcombine.low %v304, %v328
    %v896 = vcombine.high %v304, %v328
    %v898 = vunpack.c.l.s4 1983009808
    %v899 = vunpack.c.0.s8 %v898
    %v900 = vlaneseq
    %v901 = vshrl.u32 %v900, 7
    %v902 = vsub.s32 %v899, %v901
    %v903 = vrot.slane %v895, %v902
    %v905 = vunpack.c.l.s4 1983009808
    %v906 = vunpack.c.0.s8 %v905
    %v907 = vlaneseq
    %v908 = vshrl.u32 %v907, 7
    %v909 = vsub.s32 %v906, %v908
    %v910 = vrot.slane %v896, %v909
    %v911 = vcombine.low %v887, %v903
    %v912 = vcombine.high %v887, %v903
    %v914 = vunpack.c.l.s4 1934713408
    %v915 = vunpack.c.0.s8 %v914
    %v916 = vlaneseq
    %v917 = vshrl.u32 %v916, 7
    %v918 = vsub.s32 %v915, %v917
    %v919 = vrot.slane %v911, %v918
    %v921 = vunpack.c.l.s4 1934713408
    %v922 = vunpack.c.0.s8 %v921
    %v923 = vlaneseq
    %v924 = vshrl.u32 %v923, 7
    %v925 = vsub.s32 %v922, %v924
    %v926 = vrot.slane %v912, %v925
    %v927 = vcombine.low %v894, %v910
    %v928 = vcombine.high %v894, %v910
    %v930 = vunpack.c.l.s4 1934713408
    %v931 = vunpack.c.0.s8 %v930
    %v932 = vlaneseq
    %v933 = vshrl.u32 %v932, 7
    %v934 = vsub.s32 %v931, %v933
    %v935 = vrot.slane %v927, %v934
    %v937 = vunpack.c.l.s4 1934713408
    %v938 = vunpack.c.0.s8 %v937
    %v939 = vlaneseq
    %v940 = vshrl.u32 %v939, 7
    %v941 = vsub.s32 %v938, %v940
    %v942 = vrot.slane %v928, %v941
    %v943 = vcombine.high %v919, 0.0
    %v944 = vcombine.high %v926, 0.0
    %v945 = vcombine.high %v935, 0.0
    %v946 = vcombine.high %v942, 0.0
    %v947 = vcombine.low %v196, %v222
    %v948 = vcombine.high %v196, %v222
    %v950 = vunpack.c.l.s4 1983009808
    %v951 = vunpack.c.0.s8 %v950
    %v952 = vlaneseq
    %v953 = vshrl.u32 %v952, 7
    %v954 = vsub.s32 %v951, %v953
    %v955 = vrot.slane %v947, %v954
    %v957 = vunpack.c.l.s4 1983009808
    %v958 = vunpack.c.0.s8 %v957
    %v959 = vlaneseq
    %v960 = vshrl.u32 %v959, 7
    %v961 = vsub.s32 %v958, %v960
    %v962 = vrot.slane %v948, %v961
    %v963 = vcombine.low %v210, %v234
    %v964 = vcombine.high %v210, %v234
    %v966 = vunpack.c.l.s4 1983009808
    %v967 = vunpack.c.0.s8 %v966
    %v968 = vlaneseq
    %v969 = vshrl.u32 %v968, 7
    %v970 = vsub.s32 %v967, %v969
    %v971 = vrot.slane %v963, %v970
    %v973 = vunpack.c.l.s4 1983009808
    %v974 = vunpack.c.0.s8 %v973
    %v975 = vlaneseq
    %v976 = vshrl.u32 %v975, 7
    %v977 = vsub.s32 %v974, %v976
    %v978 = vrot.slane %v964, %v977
    %v979 = vcombine.low %v246, %v270
    %v980 = vcombine.high %v246, %v270
    %v982 = vunpack.c.l.s4 1983009808
    %v983 = vunpack.c.0.s8 %v982
    %v984 = vlaneseq
    %v985 = vshrl.u32 %v984, 7
    %v986 = vsub.s32 %v983, %v985
    %v987 = vrot.slane %v979, %v986
    %v989 = vunpack.c.l.s4 1983009808
    %v990 = vunpack.c.0.s8 %v989
    %v991 = vlaneseq
    %v992 = vshrl.u32 %v991, 7
    %v993 = vsub.s32 %v990, %v992
    %v994 = vrot.slane %v980, %v993
    %v995 = vcombine.low %v258, %v282
    %v996 = vcombine.high %v258, %v282
    %v998 = vunpack.c.l.s4 1983009808
    %v999 = vunpack.c.0.s8 %v998
    %v1000 = vlaneseq
    %v1001 = vshrl.u32 %v1000, 7
    %v1002 = vsub.s32 %v999, %v1001
    %v1003 = vrot.slane %v995, %v1002
    %v1005 = vunpack.c.l.s4 1983009808
    %v1006 = vunpack.c.0.s8 %v1005
    %v1007 = vlaneseq
    %v1008 = vshrl.u32 %v1007, 7
    %v1009 = vsub.s32 %v1006, %v1008
    %v1010 = vrot.slane %v996, %v1009
    %v1011 = vcombine.low %v955, %v971
    %v1012 = vcombine.high %v955, %v971
    %v1014 = vunpack.c.l.s4 1934713408
    %v1015 = vunpack.c.0.s8 %v1014
    %v1016 = vlaneseq
    %v1017 = vshrl.u32 %v1016, 7
    %v1018 = vsub.s32 %v1015, %v1017
    %v1019 = vrot.slane %v1011, %v1018
    %v1021 = vunpack.c.l.s4 1934713408
    %v1022 = vunpack.c.0.s8 %v1021
    %v1023 = vlaneseq
    %v1024 = vshrl.u32 %v1023, 7
    %v1025 = vsub.s32 %v1022, %v1024
    %v1026 = vrot.slane %v1012, %v1025
    %v1027 = vcombine.low %v962, %v978
    %v1028 = vcombine.high %v962, %v978
    %v1030 = vunpack.c.l.s4 1934713408
    %v1031 = vunpack.c.0.s8 %v1030
    %v1032 = vlaneseq
    %v1033 = vshrl.u32 %v1032, 7
    %v1034 = vsub.s32 %v1031, %v1033
    %v1035 = vrot.slane %v1027, %v1034
    %v1037 = vunpack.c.l.s4 1934713408
    %v1038 = vunpack.c.0.s8 %v1037
    %v1039 = vlaneseq
    %v1040 = vshrl.u32 %v1039, 7
    %v1041 = vsub.s32 %v1038, %v1040
    %v1042 = vrot.slane %v1028, %v1041
    %v1043 = vcombine.low %v987, %v1003
    %v1044 = vcombine.high %v987, %v1003
    %v1046 = vunpack.c.l.s4 1934713408
    %v1047 = vunpack.c.0.s8 %v1046
    %v1048 = vlaneseq
    %v1049 = vshrl.u32 %v1048, 7
    %v1050 = vsub.s32 %v1047, %v1049
    %v1051 = vrot.slane %v1043, %v1050
    %v1053 = vunpack.c.l.s4 1934713408
    %v1054 = vunpack.c.0.s8 %v1053
    %v1055 = vlaneseq
    %v1056 = vshrl.u32 %v1055, 7
    %v1057 = vsub.s32 %v1054, %v1056
    %v1058 = vrot.slane %v1044, %v1057
    %v1059 = vcombine.low %v994, %v1010
    %v1060 = vcombine.high %v994, %v1010
    %v1062 = vunpack.c.l.s4 1934713408
    %v1063 = vunpack.c.0.s8 %v1062
    %v1064 = vlaneseq
    %v1065 = vshrl.u32 %v1064, 7
    %v1066 = vsub.s32 %v1063, %v1065
    %v1067 = vrot.slane %v1059, %v1066
    %v1069 = vunpack.c.l.s4 1934713408
    %v1070 = vunpack.c.0.s8 %v1069
    %v1071 = vlaneseq
    %v1072 = vshrl.u32 %v1071, 7
    %v1073 = vsub.s32 %v1070, %v1072
    %v1074 = vrot.slane %v1060, %v1073
    %v1075 = vcombine.low %v1019, %v1051
    %v1076 = vcombine.high %v1019, %v1051
    %v1077 = vcombine.low %v1026, %v1058
    %v1078 = vcombine.high %v1026, %v1058
    %v1079 = vcombine.low %v1035, %v1067
    %v1080 = vcombine.high %v1035, %v1067
    %v1081 = vcombine.low %v1042, %v1074
    %v1082 = vcombine.high %v1042, %v1074
    %v1083 = vcombine.low %v294, %v318
    %v1084 = vcombine.high %v294, %v318
    %v1086 = vunpack.c.l.s4 1983009808
    %v1087 = vunpack.c.0.s8 %v1086
    %v1088 = vlaneseq
    %v1089 = vshrl.u32 %v1088, 7
    %v1090 = vsub.s32 %v1087, %v1089
    %v1091 = vrot.slane %v1083, %v1090
    %v1093 = vunpack.c.l.s4 1983009808
    %v1094 = vunpack.c.0.s8 %v1093
    %v1095 = vlaneseq
    %v1096 = vshrl.u32 %v1095, 7
    %v1097 = vsub.s32 %v1094, %v1096
    %v1098 = vrot.slane %v1084, %v1097
    %v1099 = vcombine.low %v306, %v330
    %v1100 = vcombine.high %v306, %v330
    %v1102 = vunpack.c.l.s4 1983009808
    %v1103 = vunpack.c.0.s8 %v1102
    %v1104 = vlaneseq
    %v1105 = vshrl.u32 %v1104, 7
    %v1106 = vsub.s32 %v1103, %v1105
    %v1107 = vrot.slane %v1099, %v1106
    %v1109 = vunpack.c.l.s4 1983009808
    %v1110 = vunpack.c.0.s8 %v1109
    %v1111 = vlaneseq
    %v1112 = vshrl.u32 %v1111, 7
    %v1113 = vsub.s32 %v1110, %v1112
    %v1114 = vrot.slane %v1100, %v1113
    %v1115 = vcombine.low %v1091, %v1107
    %v1116 = vcombine.high %v1091, %v1107
    %v1118 = vunpack.c.l.s4 1934713408
    %v1119 = vunpack.c.0.s8 %v1118
    %v1120 = vlaneseq
    %v1121 = vshrl.u32 %v1120, 7
    %v1122 = vsub.s32 %v1119, %v1121
    %v1123 = vrot.slane %v1115, %v1122
    %v1125 = vunpack.c.l.s4 1934713408
    %v1126 = vunpack.c.0.s8 %v1125
    %v1127 = vlaneseq
    %v1128 = vshrl.u32 %v1127, 7
    %v1129 = vsub.s32 %v1126, %v1128
    %v1130 = vrot.slane %v1116, %v1129
    %v1131 = vcombine.low %v1098, %v1114
    %v1132 = vcombine.high %v1098, %v1114
    %v1134 = vunpack.c.l.s4 1934713408
    %v1135 = vunpack.c.0.s8 %v1134
    %v1136 = vlaneseq
    %v1137 = vshrl.u32 %v1136, 7
    %v1138 = vsub.s32 %v1135, %v1137
    %v1139 = vrot.slane %v1131, %v1138
    %v1141 = vunpack.c.l.s4 1934713408
    %v1142 = vunpack.c.0.s8 %v1141
    %v1143 = vlaneseq
    %v1144 = vshrl.u32 %v1143, 7
    %v1145 = vsub.s32 %v1142, %v1144
    %v1146 = vrot.slane %v1132, %v1145
    %v1147 = vcombine.high %v1123, 0.0
    %v1148 = vcombine.high %v1130, 0.0
    %v1149 = vcombine.high %v1139, 0.0
    %v1150 = vcombine.high %v1146, 0.0
    %v1151 = vcombine.low %v463, %v465
    %v1152 = vcombine.high %v463, %v465
    %v1154 = vunpack.c.l.s4 1983009808
    %v1155 = vunpack.c.0.s8 %v1154
    %v1156 = vlaneseq
    %v1157 = vshrl.u32 %v1156, 7
    %v1158 = vsub.s32 %v1155, %v1157
    %v1159 = vrot.slane %v1151, %v1158
    %v1161 = vunpack.c.l.s4 1983009808
    %v1162 = vunpack.c.0.s8 %v1161
    %v1163 = vlaneseq
    %v1164 = vshrl.u32 %v1163, 7
    %v1165 = vsub.s32 %v1162, %v1164
    %v1166 = vrot.slane %v1152, %v1165
    %v1167 = vcombine.low %v464, %v466
    %v1168 = vcombine.high %v464, %v466
    %v1170 = vunpack.c.l.s4 1983009808
    %v1171 = vunpack.c.0.s8 %v1170
    %v1172 = vlaneseq
    %v1173 = vshrl.u32 %v1172, 7
    %v1174 = vsub.s32 %v1171, %v1173
    %v1175 = vrot.slane %v1167, %v1174
    %v1177 = vunpack.c.l.s4 1983009808
    %v1178 = vunpack.c.0.s8 %v1177
    %v1179 = vlaneseq
    %v1180 = vshrl.u32 %v1179, 7
    %v1181 = vsub.s32 %v1178, %v1180
    %v1182 = vrot.slane %v1168, %v1181
    %v1183 = vcombine.low %v467, %v469
    %v1184 = vcombine.high %v467, %v469
    %v1186 = vunpack.c.l.s4 1983009808
    %v1187 = vunpack.c.0.s8 %v1186
    %v1188 = vlaneseq
    %v1189 = vshrl.u32 %v1188, 7
    %v1190 = vsub.s32 %v1187, %v1189
    %v1191 = vrot.slane %v1183, %v1190
    %v1193 = vunpack.c.l.s4 1983009808
    %v1194 = vunpack.c.0.s8 %v1193
    %v1195 = vlaneseq
    %v1196 = vshrl.u32 %v1195, 7
    %v1197 = vsub.s32 %v1194, %v1196
    %v1198 = vrot.slane %v1184, %v1197
    %v1199 = vcombine.low %v468, %v470
    %v1200 = vcombine.high %v468, %v470
    %v1202 = vunpack.c.l.s4 1983009808
    %v1203 = vunpack.c.0.s8 %v1202
    %v1204 = vlaneseq
    %v1205 = vshrl.u32 %v1204, 7
    %v1206 = vsub.s32 %v1203, %v1205
    %v1207 = vrot.slane %v1199, %v1206
    %v1209 = vunpack.c.l.s4 1983009808
    %v1210 = vunpack.c.0.s8 %v1209
    %v1211 = vlaneseq
    %v1212 = vshrl.u32 %v1211, 7
    %v1213 = vsub.s32 %v1210, %v1212
    %v1214 = vrot.slane %v1200, %v1213
    %v1215 = vcombine.low %v1159, %v1175
    %v1216 = vcombine.high %v1159, %v1175
    %v1218 = vunpack.c.l.s4 1934713408
    %v1219 = vunpack.c.0.s8 %v1218
    %v1220 = vlaneseq
    %v1221 = vshrl.u32 %v1220, 7
    %v1222 = vsub.s32 %v1219, %v1221
    %v1223 = vrot.slane %v1215, %v1222
    %v1225 = vunpack.c.l.s4 1934713408
    %v1226 = vunpack.c.0.s8 %v1225
    %v1227 = vlaneseq
    %v1228 = vshrl.u32 %v1227, 7
    %v1229 = vsub.s32 %v1226, %v1228
    %v1230 = vrot.slane %v1216, %v1229
    %v1231 = vcombine.low %v1166, %v1182
    %v1232 = vcombine.high %v1166, %v1182
    %v1234 = vunpack.c.l.s4 1934713408
    %v1235 = vunpack.c.0.s8 %v1234
    %v1236 = vlaneseq
    %v1237 = vshrl.u32 %v1236, 7
    %v1238 = vsub.s32 %v1235, %v1237
    %v1239 = vrot.slane %v1231, %v1238
    %v1241 = vunpack.c.l.s4 1934713408
    %v1242 = vunpack.c.0.s8 %v1241
    %v1243 = vlaneseq
    %v1244 = vshrl.u32 %v1243, 7
    %v1245 = vsub.s32 %v1242, %v1244
    %v1246 = vrot.slane %v1232, %v1245
    %v1247 = vcombine.low %v1191, %v1207
    %v1248 = vcombine.high %v1191, %v1207
    %v1250 = vunpack.c.l.s4 1934713408
    %v1251 = vunpack.c.0.s8 %v1250
    %v1252 = vlaneseq
    %v1253 = vshrl.u32 %v1252, 7
    %v1254 = vsub.s32 %v1251, %v1253
    %v1255 = vrot.slane %v1247, %v1254
    %v1257 = vunpack.c.l.s4 1934713408
    %v1258 = vunpack.c.0.s8 %v1257
    %v1259 = vlaneseq
    %v1260 = vshrl.u32 %v1259, 7
    %v1261 = vsub.s32 %v1258, %v1260
    %v1262 = vrot.slane %v1248, %v1261
    %v1263 = vcombine.low %v1198, %v1214
    %v1264 = vcombine.high %v1198, %v1214
    %v1266 = vunpack.c.l.s4 1934713408
    %v1267 = vunpack.c.0.s8 %v1266
    %v1268 = vlaneseq
    %v1269 = vshrl.u32 %v1268, 7
    %v1270 = vsub.s32 %v1267, %v1269
    %v1271 = vrot.slane %v1263, %v1270
    %v1273 = vunpack.c.l.s4 1934713408
    %v1274 = vunpack.c.0.s8 %v1273
    %v1275 = vlaneseq
    %v1276 = vshrl.u32 %v1275, 7
    %v1277 = vsub.s32 %v1274, %v1276
    %v1278 = vrot.slane %v1264, %v1277
    %v1279 = vcombine.low %v1223, %v1255
    %v1280 = vcombine.high %v1223, %v1255
    %v1281 = vcombine.low %v1230, %v1262
    %v1282 = vcombine.high %v1230, %v1262
    %v1283 = vcombine.low %v1239, %v1271
    %v1284 = vcombine.high %v1239, %v1271
    %v1285 = vcombine.low %v1246, %v1278
    %v1286 = vcombine.high %v1246, %v1278
    %v1287 = vcombine.low %v667, %v669
    %v1288 = vcombine.high %v667, %v669
    %v1290 = vunpack.c.l.s4 1983009808
    %v1291 = vunpack.c.0.s8 %v1290
    %v1292 = vlaneseq
    %v1293 = vshrl.u32 %v1292, 7
    %v1294 = vsub.s32 %v1291, %v1293
    %v1295 = vrot.slane %v1287, %v1294
    %v1297 = vunpack.c.l.s4 1983009808
    %v1298 = vunpack.c.0.s8 %v1297
    %v1299 = vlaneseq
    %v1300 = vshrl.u32 %v1299, 7
    %v1301 = vsub.s32 %v1298, %v1300
    %v1302 = vrot.slane %v1288, %v1301
    %v1303 = vcombine.low %v668, %v670
    %v1304 = vcombine.high %v668, %v670
    %v1306 = vunpack.c.l.s4 1983009808
    %v1307 = vunpack.c.0.s8 %v1306
    %v1308 = vlaneseq
    %v1309 = vshrl.u32 %v1308, 7
    %v1310 = vsub.s32 %v1307, %v1309
    %v1311 = vrot.slane %v1303, %v1310
    %v1313 = vunpack.c.l.s4 1983009808
    %v1314 = vunpack.c.0.s8 %v1313
    %v1315 = vlaneseq
    %v1316 = vshrl.u32 %v1315, 7
    %v1317 = vsub.s32 %v1314, %v1316
    %v1318 = vrot.slane %v1304, %v1317
    %v1319 = vcombine.low %v671, %v673
    %v1320 = vcombine.high %v671, %v673
    %v1322 = vunpack.c.l.s4 1983009808
    %v1323 = vunpack.c.0.s8 %v1322
    %v1324 = vlaneseq
    %v1325 = vshrl.u32 %v1324, 7
    %v1326 = vsub.s32 %v1323, %v1325
    %v1327 = vrot.slane %v1319, %v1326
    %v1329 = vunpack.c.l.s4 1983009808
    %v1330 = vunpack.c.0.s8 %v1329
    %v1331 = vlaneseq
    %v1332 = vshrl.u32 %v1331, 7
    %v1333 = vsub.s32 %v1330, %v1332
    %v1334 = vrot.slane %v1320, %v1333
    %v1335 = vcombine.low %v672, %v674
    %v1336 = vcombine.high %v672, %v674
    %v1338 = vunpack.c.l.s4 1983009808
    %v1339 = vunpack.c.0.s8 %v1338
    %v1340 = vlaneseq
    %v1341 = vshrl.u32 %v1340, 7
    %v1342 = vsub.s32 %v1339, %v1341
    %v1343 = vrot.slane %v1335, %v1342
    %v1345 = vunpack.c.l.s4 1983009808
    %v1346 = vunpack.c.0.s8 %v1345
    %v1347 = vlaneseq
    %v1348 = vshrl.u32 %v1347, 7
    %v1349 = vsub.s32 %v1346, %v1348
    %v1350 = vrot.slane %v1336, %v1349
    %v1351 = vcombine.low %v1295, %v1311
    %v1352 = vcombine.high %v1295, %v1311
    %v1354 = vunpack.c.l.s4 1934713408
    %v1355 = vunpack.c.0.s8 %v1354
    %v1356 = vlaneseq
    %v1357 = vshrl.u32 %v1356, 7
    %v1358 = vsub.s32 %v1355, %v1357
    %v1359 = vrot.slane %v1351, %v1358
    %v1361 = vunpack.c.l.s4 1934713408
    %v1362 = vunpack.c.0.s8 %v1361
    %v1363 = vlaneseq
    %v1364 = vshrl.u32 %v1363, 7
    %v1365 = vsub.s32 %v1362, %v1364
    %v1366 = vrot.slane %v1352, %v1365
    %v1367 = vcombine.low %v1302, %v1318
    %v1368 = vcombine.high %v1302, %v1318
    %v1370 = vunpack.c.l.s4 1934713408
    %v1371 = vunpack.c.0.s8 %v1370
    %v1372 = vlaneseq
    %v1373 = vshrl.u32 %v1372, 7
    %v1374 = vsub.s32 %v1371, %v1373
    %v1375 = vrot.slane %v1367, %v1374
    %v1377 = vunpack.c.l.s4 1934713408
    %v1378 = vunpack.c.0.s8 %v1377
    %v1379 = vlaneseq
    %v1380 = vshrl.u32 %v1379, 7
    %v1381 = vsub.s32 %v1378, %v1380
    %v1382 = vrot.slane %v1368, %v1381
    %v1383 = vcombine.low %v1327, %v1343
    %v1384 = vcombine.high %v1327, %v1343
    %v1386 = vunpack.c.l.s4 1934713408
    %v1387 = vunpack.c.0.s8 %v1386
    %v1388 = vlaneseq
    %v1389 = vshrl.u32 %v1388, 7
    %v1390 = vsub.s32 %v1387, %v1389
    %v1391 = vrot.slane %v1383, %v1390
    %v1393 = vunpack.c.l.s4 1934713408
    %v1394 = vunpack.c.0.s8 %v1393
    %v1395 = vlaneseq
    %v1396 = vshrl.u32 %v1395, 7
    %v1397 = vsub.s32 %v1394, %v1396
    %v1398 = vrot.slane %v1384, %v1397
    %v1399 = vcombine.low %v1334, %v1350
    %v1400 = vcombine.high %v1334, %v1350
    %v1402 = vunpack.c.l.s4 1934713408
    %v1403 = vunpack.c.0.s8 %v1402
    %v1404 = vlaneseq
    %v1405 = vshrl.u32 %v1404, 7
    %v1406 = vsub.s32 %v1403, %v1405
    %v1407 = vrot.slane %v1399, %v1406
    %v1409 = vunpack.c.l.s4 1934713408
    %v1410 = vunpack.c.0.s8 %v1409
    %v1411 = vlaneseq
    %v1412 = vshrl.u32 %v1411, 7
    %v1413 = vsub.s32 %v1410, %v1412
    %v1414 = vrot.slane %v1400, %v1413
    %v1415 = vcombine.low %v1359, %v1391
    %v1416 = vcombine.high %v1359, %v1391
    %v1417 = vcombine.low %v1366, %v1398
    %v1418 = vcombine.high %v1366, %v1398
    %v1419 = vcombine.low %v1375, %v1407
    %v1420 = vcombine.high %v1375, %v1407
    %v1421 = vcombine.low %v1382, %v1414
    %v1422 = vcombine.high %v1382, %v1414
    %v1423 = vcombine.low %v871, %v873
    %v1424 = vcombine.high %v871, %v873
    %v1426 = vunpack.c.l.s4 1983009808
    %v1427 = vunpack.c.0.s8 %v1426
    %v1428 = vlaneseq
    %v1429 = vshrl.u32 %v1428, 7
    %v1430 = vsub.s32 %v1427, %v1429
    %v1431 = vrot.slane %v1423, %v1430
    %v1433 = vunpack.c.l.s4 1983009808
    %v1434 = vunpack.c.0.s8 %v1433
    %v1435 = vlaneseq
    %v1436 = vshrl.u32 %v1435, 7
    %v1437 = vsub.s32 %v1434, %v1436
    %v1438 = vrot.slane %v1424, %v1437
    %v1439 = vcombine.low %v872, %v874
    %v1440 = vcombine.high %v872, %v874
    %v1442 = vunpack.c.l.s4 1983009808
    %v1443 = vunpack.c.0.s8 %v1442
    %v1444 = vlaneseq
    %v1445 = vshrl.u32 %v1444, 7
    %v1446 = vsub.s32 %v1443, %v1445
    %v1447 = vrot.slane %v1439, %v1446
    %v1449 = vunpack.c.l.s4 1983009808
    %v1450 = vunpack.c.0.s8 %v1449
    %v1451 = vlaneseq
    %v1452 = vshrl.u32 %v1451, 7
    %v1453 = vsub.s32 %v1450, %v1452
    %v1454 = vrot.slane %v1440, %v1453
    %v1455 = vcombine.low %v875, %v877
    %v1456 = vcombine.high %v875, %v877
    %v1458 = vunpack.c.l.s4 1983009808
    %v1459 = vunpack.c.0.s8 %v1458
    %v1460 = vlaneseq
    %v1461 = vshrl.u32 %v1460, 7
    %v1462 = vsub.s32 %v1459, %v1461
    %v1463 = vrot.slane %v1455, %v1462
    %v1465 = vunpack.c.l.s4 1983009808
    %v1466 = vunpack.c.0.s8 %v1465
    %v1467 = vlaneseq
    %v1468 = vshrl.u32 %v1467, 7
    %v1469 = vsub.s32 %v1466, %v1468
    %v1470 = vrot.slane %v1456, %v1469
    %v1471 = vcombine.low %v876, %v878
    %v1472 = vcombine.high %v876, %v878
    %v1474 = vunpack.c.l.s4 1983009808
    %v1475 = vunpack.c.0.s8 %v1474
    %v1476 = vlaneseq
    %v1477 = vshrl.u32 %v1476, 7
    %v1478 = vsub.s32 %v1475, %v1477
    %v1479 = vrot.slane %v1471, %v1478
    %v1481 = vunpack.c.l.s4 1983009808
    %v1482 = vunpack.c.0.s8 %v1481
    %v1483 = vlaneseq
    %v1484 = vshrl.u32 %v1483, 7
    %v1485 = vsub.s32 %v1482, %v1484
    %v1486 = vrot.slane %v1472, %v1485
    %v1487 = vcombine.low %v1431, %v1447
    %v1488 = vcombine.high %v1431, %v1447
    %v1490 = vunpack.c.l.s4 1934713408
    %v1491 = vunpack.c.0.s8 %v1490
    %v1492 = vlaneseq
    %v1493 = vshrl.u32 %v1492, 7
    %v1494 = vsub.s32 %v1491, %v1493
    %v1495 = vrot.slane %v1487, %v1494
    %v1497 = vunpack.c.l.s4 1934713408
    %v1498 = vunpack.c.0.s8 %v1497
    %v1499 = vlaneseq
    %v1500 = vshrl.u32 %v1499, 7
    %v1501 = vsub.s32 %v1498, %v1500
    %v1502 = vrot.slane %v1488, %v1501
    %v1503 = vcombine.low %v1438, %v1454
    %v1504 = vcombine.high %v1438, %v1454
    %v1506 = vunpack.c.l.s4 1934713408
    %v1507 = vunpack.c.0.s8 %v1506
    %v1508 = vlaneseq
    %v1509 = vshrl.u32 %v1508, 7
    %v1510 = vsub.s32 %v1507, %v1509
    %v1511 = vrot.slane %v1503, %v1510
    %v1513 = vunpack.c.l.s4 1934713408
    %v1514 = vunpack.c.0.s8 %v1513
    %v1515 = vlaneseq
    %v1516 = vshrl.u32 %v1515, 7
    %v1517 = vsub.s32 %v1514, %v1516
    %v1518 = vrot.slane %v1504, %v1517
    %v1519 = vcombine.low %v1463, %v1479
    %v1520 = vcombine.high %v1463, %v1479
    %v1522 = vunpack.c.l.s4 1934713408
    %v1523 = vunpack.c.0.s8 %v1522
    %v1524 = vlaneseq
    %v1525 = vshrl.u32 %v1524, 7
    %v1526 = vsub.s32 %v1523, %v1525
    %v1527 = vrot.slane %v1519, %v1526
    %v1529 = vunpack.c.l.s4 1934713408
    %v1530 = vunpack.c.0.s8 %v1529
    %v1531 = vlaneseq
    %v1532 = vshrl.u32 %v1531, 7
    %v1533 = vsub.s32 %v1530, %v1532
    %v1534 = vrot.slane %v1520, %v1533
    %v1535 = vcombine.low %v1470, %v1486
    %v1536 = vcombine.high %v1470, %v1486
    %v1538 = vunpack.c.l.s4 1934713408
    %v1539 = vunpack.c.0.s8 %v1538
    %v1540 = vlaneseq
    %v1541 = vshrl.u32 %v1540, 7
    %v1542 = vsub.s32 %v1539, %v1541
    %v1543 = vrot.slane %v1535, %v1542
    %v1545 = vunpack.c.l.s4 1934713408
    %v1546 = vunpack.c.0.s8 %v1545
    %v1547 = vlaneseq
    %v1548 = vshrl.u32 %v1547, 7
    %v1549 = vsub.s32 %v1546, %v1548
    %v1550 = vrot.slane %v1536, %v1549
    %v1551 = vcombine.low %v1495, %v1527
    %v1552 = vcombine.high %v1495, %v1527
    %v1553 = vcombine.low %v1502, %v1534
    %v1554 = vcombine.high %v1502, %v1534
    %v1555 = vcombine.low %v1511, %v1543
    %v1556 = vcombine.high %v1511, %v1543
    %v1557 = vcombine.low %v1518, %v1550
    %v1558 = vcombine.high %v1518, %v1550
    %v1559 = vcombine.low %v1075, %v1077
    %v1560 = vcombine.high %v1075, %v1077
    %v1562 = vunpack.c.l.s4 1983009808
    %v1563 = vunpack.c.0.s8 %v1562
    %v1564 = vlaneseq
    %v1565 = vshrl.u32 %v1564, 7
    %v1566 = vsub.s32 %v1563, %v1565
    %v1567 = vrot.slane %v1559, %v1566
    %v1569 = vunpack.c.l.s4 1983009808
    %v1570 = vunpack.c.0.s8 %v1569
    %v1571 = vlaneseq
    %v1572 = vshrl.u32 %v1571, 7
    %v1573 = vsub.s32 %v1570, %v1572
    %v1574 = vrot.slane %v1560, %v1573
    %v1575 = vcombine.low %v1076, %v1078
    %v1576 = vcombine.high %v1076, %v1078
    %v1578 = vunpack.c.l.s4 1983009808
    %v1579 = vunpack.c.0.s8 %v1578
    %v1580 = vlaneseq
    %v1581 = vshrl.u32 %v1580, 7
    %v1582 = vsub.s32 %v1579, %v1581
    %v1583 = vrot.slane %v1575, %v1582
    %v1585 = vunpack.c.l.s4 1983009808
    %v1586 = vunpack.c.0.s8 %v1585
    %v1587 = vlaneseq
    %v1588 = vshrl.u32 %v1587, 7
    %v1589 = vsub.s32 %v1586, %v1588
    %v1590 = vrot.slane %v1576, %v1589
    %v1591 = vcombine.low %v1079, %v1081
    %v1592 = vcombine.high %v1079, %v1081
    %v1594 = vunpack.c.l.s4 1983009808
    %v1595 = vunpack.c.0.s8 %v1594
    %v1596 = vlaneseq
    %v1597 = vshrl.u32 %v1596, 7
    %v1598 = vsub.s32 %v1595, %v1597
    %v1599 = vrot.slane %v1591, %v1598
    %v1601 = vunpack.c.l.s4 1983009808
    %v1602 = vunpack.c.0.s8 %v1601
    %v1603 = vlaneseq
    %v1604 = vshrl.u32 %v1603, 7
    %v1605 = vsub.s32 %v1602, %v1604
    %v1606 = vrot.slane %v1592, %v1605
    %v1607 = vcombine.low %v1080, %v1082
    %v1608 = vcombine.high %v1080, %v1082
    %v1610 = vunpack.c.l.s4 1983009808
    %v1611 = vunpack.c.0.s8 %v1610
    %v1612 = vlaneseq
    %v1613 = vshrl.u32 %v1612, 7
    %v1614 = vsub.s32 %v1611, %v1613
    %v1615 = vrot.slane %v1607, %v1614
    %v1617 = vunpack.c.l.s4 1983009808
    %v1618 = vunpack.c.0.s8 %v1617
    %v1619 = vlaneseq
    %v1620 = vshrl.u32 %v1619, 7
    %v1621 = vsub.s32 %v1618, %v1620
    %v1622 = vrot.slane %v1608, %v1621
    %v1623 = vcombine.low %v1567, %v1583
    %v1624 = vcombine.high %v1567, %v1583
    %v1626 = vunpack.c.l.s4 1934713408
    %v1627 = vunpack.c.0.s8 %v1626
    %v1628 = vlaneseq
    %v1629 = vshrl.u32 %v1628, 7
    %v1630 = vsub.s32 %v1627, %v1629
    %v1631 = vrot.slane %v1623, %v1630
    %v1633 = vunpack.c.l.s4 1934713408
    %v1634 = vunpack.c.0.s8 %v1633
    %v1635 = vlaneseq
    %v1636 = vshrl.u32 %v1635, 7
    %v1637 = vsub.s32 %v1634, %v1636
    %v1638 = vrot.slane %v1624, %v1637
    %v1639 = vcombine.low %v1574, %v1590
    %v1640 = vcombine.high %v1574, %v1590
    %v1642 = vunpack.c.l.s4 1934713408
    %v1643 = vunpack.c.0.s8 %v1642
    %v1644 = vlaneseq
    %v1645 = vshrl.u32 %v1644, 7
    %v1646 = vsub.s32 %v1643, %v1645
    %v1647 = vrot.slane %v1639, %v1646
    %v1649 = vunpack.c.l.s4 1934713408
    %v1650 = vunpack.c.0.s8 %v1649
    %v1651 = vlaneseq
    %v1652 = vshrl.u32 %v1651, 7
    %v1653 = vsub.s32 %v1650, %v1652
    %v1654 = vrot.slane %v1640, %v1653
    %v1655 = vcombine.low %v1599, %v1615
    %v1656 = vcombine.high %v1599, %v1615
    %v1658 = vunpack.c.l.s4 1934713408
    %v1659 = vunpack.c.0.s8 %v1658
    %v1660 = vlaneseq
    %v1661 = vshrl.u32 %v1660, 7
    %v1662 = vsub.s32 %v1659, %v1661
    %v1663 = vrot.slane %v1655, %v1662
    %v1665 = vunpack.c.l.s4 1934713408
    %v1666 = vunpack.c.0.s8 %v1665
    %v1667 = vlaneseq
    %v1668 = vshrl.u32 %v1667, 7
    %v1669 = vsub.s32 %v1666, %v1668
    %v1670 = vrot.slane %v1656, %v1669
    %v1671 = vcombine.low %v1606, %v1622
    %v1672 = vcombine.high %v1606, %v1622
    %v1674 = vunpack.c.l.s4 1934713408
    %v1675 = vunpack.c.0.s8 %v1674
    %v1676 = vlaneseq
    %v1677 = vshrl.u32 %v1676, 7
    %v1678 = vsub.s32 %v1675, %v1677
    %v1679 = vrot.slane %v1671, %v1678
    %v1681 = vunpack.c.l.s4 1934713408
    %v1682 = vunpack.c.0.s8 %v1681
    %v1683 = vlaneseq
    %v1684 = vshrl.u32 %v1683, 7
    %v1685 = vsub.s32 %v1682, %v1684
    %v1686 = vrot.slane %v1672, %v1685
    %v1687 = vcombine.low %v1631, %v1663
    %v1688 = vcombine.high %v1631, %v1663
    %v1689 = vcombine.low %v1638, %v1670
    %v1690 = vcombine.high %v1638, %v1670
    %v1691 = vcombine.low %v1647, %v1679
    %v1692 = vcombine.high %v1647, %v1679
    %v1693 = vcombine.low %v1654, %v1686
    %v1694 = vcombine.high %v1654, %v1686
    %v1695 = vcombine.low %v511, %v518
    %v1697 = vunpack.c.l.s4 1983009808
    %v1698 = vunpack.c.0.s8 %v1697
    %v1699 = vlaneseq
    %v1700 = vshrl.u32 %v1699, 7
    %v1701 = vsub.s32 %v1698, %v1700
    %v1702 = vrot.slane %v1695, %v1701
    %v1703 = vcombine.low %v535, %v536
    %v1705 = vunpack.c.l.s4 1983009808
    %v1706 = vunpack.c.0.s8 %v1705
    %v1707 = vlaneseq
    %v1708 = vshrl.u32 %v1707, 7
    %v1709 = vsub.s32 %v1706, %v1708
    %v1710 = vrot.slane %v1703, %v1709
    %v1711 = vcombine.low %v527, %v534
    %v1713 = vunpack.c.l.s4 1983009808
    %v1714 = vunpack.c.0.s8 %v1713
    %v1715 = vlaneseq
    %v1716 = vshrl.u32 %v1715, 7
    %v1717 = vsub.s32 %v1714, %v1716
    %v1718 = vrot.slane %v1711, %v1717
    %v1719 = vcombine.low %v537, %v538
    %v1721 = vunpack.c.l.s4 1983009808
    %v1722 = vunpack.c.0.s8 %v1721
    %v1723 = vlaneseq
    %v1724 = vshrl.u32 %v1723, 7
    %v1725 = vsub.s32 %v1722, %v1724
    %v1726 = vrot.slane %v1719, %v1725
    %v1727 = vcombine.low %v1702, %v1710
    %v1728 = vcombine.high %v1702, %v1710
    %v1730 = vunpack.c.l.s4 1934713408
    %v1731 = vunpack.c.0.s8 %v1730
    %v1732 = vlaneseq
    %v1733 = vshrl.u32 %v1732, 7
    %v1734 = vsub.s32 %v1731, %v1733
    %v1735 = vrot.slane %v1727, %v1734
    %v1737 = vunpack.c.l.s4 1934713408
    %v1738 = vunpack.c.0.s8 %v1737
    %v1739 = vlaneseq
    %v1740 = vshrl.u32 %v1739, 7
    %v1741 = vsub.s32 %v1738, %v1740
    %v1742 = vrot.slane %v1728, %v1741
    %v1743 = vcombine.low %v1718, %v1726
    %v1744 = vcombine.high %v1718, %v1726
    %v1746 = vunpack.c.l.s4 1934713408
    %v1747 = vunpack.c.0.s8 %v1746
    %v1748 = vlaneseq
    %v1749 = vshrl.u32 %v1748, 7
    %v1750 = vsub.s32 %v1747, %v1749
    %v1751 = vrot.slane %v1743, %v1750
    %v1753 = vunpack.c.l.s4 1934713408
    %v1754 = vunpack.c.0.s8 %v1753
    %v1755 = vlaneseq
    %v1756 = vshrl.u32 %v1755, 7
    %v1757 = vsub.s32 %v1754, %v1756
    %v1758 = vrot.slane %v1744, %v1757
    %v1759 = vcombine.low %v1735, %v1751
    %v1760 = vcombine.high %v1735, %v1751
    %v1761 = vcombine.low %v1742, %v1758
    %v1762 = vcombine.high %v1742, %v1758
    %v1763 = vcombine.low %v715, %v722
    %v1765 = vunpack.c.l.s4 1983009808
    %v1766 = vunpack.c.0.s8 %v1765
    %v1767 = vlaneseq
    %v1768 = vshrl.u32 %v1767, 7
    %v1769 = vsub.s32 %v1766, %v1768
    %v1770 = vrot.slane %v1763, %v1769
    %v1771 = vcombine.low %v739, %v740
    %v1773 = vunpack.c.l.s4 1983009808
    %v1774 = vunpack.c.0.s8 %v1773
    %v1775 = vlaneseq
    %v1776 = vshrl.u32 %v1775, 7
    %v1777 = vsub.s32 %v1774, %v1776
    %v1778 = vrot.slane %v1771, %v1777
    %v1779 = vcombine.low %v731, %v738
    %v1781 = vunpack.c.l.s4 1983009808
    %v1782 = vunpack.c.0.s8 %v1781
    %v1783 = vlaneseq
    %v1784 = vshrl.u32 %v1783, 7
    %v1785 = vsub.s32 %v1782, %v1784
    %v1786 = vrot.slane %v1779, %v1785
    %v1787 = vcombine.low %v741, %v742
    %v1789 = vunpack.c.l.s4 1983009808
    %v1790 = vunpack.c.0.s8 %v1789
    %v1791 = vlaneseq
    %v1792 = vshrl.u32 %v1791, 7
    %v1793 = vsub.s32 %v1790, %v1792
    %v1794 = vrot.slane %v1787, %v1793
    %v1795 = vcombine.low %v1770, %v1778
    %v1796 = vcombine.high %v1770, %v1778
    %v1798 = vunpack.c.l.s4 1934713408
    %v1799 = vunpack.c.0.s8 %v1798
    %v1800 = vlaneseq
    %v1801 = vshrl.u32 %v1800, 7
    %v1802 = vsub.s32 %v1799, %v1801
    %v1803 = vrot.slane %v1795, %v1802
    %v1805 = vunpack.c.l.s4 1934713408
    %v1806 = vunpack.c.0.s8 %v1805
    %v1807 = vlaneseq
    %v1808 = vshrl.u32 %v1807, 7
    %v1809 = vsub.s32 %v1806, %v1808
    %v1810 = vrot.slane %v1796, %v1809
    %v1811 = vcombine.low %v1786, %v1794
    %v1812 = vcombine.high %v1786, %v1794
    %v1814 = vunpack.c.l.s4 1934713408
    %v1815 = vunpack.c.0.s8 %v1814
    %v1816 = vlaneseq
    %v1817 = vshrl.u32 %v1816, 7
    %v1818 = vsub.s32 %v1815, %v1817
    %v1819 = vrot.slane %v1811, %v1818
    %v1821 = vunpack.c.l.s4 1934713408
    %v1822 = vunpack.c.0.s8 %v1821
    %v1823 = vlaneseq
    %v1824 = vshrl.u32 %v1823, 7
    %v1825 = vsub.s32 %v1822, %v1824
    %v1826 = vrot.slane %v1812, %v1825
    %v1827 = vcombine.low %v1803, %v1819
    %v1828 = vcombine.high %v1803, %v1819
    %v1829 = vcombine.low %v1810, %v1826
    %v1830 = vcombine.high %v1810, %v1826
    %v1831 = vcombine.low %v919, %v926
    %v1833 = vunpack.c.l.s4 1983009808
    %v1834 = vunpack.c.0.s8 %v1833
    %v1835 = vlaneseq
    %v1836 = vshrl.u32 %v1835, 7
    %v1837 = vsub.s32 %v1834, %v1836
    %v1838 = vrot.slane %v1831, %v1837
    %v1839 = vcombine.low %v943, %v944
    %v1841 = vunpack.c.l.s4 1983009808
    %v1842 = vunpack.c.0.s8 %v1841
    %v1843 = vlaneseq
    %v1844 = vshrl.u32 %v1843, 7
    %v1845 = vsub.s32 %v1842, %v1844
    %v1846 = vrot.slane %v1839, %v1845
    %v1847 = vcombine.low %v935, %v942
    %v1849 = vunpack.c.l.s4 1983009808
    %v1850 = vunpack.c.0.s8 %v1849
    %v1851 = vlaneseq
    %v1852 = vshrl.u32 %v1851, 7
    %v1853 = vsub.s32 %v1850, %v1852
    %v1854 = vrot.slane %v1847, %v1853
    %v1855 = vcombine.low %v945, %v946
    %v1857 = vunpack.c.l.s4 1983009808
    %v1858 = vunpack.c.0.s8 %v1857
    %v1859 = vlaneseq
    %v1860 = vshrl.u32 %v1859, 7
    %v1861 = vsub.s32 %v1858, %v1860
    %v1862 = vrot.slane %v1855, %v1861
    %v1863 = vcombine.low %v1838, %v1846
    %v1864 = vcombine.high %v1838, %v1846
    %v1866 = vunpack.c.l.s4 1934713408
    %v1867 = vunpack.c.0.s8 %v1866
    %v1868 = vlaneseq
    %v1869 = vshrl.u32 %v1868, 7
    %v1870 = vsub.s32 %v1867, %v1869
    %v1871 = vrot.slane %v1863, %v1870
    %v1873 = vunpack.c.l.s4 1934713408
    %v1874 = vunpack.c.0.s8 %v1873
    %v1875 = vlaneseq
    %v1876 = vshrl.u32 %v1875, 7
    %v1877 = vsub.s32 %v1874, %v1876
    %v1878 = vrot.slane %v1864, %v1877
    %v1879 = vcombine.low %v1854, %v1862
    %v1880 = vcombine.high %v1854, %v1862
    %v1882 = vunpack.c.l.s4 1934713408
    %v1883 = vunpack.c.0.s8 %v1882
    %v1884 = vlaneseq
    %v1885 = vshrl.u32 %v1884, 7
    %v1886 = vsub.s32 %v1883, %v1885
    %v1887 = vrot.slane %v1879, %v1886
    %v1889 = vunpack.c.l.s4 1934713408
    %v1890 = vunpack.c.0.s8 %v1889
    %v1891 = vlaneseq
    %v1892 = vshrl.u32 %v1891, 7
    %v1893 = vsub.s32 %v1890, %v1892
    %v1894 = vrot.slane %v1880, %v1893
    %v1895 = vcombine.low %v1871, %v1887
    %v1896 = vcombine.high %v1871, %v1887
    %v1897 = vcombine.low %v1878, %v1894
    %v1898 = vcombine.high %v1878, %v1894
    %v1899 = vcombine.low %v1123, %v1130
    %v1901 = vunpack.c.l.s4 1983009808
    %v1902 = vunpack.c.0.s8 %v1901
    %v1903 = vlaneseq
    %v1904 = vshrl.u32 %v1903, 7
    %v1905 = vsub.s32 %v1902, %v1904
    %v1906 = vrot.slane %v1899, %v1905
    %v1907 = vcombine.low %v1147, %v1148
    %v1909 = vunpack.c.l.s4 1983009808
    %v1910 = vunpack.c.0.s8 %v1909
    %v1911 = vlaneseq
    %v1912 = vshrl.u32 %v1911, 7
    %v1913 = vsub.s32 %v1910, %v1912
    %v1914 = vrot.slane %v1907, %v1913
    %v1915 = vcombine.low %v1139, %v1146
    %v1917 = vunpack.c.l.s4 1983009808
    %v1918 = vunpack.c.0.s8 %v1917
    %v1919 = vlaneseq
    %v1920 = vshrl.u32 %v1919, 7
    %v1921 = vsub.s32 %v1918, %v1920
    %v1922 = vrot.slane %v1915, %v1921
    %v1923 = vcombine.low %v1149, %v1150
    %v1925 = vunpack.c.l.s4 1983009808
    %v1926 = vunpack.c.0.s8 %v1925
    %v1927 = vlaneseq
    %v1928 = vshrl.u32 %v1927, 7
    %v1929 = vsub.s32 %v1926, %v1928
    %v1930 = vrot.slane %v1923, %v1929
    %v1931 = vcombine.low %v1906, %v1914
    %v1932 = vcombine.high %v1906, %v1914
    %v1934 = vunpack.c.l.s4 1934713408
    %v1935 = vunpack.c.0.s8 %v1934
    %v1936 = vlaneseq
    %v1937 = vshrl.u32 %v1936, 7
    %v1938 = vsub.s32 %v1935, %v1937
    %v1939 = vrot.slane %v1931, %v1938
    %v1941 = vunpack.c.l.s4 1934713408
    %v1942 = vunpack.c.0.s8 %v1941
    %v1943 = vlaneseq
    %v1944 = vshrl.u32 %v1943, 7
    %v1945 = vsub.s32 %v1942, %v1944
    %v1946 = vrot.slane %v1932, %v1945
    %v1947 = vcombine.low %v1922, %v1930
    %v1948 = vcombine.high %v1922, %v1930
    %v1950 = vunpack.c.l.s4 1934713408
    %v1951 = vunpack.c.0.s8 %v1950
    %v1952 = vlaneseq
    %v1953 = vshrl.u32 %v1952, 7
    %v1954 = vsub.s32 %v1951, %v1953
    %v1955 = vrot.slane %v1947, %v1954
    %v1957 = vunpack.c.l.s4 1934713408
    %v1958 = vunpack.c.0.s8 %v1957
    %v1959 = vlaneseq
    %v1960 = vshrl.u32 %v1959, 7
    %v1961 = vsub.s32 %v1958, %v1960
    %v1962 = vrot.slane %v1948, %v1961
    %v1963 = vcombine.low %v1939, %v1955
    %v1964 = vcombine.high %v1939, %v1955
    %v1965 = vcombine.low %v1946, %v1962
    %v1966 = vcombine.high %v1946, %v1962
    %vm1967 = vcmask 64512
    %v1969 = vsel %vm1967, %v1279, 0
    %v1972 = vsel %vm1967, %v1283, 0
    %1974 = vmatprep.subr.mxu0 0.0
    %1975 = vmatpush1.xpose.msra.mxu0 0.0
    %1976 = vmatprep.subr.mxu0 0.0
    %1977 = vmatpush1.xpose.msra.mxu0 0.0
    %1978 = vmatprep.subr.mxu0 0.0
    %1979 = vmatpush1.xpose.msra.mxu0 0.0
    %1980 = vmatprep.subr.mxu0 0.0
    %1981 = vmatpush1.xpose.msra.mxu0 0.0
    %1982 = vmatprep.subr.mxu0 0.0
    %1983 = vmatpush1.xpose.msra.mxu0 0.0
    %1984 = vmatprep.subr.mxu0 0.0
    %1985 = vmatpush1.xpose.msra.mxu0 0.0
    %1986 = vmatprep.subr.mxu0 0.0
    %1987 = vmatpush1.xpose.msra.mxu0 0.0
    %1988 = vmatprep.subr.mxu0 0.0
    %1989 = vmatpush1.xpose.msra.mxu0 0.0
    %1990 = vmatprep.subr.mxu0 0.0
    %1991 = vmatpush1.xpose.msra.mxu0 0.0
    %1992 = vmatprep.subr.mxu0 0.0
    %1993 = vmatpush1.xpose.msra.mxu0 0.0
    %1994 = vmatprep.subr.mxu0 0.0
    %1995 = vmatpush1.xpose.msra.mxu0 0.0
    %1996 = vmatprep.subr.mxu0 0.0
    %1997 = vmatpush1.xpose.msra.mxu0 0.0
    %1998 = vmatprep.subr.mxu0 0.0
    %1999 = vmatpush1.xpose.msra.mxu0 0.0
    %2000 = vmatprep.subr.mxu0 0.0
    %2001 = vmatpush1.xpose.msra.mxu0 0.0
    %2002 = vmatprep.subr.mxu0 0.0
    %2003 = vmatpush1.xpose.msra.mxu0 0.0
    %2004 = vmatprep.subr.mxu0 0.0
    %2005 = vmatpush1.xpose.msra.mxu0 %v1972
    %2006 = vmatprep.subr.mxu0 0.0
    %2007 = vmatpush2.xpose.msra.mxu0 0.0
    %2008 = vmatprep.subr.mxu0 0.0
    %2009 = vmatpush2.xpose.msra.mxu0 0.0
    %2010 = vmatprep.subr.mxu0 0.0
    %2011 = vmatpush2.xpose.msra.mxu0 0.0
    %2012 = vmatprep.subr.mxu0 0.0
    %2013 = vmatpush2.xpose.msra.mxu0 0.0
    %2014 = vmatprep.subr.mxu0 0.0
    %2015 = vmatpush2.xpose.msra.mxu0 0.0
    %2016 = vmatprep.subr.mxu0 0.0
    %2017 = vmatpush2.xpose.msra.mxu0 0.0
    %2018 = vmatprep.subr.mxu0 0.0
    %2019 = vmatpush2.xpose.msra.mxu0 0.0
    %2020 = vmatprep.subr.mxu0 0.0
    %2021 = vmatpush2.xpose.msra.mxu0 0.0
    %2022 = vmatprep.subr.mxu0 0.0
    %2023 = vmatpush2.xpose.msra.mxu0 0.0
    %2024 = vmatprep.subr.mxu0 0.0
    %2025 = vmatpush2.xpose.msra.mxu0 0.0
    %2026 = vmatprep.subr.mxu0 0.0
    %2027 = vmatpush2.xpose.msra.mxu0 0.0
    %2028 = vmatprep.subr.mxu0 0.0
    %2029 = vmatpush2.xpose.msra.mxu0 0.0
    %2030 = vmatprep.subr.mxu0 0.0
    %2031 = vmatpush2.xpose.msra.mxu0 0.0
    %2032 = vmatprep.subr.mxu0 0.0
    %2033 = vmatpush2.xpose.msra.mxu0 0.0
    %2034 = vmatprep.subr.mxu0 0.0
    %2035 = vmatpush2.xpose.msra.mxu0 0.0
    %2036 = vmatprep.subr.mxu0 0.0
    %2037 = vmatpush2.xpose.msra.mxu0 0.0
    %2038 = vmatprep.mubr.f32.mxu0 0.0
    %2039 = vmatmul.mubr.f32.gmra.mxu0 %v1969
    %v2040 = vpop.f32.mrf.mxu0
    %v2041 = vadd.f32 %v80, %v2040
    %v2042 = vpop.f32.mrf.mxu0
    %2043 = vdwg.mxu0
    %v2045 = vsel %vm1967, %v1415, 0
    %v2048 = vsel %vm1967, %v1419, 0
    %2050 = vmatprep.subr.mxu0 0.0
    %2051 = vmatpush1.xpose.msra.mxu0 0.0
    %2052 = vmatprep.subr.mxu0 0.0
    %2053 = vmatpush1.xpose.msra.mxu0 0.0
    %2054 = vmatprep.subr.mxu0 0.0
    %2055 = vmatpush1.xpose.msra.mxu0 0.0
    %2056 = vmatprep.subr.mxu0 0.0
    %2057 = vmatpush1.xpose.msra.mxu0 0.0
    %2058 = vmatprep.subr.mxu0 0.0
    %2059 = vmatpush1.xpose.msra.mxu0 0.0
    %2060 = vmatprep.subr.mxu0 0.0
    %2061 = vmatpush1.xpose.msra.mxu0 0.0
    %2062 = vmatprep.subr.mxu0 0.0
    %2063 = vmatpush1.xpose.msra.mxu0 0.0
    %2064 = vmatprep.subr.mxu0 0.0
    %2065 = vmatpush1.xpose.msra.mxu0 0.0
    %2066 = vmatprep.subr.mxu0 0.0
    %2067 = vmatpush1.xpose.msra.mxu0 0.0
    %2068 = vmatprep.subr.mxu0 0.0
    %2069 = vmatpush1.xpose.msra.mxu0 0.0
    %2070 = vmatprep.subr.mxu0 0.0
    %2071 = vmatpush1.xpose.msra.mxu0 0.0
    %2072 = vmatprep.subr.mxu0 0.0
    %2073 = vmatpush1.xpose.msra.mxu0 0.0
    %2074 = vmatprep.subr.mxu0 0.0
    %2075 = vmatpush1.xpose.msra.mxu0 0.0
    %2076 = vmatprep.subr.mxu0 0.0
    %2077 = vmatpush1.xpose.msra.mxu0 0.0
    %2078 = vmatprep.subr.mxu0 0.0
    %2079 = vmatpush1.xpose.msra.mxu0 0.0
    %2080 = vmatprep.subr.mxu0 0.0
    %2081 = vmatpush1.xpose.msra.mxu0 %v2048
    %2082 = vmatprep.subr.mxu0 0.0
    %2083 = vmatpush2.xpose.msra.mxu0 0.0
    %2084 = vmatprep.subr.mxu0 0.0
    %2085 = vmatpush2.xpose.msra.mxu0 0.0
    %2086 = vmatprep.subr.mxu0 0.0
    %2087 = vmatpush2.xpose.msra.mxu0 0.0
    %2088 = vmatprep.subr.mxu0 0.0
    %2089 = vmatpush2.xpose.msra.mxu0 0.0
    %2090 = vmatprep.subr.mxu0 0.0
    %2091 = vmatpush2.xpose.msra.mxu0 0.0
    %2092 = vmatprep.subr.mxu0 0.0
    %2093 = vmatpush2.xpose.msra.mxu0 0.0
    %2094 = vmatprep.subr.mxu0 0.0
    %2095 = vmatpush2.xpose.msra.mxu0 0.0
    %2096 = vmatprep.subr.mxu0 0.0
    %2097 = vmatpush2.xpose.msra.mxu0 0.0
    %2098 = vmatprep.subr.mxu0 0.0
    %2099 = vmatpush2.xpose.msra.mxu0 0.0
    %2100 = vmatprep.subr.mxu0 0.0
    %2101 = vmatpush2.xpose.msra.mxu0 0.0
    %2102 = vmatprep.subr.mxu0 0.0
    %2103 = vmatpush2.xpose.msra.mxu0 0.0
    %2104 = vmatprep.subr.mxu0 0.0
    %2105 = vmatpush2.xpose.msra.mxu0 0.0
    %2106 = vmatprep.subr.mxu0 0.0
    %2107 = vmatpush2.xpose.msra.mxu0 0.0
    %2108 = vmatprep.subr.mxu0 0.0
    %2109 = vmatpush2.xpose.msra.mxu0 0.0
    %2110 = vmatprep.subr.mxu0 0.0
    %2111 = vmatpush2.xpose.msra.mxu0 0.0
    %2112 = vmatprep.subr.mxu0 0.0
    %2113 = vmatpush2.xpose.msra.mxu0 0.0
    %2114 = vmatprep.mubr.f32.mxu0 0.0
    %2115 = vmatmul.mubr.f32.gmra.mxu0 %v2045
    %v2116 = vpop.f32.mrf.mxu0
    %v2117 = vadd.f32 %v80, %v2116
    %v2118 = vpop.f32.mrf.mxu0
    %2119 = vdwg.mxu0
    %v2121 = vsel %vm1967, %v1551, 0
    %v2124 = vsel %vm1967, %v1555, 0
    %2126 = vmatprep.subr.mxu0 0.0
    %2127 = vmatpush1.xpose.msra.mxu0 0.0
    %2128 = vmatprep.subr.mxu0 0.0
    %2129 = vmatpush1.xpose.msra.mxu0 0.0
    %2130 = vmatprep.subr.mxu0 0.0
    %2131 = vmatpush1.xpose.msra.mxu0 0.0
    %2132 = vmatprep.subr.mxu0 0.0
    %2133 = vmatpush1.xpose.msra.mxu0 0.0
    %2134 = vmatprep.subr.mxu0 0.0
    %2135 = vmatpush1.xpose.msra.mxu0 0.0
    %2136 = vmatprep.subr.mxu0 0.0
    %2137 = vmatpush1.xpose.msra.mxu0 0.0
    %2138 = vmatprep.subr.mxu0 0.0
    %2139 = vmatpush1.xpose.msra.mxu0 0.0
    %2140 = vmatprep.subr.mxu0 0.0
    %2141 = vmatpush1.xpose.msra.mxu0 0.0
    %2142 = vmatprep.subr.mxu0 0.0
    %2143 = vmatpush1.xpose.msra.mxu0 0.0
    %2144 = vmatprep.subr.mxu0 0.0
    %2145 = vmatpush1.xpose.msra.mxu0 0.0
    %2146 = vmatprep.subr.mxu0 0.0
    %2147 = vmatpush1.xpose.msra.mxu0 0.0
    %2148 = vmatprep.subr.mxu0 0.0
    %2149 = vmatpush1.xpose.msra.mxu0 0.0
    %2150 = vmatprep.subr.mxu0 0.0
    %2151 = vmatpush1.xpose.msra.mxu0 0.0
    %2152 = vmatprep.subr.mxu0 0.0
    %2153 = vmatpush1.xpose.msra.mxu0 0.0
    %2154 = vmatprep.subr.mxu0 0.0
    %2155 = vmatpush1.xpose.msra.mxu0 0.0
    %2156 = vmatprep.subr.mxu0 0.0
    %2157 = vmatpush1.xpose.msra.mxu0 %v2124
    %2158 = vmatprep.subr.mxu0 0.0
    %2159 = vmatpush2.xpose.msra.mxu0 0.0
    %2160 = vmatprep.subr.mxu0 0.0
    %2161 = vmatpush2.xpose.msra.mxu0 0.0
    %2162 = vmatprep.subr.mxu0 0.0
    %2163 = vmatpush2.xpose.msra.mxu0 0.0
    %2164 = vmatprep.subr.mxu0 0.0
    %2165 = vmatpush2.xpose.msra.mxu0 0.0
    %2166 = vmatprep.subr.mxu0 0.0
    %2167 = vmatpush2.xpose.msra.mxu0 0.0
    %2168 = vmatprep.subr.mxu0 0.0
    %2169 = vmatpush2.xpose.msra.mxu0 0.0
    %2170 = vmatprep.subr.mxu0 0.0
    %2171 = vmatpush2.xpose.msra.mxu0 0.0
    %2172 = vmatprep.subr.mxu0 0.0
    %2173 = vmatpush2.xpose.msra.mxu0 0.0
    %2174 = vmatprep.subr.mxu0 0.0
    %2175 = vmatpush2.xpose.msra.mxu0 0.0
    %2176 = vmatprep.subr.mxu0 0.0
    %2177 = vmatpush2.xpose.msra.mxu0 0.0
    %2178 = vmatprep.subr.mxu0 0.0
    %2179 = vmatpush2.xpose.msra.mxu0 0.0
    %2180 = vmatprep.subr.mxu0 0.0
    %2181 = vmatpush2.xpose.msra.mxu0 0.0
    %2182 = vmatprep.subr.mxu0 0.0
    %2183 = vmatpush2.xpose.msra.mxu0 0.0
    %2184 = vmatprep.subr.mxu0 0.0
    %2185 = vmatpush2.xpose.msra.mxu0 0.0
    %2186 = vmatprep.subr.mxu0 0.0
    %2187 = vmatpush2.xpose.msra.mxu0 0.0
    %2188 = vmatprep.subr.mxu0 0.0
    %2189 = vmatpush2.xpose.msra.mxu0 0.0
    %2190 = vmatprep.mubr.f32.mxu0 0.0
    %2191 = vmatmul.mubr.f32.gmra.mxu0 %v2121
    %v2192 = vpop.f32.mrf.mxu0
    %v2193 = vadd.f32 %v80, %v2192
    %v2194 = vpop.f32.mrf.mxu0
    %2195 = vdwg.mxu0
    %v2197 = vsel %vm1967, %v1687, 0
    %v2200 = vsel %vm1967, %v1691, 0
    %2202 = vmatprep.subr.mxu0 0.0
    %2203 = vmatpush1.xpose.msra.mxu0 0.0
    %2204 = vmatprep.subr.mxu0 0.0
    %2205 = vmatpush1.xpose.msra.mxu0 0.0
    %2206 = vmatprep.subr.mxu0 0.0
    %2207 = vmatpush1.xpose.msra.mxu0 0.0
    %2208 = vmatprep.subr.mxu0 0.0
    %2209 = vmatpush1.xpose.msra.mxu0 0.0
    %2210 = vmatprep.subr.mxu0 0.0
    %2211 = vmatpush1.xpose.msra.mxu0 0.0
    %2212 = vmatprep.subr.mxu0 0.0
    %2213 = vmatpush1.xpose.msra.mxu0 0.0
    %2214 = vmatprep.subr.mxu0 0.0
    %2215 = vmatpush1.xpose.msra.mxu0 0.0
    %2216 = vmatprep.subr.mxu0 0.0
    %2217 = vmatpush1.xpose.msra.mxu0 0.0
    %2218 = vmatprep.subr.mxu0 0.0
    %2219 = vmatpush1.xpose.msra.mxu0 0.0
    %2220 = vmatprep.subr.mxu0 0.0
    %2221 = vmatpush1.xpose.msra.mxu0 0.0
    %2222 = vmatprep.subr.mxu0 0.0
    %2223 = vmatpush1.xpose.msra.mxu0 0.0
    %2224 = vmatprep.subr.mxu0 0.0
    %2225 = vmatpush1.xpose.msra.mxu0 0.0
    %2226 = vmatprep.subr.mxu0 0.0
    %2227 = vmatpush1.xpose.msra.mxu0 0.0
    %2228 = vmatprep.subr.mxu0 0.0
    %2229 = vmatpush1.xpose.msra.mxu0 0.0
    %2230 = vmatprep.subr.mxu0 0.0
    %2231 = vmatpush1.xpose.msra.mxu0 0.0
    %2232 = vmatprep.subr.mxu0 0.0
    %2233 = vmatpush1.xpose.msra.mxu0 %v2200
    %2234 = vmatprep.subr.mxu0 0.0
    %2235 = vmatpush2.xpose.msra.mxu0 0.0
    %2236 = vmatprep.subr.mxu0 0.0
    %2237 = vmatpush2.xpose.msra.mxu0 0.0
    %2238 = vmatprep.subr.mxu0 0.0
    %2239 = vmatpush2.xpose.msra.mxu0 0.0
    %2240 = vmatprep.subr.mxu0 0.0
    %2241 = vmatpush2.xpose.msra.mxu0 0.0
    %2242 = vmatprep.subr.mxu0 0.0
    %2243 = vmatpush2.xpose.msra.mxu0 0.0
    %2244 = vmatprep.subr.mxu0 0.0
    %2245 = vmatpush2.xpose.msra.mxu0 0.0
    %2246 = vmatprep.subr.mxu0 0.0
    %2247 = vmatpush2.xpose.msra.mxu0 0.0
    %2248 = vmatprep.subr.mxu0 0.0
    %2249 = vmatpush2.xpose.msra.mxu0 0.0
    %2250 = vmatprep.subr.mxu0 0.0
    %2251 = vmatpush2.xpose.msra.mxu0 0.0
    %2252 = vmatprep.subr.mxu0 0.0
    %2253 = vmatpush2.xpose.msra.mxu0 0.0
    %2254 = vmatprep.subr.mxu0 0.0
    %2255 = vmatpush2.xpose.msra.mxu0 0.0
    %2256 = vmatprep.subr.mxu0 0.0
    %2257 = vmatpush2.xpose.msra.mxu0 0.0
    %2258 = vmatprep.subr.mxu0 0.0
    %2259 = vmatpush2.xpose.msra.mxu0 0.0
    %2260 = vmatprep.subr.mxu0 0.0
    %2261 = vmatpush2.xpose.msra.mxu0 0.0
    %2262 = vmatprep.subr.mxu0 0.0
    %2263 = vmatpush2.xpose.msra.mxu0 0.0
    %2264 = vmatprep.subr.mxu0 0.0
    %2265 = vmatpush2.xpose.msra.mxu0 0.0
    %2266 = vmatprep.mubr.f32.mxu0 0.0
    %2267 = vmatmul.mubr.f32.gmra.mxu0 %v2197
    %v2268 = vpop.f32.mrf.mxu0
    %v2269 = vadd.f32 %v80, %v2268
    %v2270 = vpop.f32.mrf.mxu0
    %2271 = vdwg.mxu0
    %v2273 = vsel %vm1967, %v1280, 0
    %v2276 = vsel %vm1967, %v1284, 0
    %2278 = vmatprep.subr.mxu0 0.0
    %2279 = vmatpush1.xpose.msra.mxu0 0.0
    %2280 = vmatprep.subr.mxu0 0.0
    %2281 = vmatpush1.xpose.msra.mxu0 0.0
    %2282 = vmatprep.subr.mxu0 0.0
    %2283 = vmatpush1.xpose.msra.mxu0 0.0
    %2284 = vmatprep.subr.mxu0 0.0
    %2285 = vmatpush1.xpose.msra.mxu0 0.0
    %2286 = vmatprep.subr.mxu0 0.0
    %2287 = vmatpush1.xpose.msra.mxu0 0.0
    %2288 = vmatprep.subr.mxu0 0.0
    %2289 = vmatpush1.xpose.msra.mxu0 0.0
    %2290 = vmatprep.subr.mxu0 0.0
    %2291 = vmatpush1.xpose.msra.mxu0 0.0
    %2292 = vmatprep.subr.mxu0 0.0
    %2293 = vmatpush1.xpose.msra.mxu0 0.0
    %2294 = vmatprep.subr.mxu0 0.0
    %2295 = vmatpush1.xpose.msra.mxu0 0.0
    %2296 = vmatprep.subr.mxu0 0.0
    %2297 = vmatpush1.xpose.msra.mxu0 0.0
    %2298 = vmatprep.subr.mxu0 0.0
    %2299 = vmatpush1.xpose.msra.mxu0 0.0
    %2300 = vmatprep.subr.mxu0 0.0
    %2301 = vmatpush1.xpose.msra.mxu0 0.0
    %2302 = vmatprep.subr.mxu0 0.0
    %2303 = vmatpush1.xpose.msra.mxu0 0.0
    %2304 = vmatprep.subr.mxu0 0.0
    %2305 = vmatpush1.xpose.msra.mxu0 0.0
    %2306 = vmatprep.subr.mxu0 0.0
    %2307 = vmatpush1.xpose.msra.mxu0 0.0
    %2308 = vmatprep.subr.mxu0 0.0
    %2309 = vmatpush1.xpose.msra.mxu0 %v2276
    %2310 = vmatprep.subr.mxu0 0.0
    %2311 = vmatpush2.xpose.msra.mxu0 0.0
    %2312 = vmatprep.subr.mxu0 0.0
    %2313 = vmatpush2.xpose.msra.mxu0 0.0
    %2314 = vmatprep.subr.mxu0 0.0
    %2315 = vmatpush2.xpose.msra.mxu0 0.0
    %2316 = vmatprep.subr.mxu0 0.0
    %2317 = vmatpush2.xpose.msra.mxu0 0.0
    %2318 = vmatprep.subr.mxu0 0.0
    %2319 = vmatpush2.xpose.msra.mxu0 0.0
    %2320 = vmatprep.subr.mxu0 0.0
    %2321 = vmatpush2.xpose.msra.mxu0 0.0
    %2322 = vmatprep.subr.mxu0 0.0
    %2323 = vmatpush2.xpose.msra.mxu0 0.0
    %2324 = vmatprep.subr.mxu0 0.0
    %2325 = vmatpush2.xpose.msra.mxu0 0.0
    %2326 = vmatprep.subr.mxu0 0.0
    %2327 = vmatpush2.xpose.msra.mxu0 0.0
    %2328 = vmatprep.subr.mxu0 0.0
    %2329 = vmatpush2.xpose.msra.mxu0 0.0
    %2330 = vmatprep.subr.mxu0 0.0
    %2331 = vmatpush2.xpose.msra.mxu0 0.0
    %2332 = vmatprep.subr.mxu0 0.0
    %2333 = vmatpush2.xpose.msra.mxu0 0.0
    %2334 = vmatprep.subr.mxu0 0.0
    %2335 = vmatpush2.xpose.msra.mxu0 0.0
    %2336 = vmatprep.subr.mxu0 0.0
    %2337 = vmatpush2.xpose.msra.mxu0 0.0
    %2338 = vmatprep.subr.mxu0 0.0
    %2339 = vmatpush2.xpose.msra.mxu0 0.0
    %2340 = vmatprep.subr.mxu0 0.0
    %2341 = vmatpush2.xpose.msra.mxu0 0.0
    %2342 = vmatprep.mubr.f32.mxu0 0.0
    %2343 = vmatmul.mubr.f32.gmra.mxu0 %v2273
    %v2344 = vpop.f32.mrf.mxu0
    %v2345 = vadd.f32 %v80, %v2344
    %v2346 = vpop.f32.mrf.mxu0
    %2347 = vdwg.mxu0
    %v2349 = vsel %vm1967, %v1416, 0
    %v2352 = vsel %vm1967, %v1420, 0
    %2354 = vmatprep.subr.mxu0 0.0
    %2355 = vmatpush1.xpose.msra.mxu0 0.0
    %2356 = vmatprep.subr.mxu0 0.0
    %2357 = vmatpush1.xpose.msra.mxu0 0.0
    %2358 = vmatprep.subr.mxu0 0.0
    %2359 = vmatpush1.xpose.msra.mxu0 0.0
    %2360 = vmatprep.subr.mxu0 0.0
    %2361 = vmatpush1.xpose.msra.mxu0 0.0
    %2362 = vmatprep.subr.mxu0 0.0
    %2363 = vmatpush1.xpose.msra.mxu0 0.0
    %2364 = vmatprep.subr.mxu0 0.0
    %2365 = vmatpush1.xpose.msra.mxu0 0.0
    %2366 = vmatprep.subr.mxu0 0.0
    %2367 = vmatpush1.xpose.msra.mxu0 0.0
    %2368 = vmatprep.subr.mxu0 0.0
    %2369 = vmatpush1.xpose.msra.mxu0 0.0
    %2370 = vmatprep.subr.mxu0 0.0
    %2371 = vmatpush1.xpose.msra.mxu0 0.0
    %2372 = vmatprep.subr.mxu0 0.0
    %2373 = vmatpush1.xpose.msra.mxu0 0.0
    %2374 = vmatprep.subr.mxu0 0.0
    %2375 = vmatpush1.xpose.msra.mxu0 0.0
    %2376 = vmatprep.subr.mxu0 0.0
    %2377 = vmatpush1.xpose.msra.mxu0 0.0
    %2378 = vmatprep.subr.mxu0 0.0
    %2379 = vmatpush1.xpose.msra.mxu0 0.0
    %2380 = vmatprep.subr.mxu0 0.0
    %2381 = vmatpush1.xpose.msra.mxu0 0.0
    %2382 = vmatprep.subr.mxu0 0.0
    %2383 = vmatpush1.xpose.msra.mxu0 0.0
    %2384 = vmatprep.subr.mxu0 0.0
    %2385 = vmatpush1.xpose.msra.mxu0 %v2352
    %2386 = vmatprep.subr.mxu0 0.0
    %2387 = vmatpush2.xpose.msra.mxu0 0.0
    %2388 = vmatprep.subr.mxu0 0.0
    %2389 = vmatpush2.xpose.msra.mxu0 0.0
    %2390 = vmatprep.subr.mxu0 0.0
    %2391 = vmatpush2.xpose.msra.mxu0 0.0
    %2392 = vmatprep.subr.mxu0 0.0
    %2393 = vmatpush2.xpose.msra.mxu0 0.0
    %2394 = vmatprep.subr.mxu0 0.0
    %2395 = vmatpush2.xpose.msra.mxu0 0.0
    %2396 = vmatprep.subr.mxu0 0.0
    %2397 = vmatpush2.xpose.msra.mxu0 0.0
    %2398 = vmatprep.subr.mxu0 0.0
    %2399 = vmatpush2.xpose.msra.mxu0 0.0
    %2400 = vmatprep.subr.mxu0 0.0
    %2401 = vmatpush2.xpose.msra.mxu0 0.0
    %2402 = vmatprep.subr.mxu0 0.0
    %2403 = vmatpush2.xpose.msra.mxu0 0.0
    %2404 = vmatprep.subr.mxu0 0.0
    %2405 = vmatpush2.xpose.msra.mxu0 0.0
    %2406 = vmatprep.subr.mxu0 0.0
    %2407 = vmatpush2.xpose.msra.mxu0 0.0
    %2408 = vmatprep.subr.mxu0 0.0
    %2409 = vmatpush2.xpose.msra.mxu0 0.0
    %2410 = vmatprep.subr.mxu0 0.0
    %2411 = vmatpush2.xpose.msra.mxu0 0.0
    %2412 = vmatprep.subr.mxu0 0.0
    %2413 = vmatpush2.xpose.msra.mxu0 0.0
    %2414 = vmatprep.subr.mxu0 0.0
    %2415 = vmatpush2.xpose.msra.mxu0 0.0
    %2416 = vmatprep.subr.mxu0 0.0
    %2417 = vmatpush2.xpose.msra.mxu0 0.0
    %2418 = vmatprep.mubr.f32.mxu0 0.0
    %2419 = vmatmul.mubr.f32.gmra.mxu0 %v2349
    %v2420 = vpop.f32.mrf.mxu0
    %v2421 = vadd.f32 %v80, %v2420
    %v2422 = vpop.f32.mrf.mxu0
    %2423 = vdwg.mxu0
    %v2425 = vsel %vm1967, %v1552, 0
    %v2428 = vsel %vm1967, %v1556, 0
    %2430 = vmatprep.subr.mxu0 0.0
    %2431 = vmatpush1.xpose.msra.mxu0 0.0
    %2432 = vmatprep.subr.mxu0 0.0
    %2433 = vmatpush1.xpose.msra.mxu0 0.0
    %2434 = vmatprep.subr.mxu0 0.0
    %2435 = vmatpush1.xpose.msra.mxu0 0.0
    %2436 = vmatprep.subr.mxu0 0.0
    %2437 = vmatpush1.xpose.msra.mxu0 0.0
    %2438 = vmatprep.subr.mxu0 0.0
    %2439 = vmatpush1.xpose.msra.mxu0 0.0
    %2440 = vmatprep.subr.mxu0 0.0
    %2441 = vmatpush1.xpose.msra.mxu0 0.0
    %2442 = vmatprep.subr.mxu0 0.0
    %2443 = vmatpush1.xpose.msra.mxu0 0.0
    %2444 = vmatprep.subr.mxu0 0.0
    %2445 = vmatpush1.xpose.msra.mxu0 0.0
    %2446 = vmatprep.subr.mxu0 0.0
    %2447 = vmatpush1.xpose.msra.mxu0 0.0
    %2448 = vmatprep.subr.mxu0 0.0
    %2449 = vmatpush1.xpose.msra.mxu0 0.0
    %2450 = vmatprep.subr.mxu0 0.0
    %2451 = vmatpush1.xpose.msra.mxu0 0.0
    %2452 = vmatprep.subr.mxu0 0.0
    %2453 = vmatpush1.xpose.msra.mxu0 0.0
    %2454 = vmatprep.subr.mxu0 0.0
    %2455 = vmatpush1.xpose.msra.mxu0 0.0
    %2456 = vmatprep.subr.mxu0 0.0
    %2457 = vmatpush1.xpose.msra.mxu0 0.0
    %2458 = vmatprep.subr.mxu0 0.0
    %2459 = vmatpush1.xpose.msra.mxu0 0.0
    %2460 = vmatprep.subr.mxu0 0.0
    %2461 = vmatpush1.xpose.msra.mxu0 %v2428
    %2462 = vmatprep.subr.mxu0 0.0
    %2463 = vmatpush2.xpose.msra.mxu0 0.0
    %2464 = vmatprep.subr.mxu0 0.0
    %2465 = vmatpush2.xpose.msra.mxu0 0.0
    %2466 = vmatprep.subr.mxu0 0.0
    %2467 = vmatpush2.xpose.msra.mxu0 0.0
    %2468 = vmatprep.subr.mxu0 0.0
    %2469 = vmatpush2.xpose.msra.mxu0 0.0
    %2470 = vmatprep.subr.mxu0 0.0
    %2471 = vmatpush2.xpose.msra.mxu0 0.0
    %2472 = vmatprep.subr.mxu0 0.0
    %2473 = vmatpush2.xpose.msra.mxu0 0.0
    %2474 = vmatprep.subr.mxu0 0.0
    %2475 = vmatpush2.xpose.msra.mxu0 0.0
    %2476 = vmatprep.subr.mxu0 0.0
    %2477 = vmatpush2.xpose.msra.mxu0 0.0
    %2478 = vmatprep.subr.mxu0 0.0
    %2479 = vmatpush2.xpose.msra.mxu0 0.0
    %2480 = vmatprep.subr.mxu0 0.0
    %2481 = vmatpush2.xpose.msra.mxu0 0.0
    %2482 = vmatprep.subr.mxu0 0.0
    %2483 = vmatpush2.xpose.msra.mxu0 0.0
    %2484 = vmatprep.subr.mxu0 0.0
    %2485 = vmatpush2.xpose.msra.mxu0 0.0
    %2486 = vmatprep.subr.mxu0 0.0
    %2487 = vmatpush2.xpose.msra.mxu0 0.0
    %2488 = vmatprep.subr.mxu0 0.0
    %2489 = vmatpush2.xpose.msra.mxu0 0.0
    %2490 = vmatprep.subr.mxu0 0.0
    %2491 = vmatpush2.xpose.msra.mxu0 0.0
    %2492 = vmatprep.subr.mxu0 0.0
    %2493 = vmatpush2.xpose.msra.mxu0 0.0
    %2494 = vmatprep.mubr.f32.mxu0 0.0
    %2495 = vmatmul.mubr.f32.gmra.mxu0 %v2425
    %v2496 = vpop.f32.mrf.mxu0
    %v2497 = vadd.f32 %v80, %v2496
    %v2498 = vpop.f32.mrf.mxu0
    %2499 = vdwg.mxu0
    %v2501 = vsel %vm1967, %v1688, 0
    %v2504 = vsel %vm1967, %v1692, 0
    %2506 = vmatprep.subr.mxu0 0.0
    %2507 = vmatpush1.xpose.msra.mxu0 0.0
    %2508 = vmatprep.subr.mxu0 0.0
    %2509 = vmatpush1.xpose.msra.mxu0 0.0
    %2510 = vmatprep.subr.mxu0 0.0
    %2511 = vmatpush1.xpose.msra.mxu0 0.0
    %2512 = vmatprep.subr.mxu0 0.0
    %2513 = vmatpush1.xpose.msra.mxu0 0.0
    %2514 = vmatprep.subr.mxu0 0.0
    %2515 = vmatpush1.xpose.msra.mxu0 0.0
    %2516 = vmatprep.subr.mxu0 0.0
    %2517 = vmatpush1.xpose.msra.mxu0 0.0
    %2518 = vmatprep.subr.mxu0 0.0
    %2519 = vmatpush1.xpose.msra.mxu0 0.0
    %2520 = vmatprep.subr.mxu0 0.0
    %2521 = vmatpush1.xpose.msra.mxu0 0.0
    %2522 = vmatprep.subr.mxu0 0.0
    %2523 = vmatpush1.xpose.msra.mxu0 0.0
    %2524 = vmatprep.subr.mxu0 0.0
    %2525 = vmatpush1.xpose.msra.mxu0 0.0
    %2526 = vmatprep.subr.mxu0 0.0
    %2527 = vmatpush1.xpose.msra.mxu0 0.0
    %2528 = vmatprep.subr.mxu0 0.0
    %2529 = vmatpush1.xpose.msra.mxu0 0.0
    %2530 = vmatprep.subr.mxu0 0.0
    %2531 = vmatpush1.xpose.msra.mxu0 0.0
    %2532 = vmatprep.subr.mxu0 0.0
    %2533 = vmatpush1.xpose.msra.mxu0 0.0
    %2534 = vmatprep.subr.mxu0 0.0
    %2535 = vmatpush1.xpose.msra.mxu0 0.0
    %2536 = vmatprep.subr.mxu0 0.0
    %2537 = vmatpush1.xpose.msra.mxu0 %v2504
    %2538 = vmatprep.subr.mxu0 0.0
    %2539 = vmatpush2.xpose.msra.mxu0 0.0
    %2540 = vmatprep.subr.mxu0 0.0
    %2541 = vmatpush2.xpose.msra.mxu0 0.0
    %2542 = vmatprep.subr.mxu0 0.0
    %2543 = vmatpush2.xpose.msra.mxu0 0.0
    %2544 = vmatprep.subr.mxu0 0.0
    %2545 = vmatpush2.xpose.msra.mxu0 0.0
    %2546 = vmatprep.subr.mxu0 0.0
    %2547 = vmatpush2.xpose.msra.mxu0 0.0
    %2548 = vmatprep.subr.mxu0 0.0
    %2549 = vmatpush2.xpose.msra.mxu0 0.0
    %2550 = vmatprep.subr.mxu0 0.0
    %2551 = vmatpush2.xpose.msra.mxu0 0.0
    %2552 = vmatprep.subr.mxu0 0.0
    %2553 = vmatpush2.xpose.msra.mxu0 0.0
    %2554 = vmatprep.subr.mxu0 0.0
    %2555 = vmatpush2.xpose.msra.mxu0 0.0
    %2556 = vmatprep.subr.mxu0 0.0
    %2557 = vmatpush2.xpose.msra.mxu0 0.0
    %2558 = vmatprep.subr.mxu0 0.0
    %2559 = vmatpush2.xpose.msra.mxu0 0.0
    %2560 = vmatprep.subr.mxu0 0.0
    %2561 = vmatpush2.xpose.msra.mxu0 0.0
    %2562 = vmatprep.subr.mxu0 0.0
    %2563 = vmatpush2.xpose.msra.mxu0 0.0
    %2564 = vmatprep.subr.mxu0 0.0
    %2565 = vmatpush2.xpose.msra.mxu0 0.0
    %2566 = vmatprep.subr.mxu0 0.0
    %2567 = vmatpush2.xpose.msra.mxu0 0.0
    %2568 = vmatprep.subr.mxu0 0.0
    %2569 = vmatpush2.xpose.msra.mxu0 0.0
    %2570 = vmatprep.mubr.f32.mxu0 0.0
    %2571 = vmatmul.mubr.f32.gmra.mxu0 %v2501
    %v2572 = vpop.f32.mrf.mxu0
    %v2573 = vadd.f32 %v80, %v2572
    %v2574 = vpop.f32.mrf.mxu0
    %2575 = vdwg.mxu0
    %v2577 = vsel %vm1967, %v1281, 0
    %v2580 = vsel %vm1967, %v1285, 0
    %2582 = vmatprep.subr.mxu0 0.0
    %2583 = vmatpush1.xpose.msra.mxu0 0.0
    %2584 = vmatprep.subr.mxu0 0.0
    %2585 = vmatpush1.xpose.msra.mxu0 0.0
    %2586 = vmatprep.subr.mxu0 0.0
    %2587 = vmatpush1.xpose.msra.mxu0 0.0
    %2588 = vmatprep.subr.mxu0 0.0
    %2589 = vmatpush1.xpose.msra.mxu0 0.0
    %2590 = vmatprep.subr.mxu0 0.0
    %2591 = vmatpush1.xpose.msra.mxu0 0.0
    %2592 = vmatprep.subr.mxu0 0.0
    %2593 = vmatpush1.xpose.msra.mxu0 0.0
    %2594 = vmatprep.subr.mxu0 0.0
    %2595 = vmatpush1.xpose.msra.mxu0 0.0
    %2596 = vmatprep.subr.mxu0 0.0
    %2597 = vmatpush1.xpose.msra.mxu0 0.0
    %2598 = vmatprep.subr.mxu0 0.0
    %2599 = vmatpush1.xpose.msra.mxu0 0.0
    %2600 = vmatprep.subr.mxu0 0.0
    %2601 = vmatpush1.xpose.msra.mxu0 0.0
    %2602 = vmatprep.subr.mxu0 0.0
    %2603 = vmatpush1.xpose.msra.mxu0 0.0
    %2604 = vmatprep.subr.mxu0 0.0
    %2605 = vmatpush1.xpose.msra.mxu0 0.0
    %2606 = vmatprep.subr.mxu0 0.0
    %2607 = vmatpush1.xpose.msra.mxu0 0.0
    %2608 = vmatprep.subr.mxu0 0.0
    %2609 = vmatpush1.xpose.msra.mxu0 0.0
    %2610 = vmatprep.subr.mxu0 0.0
    %2611 = vmatpush1.xpose.msra.mxu0 0.0
    %2612 = vmatprep.subr.mxu0 0.0
    %2613 = vmatpush1.xpose.msra.mxu0 %v2580
    %2614 = vmatprep.subr.mxu0 0.0
    %2615 = vmatpush2.xpose.msra.mxu0 0.0
    %2616 = vmatprep.subr.mxu0 0.0
    %2617 = vmatpush2.xpose.msra.mxu0 0.0
    %2618 = vmatprep.subr.mxu0 0.0
    %2619 = vmatpush2.xpose.msra.mxu0 0.0
    %2620 = vmatprep.subr.mxu0 0.0
    %2621 = vmatpush2.xpose.msra.mxu0 0.0
    %2622 = vmatprep.subr.mxu0 0.0
    %2623 = vmatpush2.xpose.msra.mxu0 0.0
    %2624 = vmatprep.subr.mxu0 0.0
    %2625 = vmatpush2.xpose.msra.mxu0 0.0
    %2626 = vmatprep.subr.mxu0 0.0
    %2627 = vmatpush2.xpose.msra.mxu0 0.0
    %2628 = vmatprep.subr.mxu0 0.0
    %2629 = vmatpush2.xpose.msra.mxu0 0.0
    %2630 = vmatprep.subr.mxu0 0.0
    %2631 = vmatpush2.xpose.msra.mxu0 0.0
    %2632 = vmatprep.subr.mxu0 0.0
    %2633 = vmatpush2.xpose.msra.mxu0 0.0
    %2634 = vmatprep.subr.mxu0 0.0
    %2635 = vmatpush2.xpose.msra.mxu0 0.0
    %2636 = vmatprep.subr.mxu0 0.0
    %2637 = vmatpush2.xpose.msra.mxu0 0.0
    %2638 = vmatprep.subr.mxu0 0.0
    %2639 = vmatpush2.xpose.msra.mxu0 0.0
    %2640 = vmatprep.subr.mxu0 0.0
    %2641 = vmatpush2.xpose.msra.mxu0 0.0
    %2642 = vmatprep.subr.mxu0 0.0
    %2643 = vmatpush2.xpose.msra.mxu0 0.0
    %2644 = vmatprep.subr.mxu0 0.0
    %2645 = vmatpush2.xpose.msra.mxu0 0.0
    %2646 = vmatprep.mubr.f32.mxu0 0.0
    %2647 = vmatmul.mubr.f32.gmra.mxu0 %v2577
    %v2648 = vpop.f32.mrf.mxu0
    %v2649 = vadd.f32 %v80, %v2648
    %v2650 = vpop.f32.mrf.mxu0
    %2651 = vdwg.mxu0
    %v2653 = vsel %vm1967, %v1417, 0
    %v2656 = vsel %vm1967, %v1421, 0
    %2658 = vmatprep.subr.mxu0 0.0
    %2659 = vmatpush1.xpose.msra.mxu0 0.0
    %2660 = vmatprep.subr.mxu0 0.0
    %2661 = vmatpush1.xpose.msra.mxu0 0.0
    %2662 = vmatprep.subr.mxu0 0.0
    %2663 = vmatpush1.xpose.msra.mxu0 0.0
    %2664 = vmatprep.subr.mxu0 0.0
    %2665 = vmatpush1.xpose.msra.mxu0 0.0
    %2666 = vmatprep.subr.mxu0 0.0
    %2667 = vmatpush1.xpose.msra.mxu0 0.0
    %2668 = vmatprep.subr.mxu0 0.0
    %2669 = vmatpush1.xpose.msra.mxu0 0.0
    %2670 = vmatprep.subr.mxu0 0.0
    %2671 = vmatpush1.xpose.msra.mxu0 0.0
    %2672 = vmatprep.subr.mxu0 0.0
    %2673 = vmatpush1.xpose.msra.mxu0 0.0
    %2674 = vmatprep.subr.mxu0 0.0
    %2675 = vmatpush1.xpose.msra.mxu0 0.0
    %2676 = vmatprep.subr.mxu0 0.0
    %2677 = vmatpush1.xpose.msra.mxu0 0.0
    %2678 = vmatprep.subr.mxu0 0.0
    %2679 = vmatpush1.xpose.msra.mxu0 0.0
    %2680 = vmatprep.subr.mxu0 0.0
    %2681 = vmatpush1.xpose.msra.mxu0 0.0
    %2682 = vmatprep.subr.mxu0 0.0
    %2683 = vmatpush1.xpose.msra.mxu0 0.0
    %2684 = vmatprep.subr.mxu0 0.0
    %2685 = vmatpush1.xpose.msra.mxu0 0.0
    %2686 = vmatprep.subr.mxu0 0.0
    %2687 = vmatpush1.xpose.msra.mxu0 0.0
    %2688 = vmatprep.subr.mxu0 0.0
    %2689 = vmatpush1.xpose.msra.mxu0 %v2656
    %2690 = vmatprep.subr.mxu0 0.0
    %2691 = vmatpush2.xpose.msra.mxu0 0.0
    %2692 = vmatprep.subr.mxu0 0.0
    %2693 = vmatpush2.xpose.msra.mxu0 0.0
    %2694 = vmatprep.subr.mxu0 0.0
    %2695 = vmatpush2.xpose.msra.mxu0 0.0
    %2696 = vmatprep.subr.mxu0 0.0
    %2697 = vmatpush2.xpose.msra.mxu0 0.0
    %2698 = vmatprep.subr.mxu0 0.0
    %2699 = vmatpush2.xpose.msra.mxu0 0.0
    %2700 = vmatprep.subr.mxu0 0.0
    %2701 = vmatpush2.xpose.msra.mxu0 0.0
    %2702 = vmatprep.subr.mxu0 0.0
    %2703 = vmatpush2.xpose.msra.mxu0 0.0
    %2704 = vmatprep.subr.mxu0 0.0
    %2705 = vmatpush2.xpose.msra.mxu0 0.0
    %2706 = vmatprep.subr.mxu0 0.0
    %2707 = vmatpush2.xpose.msra.mxu0 0.0
    %2708 = vmatprep.subr.mxu0 0.0
    %2709 = vmatpush2.xpose.msra.mxu0 0.0
    %2710 = vmatprep.subr.mxu0 0.0
    %2711 = vmatpush2.xpose.msra.mxu0 0.0
    %2712 = vmatprep.subr.mxu0 0.0
    %2713 = vmatpush2.xpose.msra.mxu0 0.0
    %2714 = vmatprep.subr.mxu0 0.0
    %2715 = vmatpush2.xpose.msra.mxu0 0.0
    %2716 = vmatprep.subr.mxu0 0.0
    %2717 = vmatpush2.xpose.msra.mxu0 0.0
    %2718 = vmatprep.subr.mxu0 0.0
    %2719 = vmatpush2.xpose.msra.mxu0 0.0
    %2720 = vmatprep.subr.mxu0 0.0
    %2721 = vmatpush2.xpose.msra.mxu0 0.0
    %2722 = vmatprep.mubr.f32.mxu0 0.0
    %2723 = vmatmul.mubr.f32.gmra.mxu0 %v2653
    %v2724 = vpop.f32.mrf.mxu0
    %v2725 = vadd.f32 %v80, %v2724
    %v2726 = vpop.f32.mrf.mxu0
    %2727 = vdwg.mxu0
    %v2729 = vsel %vm1967, %v1553, 0
    %v2732 = vsel %vm1967, %v1557, 0
    %2734 = vmatprep.subr.mxu0 0.0
    %2735 = vmatpush1.xpose.msra.mxu0 0.0
    %2736 = vmatprep.subr.mxu0 0.0
    %2737 = vmatpush1.xpose.msra.mxu0 0.0
    %2738 = vmatprep.subr.mxu0 0.0
    %2739 = vmatpush1.xpose.msra.mxu0 0.0
    %2740 = vmatprep.subr.mxu0 0.0
    %2741 = vmatpush1.xpose.msra.mxu0 0.0
    %2742 = vmatprep.subr.mxu0 0.0
    %2743 = vmatpush1.xpose.msra.mxu0 0.0
    %2744 = vmatprep.subr.mxu0 0.0
    %2745 = vmatpush1.xpose.msra.mxu0 0.0
    %2746 = vmatprep.subr.mxu0 0.0
    %2747 = vmatpush1.xpose.msra.mxu0 0.0
    %2748 = vmatprep.subr.mxu0 0.0
    %2749 = vmatpush1.xpose.msra.mxu0 0.0
    %2750 = vmatprep.subr.mxu0 0.0
    %2751 = vmatpush1.xpose.msra.mxu0 0.0
    %2752 = vmatprep.subr.mxu0 0.0
    %2753 = vmatpush1.xpose.msra.mxu0 0.0
    %2754 = vmatprep.subr.mxu0 0.0
    %2755 = vmatpush1.xpose.msra.mxu0 0.0
    %2756 = vmatprep.subr.mxu0 0.0
    %2757 = vmatpush1.xpose.msra.mxu0 0.0
    %2758 = vmatprep.subr.mxu0 0.0
    %2759 = vmatpush1.xpose.msra.mxu0 0.0
    %2760 = vmatprep.subr.mxu0 0.0
    %2761 = vmatpush1.xpose.msra.mxu0 0.0
    %2762 = vmatprep.subr.mxu0 0.0
    %2763 = vmatpush1.xpose.msra.mxu0 0.0
    %2764 = vmatprep.subr.mxu0 0.0
    %2765 = vmatpush1.xpose.msra.mxu0 %v2732
    %2766 = vmatprep.subr.mxu0 0.0
    %2767 = vmatpush2.xpose.msra.mxu0 0.0
    %2768 = vmatprep.subr.mxu0 0.0
    %2769 = vmatpush2.xpose.msra.mxu0 0.0
    %2770 = vmatprep.subr.mxu0 0.0
    %2771 = vmatpush2.xpose.msra.mxu0 0.0
    %2772 = vmatprep.subr.mxu0 0.0
    %2773 = vmatpush2.xpose.msra.mxu0 0.0
    %2774 = vmatprep.subr.mxu0 0.0
    %2775 = vmatpush2.xpose.msra.mxu0 0.0
    %2776 = vmatprep.subr.mxu0 0.0
    %2777 = vmatpush2.xpose.msra.mxu0 0.0
    %2778 = vmatprep.subr.mxu0 0.0
    %2779 = vmatpush2.xpose.msra.mxu0 0.0
    %2780 = vmatprep.subr.mxu0 0.0
    %2781 = vmatpush2.xpose.msra.mxu0 0.0
    %2782 = vmatprep.subr.mxu0 0.0
    %2783 = vmatpush2.xpose.msra.mxu0 0.0
    %2784 = vmatprep.subr.mxu0 0.0
    %2785 = vmatpush2.xpose.msra.mxu0 0.0
    %2786 = vmatprep.subr.mxu0 0.0
    %2787 = vmatpush2.xpose.msra.mxu0 0.0
    %2788 = vmatprep.subr.mxu0 0.0
    %2789 = vmatpush2.xpose.msra.mxu0 0.0
    %2790 = vmatprep.subr.mxu0 0.0
    %2791 = vmatpush2.xpose.msra.mxu0 0.0
    %2792 = vmatprep.subr.mxu0 0.0
    %2793 = vmatpush2.xpose.msra.mxu0 0.0
    %2794 = vmatprep.subr.mxu0 0.0
    %2795 = vmatpush2.xpose.msra.mxu0 0.0
    %2796 = vmatprep.subr.mxu0 0.0
    %2797 = vmatpush2.xpose.msra.mxu0 0.0
    %2798 = vmatprep.mubr.f32.mxu0 0.0
    %2799 = vmatmul.mubr.f32.gmra.mxu0 %v2729
    %v2800 = vpop.f32.mrf.mxu0
    %v2801 = vadd.f32 %v80, %v2800
    %v2802 = vpop.f32.mrf.mxu0
    %2803 = vdwg.mxu0
    %v2805 = vsel %vm1967, %v1689, 0
    %v2808 = vsel %vm1967, %v1693, 0
    %2810 = vmatprep.subr.mxu0 0.0
    %2811 = vmatpush1.xpose.msra.mxu0 0.0
    %2812 = vmatprep.subr.mxu0 0.0
    %2813 = vmatpush1.xpose.msra.mxu0 0.0
    %2814 = vmatprep.subr.mxu0 0.0
    %2815 = vmatpush1.xpose.msra.mxu0 0.0
    %2816 = vmatprep.subr.mxu0 0.0
    %2817 = vmatpush1.xpose.msra.mxu0 0.0
    %2818 = vmatprep.subr.mxu0 0.0
    %2819 = vmatpush1.xpose.msra.mxu0 0.0
    %2820 = vmatprep.subr.mxu0 0.0
    %2821 = vmatpush1.xpose.msra.mxu0 0.0
    %2822 = vmatprep.subr.mxu0 0.0
    %2823 = vmatpush1.xpose.msra.mxu0 0.0
    %2824 = vmatprep.subr.mxu0 0.0
    %2825 = vmatpush1.xpose.msra.mxu0 0.0
    %2826 = vmatprep.subr.mxu0 0.0
    %2827 = vmatpush1.xpose.msra.mxu0 0.0
    %2828 = vmatprep.subr.mxu0 0.0
    %2829 = vmatpush1.xpose.msra.mxu0 0.0
    %2830 = vmatprep.subr.mxu0 0.0
    %2831 = vmatpush1.xpose.msra.mxu0 0.0
    %2832 = vmatprep.subr.mxu0 0.0
    %2833 = vmatpush1.xpose.msra.mxu0 0.0
    %2834 = vmatprep.subr.mxu0 0.0
    %2835 = vmatpush1.xpose.msra.mxu0 0.0
    %2836 = vmatprep.subr.mxu0 0.0
    %2837 = vmatpush1.xpose.msra.mxu0 0.0
    %2838 = vmatprep.subr.mxu0 0.0
    %2839 = vmatpush1.xpose.msra.mxu0 0.0
    %2840 = vmatprep.subr.mxu0 0.0
    %2841 = vmatpush1.xpose.msra.mxu0 %v2808
    %2842 = vmatprep.subr.mxu0 0.0
    %2843 = vmatpush2.xpose.msra.mxu0 0.0
    %2844 = vmatprep.subr.mxu0 0.0
    %2845 = vmatpush2.xpose.msra.mxu0 0.0
    %2846 = vmatprep.subr.mxu0 0.0
    %2847 = vmatpush2.xpose.msra.mxu0 0.0
    %2848 = vmatprep.subr.mxu0 0.0
    %2849 = vmatpush2.xpose.msra.mxu0 0.0
    %2850 = vmatprep.subr.mxu0 0.0
    %2851 = vmatpush2.xpose.msra.mxu0 0.0
    %2852 = vmatprep.subr.mxu0 0.0
    %2853 = vmatpush2.xpose.msra.mxu0 0.0
    %2854 = vmatprep.subr.mxu0 0.0
    %2855 = vmatpush2.xpose.msra.mxu0 0.0
    %2856 = vmatprep.subr.mxu0 0.0
    %2857 = vmatpush2.xpose.msra.mxu0 0.0
    %2858 = vmatprep.subr.mxu0 0.0
    %2859 = vmatpush2.xpose.msra.mxu0 0.0
    %2860 = vmatprep.subr.mxu0 0.0
    %2861 = vmatpush2.xpose.msra.mxu0 0.0
    %2862 = vmatprep.subr.mxu0 0.0
    %2863 = vmatpush2.xpose.msra.mxu0 0.0
    %2864 = vmatprep.subr.mxu0 0.0
    %2865 = vmatpush2.xpose.msra.mxu0 0.0
    %2866 = vmatprep.subr.mxu0 0.0
    %2867 = vmatpush2.xpose.msra.mxu0 0.0
    %2868 = vmatprep.subr.mxu0 0.0
    %2869 = vmatpush2.xpose.msra.mxu0 0.0
    %2870 = vmatprep.subr.mxu0 0.0
    %2871 = vmatpush2.xpose.msra.mxu0 0.0
    %2872 = vmatprep.subr.mxu0 0.0
    %2873 = vmatpush2.xpose.msra.mxu0 0.0
    %2874 = vmatprep.mubr.f32.mxu0 0.0
    %2875 = vmatmul.mubr.f32.gmra.mxu0 %v2805
    %v2876 = vpop.f32.mrf.mxu0
    %v2877 = vadd.f32 %v80, %v2876
    %v2878 = vpop.f32.mrf.mxu0
    %2879 = vdwg.mxu0
    %v2881 = vsel %vm1967, %v1282, 0
    %v2884 = vsel %vm1967, %v1286, 0
    %2886 = vmatprep.subr.mxu0 0.0
    %2887 = vmatpush1.xpose.msra.mxu0 0.0
    %2888 = vmatprep.subr.mxu0 0.0
    %2889 = vmatpush1.xpose.msra.mxu0 0.0
    %2890 = vmatprep.subr.mxu0 0.0
    %2891 = vmatpush1.xpose.msra.mxu0 0.0
    %2892 = vmatprep.subr.mxu0 0.0
    %2893 = vmatpush1.xpose.msra.mxu0 0.0
    %2894 = vmatprep.subr.mxu0 0.0
    %2895 = vmatpush1.xpose.msra.mxu0 0.0
    %2896 = vmatprep.subr.mxu0 0.0
    %2897 = vmatpush1.xpose.msra.mxu0 0.0
    %2898 = vmatprep.subr.mxu0 0.0
    %2899 = vmatpush1.xpose.msra.mxu0 0.0
    %2900 = vmatprep.subr.mxu0 0.0
    %2901 = vmatpush1.xpose.msra.mxu0 0.0
    %2902 = vmatprep.subr.mxu0 0.0
    %2903 = vmatpush1.xpose.msra.mxu0 0.0
    %2904 = vmatprep.subr.mxu0 0.0
    %2905 = vmatpush1.xpose.msra.mxu0 0.0
    %2906 = vmatprep.subr.mxu0 0.0
    %2907 = vmatpush1.xpose.msra.mxu0 0.0
    %2908 = vmatprep.subr.mxu0 0.0
    %2909 = vmatpush1.xpose.msra.mxu0 0.0
    %2910 = vmatprep.subr.mxu0 0.0
    %2911 = vmatpush1.xpose.msra.mxu0 0.0
    %2912 = vmatprep.subr.mxu0 0.0
    %2913 = vmatpush1.xpose.msra.mxu0 0.0
    %2914 = vmatprep.subr.mxu0 0.0
    %2915 = vmatpush1.xpose.msra.mxu0 0.0
    %2916 = vmatprep.subr.mxu0 0.0
    %2917 = vmatpush1.xpose.msra.mxu0 %v2884
    %2918 = vmatprep.subr.mxu0 0.0
    %2919 = vmatpush2.xpose.msra.mxu0 0.0
    %2920 = vmatprep.subr.mxu0 0.0
    %2921 = vmatpush2.xpose.msra.mxu0 0.0
    %2922 = vmatprep.subr.mxu0 0.0
    %2923 = vmatpush2.xpose.msra.mxu0 0.0
    %2924 = vmatprep.subr.mxu0 0.0
    %2925 = vmatpush2.xpose.msra.mxu0 0.0
    %2926 = vmatprep.subr.mxu0 0.0
    %2927 = vmatpush2.xpose.msra.mxu0 0.0
    %2928 = vmatprep.subr.mxu0 0.0
    %2929 = vmatpush2.xpose.msra.mxu0 0.0
    %2930 = vmatprep.subr.mxu0 0.0
    %2931 = vmatpush2.xpose.msra.mxu0 0.0
    %2932 = vmatprep.subr.mxu0 0.0
    %2933 = vmatpush2.xpose.msra.mxu0 0.0
    %2934 = vmatprep.subr.mxu0 0.0
    %2935 = vmatpush2.xpose.msra.mxu0 0.0
    %2936 = vmatprep.subr.mxu0 0.0
    %2937 = vmatpush2.xpose.msra.mxu0 0.0
    %2938 = vmatprep.subr.mxu0 0.0
    %2939 = vmatpush2.xpose.msra.mxu0 0.0
    %2940 = vmatprep.subr.mxu0 0.0
    %2941 = vmatpush2.xpose.msra.mxu0 0.0
    %2942 = vmatprep.subr.mxu0 0.0
    %2943 = vmatpush2.xpose.msra.mxu0 0.0
    %2944 = vmatprep.subr.mxu0 0.0
    %2945 = vmatpush2.xpose.msra.mxu0 0.0
    %2946 = vmatprep.subr.mxu0 0.0
    %2947 = vmatpush2.xpose.msra.mxu0 0.0
    %2948 = vmatprep.subr.mxu0 0.0
    %2949 = vmatpush2.xpose.msra.mxu0 0.0
    %2950 = vmatprep.mubr.f32.mxu0 0.0
    %2951 = vmatmul.mubr.f32.gmra.mxu0 %v2881
    %v2952 = vpop.f32.mrf.mxu0
    %v2953 = vadd.f32 %v80, %v2952
    %v2954 = vpop.f32.mrf.mxu0
    %2955 = vdwg.mxu0
    %v2957 = vsel %vm1967, %v1418, 0
    %v2960 = vsel %vm1967, %v1422, 0
    %2962 = vmatprep.subr.mxu0 0.0
    %2963 = vmatpush1.xpose.msra.mxu0 0.0
    %2964 = vmatprep.subr.mxu0 0.0
    %2965 = vmatpush1.xpose.msra.mxu0 0.0
    %2966 = vmatprep.subr.mxu0 0.0
    %2967 = vmatpush1.xpose.msra.mxu0 0.0
    %2968 = vmatprep.subr.mxu0 0.0
    %2969 = vmatpush1.xpose.msra.mxu0 0.0
    %2970 = vmatprep.subr.mxu0 0.0
    %2971 = vmatpush1.xpose.msra.mxu0 0.0
    %2972 = vmatprep.subr.mxu0 0.0
    %2973 = vmatpush1.xpose.msra.mxu0 0.0
    %2974 = vmatprep.subr.mxu0 0.0
    %2975 = vmatpush1.xpose.msra.mxu0 0.0
    %2976 = vmatprep.subr.mxu0 0.0
    %2977 = vmatpush1.xpose.msra.mxu0 0.0
    %2978 = vmatprep.subr.mxu0 0.0
    %2979 = vmatpush1.xpose.msra.mxu0 0.0
    %2980 = vmatprep.subr.mxu0 0.0
    %2981 = vmatpush1.xpose.msra.mxu0 0.0
    %2982 = vmatprep.subr.mxu0 0.0
    %2983 = vmatpush1.xpose.msra.mxu0 0.0
    %2984 = vmatprep.subr.mxu0 0.0
    %2985 = vmatpush1.xpose.msra.mxu0 0.0
    %2986 = vmatprep.subr.mxu0 0.0
    %2987 = vmatpush1.xpose.msra.mxu0 0.0
    %2988 = vmatprep.subr.mxu0 0.0
    %2989 = vmatpush1.xpose.msra.mxu0 0.0
    %2990 = vmatprep.subr.mxu0 0.0
    %2991 = vmatpush1.xpose.msra.mxu0 0.0
    %2992 = vmatprep.subr.mxu0 0.0
    %2993 = vmatpush1.xpose.msra.mxu0 %v2960
    %2994 = vmatprep.subr.mxu0 0.0
    %2995 = vmatpush2.xpose.msra.mxu0 0.0
    %2996 = vmatprep.subr.mxu0 0.0
    %2997 = vmatpush2.xpose.msra.mxu0 0.0
    %2998 = vmatprep.subr.mxu0 0.0
    %2999 = vmatpush2.xpose.msra.mxu0 0.0
    %3000 = vmatprep.subr.mxu0 0.0
    %3001 = vmatpush2.xpose.msra.mxu0 0.0
    %3002 = vmatprep.subr.mxu0 0.0
    %3003 = vmatpush2.xpose.msra.mxu0 0.0
    %3004 = vmatprep.subr.mxu0 0.0
    %3005 = vmatpush2.xpose.msra.mxu0 0.0
    %3006 = vmatprep.subr.mxu0 0.0
    %3007 = vmatpush2.xpose.msra.mxu0 0.0
    %3008 = vmatprep.subr.mxu0 0.0
    %3009 = vmatpush2.xpose.msra.mxu0 0.0
    %3010 = vmatprep.subr.mxu0 0.0
    %3011 = vmatpush2.xpose.msra.mxu0 0.0
    %3012 = vmatprep.subr.mxu0 0.0
    %3013 = vmatpush2.xpose.msra.mxu0 0.0
    %3014 = vmatprep.subr.mxu0 0.0
    %3015 = vmatpush2.xpose.msra.mxu0 0.0
    %3016 = vmatprep.subr.mxu0 0.0
    %3017 = vmatpush2.xpose.msra.mxu0 0.0
    %3018 = vmatprep.subr.mxu0 0.0
    %3019 = vmatpush2.xpose.msra.mxu0 0.0
    %3020 = vmatprep.subr.mxu0 0.0
    %3021 = vmatpush2.xpose.msra.mxu0 0.0
    %3022 = vmatprep.subr.mxu0 0.0
    %3023 = vmatpush2.xpose.msra.mxu0 0.0
    %3024 = vmatprep.subr.mxu0 0.0
    %3025 = vmatpush2.xpose.msra.mxu0 0.0
    %3026 = vmatprep.mubr.f32.mxu0 0.0
    %3027 = vmatmul.mubr.f32.gmra.mxu0 %v2957
    %v3028 = vpop.f32.mrf.mxu0
    %v3029 = vadd.f32 %v80, %v3028
    %v3030 = vpop.f32.mrf.mxu0
    %3031 = vdwg.mxu0
    %v3033 = vsel %vm1967, %v1554, 0
    %v3036 = vsel %vm1967, %v1558, 0
    %3038 = vmatprep.subr.mxu0 0.0
    %3039 = vmatpush1.xpose.msra.mxu0 0.0
    %3040 = vmatprep.subr.mxu0 0.0
    %3041 = vmatpush1.xpose.msra.mxu0 0.0
    %3042 = vmatprep.subr.mxu0 0.0
    %3043 = vmatpush1.xpose.msra.mxu0 0.0
    %3044 = vmatprep.subr.mxu0 0.0
    %3045 = vmatpush1.xpose.msra.mxu0 0.0
    %3046 = vmatprep.subr.mxu0 0.0
    %3047 = vmatpush1.xpose.msra.mxu0 0.0
    %3048 = vmatprep.subr.mxu0 0.0
    %3049 = vmatpush1.xpose.msra.mxu0 0.0
    %3050 = vmatprep.subr.mxu0 0.0
    %3051 = vmatpush1.xpose.msra.mxu0 0.0
    %3052 = vmatprep.subr.mxu0 0.0
    %3053 = vmatpush1.xpose.msra.mxu0 0.0
    %3054 = vmatprep.subr.mxu0 0.0
    %3055 = vmatpush1.xpose.msra.mxu0 0.0
    %3056 = vmatprep.subr.mxu0 0.0
    %3057 = vmatpush1.xpose.msra.mxu0 0.0
    %3058 = vmatprep.subr.mxu0 0.0
    %3059 = vmatpush1.xpose.msra.mxu0 0.0
    %3060 = vmatprep.subr.mxu0 0.0
    %3061 = vmatpush1.xpose.msra.mxu0 0.0
    %3062 = vmatprep.subr.mxu0 0.0
    %3063 = vmatpush1.xpose.msra.mxu0 0.0
    %3064 = vmatprep.subr.mxu0 0.0
    %3065 = vmatpush1.xpose.msra.mxu0 0.0
    %3066 = vmatprep.subr.mxu0 0.0
    %3067 = vmatpush1.xpose.msra.mxu0 0.0
    %3068 = vmatprep.subr.mxu0 0.0
    %3069 = vmatpush1.xpose.msra.mxu0 %v3036
    %3070 = vmatprep.subr.mxu0 0.0
    %3071 = vmatpush2.xpose.msra.mxu0 0.0
    %3072 = vmatprep.subr.mxu0 0.0
    %3073 = vmatpush2.xpose.msra.mxu0 0.0
    %3074 = vmatprep.subr.mxu0 0.0
    %3075 = vmatpush2.xpose.msra.mxu0 0.0
    %3076 = vmatprep.subr.mxu0 0.0
    %3077 = vmatpush2.xpose.msra.mxu0 0.0
    %3078 = vmatprep.subr.mxu0 0.0
    %3079 = vmatpush2.xpose.msra.mxu0 0.0
    %3080 = vmatprep.subr.mxu0 0.0
    %3081 = vmatpush2.xpose.msra.mxu0 0.0
    %3082 = vmatprep.subr.mxu0 0.0
    %3083 = vmatpush2.xpose.msra.mxu0 0.0
    %3084 = vmatprep.subr.mxu0 0.0
    %3085 = vmatpush2.xpose.msra.mxu0 0.0
    %3086 = vmatprep.subr.mxu0 0.0
    %3087 = vmatpush2.xpose.msra.mxu0 0.0
    %3088 = vmatprep.subr.mxu0 0.0
    %3089 = vmatpush2.xpose.msra.mxu0 0.0
    %3090 = vmatprep.subr.mxu0 0.0
    %3091 = vmatpush2.xpose.msra.mxu0 0.0
    %3092 = vmatprep.subr.mxu0 0.0
    %3093 = vmatpush2.xpose.msra.mxu0 0.0
    %3094 = vmatprep.subr.mxu0 0.0
    %3095 = vmatpush2.xpose.msra.mxu0 0.0
    %3096 = vmatprep.subr.mxu0 0.0
    %3097 = vmatpush2.xpose.msra.mxu0 0.0
    %3098 = vmatprep.subr.mxu0 0.0
    %3099 = vmatpush2.xpose.msra.mxu0 0.0
    %3100 = vmatprep.subr.mxu0 0.0
    %3101 = vmatpush2.xpose.msra.mxu0 0.0
    %3102 = vmatprep.mubr.f32.mxu0 0.0
    %3103 = vmatmul.mubr.f32.gmra.mxu0 %v3033
    %v3104 = vpop.f32.mrf.mxu0
    %v3105 = vadd.f32 %v80, %v3104
    %v3106 = vpop.f32.mrf.mxu0
    %3107 = vdwg.mxu0
    %v3109 = vsel %vm1967, %v1690, 0
    %v3112 = vsel %vm1967, %v1694, 0
    %3114 = vmatprep.subr.mxu0 0.0
    %3115 = vmatpush1.xpose.msra.mxu0 0.0
    %3116 = vmatprep.subr.mxu0 0.0
    %3117 = vmatpush1.xpose.msra.mxu0 0.0
    %3118 = vmatprep.subr.mxu0 0.0
    %3119 = vmatpush1.xpose.msra.mxu0 0.0
    %3120 = vmatprep.subr.mxu0 0.0
    %3121 = vmatpush1.xpose.msra.mxu0 0.0
    %3122 = vmatprep.subr.mxu0 0.0
    %3123 = vmatpush1.xpose.msra.mxu0 0.0
    %3124 = vmatprep.subr.mxu0 0.0
    %3125 = vmatpush1.xpose.msra.mxu0 0.0
    %3126 = vmatprep.subr.mxu0 0.0
    %3127 = vmatpush1.xpose.msra.mxu0 0.0
    %3128 = vmatprep.subr.mxu0 0.0
    %3129 = vmatpush1.xpose.msra.mxu0 0.0
    %3130 = vmatprep.subr.mxu0 0.0
    %3131 = vmatpush1.xpose.msra.mxu0 0.0
    %3132 = vmatprep.subr.mxu0 0.0
    %3133 = vmatpush1.xpose.msra.mxu0 0.0
    %3134 = vmatprep.subr.mxu0 0.0
    %3135 = vmatpush1.xpose.msra.mxu0 0.0
    %3136 = vmatprep.subr.mxu0 0.0
    %3137 = vmatpush1.xpose.msra.mxu0 0.0
    %3138 = vmatprep.subr.mxu0 0.0
    %3139 = vmatpush1.xpose.msra.mxu0 0.0
    %3140 = vmatprep.subr.mxu0 0.0
    %3141 = vmatpush1.xpose.msra.mxu0 0.0
    %3142 = vmatprep.subr.mxu0 0.0
    %3143 = vmatpush1.xpose.msra.mxu0 0.0
    %3144 = vmatprep.subr.mxu0 0.0
    %3145 = vmatpush1.xpose.msra.mxu0 %v3112
    %3146 = vmatprep.subr.mxu0 0.0
    %3147 = vmatpush2.xpose.msra.mxu0 0.0
    %3148 = vmatprep.subr.mxu0 0.0
    %3149 = vmatpush2.xpose.msra.mxu0 0.0
    %3150 = vmatprep.subr.mxu0 0.0
    %3151 = vmatpush2.xpose.msra.mxu0 0.0
    %3152 = vmatprep.subr.mxu0 0.0
    %3153 = vmatpush2.xpose.msra.mxu0 0.0
    %3154 = vmatprep.subr.mxu0 0.0
    %3155 = vmatpush2.xpose.msra.mxu0 0.0
    %3156 = vmatprep.subr.mxu0 0.0
    %3157 = vmatpush2.xpose.msra.mxu0 0.0
    %3158 = vmatprep.subr.mxu0 0.0
    %3159 = vmatpush2.xpose.msra.mxu0 0.0
    %3160 = vmatprep.subr.mxu0 0.0
    %3161 = vmatpush2.xpose.msra.mxu0 0.0
    %3162 = vmatprep.subr.mxu0 0.0
    %3163 = vmatpush2.xpose.msra.mxu0 0.0
    %3164 = vmatprep.subr.mxu0 0.0
    %3165 = vmatpush2.xpose.msra.mxu0 0.0
    %3166 = vmatprep.subr.mxu0 0.0
    %3167 = vmatpush2.xpose.msra.mxu0 0.0
    %3168 = vmatprep.subr.mxu0 0.0
    %3169 = vmatpush2.xpose.msra.mxu0 0.0
    %3170 = vmatprep.subr.mxu0 0.0
    %3171 = vmatpush2.xpose.msra.mxu0 0.0
    %3172 = vmatprep.subr.mxu0 0.0
    %3173 = vmatpush2.xpose.msra.mxu0 0.0
    %3174 = vmatprep.subr.mxu0 0.0
    %3175 = vmatpush2.xpose.msra.mxu0 0.0
    %3176 = vmatprep.subr.mxu0 0.0
    %3177 = vmatpush2.xpose.msra.mxu0 0.0
    %3178 = vmatprep.mubr.f32.mxu0 0.0
    %3179 = vmatmul.mubr.f32.gmra.mxu0 %v3109
    %v3180 = vpop.f32.mrf.mxu0
    %v3181 = vadd.f32 %v80, %v3180
    %v3182 = vpop.f32.mrf.mxu0
    %3183 = vdwg.mxu0
    %v3184 = vsel %vm1967, %v2041, -inf
    %3185 = vmax.xlane.f32.xlu0 %v3184
    %v3186 = vpop.xlane.xlu0 %3185
    %v3187 = vsel %vm1967, %v2117, -inf
    %3188 = vmax.xlane.f32.xlu0 %v3187
    %v3189 = vpop.xlane.xlu0 %3188
    %v3190 = vsel %vm1967, %v2193, -inf
    %3191 = vmax.xlane.f32.xlu0 %v3190
    %v3192 = vpop.xlane.xlu0 %3191
    %v3193 = vsel %vm1967, %v2269, -inf
    %3194 = vmax.xlane.f32.xlu0 %v3193
    %v3195 = vpop.xlane.xlu0 %3194
    %v3196 = vsel %vm1967, %v2345, -inf
    %3197 = vmax.xlane.f32.xlu0 %v3196
    %v3198 = vpop.xlane.xlu0 %3197
    %v3199 = vsel %vm1967, %v2421, -inf
    %3200 = vmax.xlane.f32.xlu0 %v3199
    %v3201 = vpop.xlane.xlu0 %3200
    %v3202 = vsel %vm1967, %v2497, -inf
    %3203 = vmax.xlane.f32.xlu0 %v3202
    %v3204 = vpop.xlane.xlu0 %3203
    %v3205 = vsel %vm1967, %v2573, -inf
    %3206 = vmax.xlane.f32.xlu0 %v3205
    %v3207 = vpop.xlane.xlu0 %3206
    %v3208 = vsel %vm1967, %v2649, -inf
    %3209 = vmax.xlane.f32.xlu0 %v3208
    %v3210 = vpop.xlane.xlu0 %3209
    %v3211 = vsel %vm1967, %v2725, -inf
    %3212 = vmax.xlane.f32.xlu0 %v3211
    %v3213 = vpop.xlane.xlu0 %3212
    %v3214 = vsel %vm1967, %v2801, -inf
    %3215 = vmax.xlane.f32.xlu0 %v3214
    %v3216 = vpop.xlane.xlu0 %3215
    %v3217 = vsel %vm1967, %v2877, -inf
    %3218 = vmax.xlane.f32.xlu0 %v3217
    %v3219 = vpop.xlane.xlu0 %3218
    %v3220 = vsel %vm1967, %v2953, -inf
    %3221 = vmax.xlane.f32.xlu0 %v3220
    %v3222 = vpop.xlane.xlu0 %3221
    %v3223 = vsel %vm1967, %v3029, -inf
    %3224 = vmax.xlane.f32.xlu0 %v3223
    %v3225 = vpop.xlane.xlu0 %3224
    %v3226 = vsel %vm1967, %v3105, -inf
    %3227 = vmax.xlane.f32.xlu0 %v3226
    %v3228 = vpop.xlane.xlu0 %3227
    %v3229 = vsel %vm1967, %v3181, -inf
    %3230 = vmax.xlane.f32.xlu0 %v3229
    %v3231 = vpop.xlane.xlu0 %3230
    %v3232 = vsub.f32 %v2041, %v3186
    %v3233 = vsub.f32 %v2117, %v3189
    %v3234 = vsub.f32 %v2193, %v3192
    %v3235 = vsub.f32 %v2269, %v3195
    %v3236 = vsub.f32 %v2345, %v3198
    %v3237 = vsub.f32 %v2421, %v3201
    %v3238 = vsub.f32 %v2497, %v3204
    %v3239 = vsub.f32 %v2573, %v3207
    %v3240 = vsub.f32 %v2649, %v3210
    %v3241 = vsub.f32 %v2725, %v3213
    %v3242 = vsub.f32 %v2801, %v3216
    %v3243 = vsub.f32 %v2877, %v3219
    %v3244 = vsub.f32 %v2953, %v3222
    %v3245 = vsub.f32 %v3029, %v3225
    %v3246 = vsub.f32 %v3105, %v3228
    %v3247 = vsub.f32 %v3181, %v3231
    %v3248 = vmul.f32 %v3232, 1.442695
    %v3249 = vpow.pop %v3248
    %v3250 = vmul.f32 %v3233, 1.442695
    %v3251 = vpow.pop %v3250
    %v3252 = vmul.f32 %v3234, 1.442695
    %v3253 = vpow.pop %v3252
    %v3254 = vmul.f32 %v3235, 1.442695
    %v3255 = vpow.pop %v3254
    %v3256 = vmul.f32 %v3236, 1.442695
    %v3257 = vpow.pop %v3256
    %v3258 = vmul.f32 %v3237, 1.442695
    %v3259 = vpow.pop %v3258
    %v3260 = vmul.f32 %v3238, 1.442695
    %v3261 = vpow.pop %v3260
    %v3262 = vmul.f32 %v3239, 1.442695
    %v3263 = vpow.pop %v3262
    %v3264 = vmul.f32 %v3240, 1.442695
    %v3265 = vpow.pop %v3264
    %v3266 = vmul.f32 %v3241, 1.442695
    %v3267 = vpow.pop %v3266
    %v3268 = vmul.f32 %v3242, 1.442695
    %v3269 = vpow.pop %v3268
    %v3270 = vmul.f32 %v3243, 1.442695
    %v3271 = vpow.pop %v3270
    %v3272 = vmul.f32 %v3244, 1.442695
    %v3273 = vpow.pop %v3272
    %v3274 = vmul.f32 %v3245, 1.442695
    %v3275 = vpow.pop %v3274
    %v3276 = vmul.f32 %v3246, 1.442695
    %v3277 = vpow.pop %v3276
    %v3278 = vmul.f32 %v3247, 1.442695
    %v3279 = vpow.pop %v3278
    %v3280 = vsel %vm1967, %v3249, 0.0
    %3281 = vadd.xlane.f32.xlu0 %v3280
    %v3282 = vpop.xlane.xlu0 %3281
    %v3283 = vsel %vm1967, %v3251, 0.0
    %3284 = vadd.xlane.f32.xlu0 %v3283
    %v3285 = vpop.xlane.xlu0 %3284
    %v3286 = vsel %vm1967, %v3253, 0.0
    %3287 = vadd.xlane.f32.xlu0 %v3286
    %v3288 = vpop.xlane.xlu0 %3287
    %v3289 = vsel %vm1967, %v3255, 0.0
    %3290 = vadd.xlane.f32.xlu0 %v3289
    %v3291 = vpop.xlane.xlu0 %3290
    %v3292 = vsel %vm1967, %v3257, 0.0
    %3293 = vadd.xlane.f32.xlu0 %v3292
    %v3294 = vpop.xlane.xlu0 %3293
    %v3295 = vsel %vm1967, %v3259, 0.0
    %3296 = vadd.xlane.f32.xlu0 %v3295
    %v3297 = vpop.xlane.xlu0 %3296
    %v3298 = vsel %vm1967, %v3261, 0.0
    %3299 = vadd.xlane.f32.xlu0 %v3298
    %v3300 = vpop.xlane.xlu0 %3299
    %v3301 = vsel %vm1967, %v3263, 0.0
    %3302 = vadd.xlane.f32.xlu0 %v3301
    %v3303 = vpop.xlane.xlu0 %3302
    %v3304 = vsel %vm1967, %v3265, 0.0
    %3305 = vadd.xlane.f32.xlu0 %v3304
    %v3306 = vpop.xlane.xlu0 %3305
    %v3307 = vsel %vm1967, %v3267, 0.0
    %3308 = vadd.xlane.f32.xlu0 %v3307
    %v3309 = vpop.xlane.xlu0 %3308
    %v3310 = vsel %vm1967, %v3269, 0.0
    %3311 = vadd.xlane.f32.xlu0 %v3310
    %v3312 = vpop.xlane.xlu0 %3311
    %v3313 = vsel %vm1967, %v3271, 0.0
    %3314 = vadd.xlane.f32.xlu0 %v3313
    %v3315 = vpop.xlane.xlu0 %3314
    %v3316 = vsel %vm1967, %v3273, 0.0
    %3317 = vadd.xlane.f32.xlu0 %v3316
    %v3318 = vpop.xlane.xlu0 %3317
    %v3319 = vsel %vm1967, %v3275, 0.0
    %3320 = vadd.xlane.f32.xlu0 %v3319
    %v3321 = vpop.xlane.xlu0 %3320
    %v3322 = vsel %vm1967, %v3277, 0.0
    %3323 = vadd.xlane.f32.xlu0 %v3322
    %v3324 = vpop.xlane.xlu0 %3323
    %v3325 = vsel %vm1967, %v3279, 0.0
    %3326 = vadd.xlane.f32.xlu0 %v3325
    %v3327 = vpop.xlane.xlu0 %3326
    %v3328 = vrcp.pop %v3282
    %v3329 = vrcp.pop %v3285
    %v3330 = vrcp.pop %v3288
    %v3331 = vrcp.pop %v3291
    %v3332 = vrcp.pop %v3294
    %v3333 = vrcp.pop %v3297
    %v3334 = vrcp.pop %v3300
    %v3335 = vrcp.pop %v3303
    %v3336 = vrcp.pop %v3306
    %v3337 = vrcp.pop %v3309
    %v3338 = vrcp.pop %v3312
    %v3339 = vrcp.pop %v3315
    %v3340 = vrcp.pop %v3318
    %v3341 = vrcp.pop %v3321
    %v3342 = vrcp.pop %v3324
    %v3343 = vrcp.pop %v3327
    %v3344 = vmul.f32 %v3249, %v3328
    %v3345 = vmul.f32 %v3251, %v3329
    %v3346 = vmul.f32 %v3253, %v3330
    %v3347 = vmul.f32 %v3255, %v3331
    %v3348 = vmul.f32 %v3257, %v3332
    %v3349 = vmul.f32 %v3259, %v3333
    %v3350 = vmul.f32 %v3261, %v3334
    %v3351 = vmul.f32 %v3263, %v3335
    %v3352 = vmul.f32 %v3265, %v3336
    %v3353 = vmul.f32 %v3267, %v3337
    %v3354 = vmul.f32 %v3269, %v3338
    %v3355 = vmul.f32 %v3271, %v3339
    %v3356 = vmul.f32 %v3273, %v3340
    %v3357 = vmul.f32 %v3275, %v3341
    %v3358 = vmul.f32 %v3277, %v3342
    %v3359 = vmul.f32 %v3279, %v3343
    %v3361 = vsel %vm1967, %v3344, 0
    %3363 = vmatprep.subr.mxu0 0.0
    %3364 = vmatpush1.msra.mxu0 0.0
    %3365 = vmatprep.subr.mxu0 0.0
    %3366 = vmatpush1.msra.mxu0 0.0
    %3367 = vmatprep.subr.mxu0 0.0
    %3368 = vmatpush1.msra.mxu0 0.0
    %3369 = vmatprep.subr.mxu0 0.0
    %3370 = vmatpush1.msra.mxu0 0.0
    %3371 = vmatprep.subr.mxu0 0.0
    %3372 = vmatpush1.msra.mxu0 0.0
    %3373 = vmatprep.subr.mxu0 0.0
    %3374 = vmatpush1.msra.mxu0 0.0
    %3375 = vmatprep.subr.mxu0 0.0
    %3376 = vmatpush1.msra.mxu0 0.0
    %3377 = vmatprep.subr.mxu0 0.0
    %3378 = vmatpush1.msra.mxu0 0.0
    %3379 = vmatprep.subr.mxu0 0.0
    %3380 = vmatpush1.msra.mxu0 0.0
    %3381 = vmatprep.subr.mxu0 0.0
    %3382 = vmatpush1.msra.mxu0 0.0
    %3383 = vmatprep.subr.mxu0 0.0
    %3384 = vmatpush1.msra.mxu0 0.0
    %3385 = vmatprep.subr.mxu0 0.0
    %3386 = vmatpush1.msra.mxu0 0.0
    %3387 = vmatprep.subr.mxu0 0.0
    %3388 = vmatpush1.msra.mxu0 0.0
    %3389 = vmatprep.subr.mxu0 0.0
    %3390 = vmatpush1.msra.mxu0 0.0
    %3391 = vmatprep.subr.mxu0 0.0
    %3392 = vmatpush1.msra.mxu0 0.0
    %3393 = vmatprep.subr.mxu0 0.0
    %3394 = vmatpush1.msra.mxu0 %v1759
    %3395 = vmatprep.subr.mxu0 0.0
    %3396 = vmatpush2.msra.mxu0 0.0
    %3397 = vmatprep.subr.mxu0 0.0
    %3398 = vmatpush2.msra.mxu0 0.0
    %3399 = vmatprep.subr.mxu0 0.0
    %3400 = vmatpush2.msra.mxu0 0.0
    %3401 = vmatprep.subr.mxu0 0.0
    %3402 = vmatpush2.msra.mxu0 0.0
    %3403 = vmatprep.subr.mxu0 0.0
    %3404 = vmatpush2.msra.mxu0 0.0
    %3405 = vmatprep.subr.mxu0 0.0
    %3406 = vmatpush2.msra.mxu0 0.0
    %3407 = vmatprep.subr.mxu0 0.0
    %3408 = vmatpush2.msra.mxu0 0.0
    %3409 = vmatprep.subr.mxu0 0.0
    %3410 = vmatpush2.msra.mxu0 0.0
    %3411 = vmatprep.subr.mxu0 0.0
    %3412 = vmatpush2.msra.mxu0 0.0
    %3413 = vmatprep.subr.mxu0 0.0
    %3414 = vmatpush2.msra.mxu0 0.0
    %3415 = vmatprep.subr.mxu0 0.0
    %3416 = vmatpush2.msra.mxu0 0.0
    %3417 = vmatprep.subr.mxu0 0.0
    %3418 = vmatpush2.msra.mxu0 0.0
    %3419 = vmatprep.subr.mxu0 0.0
    %3420 = vmatpush2.msra.mxu0 0.0
    %3421 = vmatprep.subr.mxu0 0.0
    %3422 = vmatpush2.msra.mxu0 0.0
    %3423 = vmatprep.subr.mxu0 0.0
    %3424 = vmatpush2.msra.mxu0 0.0
    %3425 = vmatprep.subr.mxu0 0.0
    %3426 = vmatpush2.msra.mxu0 0.0
    %3427 = vmatprep.mubr.f32.mxu0 0.0
    %3428 = vmatmul.mubr.f32.gmra.mxu0 %v3361
    %v3429 = vpop.f32.mrf.mxu0
    %v3430 = vadd.f32 0.0, %v3429
    %v3431 = vpop.f32.mrf.mxu0
    %3432 = vdwg.mxu0
    %v3434 = vsel %vm1967, %v3345, 0
    %3436 = vmatprep.subr.mxu0 0.0
    %3437 = vmatpush1.msra.mxu0 0.0
    %3438 = vmatprep.subr.mxu0 0.0
    %3439 = vmatpush1.msra.mxu0 0.0
    %3440 = vmatprep.subr.mxu0 0.0
    %3441 = vmatpush1.msra.mxu0 0.0
    %3442 = vmatprep.subr.mxu0 0.0
    %3443 = vmatpush1.msra.mxu0 0.0
    %3444 = vmatprep.subr.mxu0 0.0
    %3445 = vmatpush1.msra.mxu0 0.0
    %3446 = vmatprep.subr.mxu0 0.0
    %3447 = vmatpush1.msra.mxu0 0.0
    %3448 = vmatprep.subr.mxu0 0.0
    %3449 = vmatpush1.msra.mxu0 0.0
    %3450 = vmatprep.subr.mxu0 0.0
    %3451 = vmatpush1.msra.mxu0 0.0
    %3452 = vmatprep.subr.mxu0 0.0
    %3453 = vmatpush1.msra.mxu0 0.0
    %3454 = vmatprep.subr.mxu0 0.0
    %3455 = vmatpush1.msra.mxu0 0.0
    %3456 = vmatprep.subr.mxu0 0.0
    %3457 = vmatpush1.msra.mxu0 0.0
    %3458 = vmatprep.subr.mxu0 0.0
    %3459 = vmatpush1.msra.mxu0 0.0
    %3460 = vmatprep.subr.mxu0 0.0
    %3461 = vmatpush1.msra.mxu0 0.0
    %3462 = vmatprep.subr.mxu0 0.0
    %3463 = vmatpush1.msra.mxu0 0.0
    %3464 = vmatprep.subr.mxu0 0.0
    %3465 = vmatpush1.msra.mxu0 0.0
    %3466 = vmatprep.subr.mxu0 0.0
    %3467 = vmatpush1.msra.mxu0 %v1827
    %3468 = vmatprep.subr.mxu0 0.0
    %3469 = vmatpush2.msra.mxu0 0.0
    %3470 = vmatprep.subr.mxu0 0.0
    %3471 = vmatpush2.msra.mxu0 0.0
    %3472 = vmatprep.subr.mxu0 0.0
    %3473 = vmatpush2.msra.mxu0 0.0
    %3474 = vmatprep.subr.mxu0 0.0
    %3475 = vmatpush2.msra.mxu0 0.0
    %3476 = vmatprep.subr.mxu0 0.0
    %3477 = vmatpush2.msra.mxu0 0.0
    %3478 = vmatprep.subr.mxu0 0.0
    %3479 = vmatpush2.msra.mxu0 0.0
    %3480 = vmatprep.subr.mxu0 0.0
    %3481 = vmatpush2.msra.mxu0 0.0
    %3482 = vmatprep.subr.mxu0 0.0
    %3483 = vmatpush2.msra.mxu0 0.0
    %3484 = vmatprep.subr.mxu0 0.0
    %3485 = vmatpush2.msra.mxu0 0.0
    %3486 = vmatprep.subr.mxu0 0.0
    %3487 = vmatpush2.msra.mxu0 0.0
    %3488 = vmatprep.subr.mxu0 0.0
    %3489 = vmatpush2.msra.mxu0 0.0
    %3490 = vmatprep.subr.mxu0 0.0
    %3491 = vmatpush2.msra.mxu0 0.0
    %3492 = vmatprep.subr.mxu0 0.0
    %3493 = vmatpush2.msra.mxu0 0.0
    %3494 = vmatprep.subr.mxu0 0.0
    %3495 = vmatpush2.msra.mxu0 0.0
    %3496 = vmatprep.subr.mxu0 0.0
    %3497 = vmatpush2.msra.mxu0 0.0
    %3498 = vmatprep.subr.mxu0 0.0
    %3499 = vmatpush2.msra.mxu0 0.0
    %3500 = vmatprep.mubr.f32.mxu0 0.0
    %3501 = vmatmul.mubr.f32.gmra.mxu0 %v3434
    %v3502 = vpop.f32.mrf.mxu0
    %v3503 = vadd.f32 0.0, %v3502
    %v3504 = vpop.f32.mrf.mxu0
    %3505 = vdwg.mxu0
    %v3507 = vsel %vm1967, %v3346, 0
    %3509 = vmatprep.subr.mxu0 0.0
    %3510 = vmatpush1.msra.mxu0 0.0
    %3511 = vmatprep.subr.mxu0 0.0
    %3512 = vmatpush1.msra.mxu0 0.0
    %3513 = vmatprep.subr.mxu0 0.0
    %3514 = vmatpush1.msra.mxu0 0.0
    %3515 = vmatprep.subr.mxu0 0.0
    %3516 = vmatpush1.msra.mxu0 0.0
    %3517 = vmatprep.subr.mxu0 0.0
    %3518 = vmatpush1.msra.mxu0 0.0
    %3519 = vmatprep.subr.mxu0 0.0
    %3520 = vmatpush1.msra.mxu0 0.0
    %3521 = vmatprep.subr.mxu0 0.0
    %3522 = vmatpush1.msra.mxu0 0.0
    %3523 = vmatprep.subr.mxu0 0.0
    %3524 = vmatpush1.msra.mxu0 0.0
    %3525 = vmatprep.subr.mxu0 0.0
    %3526 = vmatpush1.msra.mxu0 0.0
    %3527 = vmatprep.subr.mxu0 0.0
    %3528 = vmatpush1.msra.mxu0 0.0
    %3529 = vmatprep.subr.mxu0 0.0
    %3530 = vmatpush1.msra.mxu0 0.0
    %3531 = vmatprep.subr.mxu0 0.0
    %3532 = vmatpush1.msra.mxu0 0.0
    %3533 = vmatprep.subr.mxu0 0.0
    %3534 = vmatpush1.msra.mxu0 0.0
    %3535 = vmatprep.subr.mxu0 0.0
    %3536 = vmatpush1.msra.mxu0 0.0
    %3537 = vmatprep.subr.mxu0 0.0
    %3538 = vmatpush1.msra.mxu0 0.0
    %3539 = vmatprep.subr.mxu0 0.0
    %3540 = vmatpush1.msra.mxu0 %v1895
    %3541 = vmatprep.subr.mxu0 0.0
    %3542 = vmatpush2.msra.mxu0 0.0
    %3543 = vmatprep.subr.mxu0 0.0
    %3544 = vmatpush2.msra.mxu0 0.0
    %3545 = vmatprep.subr.mxu0 0.0
    %3546 = vmatpush2.msra.mxu0 0.0
    %3547 = vmatprep.subr.mxu0 0.0
    %3548 = vmatpush2.msra.mxu0 0.0
    %3549 = vmatprep.subr.mxu0 0.0
    %3550 = vmatpush2.msra.mxu0 0.0
    %3551 = vmatprep.subr.mxu0 0.0
    %3552 = vmatpush2.msra.mxu0 0.0
    %3553 = vmatprep.subr.mxu0 0.0
    %3554 = vmatpush2.msra.mxu0 0.0
    %3555 = vmatprep.subr.mxu0 0.0
    %3556 = vmatpush2.msra.mxu0 0.0
    %3557 = vmatprep.subr.mxu0 0.0
    %3558 = vmatpush2.msra.mxu0 0.0
    %3559 = vmatprep.subr.mxu0 0.0
    %3560 = vmatpush2.msra.mxu0 0.0
    %3561 = vmatprep.subr.mxu0 0.0
    %3562 = vmatpush2.msra.mxu0 0.0
    %3563 = vmatprep.subr.mxu0 0.0
    %3564 = vmatpush2.msra.mxu0 0.0
    %3565 = vmatprep.subr.mxu0 0.0
    %3566 = vmatpush2.msra.mxu0 0.0
    %3567 = vmatprep.subr.mxu0 0.0
    %3568 = vmatpush2.msra.mxu0 0.0
    %3569 = vmatprep.subr.mxu0 0.0
    %3570 = vmatpush2.msra.mxu0 0.0
    %3571 = vmatprep.subr.mxu0 0.0
    %3572 = vmatpush2.msra.mxu0 0.0
    %3573 = vmatprep.mubr.f32.mxu0 0.0
    %3574 = vmatmul.mubr.f32.gmra.mxu0 %v3507
    %v3575 = vpop.f32.mrf.mxu0
    %v3576 = vadd.f32 0.0, %v3575
    %v3577 = vpop.f32.mrf.mxu0
    %3578 = vdwg.mxu0
    %v3580 = vsel %vm1967, %v3347, 0
    %3582 = vmatprep.subr.mxu0 0.0
    %3583 = vmatpush1.msra.mxu0 0.0
    %3584 = vmatprep.subr.mxu0 0.0
    %3585 = vmatpush1.msra.mxu0 0.0
    %3586 = vmatprep.subr.mxu0 0.0
    %3587 = vmatpush1.msra.mxu0 0.0
    %3588 = vmatprep.subr.mxu0 0.0
    %3589 = vmatpush1.msra.mxu0 0.0
    %3590 = vmatprep.subr.mxu0 0.0
    %3591 = vmatpush1.msra.mxu0 0.0
    %3592 = vmatprep.subr.mxu0 0.0
    %3593 = vmatpush1.msra.mxu0 0.0
    %3594 = vmatprep.subr.mxu0 0.0
    %3595 = vmatpush1.msra.mxu0 0.0
    %3596 = vmatprep.subr.mxu0 0.0
    %3597 = vmatpush1.msra.mxu0 0.0
    %3598 = vmatprep.subr.mxu0 0.0
    %3599 = vmatpush1.msra.mxu0 0.0
    %3600 = vmatprep.subr.mxu0 0.0
    %3601 = vmatpush1.msra.mxu0 0.0
    %3602 = vmatprep.subr.mxu0 0.0
    %3603 = vmatpush1.msra.mxu0 0.0
    %3604 = vmatprep.subr.mxu0 0.0
    %3605 = vmatpush1.msra.mxu0 0.0
    %3606 = vmatprep.subr.mxu0 0.0
    %3607 = vmatpush1.msra.mxu0 0.0
    %3608 = vmatprep.subr.mxu0 0.0
    %3609 = vmatpush1.msra.mxu0 0.0
    %3610 = vmatprep.subr.mxu0 0.0
    %3611 = vmatpush1.msra.mxu0 0.0
    %3612 = vmatprep.subr.mxu0 0.0
    %3613 = vmatpush1.msra.mxu0 %v1963
    %3614 = vmatprep.subr.mxu0 0.0
    %3615 = vmatpush2.msra.mxu0 0.0
    %3616 = vmatprep.subr.mxu0 0.0
    %3617 = vmatpush2.msra.mxu0 0.0
    %3618 = vmatprep.subr.mxu0 0.0
    %3619 = vmatpush2.msra.mxu0 0.0
    %3620 = vmatprep.subr.mxu0 0.0
    %3621 = vmatpush2.msra.mxu0 0.0
    %3622 = vmatprep.subr.mxu0 0.0
    %3623 = vmatpush2.msra.mxu0 0.0
    %3624 = vmatprep.subr.mxu0 0.0
    %3625 = vmatpush2.msra.mxu0 0.0
    %3626 = vmatprep.subr.mxu0 0.0
    %3627 = vmatpush2.msra.mxu0 0.0
    %3628 = vmatprep.subr.mxu0 0.0
    %3629 = vmatpush2.msra.mxu0 0.0
    %3630 = vmatprep.subr.mxu0 0.0
    %3631 = vmatpush2.msra.mxu0 0.0
    %3632 = vmatprep.subr.mxu0 0.0
    %3633 = vmatpush2.msra.mxu0 0.0
    %3634 = vmatprep.subr.mxu0 0.0
    %3635 = vmatpush2.msra.mxu0 0.0
    %3636 = vmatprep.subr.mxu0 0.0
    %3637 = vmatpush2.msra.mxu0 0.0
    %3638 = vmatprep.subr.mxu0 0.0
    %3639 = vmatpush2.msra.mxu0 0.0
    %3640 = vmatprep.subr.mxu0 0.0
    %3641 = vmatpush2.msra.mxu0 0.0
    %3642 = vmatprep.subr.mxu0 0.0
    %3643 = vmatpush2.msra.mxu0 0.0
    %3644 = vmatprep.subr.mxu0 0.0
    %3645 = vmatpush2.msra.mxu0 0.0
    %3646 = vmatprep.mubr.f32.mxu0 0.0
    %3647 = vmatmul.mubr.f32.gmra.mxu0 %v3580
    %v3648 = vpop.f32.mrf.mxu0
    %v3649 = vadd.f32 0.0, %v3648
    %v3650 = vpop.f32.mrf.mxu0
    %3651 = vdwg.mxu0
    %v3653 = vsel %vm1967, %v3348, 0
    %3655 = vmatprep.subr.mxu0 0.0
    %3656 = vmatpush1.msra.mxu0 0.0
    %3657 = vmatprep.subr.mxu0 0.0
    %3658 = vmatpush1.msra.mxu0 0.0
    %3659 = vmatprep.subr.mxu0 0.0
    %3660 = vmatpush1.msra.mxu0 0.0
    %3661 = vmatprep.subr.mxu0 0.0
    %3662 = vmatpush1.msra.mxu0 0.0
    %3663 = vmatprep.subr.mxu0 0.0
    %3664 = vmatpush1.msra.mxu0 0.0
    %3665 = vmatprep.subr.mxu0 0.0
    %3666 = vmatpush1.msra.mxu0 0.0
    %3667 = vmatprep.subr.mxu0 0.0
    %3668 = vmatpush1.msra.mxu0 0.0
    %3669 = vmatprep.subr.mxu0 0.0
    %3670 = vmatpush1.msra.mxu0 0.0
    %3671 = vmatprep.subr.mxu0 0.0
    %3672 = vmatpush1.msra.mxu0 0.0
    %3673 = vmatprep.subr.mxu0 0.0
    %3674 = vmatpush1.msra.mxu0 0.0
    %3675 = vmatprep.subr.mxu0 0.0
    %3676 = vmatpush1.msra.mxu0 0.0
    %3677 = vmatprep.subr.mxu0 0.0
    %3678 = vmatpush1.msra.mxu0 0.0
    %3679 = vmatprep.subr.mxu0 0.0
    %3680 = vmatpush1.msra.mxu0 0.0
    %3681 = vmatprep.subr.mxu0 0.0
    %3682 = vmatpush1.msra.mxu0 0.0
    %3683 = vmatprep.subr.mxu0 0.0
    %3684 = vmatpush1.msra.mxu0 0.0
    %3685 = vmatprep.subr.mxu0 0.0
    %3686 = vmatpush1.msra.mxu0 %v1760
    %3687 = vmatprep.subr.mxu0 0.0
    %3688 = vmatpush2.msra.mxu0 0.0
    %3689 = vmatprep.subr.mxu0 0.0
    %3690 = vmatpush2.msra.mxu0 0.0
    %3691 = vmatprep.subr.mxu0 0.0
    %3692 = vmatpush2.msra.mxu0 0.0
    %3693 = vmatprep.subr.mxu0 0.0
    %3694 = vmatpush2.msra.mxu0 0.0
    %3695 = vmatprep.subr.mxu0 0.0
    %3696 = vmatpush2.msra.mxu0 0.0
    %3697 = vmatprep.subr.mxu0 0.0
    %3698 = vmatpush2.msra.mxu0 0.0
    %3699 = vmatprep.subr.mxu0 0.0
    %3700 = vmatpush2.msra.mxu0 0.0
    %3701 = vmatprep.subr.mxu0 0.0
    %3702 = vmatpush2.msra.mxu0 0.0
    %3703 = vmatprep.subr.mxu0 0.0
    %3704 = vmatpush2.msra.mxu0 0.0
    %3705 = vmatprep.subr.mxu0 0.0
    %3706 = vmatpush2.msra.mxu0 0.0
    %3707 = vmatprep.subr.mxu0 0.0
    %3708 = vmatpush2.msra.mxu0 0.0
    %3709 = vmatprep.subr.mxu0 0.0
    %3710 = vmatpush2.msra.mxu0 0.0
    %3711 = vmatprep.subr.mxu0 0.0
    %3712 = vmatpush2.msra.mxu0 0.0
    %3713 = vmatprep.subr.mxu0 0.0
    %3714 = vmatpush2.msra.mxu0 0.0
    %3715 = vmatprep.subr.mxu0 0.0
    %3716 = vmatpush2.msra.mxu0 0.0
    %3717 = vmatprep.subr.mxu0 0.0
    %3718 = vmatpush2.msra.mxu0 0.0
    %3719 = vmatprep.mubr.f32.mxu0 0.0
    %3720 = vmatmul.mubr.f32.gmra.mxu0 %v3653
    %v3721 = vpop.f32.mrf.mxu0
    %v3722 = vadd.f32 0.0, %v3721
    %v3723 = vpop.f32.mrf.mxu0
    %3724 = vdwg.mxu0
    %v3726 = vsel %vm1967, %v3349, 0
    %3728 = vmatprep.subr.mxu0 0.0
    %3729 = vmatpush1.msra.mxu0 0.0
    %3730 = vmatprep.subr.mxu0 0.0
    %3731 = vmatpush1.msra.mxu0 0.0
    %3732 = vmatprep.subr.mxu0 0.0
    %3733 = vmatpush1.msra.mxu0 0.0
    %3734 = vmatprep.subr.mxu0 0.0
    %3735 = vmatpush1.msra.mxu0 0.0
    %3736 = vmatprep.subr.mxu0 0.0
    %3737 = vmatpush1.msra.mxu0 0.0
    %3738 = vmatprep.subr.mxu0 0.0
    %3739 = vmatpush1.msra.mxu0 0.0
    %3740 = vmatprep.subr.mxu0 0.0
    %3741 = vmatpush1.msra.mxu0 0.0
    %3742 = vmatprep.subr.mxu0 0.0
    %3743 = vmatpush1.msra.mxu0 0.0
    %3744 = vmatprep.subr.mxu0 0.0
    %3745 = vmatpush1.msra.mxu0 0.0
    %3746 = vmatprep.subr.mxu0 0.0
    %3747 = vmatpush1.msra.mxu0 0.0
    %3748 = vmatprep.subr.mxu0 0.0
    %3749 = vmatpush1.msra.mxu0 0.0
    %3750 = vmatprep.subr.mxu0 0.0
    %3751 = vmatpush1.msra.mxu0 0.0
    %3752 = vmatprep.subr.mxu0 0.0
    %3753 = vmatpush1.msra.mxu0 0.0
    %3754 = vmatprep.subr.mxu0 0.0
    %3755 = vmatpush1.msra.mxu0 0.0
    %3756 = vmatprep.subr.mxu0 0.0
    %3757 = vmatpush1.msra.mxu0 0.0
    %3758 = vmatprep.subr.mxu0 0.0
    %3759 = vmatpush1.msra.mxu0 %v1828
    %3760 = vmatprep.subr.mxu0 0.0
    %3761 = vmatpush2.msra.mxu0 0.0
    %3762 = vmatprep.subr.mxu0 0.0
    %3763 = vmatpush2.msra.mxu0 0.0
    %3764 = vmatprep.subr.mxu0 0.0
    %3765 = vmatpush2.msra.mxu0 0.0
    %3766 = vmatprep.subr.mxu0 0.0
    %3767 = vmatpush2.msra.mxu0 0.0
    %3768 = vmatprep.subr.mxu0 0.0
    %3769 = vmatpush2.msra.mxu0 0.0
    %3770 = vmatprep.subr.mxu0 0.0
    %3771 = vmatpush2.msra.mxu0 0.0
    %3772 = vmatprep.subr.mxu0 0.0
    %3773 = vmatpush2.msra.mxu0 0.0
    %3774 = vmatprep.subr.mxu0 0.0
    %3775 = vmatpush2.msra.mxu0 0.0
    %3776 = vmatprep.subr.mxu0 0.0
    %3777 = vmatpush2.msra.mxu0 0.0
    %3778 = vmatprep.subr.mxu0 0.0
    %3779 = vmatpush2.msra.mxu0 0.0
    %3780 = vmatprep.subr.mxu0 0.0
    %3781 = vmatpush2.msra.mxu0 0.0
    %3782 = vmatprep.subr.mxu0 0.0
    %3783 = vmatpush2.msra.mxu0 0.0
    %3784 = vmatprep.subr.mxu0 0.0
    %3785 = vmatpush2.msra.mxu0 0.0
    %3786 = vmatprep.subr.mxu0 0.0
    %3787 = vmatpush2.msra.mxu0 0.0
    %3788 = vmatprep.subr.mxu0 0.0
    %3789 = vmatpush2.msra.mxu0 0.0
    %3790 = vmatprep.subr.mxu0 0.0
    %3791 = vmatpush2.msra.mxu0 0.0
    %3792 = vmatprep.mubr.f32.mxu0 0.0
    %3793 = vmatmul.mubr.f32.gmra.mxu0 %v3726
    %v3794 = vpop.f32.mrf.mxu0
    %v3795 = vadd.f32 0.0, %v3794
    %v3796 = vpop.f32.mrf.mxu0
    %3797 = vdwg.mxu0
    %v3799 = vsel %vm1967, %v3350, 0
    %3801 = vmatprep.subr.mxu0 0.0
    %3802 = vmatpush1.msra.mxu0 0.0
    %3803 = vmatprep.subr.mxu0 0.0
    %3804 = vmatpush1.msra.mxu0 0.0
    %3805 = vmatprep.subr.mxu0 0.0
    %3806 = vmatpush1.msra.mxu0 0.0
    %3807 = vmatprep.subr.mxu0 0.0
    %3808 = vmatpush1.msra.mxu0 0.0
    %3809 = vmatprep.subr.mxu0 0.0
    %3810 = vmatpush1.msra.mxu0 0.0
    %3811 = vmatprep.subr.mxu0 0.0
    %3812 = vmatpush1.msra.mxu0 0.0
    %3813 = vmatprep.subr.mxu0 0.0
    %3814 = vmatpush1.msra.mxu0 0.0
    %3815 = vmatprep.subr.mxu0 0.0
    %3816 = vmatpush1.msra.mxu0 0.0
    %3817 = vmatprep.subr.mxu0 0.0
    %3818 = vmatpush1.msra.mxu0 0.0
    %3819 = vmatprep.subr.mxu0 0.0
    %3820 = vmatpush1.msra.mxu0 0.0
    %3821 = vmatprep.subr.mxu0 0.0
    %3822 = vmatpush1.msra.mxu0 0.0
    %3823 = vmatprep.subr.mxu0 0.0
    %3824 = vmatpush1.msra.mxu0 0.0
    %3825 = vmatprep.subr.mxu0 0.0
    %3826 = vmatpush1.msra.mxu0 0.0
    %3827 = vmatprep.subr.mxu0 0.0
    %3828 = vmatpush1.msra.mxu0 0.0
    %3829 = vmatprep.subr.mxu0 0.0
    %3830 = vmatpush1.msra.mxu0 0.0
    %3831 = vmatprep.subr.mxu0 0.0
    %3832 = vmatpush1.msra.mxu0 %v1896
    %3833 = vmatprep.subr.mxu0 0.0
    %3834 = vmatpush2.msra.mxu0 0.0
    %3835 = vmatprep.subr.mxu0 0.0
    %3836 = vmatpush2.msra.mxu0 0.0
    %3837 = vmatprep.subr.mxu0 0.0
    %3838 = vmatpush2.msra.mxu0 0.0
    %3839 = vmatprep.subr.mxu0 0.0
    %3840 = vmatpush2.msra.mxu0 0.0
    %3841 = vmatprep.subr.mxu0 0.0
    %3842 = vmatpush2.msra.mxu0 0.0
    %3843 = vmatprep.subr.mxu0 0.0
    %3844 = vmatpush2.msra.mxu0 0.0
    %3845 = vmatprep.subr.mxu0 0.0
    %3846 = vmatpush2.msra.mxu0 0.0
    %3847 = vmatprep.subr.mxu0 0.0
    %3848 = vmatpush2.msra.mxu0 0.0
    %3849 = vmatprep.subr.mxu0 0.0
    %3850 = vmatpush2.msra.mxu0 0.0
    %3851 = vmatprep.subr.mxu0 0.0
    %3852 = vmatpush2.msra.mxu0 0.0
    %3853 = vmatprep.subr.mxu0 0.0
    %3854 = vmatpush2.msra.mxu0 0.0
    %3855 = vmatprep.subr.mxu0 0.0
    %3856 = vmatpush2.msra.mxu0 0.0
    %3857 = vmatprep.subr.mxu0 0.0
    %3858 = vmatpush2.msra.mxu0 0.0
    %3859 = vmatprep.subr.mxu0 0.0
    %3860 = vmatpush2.msra.mxu0 0.0
    %3861 = vmatprep.subr.mxu0 0.0
    %3862 = vmatpush2.msra.mxu0 0.0
    %3863 = vmatprep.subr.mxu0 0.0
    %3864 = vmatpush2.msra.mxu0 0.0
    %3865 = vmatprep.mubr.f32.mxu0 0.0
    %3866 = vmatmul.mubr.f32.gmra.mxu0 %v3799
    %v3867 = vpop.f32.mrf.mxu0
    %v3868 = vadd.f32 0.0, %v3867
    %v3869 = vpop.f32.mrf.mxu0
    %3870 = vdwg.mxu0
    %v3872 = vsel %vm1967, %v3351, 0
    %3874 = vmatprep.subr.mxu0 0.0
    %3875 = vmatpush1.msra.mxu0 0.0
    %3876 = vmatprep.subr.mxu0 0.0
    %3877 = vmatpush1.msra.mxu0 0.0
    %3878 = vmatprep.subr.mxu0 0.0
    %3879 = vmatpush1.msra.mxu0 0.0
    %3880 = vmatprep.subr.mxu0 0.0
    %3881 = vmatpush1.msra.mxu0 0.0
    %3882 = vmatprep.subr.mxu0 0.0
    %3883 = vmatpush1.msra.mxu0 0.0
    %3884 = vmatprep.subr.mxu0 0.0
    %3885 = vmatpush1.msra.mxu0 0.0
    %3886 = vmatprep.subr.mxu0 0.0
    %3887 = vmatpush1.msra.mxu0 0.0
    %3888 = vmatprep.subr.mxu0 0.0
    %3889 = vmatpush1.msra.mxu0 0.0
    %3890 = vmatprep.subr.mxu0 0.0
    %3891 = vmatpush1.msra.mxu0 0.0
    %3892 = vmatprep.subr.mxu0 0.0
    %3893 = vmatpush1.msra.mxu0 0.0
    %3894 = vmatprep.subr.mxu0 0.0
    %3895 = vmatpush1.msra.mxu0 0.0
    %3896 = vmatprep.subr.mxu0 0.0
    %3897 = vmatpush1.msra.mxu0 0.0
    %3898 = vmatprep.subr.mxu0 0.0
    %3899 = vmatpush1.msra.mxu0 0.0
    %3900 = vmatprep.subr.mxu0 0.0
    %3901 = vmatpush1.msra.mxu0 0.0
    %3902 = vmatprep.subr.mxu0 0.0
    %3903 = vmatpush1.msra.mxu0 0.0
    %3904 = vmatprep.subr.mxu0 0.0
    %3905 = vmatpush1.msra.mxu0 %v1964
    %3906 = vmatprep.subr.mxu0 0.0
    %3907 = vmatpush2.msra.mxu0 0.0
    %3908 = vmatprep.subr.mxu0 0.0
    %3909 = vmatpush2.msra.mxu0 0.0
    %3910 = vmatprep.subr.mxu0 0.0
    %3911 = vmatpush2.msra.mxu0 0.0
    %3912 = vmatprep.subr.mxu0 0.0
    %3913 = vmatpush2.msra.mxu0 0.0
    %3914 = vmatprep.subr.mxu0 0.0
    %3915 = vmatpush2.msra.mxu0 0.0
    %3916 = vmatprep.subr.mxu0 0.0
    %3917 = vmatpush2.msra.mxu0 0.0
    %3918 = vmatprep.subr.mxu0 0.0
    %3919 = vmatpush2.msra.mxu0 0.0
    %3920 = vmatprep.subr.mxu0 0.0
    %3921 = vmatpush2.msra.mxu0 0.0
    %3922 = vmatprep.subr.mxu0 0.0
    %3923 = vmatpush2.msra.mxu0 0.0
    %3924 = vmatprep.subr.mxu0 0.0
    %3925 = vmatpush2.msra.mxu0 0.0
    %3926 = vmatprep.subr.mxu0 0.0
    %3927 = vmatpush2.msra.mxu0 0.0
    %3928 = vmatprep.subr.mxu0 0.0
    %3929 = vmatpush2.msra.mxu0 0.0
    %3930 = vmatprep.subr.mxu0 0.0
    %3931 = vmatpush2.msra.mxu0 0.0
    %3932 = vmatprep.subr.mxu0 0.0
    %3933 = vmatpush2.msra.mxu0 0.0
    %3934 = vmatprep.subr.mxu0 0.0
    %3935 = vmatpush2.msra.mxu0 0.0
    %3936 = vmatprep.subr.mxu0 0.0
    %3937 = vmatpush2.msra.mxu0 0.0
    %3938 = vmatprep.mubr.f32.mxu0 0.0
    %3939 = vmatmul.mubr.f32.gmra.mxu0 %v3872
    %v3940 = vpop.f32.mrf.mxu0
    %v3941 = vadd.f32 0.0, %v3940
    %v3942 = vpop.f32.mrf.mxu0
    %3943 = vdwg.mxu0
    %v3945 = vsel %vm1967, %v3352, 0
    %3947 = vmatprep.subr.mxu0 0.0
    %3948 = vmatpush1.msra.mxu0 0.0
    %3949 = vmatprep.subr.mxu0 0.0
    %3950 = vmatpush1.msra.mxu0 0.0
    %3951 = vmatprep.subr.mxu0 0.0
    %3952 = vmatpush1.msra.mxu0 0.0
    %3953 = vmatprep.subr.mxu0 0.0
    %3954 = vmatpush1.msra.mxu0 0.0
    %3955 = vmatprep.subr.mxu0 0.0
    %3956 = vmatpush1.msra.mxu0 0.0
    %3957 = vmatprep.subr.mxu0 0.0
    %3958 = vmatpush1.msra.mxu0 0.0
    %3959 = vmatprep.subr.mxu0 0.0
    %3960 = vmatpush1.msra.mxu0 0.0
    %3961 = vmatprep.subr.mxu0 0.0
    %3962 = vmatpush1.msra.mxu0 0.0
    %3963 = vmatprep.subr.mxu0 0.0
    %3964 = vmatpush1.msra.mxu0 0.0
    %3965 = vmatprep.subr.mxu0 0.0
    %3966 = vmatpush1.msra.mxu0 0.0
    %3967 = vmatprep.subr.mxu0 0.0
    %3968 = vmatpush1.msra.mxu0 0.0
    %3969 = vmatprep.subr.mxu0 0.0
    %3970 = vmatpush1.msra.mxu0 0.0
    %3971 = vmatprep.subr.mxu0 0.0
    %3972 = vmatpush1.msra.mxu0 0.0
    %3973 = vmatprep.subr.mxu0 0.0
    %3974 = vmatpush1.msra.mxu0 0.0
    %3975 = vmatprep.subr.mxu0 0.0
    %3976 = vmatpush1.msra.mxu0 0.0
    %3977 = vmatprep.subr.mxu0 0.0
    %3978 = vmatpush1.msra.mxu0 %v1761
    %3979 = vmatprep.subr.mxu0 0.0
    %3980 = vmatpush2.msra.mxu0 0.0
    %3981 = vmatprep.subr.mxu0 0.0
    %3982 = vmatpush2.msra.mxu0 0.0
    %3983 = vmatprep.subr.mxu0 0.0
    %3984 = vmatpush2.msra.mxu0 0.0
    %3985 = vmatprep.subr.mxu0 0.0
    %3986 = vmatpush2.msra.mxu0 0.0
    %3987 = vmatprep.subr.mxu0 0.0
    %3988 = vmatpush2.msra.mxu0 0.0
    %3989 = vmatprep.subr.mxu0 0.0
    %3990 = vmatpush2.msra.mxu0 0.0
    %3991 = vmatprep.subr.mxu0 0.0
    %3992 = vmatpush2.msra.mxu0 0.0
    %3993 = vmatprep.subr.mxu0 0.0
    %3994 = vmatpush2.msra.mxu0 0.0
    %3995 = vmatprep.subr.mxu0 0.0
    %3996 = vmatpush2.msra.mxu0 0.0
    %3997 = vmatprep.subr.mxu0 0.0
    %3998 = vmatpush2.msra.mxu0 0.0
    %3999 = vmatprep.subr.mxu0 0.0
    %4000 = vmatpush2.msra.mxu0 0.0
    %4001 = vmatprep.subr.mxu0 0.0
    %4002 = vmatpush2.msra.mxu0 0.0
    %4003 = vmatprep.subr.mxu0 0.0
    %4004 = vmatpush2.msra.mxu0 0.0
    %4005 = vmatprep.subr.mxu0 0.0
    %4006 = vmatpush2.msra.mxu0 0.0
    %4007 = vmatprep.subr.mxu0 0.0
    %4008 = vmatpush2.msra.mxu0 0.0
    %4009 = vmatprep.subr.mxu0 0.0
    %4010 = vmatpush2.msra.mxu0 0.0
    %4011 = vmatprep.mubr.f32.mxu0 0.0
    %4012 = vmatmul.mubr.f32.gmra.mxu0 %v3945
    %v4013 = vpop.f32.mrf.mxu0
    %v4014 = vadd.f32 0.0, %v4013
    %v4015 = vpop.f32.mrf.mxu0
    %4016 = vdwg.mxu0
    %v4018 = vsel %vm1967, %v3353, 0
    %4020 = vmatprep.subr.mxu0 0.0
    %4021 = vmatpush1.msra.mxu0 0.0
    %4022 = vmatprep.subr.mxu0 0.0
    %4023 = vmatpush1.msra.mxu0 0.0
    %4024 = vmatprep.subr.mxu0 0.0
    %4025 = vmatpush1.msra.mxu0 0.0
    %4026 = vmatprep.subr.mxu0 0.0
    %4027 = vmatpush1.msra.mxu0 0.0
    %4028 = vmatprep.subr.mxu0 0.0
    %4029 = vmatpush1.msra.mxu0 0.0
    %4030 = vmatprep.subr.mxu0 0.0
    %4031 = vmatpush1.msra.mxu0 0.0
    %4032 = vmatprep.subr.mxu0 0.0
    %4033 = vmatpush1.msra.mxu0 0.0
    %4034 = vmatprep.subr.mxu0 0.0
    %4035 = vmatpush1.msra.mxu0 0.0
    %4036 = vmatprep.subr.mxu0 0.0
    %4037 = vmatpush1.msra.mxu0 0.0
    %4038 = vmatprep.subr.mxu0 0.0
    %4039 = vmatpush1.msra.mxu0 0.0
    %4040 = vmatprep.subr.mxu0 0.0
    %4041 = vmatpush1.msra.mxu0 0.0
    %4042 = vmatprep.subr.mxu0 0.0
    %4043 = vmatpush1.msra.mxu0 0.0
    %4044 = vmatprep.subr.mxu0 0.0
    %4045 = vmatpush1.msra.mxu0 0.0
    %4046 = vmatprep.subr.mxu0 0.0
    %4047 = vmatpush1.msra.mxu0 0.0
    %4048 = vmatprep.subr.mxu0 0.0
    %4049 = vmatpush1.msra.mxu0 0.0
    %4050 = vmatprep.subr.mxu0 0.0
    %4051 = vmatpush1.msra.mxu0 %v1829
    %4052 = vmatprep.subr.mxu0 0.0
    %4053 = vmatpush2.msra.mxu0 0.0
    %4054 = vmatprep.subr.mxu0 0.0
    %4055 = vmatpush2.msra.mxu0 0.0
    %4056 = vmatprep.subr.mxu0 0.0
    %4057 = vmatpush2.msra.mxu0 0.0
    %4058 = vmatprep.subr.mxu0 0.0
    %4059 = vmatpush2.msra.mxu0 0.0
    %4060 = vmatprep.subr.mxu0 0.0
    %4061 = vmatpush2.msra.mxu0 0.0
    %4062 = vmatprep.subr.mxu0 0.0
    %4063 = vmatpush2.msra.mxu0 0.0
    %4064 = vmatprep.subr.mxu0 0.0
    %4065 = vmatpush2.msra.mxu0 0.0
    %4066 = vmatprep.subr.mxu0 0.0
    %4067 = vmatpush2.msra.mxu0 0.0
    %4068 = vmatprep.subr.mxu0 0.0
    %4069 = vmatpush2.msra.mxu0 0.0
    %4070 = vmatprep.subr.mxu0 0.0
    %4071 = vmatpush2.msra.mxu0 0.0
    %4072 = vmatprep.subr.mxu0 0.0
    %4073 = vmatpush2.msra.mxu0 0.0
    %4074 = vmatprep.subr.mxu0 0.0
    %4075 = vmatpush2.msra.mxu0 0.0
    %4076 = vmatprep.subr.mxu0 0.0
    %4077 = vmatpush2.msra.mxu0 0.0
    %4078 = vmatprep.subr.mxu0 0.0
    %4079 = vmatpush2.msra.mxu0 0.0
    %4080 = vmatprep.subr.mxu0 0.0
    %4081 = vmatpush2.msra.mxu0 0.0
    %4082 = vmatprep.subr.mxu0 0.0
    %4083 = vmatpush2.msra.mxu0 0.0
    %4084 = vmatprep.mubr.f32.mxu0 0.0
    %4085 = vmatmul.mubr.f32.gmra.mxu0 %v4018
    %v4086 = vpop.f32.mrf.mxu0
    %v4087 = vadd.f32 0.0, %v4086
    %v4088 = vpop.f32.mrf.mxu0
    %4089 = vdwg.mxu0
    %v4091 = vsel %vm1967, %v3354, 0
    %4093 = vmatprep.subr.mxu0 0.0
    %4094 = vmatpush1.msra.mxu0 0.0
    %4095 = vmatprep.subr.mxu0 0.0
    %4096 = vmatpush1.msra.mxu0 0.0
    %4097 = vmatprep.subr.mxu0 0.0
    %4098 = vmatpush1.msra.mxu0 0.0
    %4099 = vmatprep.subr.mxu0 0.0
    %4100 = vmatpush1.msra.mxu0 0.0
    %4101 = vmatprep.subr.mxu0 0.0
    %4102 = vmatpush1.msra.mxu0 0.0
    %4103 = vmatprep.subr.mxu0 0.0
    %4104 = vmatpush1.msra.mxu0 0.0
    %4105 = vmatprep.subr.mxu0 0.0
    %4106 = vmatpush1.msra.mxu0 0.0
    %4107 = vmatprep.subr.mxu0 0.0
    %4108 = vmatpush1.msra.mxu0 0.0
    %4109 = vmatprep.subr.mxu0 0.0
    %4110 = vmatpush1.msra.mxu0 0.0
    %4111 = vmatprep.subr.mxu0 0.0
    %4112 = vmatpush1.msra.mxu0 0.0
    %4113 = vmatprep.subr.mxu0 0.0
    %4114 = vmatpush1.msra.mxu0 0.0
    %4115 = vmatprep.subr.mxu0 0.0
    %4116 = vmatpush1.msra.mxu0 0.0
    %4117 = vmatprep.subr.mxu0 0.0
    %4118 = vmatpush1.msra.mxu0 0.0
    %4119 = vmatprep.subr.mxu0 0.0
    %4120 = vmatpush1.msra.mxu0 0.0
    %4121 = vmatprep.subr.mxu0 0.0
    %4122 = vmatpush1.msra.mxu0 0.0
    %4123 = vmatprep.subr.mxu0 0.0
    %4124 = vmatpush1.msra.mxu0 %v1897
    %4125 = vmatprep.subr.mxu0 0.0
    %4126 = vmatpush2.msra.mxu0 0.0
    %4127 = vmatprep.subr.mxu0 0.0
    %4128 = vmatpush2.msra.mxu0 0.0
    %4129 = vmatprep.subr.mxu0 0.0
    %4130 = vmatpush2.msra.mxu0 0.0
    %4131 = vmatprep.subr.mxu0 0.0
    %4132 = vmatpush2.msra.mxu0 0.0
    %4133 = vmatprep.subr.mxu0 0.0
    %4134 = vmatpush2.msra.mxu0 0.0
    %4135 = vmatprep.subr.mxu0 0.0
    %4136 = vmatpush2.msra.mxu0 0.0
    %4137 = vmatprep.subr.mxu0 0.0
    %4138 = vmatpush2.msra.mxu0 0.0
    %4139 = vmatprep.subr.mxu0 0.0
    %4140 = vmatpush2.msra.mxu0 0.0
    %4141 = vmatprep.subr.mxu0 0.0
    %4142 = vmatpush2.msra.mxu0 0.0
    %4143 = vmatprep.subr.mxu0 0.0
    %4144 = vmatpush2.msra.mxu0 0.0
    %4145 = vmatprep.subr.mxu0 0.0
    %4146 = vmatpush2.msra.mxu0 0.0
    %4147 = vmatprep.subr.mxu0 0.0
    %4148 = vmatpush2.msra.mxu0 0.0
    %4149 = vmatprep.subr.mxu0 0.0
    %4150 = vmatpush2.msra.mxu0 0.0
    %4151 = vmatprep.subr.mxu0 0.0
    %4152 = vmatpush2.msra.mxu0 0.0
    %4153 = vmatprep.subr.mxu0 0.0
    %4154 = vmatpush2.msra.mxu0 0.0
    %4155 = vmatprep.subr.mxu0 0.0
    %4156 = vmatpush2.msra.mxu0 0.0
    %4157 = vmatprep.mubr.f32.mxu0 0.0
    %4158 = vmatmul.mubr.f32.gmra.mxu0 %v4091
    %v4159 = vpop.f32.mrf.mxu0
    %v4160 = vadd.f32 0.0, %v4159
    %v4161 = vpop.f32.mrf.mxu0
    %4162 = vdwg.mxu0
    %v4164 = vsel %vm1967, %v3355, 0
    %4166 = vmatprep.subr.mxu0 0.0
    %4167 = vmatpush1.msra.mxu0 0.0
    %4168 = vmatprep.subr.mxu0 0.0
    %4169 = vmatpush1.msra.mxu0 0.0
    %4170 = vmatprep.subr.mxu0 0.0
    %4171 = vmatpush1.msra.mxu0 0.0
    %4172 = vmatprep.subr.mxu0 0.0
    %4173 = vmatpush1.msra.mxu0 0.0
    %4174 = vmatprep.subr.mxu0 0.0
    %4175 = vmatpush1.msra.mxu0 0.0
    %4176 = vmatprep.subr.mxu0 0.0
    %4177 = vmatpush1.msra.mxu0 0.0
    %4178 = vmatprep.subr.mxu0 0.0
    %4179 = vmatpush1.msra.mxu0 0.0
    %4180 = vmatprep.subr.mxu0 0.0
    %4181 = vmatpush1.msra.mxu0 0.0
    %4182 = vmatprep.subr.mxu0 0.0
    %4183 = vmatpush1.msra.mxu0 0.0
    %4184 = vmatprep.subr.mxu0 0.0
    %4185 = vmatpush1.msra.mxu0 0.0
    %4186 = vmatprep.subr.mxu0 0.0
    %4187 = vmatpush1.msra.mxu0 0.0
    %4188 = vmatprep.subr.mxu0 0.0
    %4189 = vmatpush1.msra.mxu0 0.0
    %4190 = vmatprep.subr.mxu0 0.0
    %4191 = vmatpush1.msra.mxu0 0.0
    %4192 = vmatprep.subr.mxu0 0.0
    %4193 = vmatpush1.msra.mxu0 0.0
    %4194 = vmatprep.subr.mxu0 0.0
    %4195 = vmatpush1.msra.mxu0 0.0
    %4196 = vmatprep.subr.mxu0 0.0
    %4197 = vmatpush1.msra.mxu0 %v1965
    %4198 = vmatprep.subr.mxu0 0.0
    %4199 = vmatpush2.msra.mxu0 0.0
    %4200 = vmatprep.subr.mxu0 0.0
    %4201 = vmatpush2.msra.mxu0 0.0
    %4202 = vmatprep.subr.mxu0 0.0
    %4203 = vmatpush2.msra.mxu0 0.0
    %4204 = vmatprep.subr.mxu0 0.0
    %4205 = vmatpush2.msra.mxu0 0.0
    %4206 = vmatprep.subr.mxu0 0.0
    %4207 = vmatpush2.msra.mxu0 0.0
    %4208 = vmatprep.subr.mxu0 0.0
    %4209 = vmatpush2.msra.mxu0 0.0
    %4210 = vmatprep.subr.mxu0 0.0
    %4211 = vmatpush2.msra.mxu0 0.0
    %4212 = vmatprep.subr.mxu0 0.0
    %4213 = vmatpush2.msra.mxu0 0.0
    %4214 = vmatprep.subr.mxu0 0.0
    %4215 = vmatpush2.msra.mxu0 0.0
    %4216 = vmatprep.subr.mxu0 0.0
    %4217 = vmatpush2.msra.mxu0 0.0
    %4218 = vmatprep.subr.mxu0 0.0
    %4219 = vmatpush2.msra.mxu0 0.0
    %4220 = vmatprep.subr.mxu0 0.0
    %4221 = vmatpush2.msra.mxu0 0.0
    %4222 = vmatprep.subr.mxu0 0.0
    %4223 = vmatpush2.msra.mxu0 0.0
    %4224 = vmatprep.subr.mxu0 0.0
    %4225 = vmatpush2.msra.mxu0 0.0
    %4226 = vmatprep.subr.mxu0 0.0
    %4227 = vmatpush2.msra.mxu0 0.0
    %4228 = vmatprep.subr.mxu0 0.0
    %4229 = vmatpush2.msra.mxu0 0.0
    %4230 = vmatprep.mubr.f32.mxu0 0.0
    %4231 = vmatmul.mubr.f32.gmra.mxu0 %v4164
    %v4232 = vpop.f32.mrf.mxu0
    %v4233 = vadd.f32 0.0, %v4232
    %v4234 = vpop.f32.mrf.mxu0
    %4235 = vdwg.mxu0
    %v4237 = vsel %vm1967, %v3356, 0
    %4239 = vmatprep.subr.mxu0 0.0
    %4240 = vmatpush1.msra.mxu0 0.0
    %4241 = vmatprep.subr.mxu0 0.0
    %4242 = vmatpush1.msra.mxu0 0.0
    %4243 = vmatprep.subr.mxu0 0.0
    %4244 = vmatpush1.msra.mxu0 0.0
    %4245 = vmatprep.subr.mxu0 0.0
    %4246 = vmatpush1.msra.mxu0 0.0
    %4247 = vmatprep.subr.mxu0 0.0
    %4248 = vmatpush1.msra.mxu0 0.0
    %4249 = vmatprep.subr.mxu0 0.0
    %4250 = vmatpush1.msra.mxu0 0.0
    %4251 = vmatprep.subr.mxu0 0.0
    %4252 = vmatpush1.msra.mxu0 0.0
    %4253 = vmatprep.subr.mxu0 0.0
    %4254 = vmatpush1.msra.mxu0 0.0
    %4255 = vmatprep.subr.mxu0 0.0
    %4256 = vmatpush1.msra.mxu0 0.0
    %4257 = vmatprep.subr.mxu0 0.0
    %4258 = vmatpush1.msra.mxu0 0.0
    %4259 = vmatprep.subr.mxu0 0.0
    %4260 = vmatpush1.msra.mxu0 0.0
    %4261 = vmatprep.subr.mxu0 0.0
    %4262 = vmatpush1.msra.mxu0 0.0
    %4263 = vmatprep.subr.mxu0 0.0
    %4264 = vmatpush1.msra.mxu0 0.0
    %4265 = vmatprep.subr.mxu0 0.0
    %4266 = vmatpush1.msra.mxu0 0.0
    %4267 = vmatprep.subr.mxu0 0.0
    %4268 = vmatpush1.msra.mxu0 0.0
    %4269 = vmatprep.subr.mxu0 0.0
    %4270 = vmatpush1.msra.mxu0 %v1762
    %4271 = vmatprep.subr.mxu0 0.0
    %4272 = vmatpush2.msra.mxu0 0.0
    %4273 = vmatprep.subr.mxu0 0.0
    %4274 = vmatpush2.msra.mxu0 0.0
    %4275 = vmatprep.subr.mxu0 0.0
    %4276 = vmatpush2.msra.mxu0 0.0
    %4277 = vmatprep.subr.mxu0 0.0
    %4278 = vmatpush2.msra.mxu0 0.0
    %4279 = vmatprep.subr.mxu0 0.0
    %4280 = vmatpush2.msra.mxu0 0.0
    %4281 = vmatprep.subr.mxu0 0.0
    %4282 = vmatpush2.msra.mxu0 0.0
    %4283 = vmatprep.subr.mxu0 0.0
    %4284 = vmatpush2.msra.mxu0 0.0
    %4285 = vmatprep.subr.mxu0 0.0
    %4286 = vmatpush2.msra.mxu0 0.0
    %4287 = vmatprep.subr.mxu0 0.0
    %4288 = vmatpush2.msra.mxu0 0.0
    %4289 = vmatprep.subr.mxu0 0.0
    %4290 = vmatpush2.msra.mxu0 0.0
    %4291 = vmatprep.subr.mxu0 0.0
    %4292 = vmatpush2.msra.mxu0 0.0
    %4293 = vmatprep.subr.mxu0 0.0
    %4294 = vmatpush2.msra.mxu0 0.0
    %4295 = vmatprep.subr.mxu0 0.0
    %4296 = vmatpush2.msra.mxu0 0.0
    %4297 = vmatprep.subr.mxu0 0.0
    %4298 = vmatpush2.msra.mxu0 0.0
    %4299 = vmatprep.subr.mxu0 0.0
    %4300 = vmatpush2.msra.mxu0 0.0
    %4301 = vmatprep.subr.mxu0 0.0
    %4302 = vmatpush2.msra.mxu0 0.0
    %4303 = vmatprep.mubr.f32.mxu0 0.0
    %4304 = vmatmul.mubr.f32.gmra.mxu0 %v4237
    %v4305 = vpop.f32.mrf.mxu0
    %v4306 = vadd.f32 0.0, %v4305
    %v4307 = vpop.f32.mrf.mxu0
    %4308 = vdwg.mxu0
    %v4310 = vsel %vm1967, %v3357, 0
    %4312 = vmatprep.subr.mxu0 0.0
    %4313 = vmatpush1.msra.mxu0 0.0
    %4314 = vmatprep.subr.mxu0 0.0
    %4315 = vmatpush1.msra.mxu0 0.0
    %4316 = vmatprep.subr.mxu0 0.0
    %4317 = vmatpush1.msra.mxu0 0.0
    %4318 = vmatprep.subr.mxu0 0.0
    %4319 = vmatpush1.msra.mxu0 0.0
    %4320 = vmatprep.subr.mxu0 0.0
    %4321 = vmatpush1.msra.mxu0 0.0
    %4322 = vmatprep.subr.mxu0 0.0
    %4323 = vmatpush1.msra.mxu0 0.0
    %4324 = vmatprep.subr.mxu0 0.0
    %4325 = vmatpush1.msra.mxu0 0.0
    %4326 = vmatprep.subr.mxu0 0.0
    %4327 = vmatpush1.msra.mxu0 0.0
    %4328 = vmatprep.subr.mxu0 0.0
    %4329 = vmatpush1.msra.mxu0 0.0
    %4330 = vmatprep.subr.mxu0 0.0
    %4331 = vmatpush1.msra.mxu0 0.0
    %4332 = vmatprep.subr.mxu0 0.0
    %4333 = vmatpush1.msra.mxu0 0.0
    %4334 = vmatprep.subr.mxu0 0.0
    %4335 = vmatpush1.msra.mxu0 0.0
    %4336 = vmatprep.subr.mxu0 0.0
    %4337 = vmatpush1.msra.mxu0 0.0
    %4338 = vmatprep.subr.mxu0 0.0
    %4339 = vmatpush1.msra.mxu0 0.0
    %4340 = vmatprep.subr.mxu0 0.0
    %4341 = vmatpush1.msra.mxu0 0.0
    %4342 = vmatprep.subr.mxu0 0.0
    %4343 = vmatpush1.msra.mxu0 %v1830
    %4344 = vmatprep.subr.mxu0 0.0
    %4345 = vmatpush2.msra.mxu0 0.0
    %4346 = vmatprep.subr.mxu0 0.0
    %4347 = vmatpush2.msra.mxu0 0.0
    %4348 = vmatprep.subr.mxu0 0.0
    %4349 = vmatpush2.msra.mxu0 0.0
    %4350 = vmatprep.subr.mxu0 0.0
    %4351 = vmatpush2.msra.mxu0 0.0
    %4352 = vmatprep.subr.mxu0 0.0
    %4353 = vmatpush2.msra.mxu0 0.0
    %4354 = vmatprep.subr.mxu0 0.0
    %4355 = vmatpush2.msra.mxu0 0.0
    %4356 = vmatprep.subr.mxu0 0.0
    %4357 = vmatpush2.msra.mxu0 0.0
    %4358 = vmatprep.subr.mxu0 0.0
    %4359 = vmatpush2.msra.mxu0 0.0
    %4360 = vmatprep.subr.mxu0 0.0
    %4361 = vmatpush2.msra.mxu0 0.0
    %4362 = vmatprep.subr.mxu0 0.0
    %4363 = vmatpush2.msra.mxu0 0.0
    %4364 = vmatprep.subr.mxu0 0.0
    %4365 = vmatpush2.msra.mxu0 0.0
    %4366 = vmatprep.subr.mxu0 0.0
    %4367 = vmatpush2.msra.mxu0 0.0
    %4368 = vmatprep.subr.mxu0 0.0
    %4369 = vmatpush2.msra.mxu0 0.0
    %4370 = vmatprep.subr.mxu0 0.0
    %4371 = vmatpush2.msra.mxu0 0.0
    %4372 = vmatprep.subr.mxu0 0.0
    %4373 = vmatpush2.msra.mxu0 0.0
    %4374 = vmatprep.subr.mxu0 0.0
    %4375 = vmatpush2.msra.mxu0 0.0
    %4376 = vmatprep.mubr.f32.mxu0 0.0
    %4377 = vmatmul.mubr.f32.gmra.mxu0 %v4310
    %v4378 = vpop.f32.mrf.mxu0
    %v4379 = vadd.f32 0.0, %v4378
    %v4380 = vpop.f32.mrf.mxu0
    %4381 = vdwg.mxu0
    %v4383 = vsel %vm1967, %v3358, 0
    %4385 = vmatprep.subr.mxu0 0.0
    %4386 = vmatpush1.msra.mxu0 0.0
    %4387 = vmatprep.subr.mxu0 0.0
    %4388 = vmatpush1.msra.mxu0 0.0
    %4389 = vmatprep.subr.mxu0 0.0
    %4390 = vmatpush1.msra.mxu0 0.0
    %4391 = vmatprep.subr.mxu0 0.0
    %4392 = vmatpush1.msra.mxu0 0.0
    %4393 = vmatprep.subr.mxu0 0.0
    %4394 = vmatpush1.msra.mxu0 0.0
    %4395 = vmatprep.subr.mxu0 0.0
    %4396 = vmatpush1.msra.mxu0 0.0
    %4397 = vmatprep.subr.mxu0 0.0
    %4398 = vmatpush1.msra.mxu0 0.0
    %4399 = vmatprep.subr.mxu0 0.0
    %4400 = vmatpush1.msra.mxu0 0.0
    %4401 = vmatprep.subr.mxu0 0.0
    %4402 = vmatpush1.msra.mxu0 0.0
    %4403 = vmatprep.subr.mxu0 0.0
    %4404 = vmatpush1.msra.mxu0 0.0
    %4405 = vmatprep.subr.mxu0 0.0
    %4406 = vmatpush1.msra.mxu0 0.0
    %4407 = vmatprep.subr.mxu0 0.0
    %4408 = vmatpush1.msra.mxu0 0.0
    %4409 = vmatprep.subr.mxu0 0.0
    %4410 = vmatpush1.msra.mxu0 0.0
    %4411 = vmatprep.subr.mxu0 0.0
    %4412 = vmatpush1.msra.mxu0 0.0
    %4413 = vmatprep.subr.mxu0 0.0
    %4414 = vmatpush1.msra.mxu0 0.0
    %4415 = vmatprep.subr.mxu0 0.0
    %4416 = vmatpush1.msra.mxu0 %v1898
    %4417 = vmatprep.subr.mxu0 0.0
    %4418 = vmatpush2.msra.mxu0 0.0
    %4419 = vmatprep.subr.mxu0 0.0
    %4420 = vmatpush2.msra.mxu0 0.0
    %4421 = vmatprep.subr.mxu0 0.0
    %4422 = vmatpush2.msra.mxu0 0.0
    %4423 = vmatprep.subr.mxu0 0.0
    %4424 = vmatpush2.msra.mxu0 0.0
    %4425 = vmatprep.subr.mxu0 0.0
    %4426 = vmatpush2.msra.mxu0 0.0
    %4427 = vmatprep.subr.mxu0 0.0
    %4428 = vmatpush2.msra.mxu0 0.0
    %4429 = vmatprep.subr.mxu0 0.0
    %4430 = vmatpush2.msra.mxu0 0.0
    %4431 = vmatprep.subr.mxu0 0.0
    %4432 = vmatpush2.msra.mxu0 0.0
    %4433 = vmatprep.subr.mxu0 0.0
    %4434 = vmatpush2.msra.mxu0 0.0
    %4435 = vmatprep.subr.mxu0 0.0
    %4436 = vmatpush2.msra.mxu0 0.0
    %4437 = vmatprep.subr.mxu0 0.0
    %4438 = vmatpush2.msra.mxu0 0.0
    %4439 = vmatprep.subr.mxu0 0.0
    %4440 = vmatpush2.msra.mxu0 0.0
    %4441 = vmatprep.subr.mxu0 0.0
    %4442 = vmatpush2.msra.mxu0 0.0
    %4443 = vmatprep.subr.mxu0 0.0
    %4444 = vmatpush2.msra.mxu0 0.0
    %4445 = vmatprep.subr.mxu0 0.0
    %4446 = vmatpush2.msra.mxu0 0.0
    %4447 = vmatprep.subr.mxu0 0.0
    %4448 = vmatpush2.msra.mxu0 0.0
    %4449 = vmatprep.mubr.f32.mxu0 0.0
    %4450 = vmatmul.mubr.f32.gmra.mxu0 %v4383
    %v4451 = vpop.f32.mrf.mxu0
    %v4452 = vadd.f32 0.0, %v4451
    %v4453 = vpop.f32.mrf.mxu0
    %4454 = vdwg.mxu0
    %v4456 = vsel %vm1967, %v3359, 0
    %4458 = vmatprep.subr.mxu0 0.0
    %4459 = vmatpush1.msra.mxu0 0.0
    %4460 = vmatprep.subr.mxu0 0.0
    %4461 = vmatpush1.msra.mxu0 0.0
    %4462 = vmatprep.subr.mxu0 0.0
    %4463 = vmatpush1.msra.mxu0 0.0
    %4464 = vmatprep.subr.mxu0 0.0
    %4465 = vmatpush1.msra.mxu0 0.0
    %4466 = vmatprep.subr.mxu0 0.0
    %4467 = vmatpush1.msra.mxu0 0.0
    %4468 = vmatprep.subr.mxu0 0.0
    %4469 = vmatpush1.msra.mxu0 0.0
    %4470 = vmatprep.subr.mxu0 0.0
    %4471 = vmatpush1.msra.mxu0 0.0
    %4472 = vmatprep.subr.mxu0 0.0
    %4473 = vmatpush1.msra.mxu0 0.0
    %4474 = vmatprep.subr.mxu0 0.0
    %4475 = vmatpush1.msra.mxu0 0.0
    %4476 = vmatprep.subr.mxu0 0.0
    %4477 = vmatpush1.msra.mxu0 0.0
    %4478 = vmatprep.subr.mxu0 0.0
    %4479 = vmatpush1.msra.mxu0 0.0
    %4480 = vmatprep.subr.mxu0 0.0
    %4481 = vmatpush1.msra.mxu0 0.0
    %4482 = vmatprep.subr.mxu0 0.0
    %4483 = vmatpush1.msra.mxu0 0.0
    %4484 = vmatprep.subr.mxu0 0.0
    %4485 = vmatpush1.msra.mxu0 0.0
    %4486 = vmatprep.subr.mxu0 0.0
    %4487 = vmatpush1.msra.mxu0 0.0
    %4488 = vmatprep.subr.mxu0 0.0
    %4489 = vmatpush1.msra.mxu0 %v1966
    %4490 = vmatprep.subr.mxu0 0.0
    %4491 = vmatpush2.msra.mxu0 0.0
    %4492 = vmatprep.subr.mxu0 0.0
    %4493 = vmatpush2.msra.mxu0 0.0
    %4494 = vmatprep.subr.mxu0 0.0
    %4495 = vmatpush2.msra.mxu0 0.0
    %4496 = vmatprep.subr.mxu0 0.0
    %4497 = vmatpush2.msra.mxu0 0.0
    %4498 = vmatprep.subr.mxu0 0.0
    %4499 = vmatpush2.msra.mxu0 0.0
    %4500 = vmatprep.subr.mxu0 0.0
    %4501 = vmatpush2.msra.mxu0 0.0
    %4502 = vmatprep.subr.mxu0 0.0
    %4503 = vmatpush2.msra.mxu0 0.0
    %4504 = vmatprep.subr.mxu0 0.0
    %4505 = vmatpush2.msra.mxu0 0.0
    %4506 = vmatprep.subr.mxu0 0.0
    %4507 = vmatpush2.msra.mxu0 0.0
    %4508 = vmatprep.subr.mxu0 0.0
    %4509 = vmatpush2.msra.mxu0 0.0
    %4510 = vmatprep.subr.mxu0 0.0
    %4511 = vmatpush2.msra.mxu0 0.0
    %4512 = vmatprep.subr.mxu0 0.0
    %4513 = vmatpush2.msra.mxu0 0.0
    %4514 = vmatprep.subr.mxu0 0.0
    %4515 = vmatpush2.msra.mxu0 0.0
    %4516 = vmatprep.subr.mxu0 0.0
    %4517 = vmatpush2.msra.mxu0 0.0
    %4518 = vmatprep.subr.mxu0 0.0
    %4519 = vmatpush2.msra.mxu0 0.0
    %4520 = vmatprep.subr.mxu0 0.0
    %4521 = vmatpush2.msra.mxu0 0.0
    %4522 = vmatprep.mubr.f32.mxu0 0.0
    %4523 = vmatmul.mubr.f32.gmra.mxu0 %v4456
    %v4524 = vpop.f32.mrf.mxu0
    %v4525 = vadd.f32 0.0, %v4524
    %v4526 = vpop.f32.mrf.mxu0
    %4527 = vdwg.mxu0
    %v4528 = vcombine.low %v3430, %v4014
    %v4529 = vcombine.high %v3430, %v4014
    %v4531 = vunpack.c.l.s4 1983009808
    %v4532 = vunpack.c.0.s8 %v4531
    %v4533 = vlaneseq
    %v4534 = vshrl.u32 %v4533, 7
    %v4535 = vsub.s32 %v4532, %v4534
    %v4536 = vrot.slane %v4528, %v4535
    %v4538 = vunpack.c.l.s4 1983009808
    %v4539 = vunpack.c.0.s8 %v4538
    %v4540 = vlaneseq
    %v4541 = vshrl.u32 %v4540, 7
    %v4542 = vsub.s32 %v4539, %v4541
    %v4543 = vrot.slane %v4529, %v4542
    %v4544 = vcombine.low %v3722, %v4306
    %v4545 = vcombine.high %v3722, %v4306
    %v4547 = vunpack.c.l.s4 1983009808
    %v4548 = vunpack.c.0.s8 %v4547
    %v4549 = vlaneseq
    %v4550 = vshrl.u32 %v4549, 7
    %v4551 = vsub.s32 %v4548, %v4550
    %v4552 = vrot.slane %v4544, %v4551
    %v4554 = vunpack.c.l.s4 1983009808
    %v4555 = vunpack.c.0.s8 %v4554
    %v4556 = vlaneseq
    %v4557 = vshrl.u32 %v4556, 7
    %v4558 = vsub.s32 %v4555, %v4557
    %v4559 = vrot.slane %v4545, %v4558
    %v4560 = vcombine.low %v4536, %v4552
    %v4561 = vcombine.high %v4536, %v4552
    %v4563 = vunpack.c.l.s4 1934713408
    %v4564 = vunpack.c.0.s8 %v4563
    %v4565 = vlaneseq
    %v4566 = vshrl.u32 %v4565, 7
    %v4567 = vsub.s32 %v4564, %v4566
    %v4568 = vrot.slane %v4560, %v4567
    %v4570 = vunpack.c.l.s4 1934713408
    %v4571 = vunpack.c.0.s8 %v4570
    %v4572 = vlaneseq
    %v4573 = vshrl.u32 %v4572, 7
    %v4574 = vsub.s32 %v4571, %v4573
    %v4575 = vrot.slane %v4561, %v4574
    %v4576 = vcombine.low %v4543, %v4559
    %v4577 = vcombine.high %v4543, %v4559
    %v4579 = vunpack.c.l.s4 1934713408
    %v4580 = vunpack.c.0.s8 %v4579
    %v4581 = vlaneseq
    %v4582 = vshrl.u32 %v4581, 7
    %v4583 = vsub.s32 %v4580, %v4582
    %v4584 = vrot.slane %v4576, %v4583
    %v4586 = vunpack.c.l.s4 1934713408
    %v4587 = vunpack.c.0.s8 %v4586
    %v4588 = vlaneseq
    %v4589 = vshrl.u32 %v4588, 7
    %v4590 = vsub.s32 %v4587, %v4589
    %v4591 = vrot.slane %v4577, %v4590
    %v4592 = vcombine.high %v4568, 0.0
    %v4593 = vcombine.high %v4575, 0.0
    %v4594 = vcombine.high %v4584, 0.0
    %v4595 = vcombine.high %v4591, 0.0
    %v4596 = vcombine.low %v3503, %v4087
    %v4597 = vcombine.high %v3503, %v4087
    %v4599 = vunpack.c.l.s4 1983009808
    %v4600 = vunpack.c.0.s8 %v4599
    %v4601 = vlaneseq
    %v4602 = vshrl.u32 %v4601, 7
    %v4603 = vsub.s32 %v4600, %v4602
    %v4604 = vrot.slane %v4596, %v4603
    %v4606 = vunpack.c.l.s4 1983009808
    %v4607 = vunpack.c.0.s8 %v4606
    %v4608 = vlaneseq
    %v4609 = vshrl.u32 %v4608, 7
    %v4610 = vsub.s32 %v4607, %v4609
    %v4611 = vrot.slane %v4597, %v4610
    %v4612 = vcombine.low %v3795, %v4379
    %v4613 = vcombine.high %v3795, %v4379
    %v4615 = vunpack.c.l.s4 1983009808
    %v4616 = vunpack.c.0.s8 %v4615
    %v4617 = vlaneseq
    %v4618 = vshrl.u32 %v4617, 7
    %v4619 = vsub.s32 %v4616, %v4618
    %v4620 = vrot.slane %v4612, %v4619
    %v4622 = vunpack.c.l.s4 1983009808
    %v4623 = vunpack.c.0.s8 %v4622
    %v4624 = vlaneseq
    %v4625 = vshrl.u32 %v4624, 7
    %v4626 = vsub.s32 %v4623, %v4625
    %v4627 = vrot.slane %v4613, %v4626
    %v4628 = vcombine.low %v4604, %v4620
    %v4629 = vcombine.high %v4604, %v4620
    %v4631 = vunpack.c.l.s4 1934713408
    %v4632 = vunpack.c.0.s8 %v4631
    %v4633 = vlaneseq
    %v4634 = vshrl.u32 %v4633, 7
    %v4635 = vsub.s32 %v4632, %v4634
    %v4636 = vrot.slane %v4628, %v4635
    %v4638 = vunpack.c.l.s4 1934713408
    %v4639 = vunpack.c.0.s8 %v4638
    %v4640 = vlaneseq
    %v4641 = vshrl.u32 %v4640, 7
    %v4642 = vsub.s32 %v4639, %v4641
    %v4643 = vrot.slane %v4629, %v4642
    %v4644 = vcombine.low %v4611, %v4627
    %v4645 = vcombine.high %v4611, %v4627
    %v4647 = vunpack.c.l.s4 1934713408
    %v4648 = vunpack.c.0.s8 %v4647
    %v4649 = vlaneseq
    %v4650 = vshrl.u32 %v4649, 7
    %v4651 = vsub.s32 %v4648, %v4650
    %v4652 = vrot.slane %v4644, %v4651
    %v4654 = vunpack.c.l.s4 1934713408
    %v4655 = vunpack.c.0.s8 %v4654
    %v4656 = vlaneseq
    %v4657 = vshrl.u32 %v4656, 7
    %v4658 = vsub.s32 %v4655, %v4657
    %v4659 = vrot.slane %v4645, %v4658
    %v4660 = vcombine.high %v4636, 0.0
    %v4661 = vcombine.high %v4643, 0.0
    %v4662 = vcombine.high %v4652, 0.0
    %v4663 = vcombine.high %v4659, 0.0
    %v4664 = vcombine.low %v3576, %v4160
    %v4665 = vcombine.high %v3576, %v4160
    %v4667 = vunpack.c.l.s4 1983009808
    %v4668 = vunpack.c.0.s8 %v4667
    %v4669 = vlaneseq
    %v4670 = vshrl.u32 %v4669, 7
    %v4671 = vsub.s32 %v4668, %v4670
    %v4672 = vrot.slane %v4664, %v4671
    %v4674 = vunpack.c.l.s4 1983009808
    %v4675 = vunpack.c.0.s8 %v4674
    %v4676 = vlaneseq
    %v4677 = vshrl.u32 %v4676, 7
    %v4678 = vsub.s32 %v4675, %v4677
    %v4679 = vrot.slane %v4665, %v4678
    %v4680 = vcombine.low %v3868, %v4452
    %v4681 = vcombine.high %v3868, %v4452
    %v4683 = vunpack.c.l.s4 1983009808
    %v4684 = vunpack.c.0.s8 %v4683
    %v4685 = vlaneseq
    %v4686 = vshrl.u32 %v4685, 7
    %v4687 = vsub.s32 %v4684, %v4686
    %v4688 = vrot.slane %v4680, %v4687
    %v4690 = vunpack.c.l.s4 1983009808
    %v4691 = vunpack.c.0.s8 %v4690
    %v4692 = vlaneseq
    %v4693 = vshrl.u32 %v4692, 7
    %v4694 = vsub.s32 %v4691, %v4693
    %v4695 = vrot.slane %v4681, %v4694
    %v4696 = vcombine.low %v4672, %v4688
    %v4697 = vcombine.high %v4672, %v4688
    %v4699 = vunpack.c.l.s4 1934713408
    %v4700 = vunpack.c.0.s8 %v4699
    %v4701 = vlaneseq
    %v4702 = vshrl.u32 %v4701, 7
    %v4703 = vsub.s32 %v4700, %v4702
    %v4704 = vrot.slane %v4696, %v4703
    %v4706 = vunpack.c.l.s4 1934713408
    %v4707 = vunpack.c.0.s8 %v4706
    %v4708 = vlaneseq
    %v4709 = vshrl.u32 %v4708, 7
    %v4710 = vsub.s32 %v4707, %v4709
    %v4711 = vrot.slane %v4697, %v4710
    %v4712 = vcombine.low %v4679, %v4695
    %v4713 = vcombine.high %v4679, %v4695
    %v4715 = vunpack.c.l.s4 1934713408
    %v4716 = vunpack.c.0.s8 %v4715
    %v4717 = vlaneseq
    %v4718 = vshrl.u32 %v4717, 7
    %v4719 = vsub.s32 %v4716, %v4718
    %v4720 = vrot.slane %v4712, %v4719
    %v4722 = vunpack.c.l.s4 1934713408
    %v4723 = vunpack.c.0.s8 %v4722
    %v4724 = vlaneseq
    %v4725 = vshrl.u32 %v4724, 7
    %v4726 = vsub.s32 %v4723, %v4725
    %v4727 = vrot.slane %v4713, %v4726
    %v4728 = vcombine.high %v4704, 0.0
    %v4729 = vcombine.high %v4711, 0.0
    %v4730 = vcombine.high %v4720, 0.0
    %v4731 = vcombine.high %v4727, 0.0
    %v4732 = vcombine.low %v3649, %v4233
    %v4733 = vcombine.high %v3649, %v4233
    %v4735 = vunpack.c.l.s4 1983009808
    %v4736 = vunpack.c.0.s8 %v4735
    %v4737 = vlaneseq
    %v4738 = vshrl.u32 %v4737, 7
    %v4739 = vsub.s32 %v4736, %v4738
    %v4740 = vrot.slane %v4732, %v4739
    %v4742 = vunpack.c.l.s4 1983009808
    %v4743 = vunpack.c.0.s8 %v4742
    %v4744 = vlaneseq
    %v4745 = vshrl.u32 %v4744, 7
    %v4746 = vsub.s32 %v4743, %v4745
    %v4747 = vrot.slane %v4733, %v4746
    %v4748 = vcombine.low %v3941, %v4525
    %v4749 = vcombine.high %v3941, %v4525
    %v4751 = vunpack.c.l.s4 1983009808
    %v4752 = vunpack.c.0.s8 %v4751
    %v4753 = vlaneseq
    %v4754 = vshrl.u32 %v4753, 7
    %v4755 = vsub.s32 %v4752, %v4754
    %v4756 = vrot.slane %v4748, %v4755
    %v4758 = vunpack.c.l.s4 1983009808
    %v4759 = vunpack.c.0.s8 %v4758
    %v4760 = vlaneseq
    %v4761 = vshrl.u32 %v4760, 7
    %v4762 = vsub.s32 %v4759, %v4761
    %v4763 = vrot.slane %v4749, %v4762
    %v4764 = vcombine.low %v4740, %v4756
    %v4765 = vcombine.high %v4740, %v4756
    %v4767 = vunpack.c.l.s4 1934713408
    %v4768 = vunpack.c.0.s8 %v4767
    %v4769 = vlaneseq
    %v4770 = vshrl.u32 %v4769, 7
    %v4771 = vsub.s32 %v4768, %v4770
    %v4772 = vrot.slane %v4764, %v4771
    %v4774 = vunpack.c.l.s4 1934713408
    %v4775 = vunpack.c.0.s8 %v4774
    %v4776 = vlaneseq
    %v4777 = vshrl.u32 %v4776, 7
    %v4778 = vsub.s32 %v4775, %v4777
    %v4779 = vrot.slane %v4765, %v4778
    %v4780 = vcombine.low %v4747, %v4763
    %v4781 = vcombine.high %v4747, %v4763
    %v4783 = vunpack.c.l.s4 1934713408
    %v4784 = vunpack.c.0.s8 %v4783
    %v4785 = vlaneseq
    %v4786 = vshrl.u32 %v4785, 7
    %v4787 = vsub.s32 %v4784, %v4786
    %v4788 = vrot.slane %v4780, %v4787
    %v4790 = vunpack.c.l.s4 1934713408
    %v4791 = vunpack.c.0.s8 %v4790
    %v4792 = vlaneseq
    %v4793 = vshrl.u32 %v4792, 7
    %v4794 = vsub.s32 %v4791, %v4793
    %v4795 = vrot.slane %v4781, %v4794
    %v4796 = vcombine.high %v4772, 0.0
    %v4797 = vcombine.high %v4779, 0.0
    %v4798 = vcombine.high %v4788, 0.0
    %v4799 = vcombine.high %v4795, 0.0
    %v4800 = vcombine.low %v4568, %v4575
    %v4802 = vunpack.c.l.s4 1983009808
    %v4803 = vunpack.c.0.s8 %v4802
    %v4804 = vlaneseq
    %v4805 = vshrl.u32 %v4804, 7
    %v4806 = vsub.s32 %v4803, %v4805
    %v4807 = vrot.slane %v4800, %v4806
    %v4808 = vcombine.low %v4592, %v4593
    %v4810 = vunpack.c.l.s4 1983009808
    %v4811 = vunpack.c.0.s8 %v4810
    %v4812 = vlaneseq
    %v4813 = vshrl.u32 %v4812, 7
    %v4814 = vsub.s32 %v4811, %v4813
    %v4815 = vrot.slane %v4808, %v4814
    %v4816 = vcombine.low %v4584, %v4591
    %v4818 = vunpack.c.l.s4 1983009808
    %v4819 = vunpack.c.0.s8 %v4818
    %v4820 = vlaneseq
    %v4821 = vshrl.u32 %v4820, 7
    %v4822 = vsub.s32 %v4819, %v4821
    %v4823 = vrot.slane %v4816, %v4822
    %v4824 = vcombine.low %v4594, %v4595
    %v4826 = vunpack.c.l.s4 1983009808
    %v4827 = vunpack.c.0.s8 %v4826
    %v4828 = vlaneseq
    %v4829 = vshrl.u32 %v4828, 7
    %v4830 = vsub.s32 %v4827, %v4829
    %v4831 = vrot.slane %v4824, %v4830
    %v4832 = vcombine.low %v4807, %v4815
    %v4833 = vcombine.high %v4807, %v4815
    %v4835 = vunpack.c.l.s4 1934713408
    %v4836 = vunpack.c.0.s8 %v4835
    %v4837 = vlaneseq
    %v4838 = vshrl.u32 %v4837, 7
    %v4839 = vsub.s32 %v4836, %v4838
    %v4840 = vrot.slane %v4832, %v4839
    %v4842 = vunpack.c.l.s4 1934713408
    %v4843 = vunpack.c.0.s8 %v4842
    %v4844 = vlaneseq
    %v4845 = vshrl.u32 %v4844, 7
    %v4846 = vsub.s32 %v4843, %v4845
    %v4847 = vrot.slane %v4833, %v4846
    %v4848 = vcombine.low %v4823, %v4831
    %v4849 = vcombine.high %v4823, %v4831
    %v4851 = vunpack.c.l.s4 1934713408
    %v4852 = vunpack.c.0.s8 %v4851
    %v4853 = vlaneseq
    %v4854 = vshrl.u32 %v4853, 7
    %v4855 = vsub.s32 %v4852, %v4854
    %v4856 = vrot.slane %v4848, %v4855
    %v4858 = vunpack.c.l.s4 1934713408
    %v4859 = vunpack.c.0.s8 %v4858
    %v4860 = vlaneseq
    %v4861 = vshrl.u32 %v4860, 7
    %v4862 = vsub.s32 %v4859, %v4861
    %v4863 = vrot.slane %v4849, %v4862
    %v4864 = vcombine.low %v4840, %v4856
    %v4865 = vcombine.high %v4840, %v4856
    %v4866 = vcombine.low %v4847, %v4863
    %v4867 = vcombine.high %v4847, %v4863
    %v4868 = vcombine.low %v4636, %v4643
    %v4870 = vunpack.c.l.s4 1983009808
    %v4871 = vunpack.c.0.s8 %v4870
    %v4872 = vlaneseq
    %v4873 = vshrl.u32 %v4872, 7
    %v4874 = vsub.s32 %v4871, %v4873
    %v4875 = vrot.slane %v4868, %v4874
    %v4876 = vcombine.low %v4660, %v4661
    %v4878 = vunpack.c.l.s4 1983009808
    %v4879 = vunpack.c.0.s8 %v4878
    %v4880 = vlaneseq
    %v4881 = vshrl.u32 %v4880, 7
    %v4882 = vsub.s32 %v4879, %v4881
    %v4883 = vrot.slane %v4876, %v4882
    %v4884 = vcombine.low %v4652, %v4659
    %v4886 = vunpack.c.l.s4 1983009808
    %v4887 = vunpack.c.0.s8 %v4886
    %v4888 = vlaneseq
    %v4889 = vshrl.u32 %v4888, 7
    %v4890 = vsub.s32 %v4887, %v4889
    %v4891 = vrot.slane %v4884, %v4890
    %v4892 = vcombine.low %v4662, %v4663
    %v4894 = vunpack.c.l.s4 1983009808
    %v4895 = vunpack.c.0.s8 %v4894
    %v4896 = vlaneseq
    %v4897 = vshrl.u32 %v4896, 7
    %v4898 = vsub.s32 %v4895, %v4897
    %v4899 = vrot.slane %v4892, %v4898
    %v4900 = vcombine.low %v4875, %v4883
    %v4901 = vcombine.high %v4875, %v4883
    %v4903 = vunpack.c.l.s4 1934713408
    %v4904 = vunpack.c.0.s8 %v4903
    %v4905 = vlaneseq
    %v4906 = vshrl.u32 %v4905, 7
    %v4907 = vsub.s32 %v4904, %v4906
    %v4908 = vrot.slane %v4900, %v4907
    %v4910 = vunpack.c.l.s4 1934713408
    %v4911 = vunpack.c.0.s8 %v4910
    %v4912 = vlaneseq
    %v4913 = vshrl.u32 %v4912, 7
    %v4914 = vsub.s32 %v4911, %v4913
    %v4915 = vrot.slane %v4901, %v4914
    %v4916 = vcombine.low %v4891, %v4899
    %v4917 = vcombine.high %v4891, %v4899
    %v4919 = vunpack.c.l.s4 1934713408
    %v4920 = vunpack.c.0.s8 %v4919
    %v4921 = vlaneseq
    %v4922 = vshrl.u32 %v4921, 7
    %v4923 = vsub.s32 %v4920, %v4922
    %v4924 = vrot.slane %v4916, %v4923
    %v4926 = vunpack.c.l.s4 1934713408
    %v4927 = vunpack.c.0.s8 %v4926
    %v4928 = vlaneseq
    %v4929 = vshrl.u32 %v4928, 7
    %v4930 = vsub.s32 %v4927, %v4929
    %v4931 = vrot.slane %v4917, %v4930
    %v4932 = vcombine.low %v4908, %v4924
    %v4933 = vcombine.high %v4908, %v4924
    %v4934 = vcombine.low %v4915, %v4931
    %v4935 = vcombine.high %v4915, %v4931
    %v4936 = vcombine.low %v4704, %v4711
    %v4938 = vunpack.c.l.s4 1983009808
    %v4939 = vunpack.c.0.s8 %v4938
    %v4940 = vlaneseq
    %v4941 = vshrl.u32 %v4940, 7
    %v4942 = vsub.s32 %v4939, %v4941
    %v4943 = vrot.slane %v4936, %v4942
    %v4944 = vcombine.low %v4728, %v4729
    %v4946 = vunpack.c.l.s4 1983009808
    %v4947 = vunpack.c.0.s8 %v4946
    %v4948 = vlaneseq
    %v4949 = vshrl.u32 %v4948, 7
    %v4950 = vsub.s32 %v4947, %v4949
    %v4951 = vrot.slane %v4944, %v4950
    %v4952 = vcombine.low %v4720, %v4727
    %v4954 = vunpack.c.l.s4 1983009808
    %v4955 = vunpack.c.0.s8 %v4954
    %v4956 = vlaneseq
    %v4957 = vshrl.u32 %v4956, 7
    %v4958 = vsub.s32 %v4955, %v4957
    %v4959 = vrot.slane %v4952, %v4958
    %v4960 = vcombine.low %v4730, %v4731
    %v4962 = vunpack.c.l.s4 1983009808
    %v4963 = vunpack.c.0.s8 %v4962
    %v4964 = vlaneseq
    %v4965 = vshrl.u32 %v4964, 7
    %v4966 = vsub.s32 %v4963, %v4965
    %v4967 = vrot.slane %v4960, %v4966
    %v4968 = vcombine.low %v4943, %v4951
    %v4969 = vcombine.high %v4943, %v4951
    %v4971 = vunpack.c.l.s4 1934713408
    %v4972 = vunpack.c.0.s8 %v4971
    %v4973 = vlaneseq
    %v4974 = vshrl.u32 %v4973, 7
    %v4975 = vsub.s32 %v4972, %v4974
    %v4976 = vrot.slane %v4968, %v4975
    %v4978 = vunpack.c.l.s4 1934713408
    %v4979 = vunpack.c.0.s8 %v4978
    %v4980 = vlaneseq
    %v4981 = vshrl.u32 %v4980, 7
    %v4982 = vsub.s32 %v4979, %v4981
    %v4983 = vrot.slane %v4969, %v4982
    %v4984 = vcombine.low %v4959, %v4967
    %v4985 = vcombine.high %v4959, %v4967
    %v4987 = vunpack.c.l.s4 1934713408
    %v4988 = vunpack.c.0.s8 %v4987
    %v4989 = vlaneseq
    %v4990 = vshrl.u32 %v4989, 7
    %v4991 = vsub.s32 %v4988, %v4990
    %v4992 = vrot.slane %v4984, %v4991
    %v4994 = vunpack.c.l.s4 1934713408
    %v4995 = vunpack.c.0.s8 %v4994
    %v4996 = vlaneseq
    %v4997 = vshrl.u32 %v4996, 7
    %v4998 = vsub.s32 %v4995, %v4997
    %v4999 = vrot.slane %v4985, %v4998
    %v5000 = vcombine.low %v4976, %v4992
    %v5001 = vcombine.high %v4976, %v4992
    %v5002 = vcombine.low %v4983, %v4999
    %v5003 = vcombine.high %v4983, %v4999
    %v5004 = vcombine.low %v4772, %v4779
    %v5006 = vunpack.c.l.s4 1983009808
    %v5007 = vunpack.c.0.s8 %v5006
    %v5008 = vlaneseq
    %v5009 = vshrl.u32 %v5008, 7
    %v5010 = vsub.s32 %v5007, %v5009
    %v5011 = vrot.slane %v5004, %v5010
    %v5012 = vcombine.low %v4796, %v4797
    %v5014 = vunpack.c.l.s4 1983009808
    %v5015 = vunpack.c.0.s8 %v5014
    %v5016 = vlaneseq
    %v5017 = vshrl.u32 %v5016, 7
    %v5018 = vsub.s32 %v5015, %v5017
    %v5019 = vrot.slane %v5012, %v5018
    %v5020 = vcombine.low %v4788, %v4795
    %v5022 = vunpack.c.l.s4 1983009808
    %v5023 = vunpack.c.0.s8 %v5022
    %v5024 = vlaneseq
    %v5025 = vshrl.u32 %v5024, 7
    %v5026 = vsub.s32 %v5023, %v5025
    %v5027 = vrot.slane %v5020, %v5026
    %v5028 = vcombine.low %v4798, %v4799
    %v5030 = vunpack.c.l.s4 1983009808
    %v5031 = vunpack.c.0.s8 %v5030
    %v5032 = vlaneseq
    %v5033 = vshrl.u32 %v5032, 7
    %v5034 = vsub.s32 %v5031, %v5033
    %v5035 = vrot.slane %v5028, %v5034
    %v5036 = vcombine.low %v5011, %v5019
    %v5037 = vcombine.high %v5011, %v5019
    %v5039 = vunpack.c.l.s4 1934713408
    %v5040 = vunpack.c.0.s8 %v5039
    %v5041 = vlaneseq
    %v5042 = vshrl.u32 %v5041, 7
    %v5043 = vsub.s32 %v5040, %v5042
    %v5044 = vrot.slane %v5036, %v5043
    %v5046 = vunpack.c.l.s4 1934713408
    %v5047 = vunpack.c.0.s8 %v5046
    %v5048 = vlaneseq
    %v5049 = vshrl.u32 %v5048, 7
    %v5050 = vsub.s32 %v5047, %v5049
    %v5051 = vrot.slane %v5037, %v5050
    %v5052 = vcombine.low %v5027, %v5035
    %v5053 = vcombine.high %v5027, %v5035
    %v5055 = vunpack.c.l.s4 1934713408
    %v5056 = vunpack.c.0.s8 %v5055
    %v5057 = vlaneseq
    %v5058 = vshrl.u32 %v5057, 7
    %v5059 = vsub.s32 %v5056, %v5058
    %v5060 = vrot.slane %v5052, %v5059
    %v5062 = vunpack.c.l.s4 1934713408
    %v5063 = vunpack.c.0.s8 %v5062
    %v5064 = vlaneseq
    %v5065 = vshrl.u32 %v5064, 7
    %v5066 = vsub.s32 %v5063, %v5065
    %v5067 = vrot.slane %v5053, %v5066
    %v5068 = vcombine.low %v5044, %v5060
    %v5069 = vcombine.high %v5044, %v5060
    %v5070 = vcombine.low %v5051, %v5067
    %v5071 = vcombine.high %v5051, %v5067
    %5076 = vrot.lane.b32.xlu0 %v4865, 8
    %v5077 = vpop.permute.xlu0 %5076
    %5078 = vrot.lane.b32.xlu0 %v4933, 8
    %v5079 = vpop.permute.xlu0 %5078
    %5080 = vrot.lane.b32.xlu0 %v5001, 8
    %v5081 = vpop.permute.xlu0 %5080
    %5082 = vrot.lane.b32.xlu0 %v5069, 8
    %v5083 = vpop.permute.xlu0 %5082
    %5092 = vrot.lane.b32.xlu0 %v4866, 16
    %v5093 = vpop.permute.xlu0 %5092
    %5094 = vrot.lane.b32.xlu0 %v4934, 16
    %v5095 = vpop.permute.xlu0 %5094
    %5096 = vrot.lane.b32.xlu0 %v5002, 16
    %v5097 = vpop.permute.xlu0 %5096
    %5098 = vrot.lane.b32.xlu0 %v5070, 16
    %v5099 = vpop.permute.xlu0 %5098
    %5108 = vrot.lane.b32.xlu0 %v4867, 24
    %v5109 = vpop.permute.xlu0 %5108
    %5110 = vrot.lane.b32.xlu0 %v4935, 24
    %v5111 = vpop.permute.xlu0 %5110
    %5112 = vrot.lane.b32.xlu0 %v5003, 24
    %v5113 = vpop.permute.xlu0 %5112
    %5114 = vrot.lane.b32.xlu0 %v5071, 24
    %v5115 = vpop.permute.xlu0 %5114
    %v5120 = vsel %vm1967, %v4864, %v5077
    %v5121 = vsel %vm1967, %v4932, %v5079
    %v5122 = vsel %vm1967, %v5000, %v5081
    %v5123 = vsel %vm1967, %v5068, %v5083
    %vm5124 = vcmask 130048
    %v5125 = vsel %vm5124, %v5120, %v5093
    %v5126 = vsel %vm5124, %v5121, %v5095
    %v5127 = vsel %vm5124, %v5122, %v5097
    %v5128 = vsel %vm5124, %v5123, %v5099
    %vm5129 = vcmask 195584
    %v5130 = vsel %vm5129, %v5125, %v5109
    %v5131 = vsel %vm5129, %v5126, %v5111
    %v5132 = vsel %vm5129, %v5127, %v5113
    %v5133 = vsel %vm5129, %v5128, %v5115
    %v5134 = vpack.c.bf16 %v5131, %v5130
    %v5135 = vpack.c.bf16 %v5133, %v5132
    %v5136 = vld [vmem:[%s4] sm:$0xf]
    %v5137 = vld [vmem:[%s4 + $0x4] sm:$0xf]
    %v5138 = vld [vmem:[%s4 + $0x8] sm:$0xf]
    %v5139 = vld [vmem:[%s4 + $0xc] sm:$0xf]
    %v5144 = vunpack.c.l.b16 %v5136
    %v5145 = vunpack.c.l.b16 %v5137
    %v5146 = vunpack.c.l.b16 %v5138
    %v5147 = vunpack.c.l.b16 %v5139
    %v5148 = vpack.c.b16 %v5145, %v5144
    %v5149 = vpack.c.b16 %v5147, %v5146
    %v5153 = vsel %vm86, %v5134, 0
    %v5156 = vsel %vm86, %v5135, 0
    %5158 = vmatprep.subr.bf16.mxu0 0
    %5159 = vmatpush1.bf16.msra.mxu0 0
    %5160 = vmatprep.subr.bf16.mxu0 0
    %5161 = vmatpush1.bf16.msra.mxu0 0
    %5162 = vmatprep.subr.bf16.mxu0 0
    %5163 = vmatpush1.bf16.msra.mxu0 0
    %5164 = vmatprep.subr.bf16.mxu0 0
    %5165 = vmatpush1.bf16.msra.mxu0 0
    %5166 = vmatprep.subr.bf16.mxu0 0
    %5167 = vmatpush1.bf16.msra.mxu0 0
    %5168 = vmatprep.subr.bf16.mxu0 0
    %5169 = vmatpush1.bf16.msra.mxu0 0
    %5170 = vmatprep.subr.bf16.mxu0 0
    %5171 = vmatpush1.bf16.msra.mxu0 %v5149
    %5172 = vmatprep.subr.bf16.mxu0 0
    %5173 = vmatpush1.bf16.msra.mxu0 %v5148
    %5174 = vmatprep.subr.bf16.mxu0 0
    %5175 = vmatpush2.bf16.msra.mxu0 0
    %5176 = vmatprep.subr.bf16.mxu0 0
    %5177 = vmatpush2.bf16.msra.mxu0 0
    %5178 = vmatprep.subr.bf16.mxu0 0
    %5179 = vmatpush2.bf16.msra.mxu0 0
    %5180 = vmatprep.subr.bf16.mxu0 0
    %5181 = vmatpush2.bf16.msra.mxu0 0
    %5182 = vmatprep.subr.bf16.mxu0 0
    %5183 = vmatpush2.bf16.msra.mxu0 0
    %5184 = vmatprep.subr.bf16.mxu0 0
    %5185 = vmatpush2.bf16.msra.mxu0 0
    %5186 = vmatprep.subr.bf16.mxu0 0
    %5187 = vmatpush2.bf16.msra.mxu0 0
    %5188 = vmatprep.subr.bf16.mxu0 0
    %5189 = vmatpush2.bf16.msra.mxu0 0
    %5190 = vmatprep.mubr.bf16.mxu0 0
    %5191 = vmatmul.mubr.bf16.gmra.mxu0 %v5153
    %v5192 = vpop.f32.mrf.mxu0
    %v5193 = vadd.f32 0.0, %v5192
    %v5194 = vpop.f32.mrf.mxu0
    %v5195 = vpop.f32.mrf.mxu0
    %v5196 = vadd.f32 0.0, %v5195
    %v5197 = vpop.f32.mrf.mxu0
    %5198 = vmatprep.mubr.bf16.mxu0 0
    %5199 = vmatmul.mubr.bf16.gmra.mxu0 %v5156
    %v5200 = vpop.f32.mrf.mxu0
    %v5201 = vadd.f32 0.0, %v5200
    %v5202 = vpop.f32.mrf.mxu0
    %v5203 = vpop.f32.mrf.mxu0
    %v5204 = vadd.f32 0.0, %v5203
    %v5205 = vpop.f32.mrf.mxu0
    %5206 = vdwg.mxu0
    %v5207 = vadd.f32 %v76, %v5193
    %v5208 = vadd.f32 %v77, %v5196
    %v5209 = vadd.f32 %v78, %v5201
    %v5210 = vadd.f32 %v79, %v5204
    %v5211 = vld [vmem:[%s8] sm:$0x1]
    %v5212 = vmul.f32 %v5207, %v5207
    %v5213 = vmul.f32 %v5208, %v5208
    %v5214 = vmul.f32 %v5209, %v5209
    %v5215 = vmul.f32 %v5210, %v5210
    %v5216 = vsel %vm86, %v5212, 0.0
    %5217 = vadd.xlane.f32.xlu0 %v5216
    %v5218 = vpop.xlane.xlu0 %5217
    %v5219 = vsel %vm86, %v5213, 0.0
    %5220 = vadd.xlane.f32.xlu0 %v5219
    %v5221 = vpop.xlane.xlu0 %5220
    %v5222 = vsel %vm86, %v5214, 0.0
    %5223 = vadd.xlane.f32.xlu0 %v5222
    %v5224 = vpop.xlane.xlu0 %5223
    %v5225 = vsel %vm86, %v5215, 0.0
    %5226 = vadd.xlane.f32.xlu0 %v5225
    %v5227 = vpop.xlane.xlu0 %5226
    %v5228 = vmul.f32 %v5218, %v99
    %v5229 = vmul.f32 %v5221, %v99
    %v5230 = vmul.f32 %v5224, %v99
    %v5231 = vmul.f32 %v5227, %v99
    %v5232 = vadd.f32 %v5228, 1e-06
    %v5233 = vadd.f32 %v5229, 1e-06
    %v5234 = vadd.f32 %v5230, 1e-06
    %v5235 = vadd.f32 %v5231, 1e-06
    %v5236 = vrsqrt.pop %v5232
    %v5237 = vrsqrt.pop %v5233
    %v5238 = vrsqrt.pop %v5234
    %v5239 = vrsqrt.pop %v5235
    %v5240 = vmul.f32 %v5207, %v5236
    %v5241 = vmul.f32 %v5208, %v5237
    %v5242 = vmul.f32 %v5209, %v5238
    %v5243 = vmul.f32 %v5210, %v5239
    %v5245 = vlaneseq
    %v5246 = vshrl.u32 %v5245, 7
    %v5247 = vsub.s32 0, %v5246
    %v5248 = vrot.slane %v5211, %v5247
    %v5250 = vmul.f32 %v5240, %v5248
    %v5251 = vmul.f32 %v5241, %v5248
    %v5252 = vmul.f32 %v5242, %v5248
    %v5253 = vmul.f32 %v5243, %v5248
    %v5254 = vpack.c.bf16 %v5251, %v5250
    %v5255 = vpack.c.bf16 %v5253, %v5252
    %v5256 = vld [vmem:[%s5] sm:$0xf]
    %v5257 = vld [vmem:[%s5 + $0x4] sm:$0xf]
    %v5258 = vld [vmem:[%s5 + $0x8] sm:$0xf]
    %v5259 = vld [vmem:[%s5 + $0xc] sm:$0xf]
    %v5264 = vunpack.c.l.b16 %v5256
    %v5265 = vunpack.c.l.b16 %v5257
    %v5266 = vunpack.c.l.b16 %v5258
    %v5267 = vunpack.c.l.b16 %v5259
    %v5268 = vpack.c.b16 %v5265, %v5264
    %v5269 = vpack.c.b16 %v5267, %v5266
    %v5273 = vsel %vm86, %v5254, 0
    %v5276 = vsel %vm86, %v5255, 0
    %5278 = vmatprep.subr.bf16.mxu0 0
    %5279 = vmatpush1.bf16.msra.mxu0 0
    %5280 = vmatprep.subr.bf16.mxu0 0
    %5281 = vmatpush1.bf16.msra.mxu0 0
    %5282 = vmatprep.subr.bf16.mxu0 0
    %5283 = vmatpush1.bf16.msra.mxu0 0
    %5284 = vmatprep.subr.bf16.mxu0 0
    %5285 = vmatpush1.bf16.msra.mxu0 0
    %5286 = vmatprep.subr.bf16.mxu0 0
    %5287 = vmatpush1.bf16.msra.mxu0 0
    %5288 = vmatprep.subr.bf16.mxu0 0
    %5289 = vmatpush1.bf16.msra.mxu0 0
    %5290 = vmatprep.subr.bf16.mxu0 0
    %5291 = vmatpush1.bf16.msra.mxu0 %v5269
    %5292 = vmatprep.subr.bf16.mxu0 0
    %5293 = vmatpush1.bf16.msra.mxu0 %v5268
    %5294 = vmatprep.subr.bf16.mxu0 0
    %5295 = vmatpush2.bf16.msra.mxu0 0
    %5296 = vmatprep.subr.bf16.mxu0 0
    %5297 = vmatpush2.bf16.msra.mxu0 0
    %5298 = vmatprep.subr.bf16.mxu0 0
    %5299 = vmatpush2.bf16.msra.mxu0 0
    %5300 = vmatprep.subr.bf16.mxu0 0
    %5301 = vmatpush2.bf16.msra.mxu0 0
    %5302 = vmatprep.subr.bf16.mxu0 0
    %5303 = vmatpush2.bf16.msra.mxu0 0
    %5304 = vmatprep.subr.bf16.mxu0 0
    %5305 = vmatpush2.bf16.msra.mxu0 0
    %5306 = vmatprep.subr.bf16.mxu0 0
    %5307 = vmatpush2.bf16.msra.mxu0 0
    %5308 = vmatprep.subr.bf16.mxu0 0
    %5309 = vmatpush2.bf16.msra.mxu0 0
    %5310 = vmatprep.mubr.bf16.mxu0 0
    %5311 = vmatmul.mubr.bf16.gmra.mxu0 %v5273
    %v5312 = vpop.f32.mrf.mxu0
    %v5313 = vadd.f32 0.0, %v5312
    %v5314 = vpop.f32.mrf.mxu0
    %v5315 = vpop.f32.mrf.mxu0
    %v5316 = vadd.f32 0.0, %v5315
    %v5317 = vpop.f32.mrf.mxu0
    %5318 = vmatprep.mubr.bf16.mxu0 0
    %5319 = vmatmul.mubr.bf16.gmra.mxu0 %v5276
    %v5320 = vpop.f32.mrf.mxu0
    %v5321 = vadd.f32 0.0, %v5320
    %v5322 = vpop.f32.mrf.mxu0
    %v5323 = vpop.f32.mrf.mxu0
    %v5324 = vadd.f32 0.0, %v5323
    %v5325 = vpop.f32.mrf.mxu0
    %5326 = vdwg.mxu0
    %v5327 = vxor.u32 %v5313, 2147483648
    %v5328 = vxor.u32 %v5316, 2147483648
    %v5329 = vxor.u32 %v5321, 2147483648
    %v5330 = vxor.u32 %v5324, 2147483648
    %v5331 = vmul.f32 %v5327, 1.442695
    %v5332 = vpow.pop %v5331
    %v5333 = vmul.f32 %v5328, 1.442695
    %v5334 = vpow.pop %v5333
    %v5335 = vmul.f32 %v5329, 1.442695
    %v5336 = vpow.pop %v5335
    %v5337 = vmul.f32 %v5330, 1.442695
    %v5338 = vpow.pop %v5337
    %v5339 = vadd.f32 %v5332, 1.0
    %v5340 = vadd.f32 %v5334, 1.0
    %v5341 = vadd.f32 %v5336, 1.0
    %v5342 = vadd.f32 %v5338, 1.0
    %v5343 = vrcp.pop %v5339
    %v5344 = vmul.f32 1.0, %v5343
    %v5345 = vrcp.pop %v5340
    %v5346 = vmul.f32 1.0, %v5345
    %v5347 = vrcp.pop %v5341
    %v5348 = vmul.f32 1.0, %v5347
    %v5349 = vrcp.pop %v5342
    %v5350 = vmul.f32 1.0, %v5349
    %v5351 = vmul.f32 %v5313, %v5344
    %v5352 = vmul.f32 %v5316, %v5346
    %v5353 = vmul.f32 %v5321, %v5348
    %v5354 = vmul.f32 %v5324, %v5350
    %v5355 = vpack.c.bf16 %v5352, %v5351
    %v5356 = vpack.c.bf16 %v5354, %v5353
    %v5357 = vld [vmem:[%s6] sm:$0xf]
    %v5358 = vld [vmem:[%s6 + $0x4] sm:$0xf]
    %v5359 = vld [vmem:[%s6 + $0x8] sm:$0xf]
    %v5360 = vld [vmem:[%s6 + $0xc] sm:$0xf]
    %v5361 = vld [vmem:[%s6 + $0x10] sm:$0xf]
    %v5362 = vld [vmem:[%s6 + $0x14] sm:$0xf]
    %v5363 = vld [vmem:[%s6 + $0x18] sm:$0xf]
    %v5364 = vld [vmem:[%s6 + $0x1c] sm:$0xf]
    %v5365 = vld [vmem:[%s6 + $0x20] sm:$0xf]
    %v5366 = vld [vmem:[%s6 + $0x24] sm:$0xf]
    %v5367 = vld [vmem:[%s6 + $0x28] sm:$0xf]
    %v5368 = vld [vmem:[%s6 + $0x2c] sm:$0xf]
    %v5369 = vld [vmem:[%s6 + $0x30] sm:$0xf]
    %v5370 = vld [vmem:[%s6 + $0x34] sm:$0xf]
    %v5371 = vld [vmem:[%s6 + $0x38] sm:$0xf]
    %v5372 = vld [vmem:[%s6 + $0x3c] sm:$0xf]
    %v5389 = vunpack.c.l.b16 %v5357
    %v5390 = vunpack.c.l.b16 %v5358
    %v5391 = vunpack.c.l.b16 %v5359
    %v5392 = vunpack.c.l.b16 %v5360
    %v5393 = vunpack.c.l.b16 %v5361
    %v5394 = vunpack.c.l.b16 %v5362
    %v5395 = vunpack.c.l.b16 %v5363
    %v5396 = vunpack.c.l.b16 %v5364
    %v5397 = vunpack.c.l.b16 %v5365
    %v5398 = vunpack.c.l.b16 %v5366
    %v5399 = vunpack.c.l.b16 %v5367
    %v5400 = vunpack.c.l.b16 %v5368
    %v5401 = vunpack.c.l.b16 %v5369
    %v5402 = vunpack.c.l.b16 %v5370
    %v5403 = vunpack.c.l.b16 %v5371
    %v5404 = vunpack.c.l.b16 %v5372
    %v5405 = vpack.c.b16 %v5390, %v5389
    %v5406 = vpack.c.b16 %v5392, %v5391
    %v5407 = vpack.c.b16 %v5394, %v5393
    %v5408 = vpack.c.b16 %v5396, %v5395
    %v5409 = vpack.c.b16 %v5398, %v5397
    %v5410 = vpack.c.b16 %v5400, %v5399
    %v5411 = vpack.c.b16 %v5402, %v5401
    %v5412 = vpack.c.b16 %v5404, %v5403
    %5421 = vmatprep.subr.bf16.mxu0 0
    %5422 = vmatpush1.bf16.msra.mxu0 %v5412
    %5423 = vmatprep.subr.bf16.mxu0 0
    %5424 = vmatpush1.bf16.msra.mxu0 %v5411
    %5425 = vmatprep.subr.bf16.mxu0 0
    %5426 = vmatpush1.bf16.msra.mxu0 %v5410
    %5427 = vmatprep.subr.bf16.mxu0 0
    %5428 = vmatpush1.bf16.msra.mxu0 %v5409
    %5429 = vmatprep.subr.bf16.mxu0 0
    %5430 = vmatpush1.bf16.msra.mxu0 %v5408
    %5431 = vmatprep.subr.bf16.mxu0 0
    %5432 = vmatpush1.bf16.msra.mxu0 %v5407
    %5433 = vmatprep.subr.bf16.mxu0 0
    %5434 = vmatpush1.bf16.msra.mxu0 %v5406
    %5435 = vmatprep.subr.bf16.mxu0 0
    %5436 = vmatpush1.bf16.msra.mxu0 %v5405
    %5437 = vmatprep.subr.bf16.mxu0 0
    %5438 = vmatpush2.bf16.msra.mxu0 0
    %5439 = vmatprep.subr.bf16.mxu0 0
    %5440 = vmatpush2.bf16.msra.mxu0 0
    %5441 = vmatprep.subr.bf16.mxu0 0
    %5442 = vmatpush2.bf16.msra.mxu0 0
    %5443 = vmatprep.subr.bf16.mxu0 0
    %5444 = vmatpush2.bf16.msra.mxu0 0
    %5445 = vmatprep.subr.bf16.mxu0 0
    %5446 = vmatpush2.bf16.msra.mxu0 0
    %5447 = vmatprep.subr.bf16.mxu0 0
    %5448 = vmatpush2.bf16.msra.mxu0 0
    %5449 = vmatprep.subr.bf16.mxu0 0
    %5450 = vmatpush2.bf16.msra.mxu0 0
    %5451 = vmatprep.subr.bf16.mxu0 0
    %5452 = vmatpush2.bf16.msra.mxu0 0
    %5453 = vmatprep.mubr.bf16.mxu0 0
    %5454 = vmatmul.mubr.bf16.gmra.mxu0 %v5355
    %v5455 = vpop.f32.mrf.mxu0
    %v5456 = vadd.f32 0.0, %v5455
    %v5457 = vpop.f32.mrf.mxu0
    %v5458 = vpop.f32.mrf.mxu0
    %v5459 = vadd.f32 0.0, %v5458
    %v5460 = vpop.f32.mrf.mxu0
    %5461 = vmatprep.mubr.bf16.mxu0 0
    %5462 = vmatmul.mubr.bf16.gmra.mxu0 %v5356
    %v5463 = vpop.f32.mrf.mxu0
    %v5464 = vadd.f32 0.0, %v5463
    %v5465 = vpop.f32.mrf.mxu0
    %v5466 = vpop.f32.mrf.mxu0
    %v5467 = vadd.f32 0.0, %v5466
    %v5468 = vpop.f32.mrf.mxu0
    %5469 = vdwg.mxu0
    %v5470 = vadd.f32 %v5207, %v5456
    %v5471 = vadd.f32 %v5208, %v5459
    %v5472 = vadd.f32 %v5209, %v5464
    %v5473 = vadd.f32 %v5210, %v5467
    %s5474 = scalar_lea.vmem %s7, 1
    %v5475 = vld [vmem:[%s5474] sm:$0x1]
    %v5476 = vmul.f32 %v5470, %v5470
    %v5477 = vmul.f32 %v5471, %v5471
    %v5478 = vmul.f32 %v5472, %v5472
    %v5479 = vmul.f32 %v5473, %v5473
    %v5480 = vsel %vm86, %v5476, 0.0
    %5481 = vadd.xlane.f32.xlu0 %v5480
    %v5482 = vpop.xlane.xlu0 %5481
    %v5483 = vsel %vm86, %v5477, 0.0
    %5484 = vadd.xlane.f32.xlu0 %v5483
    %v5485 = vpop.xlane.xlu0 %5484
    %v5486 = vsel %vm86, %v5478, 0.0
    %5487 = vadd.xlane.f32.xlu0 %v5486
    %v5488 = vpop.xlane.xlu0 %5487
    %v5489 = vsel %vm86, %v5479, 0.0
    %5490 = vadd.xlane.f32.xlu0 %v5489
    %v5491 = vpop.xlane.xlu0 %5490
    %v5492 = vmul.f32 %v5482, %v99
    %v5493 = vmul.f32 %v5485, %v99
    %v5494 = vmul.f32 %v5488, %v99
    %v5495 = vmul.f32 %v5491, %v99
    %v5496 = vadd.f32 %v5492, 1e-06
    %v5497 = vadd.f32 %v5493, 1e-06
    %v5498 = vadd.f32 %v5494, 1e-06
    %v5499 = vadd.f32 %v5495, 1e-06
    %v5500 = vrsqrt.pop %v5496
    %v5501 = vrsqrt.pop %v5497
    %v5502 = vrsqrt.pop %v5498
    %v5503 = vrsqrt.pop %v5499
    %v5504 = vmul.f32 %v5470, %v5500
    %v5505 = vmul.f32 %v5471, %v5501
    %v5506 = vmul.f32 %v5472, %v5502
    %v5507 = vmul.f32 %v5473, %v5503
    %v5509 = vlaneseq
    %v5510 = vshrl.u32 %v5509, 7
    %v5511 = vsub.s32 0, %v5510
    %v5512 = vrot.slane %v5475, %v5511
    %v5514 = vmul.f32 %v5504, %v5512
    %v5515 = vmul.f32 %v5505, %v5512
    %v5516 = vmul.f32 %v5506, %v5512
    %v5517 = vmul.f32 %v5507, %v5512
    %v5518 = vpack.c.bf16 %v5515, %v5514
    %v5519 = vpack.c.bf16 %v5517, %v5516
    %s5520 = scalar_lea.vmem %s3, 16
    %v5521 = vld [vmem:[%s5520] sm:$0xf]
    %v5522 = vld [vmem:[%s5520 + $0x4] sm:$0xf]
    %v5523 = vld [vmem:[%s5520 + $0x8] sm:$0xf]
    %v5524 = vld [vmem:[%s5520 + $0xc] sm:$0xf]
    %v5529 = vunpack.c.l.b16 %v5521
    %v5530 = vunpack.c.l.b16 %v5522
    %v5531 = vunpack.c.l.b16 %v5523
    %v5532 = vunpack.c.l.b16 %v5524
    %v5533 = vpack.c.b16 %v5530, %v5529
    %v5534 = vpack.c.b16 %v5532, %v5531
    %v5538 = vsel %vm86, %v5518, 0
    %v5541 = vsel %vm86, %v5519, 0
    %5543 = vmatprep.subr.bf16.mxu0 0
    %5544 = vmatpush1.bf16.msra.mxu0 0
    %5545 = vmatprep.subr.bf16.mxu0 0
    %5546 = vmatpush1.bf16.msra.mxu0 0
    %5547 = vmatprep.subr.bf16.mxu0 0
    %5548 = vmatpush1.bf16.msra.mxu0 0
    %5549 = vmatprep.subr.bf16.mxu0 0
    %5550 = vmatpush1.bf16.msra.mxu0 0
    %5551 = vmatprep.subr.bf16.mxu0 0
    %5552 = vmatpush1.bf16.msra.mxu0 0
    %5553 = vmatprep.subr.bf16.mxu0 0
    %5554 = vmatpush1.bf16.msra.mxu0 0
    %5555 = vmatprep.subr.bf16.mxu0 0
    %5556 = vmatpush1.bf16.msra.mxu0 %v5534
    %5557 = vmatprep.subr.bf16.mxu0 0
    %5558 = vmatpush1.bf16.msra.mxu0 %v5533
    %5559 = vmatprep.subr.bf16.mxu0 0
    %5560 = vmatpush2.bf16.msra.mxu0 0
    %5561 = vmatprep.subr.bf16.mxu0 0
    %5562 = vmatpush2.bf16.msra.mxu0 0
    %5563 = vmatprep.subr.bf16.mxu0 0
    %5564 = vmatpush2.bf16.msra.mxu0 0
    %5565 = vmatprep.subr.bf16.mxu0 0
    %5566 = vmatpush2.bf16.msra.mxu0 0
    %5567 = vmatprep.subr.bf16.mxu0 0
    %5568 = vmatpush2.bf16.msra.mxu0 0
    %5569 = vmatprep.subr.bf16.mxu0 0
    %5570 = vmatpush2.bf16.msra.mxu0 0
    %5571 = vmatprep.subr.bf16.mxu0 0
    %5572 = vmatpush2.bf16.msra.mxu0 0
    %5573 = vmatprep.subr.bf16.mxu0 0
    %5574 = vmatpush2.bf16.msra.mxu0 0
    %5575 = vmatprep.mubr.bf16.mxu0 0
    %5576 = vmatmul.mubr.bf16.gmra.mxu0 %v5538
    %v5577 = vpop.f32.mrf.mxu0
    %v5578 = vadd.f32 0.0, %v5577
    %v5579 = vpop.f32.mrf.mxu0
    %v5580 = vpop.f32.mrf.mxu0
    %v5581 = vadd.f32 0.0, %v5580
    %v5582 = vpop.f32.mrf.mxu0
    %5583 = vmatprep.mubr.bf16.mxu0 0
    %5584 = vmatmul.mubr.bf16.gmra.mxu0 %v5541
    %v5585 = vpop.f32.mrf.mxu0
    %v5586 = vadd.f32 0.0, %v5585
    %v5587 = vpop.f32.mrf.mxu0
    %v5588 = vpop.f32.mrf.mxu0
    %v5589 = vadd.f32 0.0, %v5588
    %v5590 = vpop.f32.mrf.mxu0
    %5591 = vdwg.mxu0
    %5596 = vrot.lane.b32.xlu0 %v5578, 120
    %v5597 = vpop.permute.xlu0 %5596
    %5598 = vrot.lane.b32.xlu0 %v5581, 120
    %v5599 = vpop.permute.xlu0 %5598
    %5600 = vrot.lane.b32.xlu0 %v5586, 120
    %v5601 = vpop.permute.xlu0 %5600
    %5602 = vrot.lane.b32.xlu0 %v5589, 120
    %v5603 = vpop.permute.xlu0 %5602
    %5608 = vrot.lane.b32.xlu0 %v5578, 112
    %v5609 = vpop.permute.xlu0 %5608
    %5610 = vrot.lane.b32.xlu0 %v5581, 112
    %v5611 = vpop.permute.xlu0 %5610
    %5612 = vrot.lane.b32.xlu0 %v5586, 112
    %v5613 = vpop.permute.xlu0 %5612
    %5614 = vrot.lane.b32.xlu0 %v5589, 112
    %v5615 = vpop.permute.xlu0 %5614
    %5620 = vrot.lane.b32.xlu0 %v5578, 104
    %v5621 = vpop.permute.xlu0 %5620
    %5622 = vrot.lane.b32.xlu0 %v5581, 104
    %v5623 = vpop.permute.xlu0 %5622
    %5624 = vrot.lane.b32.xlu0 %v5586, 104
    %v5625 = vpop.permute.xlu0 %5624
    %5626 = vrot.lane.b32.xlu0 %v5589, 104
    %v5627 = vpop.permute.xlu0 %5626
    %5632 = vrot.lane.b32.xlu0 %v5578, 96
    %v5633 = vpop.permute.xlu0 %5632
    %5634 = vrot.lane.b32.xlu0 %v5581, 96
    %v5635 = vpop.permute.xlu0 %5634
    %5636 = vrot.lane.b32.xlu0 %v5586, 96
    %v5637 = vpop.permute.xlu0 %5636
    %5638 = vrot.lane.b32.xlu0 %v5589, 96
    %v5639 = vpop.permute.xlu0 %5638
    %5644 = vrot.lane.b32.xlu0 %v5578, 88
    %v5645 = vpop.permute.xlu0 %5644
    %5646 = vrot.lane.b32.xlu0 %v5581, 88
    %v5647 = vpop.permute.xlu0 %5646
    %5648 = vrot.lane.b32.xlu0 %v5586, 88
    %v5649 = vpop.permute.xlu0 %5648
    %5650 = vrot.lane.b32.xlu0 %v5589, 88
    %v5651 = vpop.permute.xlu0 %5650
    %5656 = vrot.lane.b32.xlu0 %v5578, 80
    %v5657 = vpop.permute.xlu0 %5656
    %5658 = vrot.lane.b32.xlu0 %v5581, 80
    %v5659 = vpop.permute.xlu0 %5658
    %5660 = vrot.lane.b32.xlu0 %v5586, 80
    %v5661 = vpop.permute.xlu0 %5660
    %5662 = vrot.lane.b32.xlu0 %v5589, 80
    %v5663 = vpop.permute.xlu0 %5662
    %5668 = vrot.lane.b32.xlu0 %v5578, 72
    %v5669 = vpop.permute.xlu0 %5668
    %5670 = vrot.lane.b32.xlu0 %v5581, 72
    %v5671 = vpop.permute.xlu0 %5670
    %5672 = vrot.lane.b32.xlu0 %v5586, 72
    %v5673 = vpop.permute.xlu0 %5672
    %5674 = vrot.lane.b32.xlu0 %v5589, 72
    %v5675 = vpop.permute.xlu0 %5674
    %5680 = vrot.lane.b32.xlu0 %v5578, 64
    %v5681 = vpop.permute.xlu0 %5680
    %5682 = vrot.lane.b32.xlu0 %v5581, 64
    %v5683 = vpop.permute.xlu0 %5682
    %5684 = vrot.lane.b32.xlu0 %v5586, 64
    %v5685 = vpop.permute.xlu0 %5684
    %5686 = vrot.lane.b32.xlu0 %v5589, 64
    %v5687 = vpop.permute.xlu0 %5686
    %5692 = vrot.lane.b32.xlu0 %v5578, 56
    %v5693 = vpop.permute.xlu0 %5692
    %5694 = vrot.lane.b32.xlu0 %v5581, 56
    %v5695 = vpop.permute.xlu0 %5694
    %5696 = vrot.lane.b32.xlu0 %v5586, 56
    %v5697 = vpop.permute.xlu0 %5696
    %5698 = vrot.lane.b32.xlu0 %v5589, 56
    %v5699 = vpop.permute.xlu0 %5698
    %5704 = vrot.lane.b32.xlu0 %v5578, 48
    %v5705 = vpop.permute.xlu0 %5704
    %5706 = vrot.lane.b32.xlu0 %v5581, 48
    %v5707 = vpop.permute.xlu0 %5706
    %5708 = vrot.lane.b32.xlu0 %v5586, 48
    %v5709 = vpop.permute.xlu0 %5708
    %5710 = vrot.lane.b32.xlu0 %v5589, 48
    %v5711 = vpop.permute.xlu0 %5710
    %5716 = vrot.lane.b32.xlu0 %v5578, 40
    %v5717 = vpop.permute.xlu0 %5716
    %5718 = vrot.lane.b32.xlu0 %v5581, 40
    %v5719 = vpop.permute.xlu0 %5718
    %5720 = vrot.lane.b32.xlu0 %v5586, 40
    %v5721 = vpop.permute.xlu0 %5720
    %5722 = vrot.lane.b32.xlu0 %v5589, 40
    %v5723 = vpop.permute.xlu0 %5722
    %v5728 = vcombine.low %v5578, %v5609
    %v5729 = vcombine.high %v5578, %v5609
    %v5731 = vunpack.c.l.s4 1983009808
    %v5732 = vunpack.c.0.s8 %v5731
    %v5733 = vlaneseq
    %v5734 = vshrl.u32 %v5733, 7
    %v5735 = vsub.s32 %v5732, %v5734
    %v5736 = vrot.slane %v5728, %v5735
    %v5738 = vunpack.c.l.s4 1983009808
    %v5739 = vunpack.c.0.s8 %v5738
    %v5740 = vlaneseq
    %v5741 = vshrl.u32 %v5740, 7
    %v5742 = vsub.s32 %v5739, %v5741
    %v5743 = vrot.slane %v5729, %v5742
    %v5744 = vcombine.low %v5597, %v5621
    %v5745 = vcombine.high %v5597, %v5621
    %v5747 = vunpack.c.l.s4 1983009808
    %v5748 = vunpack.c.0.s8 %v5747
    %v5749 = vlaneseq
    %v5750 = vshrl.u32 %v5749, 7
    %v5751 = vsub.s32 %v5748, %v5750
    %v5752 = vrot.slane %v5744, %v5751
    %v5754 = vunpack.c.l.s4 1983009808
    %v5755 = vunpack.c.0.s8 %v5754
    %v5756 = vlaneseq
    %v5757 = vshrl.u32 %v5756, 7
    %v5758 = vsub.s32 %v5755, %v5757
    %v5759 = vrot.slane %v5745, %v5758
    %v5760 = vcombine.low %v5633, %v5657
    %v5761 = vcombine.high %v5633, %v5657
    %v5763 = vunpack.c.l.s4 1983009808
    %v5764 = vunpack.c.0.s8 %v5763
    %v5765 = vlaneseq
    %v5766 = vshrl.u32 %v5765, 7
    %v5767 = vsub.s32 %v5764, %v5766
    %v5768 = vrot.slane %v5760, %v5767
    %v5770 = vunpack.c.l.s4 1983009808
    %v5771 = vunpack.c.0.s8 %v5770
    %v5772 = vlaneseq
    %v5773 = vshrl.u32 %v5772, 7
    %v5774 = vsub.s32 %v5771, %v5773
    %v5775 = vrot.slane %v5761, %v5774
    %v5776 = vcombine.low %v5645, %v5669
    %v5777 = vcombine.high %v5645, %v5669
    %v5779 = vunpack.c.l.s4 1983009808
    %v5780 = vunpack.c.0.s8 %v5779
    %v5781 = vlaneseq
    %v5782 = vshrl.u32 %v5781, 7
    %v5783 = vsub.s32 %v5780, %v5782
    %v5784 = vrot.slane %v5776, %v5783
    %v5786 = vunpack.c.l.s4 1983009808
    %v5787 = vunpack.c.0.s8 %v5786
    %v5788 = vlaneseq
    %v5789 = vshrl.u32 %v5788, 7
    %v5790 = vsub.s32 %v5787, %v5789
    %v5791 = vrot.slane %v5777, %v5790
    %v5792 = vcombine.low %v5736, %v5752
    %v5793 = vcombine.high %v5736, %v5752
    %v5795 = vunpack.c.l.s4 1934713408
    %v5796 = vunpack.c.0.s8 %v5795
    %v5797 = vlaneseq
    %v5798 = vshrl.u32 %v5797, 7
    %v5799 = vsub.s32 %v5796, %v5798
    %v5800 = vrot.slane %v5792, %v5799
    %v5802 = vunpack.c.l.s4 1934713408
    %v5803 = vunpack.c.0.s8 %v5802
    %v5804 = vlaneseq
    %v5805 = vshrl.u32 %v5804, 7
    %v5806 = vsub.s32 %v5803, %v5805
    %v5807 = vrot.slane %v5793, %v5806
    %v5808 = vcombine.low %v5743, %v5759
    %v5809 = vcombine.high %v5743, %v5759
    %v5811 = vunpack.c.l.s4 1934713408
    %v5812 = vunpack.c.0.s8 %v5811
    %v5813 = vlaneseq
    %v5814 = vshrl.u32 %v5813, 7
    %v5815 = vsub.s32 %v5812, %v5814
    %v5816 = vrot.slane %v5808, %v5815
    %v5818 = vunpack.c.l.s4 1934713408
    %v5819 = vunpack.c.0.s8 %v5818
    %v5820 = vlaneseq
    %v5821 = vshrl.u32 %v5820, 7
    %v5822 = vsub.s32 %v5819, %v5821
    %v5823 = vrot.slane %v5809, %v5822
    %v5824 = vcombine.low %v5768, %v5784
    %v5825 = vcombine.high %v5768, %v5784
    %v5827 = vunpack.c.l.s4 1934713408
    %v5828 = vunpack.c.0.s8 %v5827
    %v5829 = vlaneseq
    %v5830 = vshrl.u32 %v5829, 7
    %v5831 = vsub.s32 %v5828, %v5830
    %v5832 = vrot.slane %v5824, %v5831
    %v5834 = vunpack.c.l.s4 1934713408
    %v5835 = vunpack.c.0.s8 %v5834
    %v5836 = vlaneseq
    %v5837 = vshrl.u32 %v5836, 7
    %v5838 = vsub.s32 %v5835, %v5837
    %v5839 = vrot.slane %v5825, %v5838
    %v5840 = vcombine.low %v5775, %v5791
    %v5841 = vcombine.high %v5775, %v5791
    %v5843 = vunpack.c.l.s4 1934713408
    %v5844 = vunpack.c.0.s8 %v5843
    %v5845 = vlaneseq
    %v5846 = vshrl.u32 %v5845, 7
    %v5847 = vsub.s32 %v5844, %v5846
    %v5848 = vrot.slane %v5840, %v5847
    %v5850 = vunpack.c.l.s4 1934713408
    %v5851 = vunpack.c.0.s8 %v5850
    %v5852 = vlaneseq
    %v5853 = vshrl.u32 %v5852, 7
    %v5854 = vsub.s32 %v5851, %v5853
    %v5855 = vrot.slane %v5841, %v5854
    %v5856 = vcombine.low %v5800, %v5832
    %v5857 = vcombine.high %v5800, %v5832
    %v5858 = vcombine.low %v5807, %v5839
    %v5859 = vcombine.high %v5807, %v5839
    %v5860 = vcombine.low %v5816, %v5848
    %v5861 = vcombine.high %v5816, %v5848
    %v5862 = vcombine.low %v5823, %v5855
    %v5863 = vcombine.high %v5823, %v5855
    %v5864 = vcombine.low %v5681, %v5705
    %v5865 = vcombine.high %v5681, %v5705
    %v5867 = vunpack.c.l.s4 1983009808
    %v5868 = vunpack.c.0.s8 %v5867
    %v5869 = vlaneseq
    %v5870 = vshrl.u32 %v5869, 7
    %v5871 = vsub.s32 %v5868, %v5870
    %v5872 = vrot.slane %v5864, %v5871
    %v5874 = vunpack.c.l.s4 1983009808
    %v5875 = vunpack.c.0.s8 %v5874
    %v5876 = vlaneseq
    %v5877 = vshrl.u32 %v5876, 7
    %v5878 = vsub.s32 %v5875, %v5877
    %v5879 = vrot.slane %v5865, %v5878
    %v5880 = vcombine.low %v5693, %v5717
    %v5881 = vcombine.high %v5693, %v5717
    %v5883 = vunpack.c.l.s4 1983009808
    %v5884 = vunpack.c.0.s8 %v5883
    %v5885 = vlaneseq
    %v5886 = vshrl.u32 %v5885, 7
    %v5887 = vsub.s32 %v5884, %v5886
    %v5888 = vrot.slane %v5880, %v5887
    %v5890 = vunpack.c.l.s4 1983009808
    %v5891 = vunpack.c.0.s8 %v5890
    %v5892 = vlaneseq
    %v5893 = vshrl.u32 %v5892, 7
    %v5894 = vsub.s32 %v5891, %v5893
    %v5895 = vrot.slane %v5881, %v5894
    %v5896 = vcombine.low %v5872, %v5888
    %v5897 = vcombine.high %v5872, %v5888
    %v5899 = vunpack.c.l.s4 1934713408
    %v5900 = vunpack.c.0.s8 %v5899
    %v5901 = vlaneseq
    %v5902 = vshrl.u32 %v5901, 7
    %v5903 = vsub.s32 %v5900, %v5902
    %v5904 = vrot.slane %v5896, %v5903
    %v5906 = vunpack.c.l.s4 1934713408
    %v5907 = vunpack.c.0.s8 %v5906
    %v5908 = vlaneseq
    %v5909 = vshrl.u32 %v5908, 7
    %v5910 = vsub.s32 %v5907, %v5909
    %v5911 = vrot.slane %v5897, %v5910
    %v5912 = vcombine.low %v5879, %v5895
    %v5913 = vcombine.high %v5879, %v5895
    %v5915 = vunpack.c.l.s4 1934713408
    %v5916 = vunpack.c.0.s8 %v5915
    %v5917 = vlaneseq
    %v5918 = vshrl.u32 %v5917, 7
    %v5919 = vsub.s32 %v5916, %v5918
    %v5920 = vrot.slane %v5912, %v5919
    %v5922 = vunpack.c.l.s4 1934713408
    %v5923 = vunpack.c.0.s8 %v5922
    %v5924 = vlaneseq
    %v5925 = vshrl.u32 %v5924, 7
    %v5926 = vsub.s32 %v5923, %v5925
    %v5927 = vrot.slane %v5913, %v5926
    %v5928 = vcombine.high %v5904, 0.0
    %v5929 = vcombine.high %v5911, 0.0
    %v5930 = vcombine.high %v5920, 0.0
    %v5931 = vcombine.high %v5927, 0.0
    %v5932 = vcombine.low %v5581, %v5611
    %v5933 = vcombine.high %v5581, %v5611
    %v5935 = vunpack.c.l.s4 1983009808
    %v5936 = vunpack.c.0.s8 %v5935
    %v5937 = vlaneseq
    %v5938 = vshrl.u32 %v5937, 7
    %v5939 = vsub.s32 %v5936, %v5938
    %v5940 = vrot.slane %v5932, %v5939
    %v5942 = vunpack.c.l.s4 1983009808
    %v5943 = vunpack.c.0.s8 %v5942
    %v5944 = vlaneseq
    %v5945 = vshrl.u32 %v5944, 7
    %v5946 = vsub.s32 %v5943, %v5945
    %v5947 = vrot.slane %v5933, %v5946
    %v5948 = vcombine.low %v5599, %v5623
    %v5949 = vcombine.high %v5599, %v5623
    %v5951 = vunpack.c.l.s4 1983009808
    %v5952 = vunpack.c.0.s8 %v5951
    %v5953 = vlaneseq
    %v5954 = vshrl.u32 %v5953, 7
    %v5955 = vsub.s32 %v5952, %v5954
    %v5956 = vrot.slane %v5948, %v5955
    %v5958 = vunpack.c.l.s4 1983009808
    %v5959 = vunpack.c.0.s8 %v5958
    %v5960 = vlaneseq
    %v5961 = vshrl.u32 %v5960, 7
    %v5962 = vsub.s32 %v5959, %v5961
    %v5963 = vrot.slane %v5949, %v5962
    %v5964 = vcombine.low %v5635, %v5659
    %v5965 = vcombine.high %v5635, %v5659
    %v5967 = vunpack.c.l.s4 1983009808
    %v5968 = vunpack.c.0.s8 %v5967
    %v5969 = vlaneseq
    %v5970 = vshrl.u32 %v5969, 7
    %v5971 = vsub.s32 %v5968, %v5970
    %v5972 = vrot.slane %v5964, %v5971
    %v5974 = vunpack.c.l.s4 1983009808
    %v5975 = vunpack.c.0.s8 %v5974
    %v5976 = vlaneseq
    %v5977 = vshrl.u32 %v5976, 7
    %v5978 = vsub.s32 %v5975, %v5977
    %v5979 = vrot.slane %v5965, %v5978
    %v5980 = vcombine.low %v5647, %v5671
    %v5981 = vcombine.high %v5647, %v5671
    %v5983 = vunpack.c.l.s4 1983009808
    %v5984 = vunpack.c.0.s8 %v5983
    %v5985 = vlaneseq
    %v5986 = vshrl.u32 %v5985, 7
    %v5987 = vsub.s32 %v5984, %v5986
    %v5988 = vrot.slane %v5980, %v5987
    %v5990 = vunpack.c.l.s4 1983009808
    %v5991 = vunpack.c.0.s8 %v5990
    %v5992 = vlaneseq
    %v5993 = vshrl.u32 %v5992, 7
    %v5994 = vsub.s32 %v5991, %v5993
    %v5995 = vrot.slane %v5981, %v5994
    %v5996 = vcombine.low %v5940, %v5956
    %v5997 = vcombine.high %v5940, %v5956
    %v5999 = vunpack.c.l.s4 1934713408
    %v6000 = vunpack.c.0.s8 %v5999
    %v6001 = vlaneseq
    %v6002 = vshrl.u32 %v6001, 7
    %v6003 = vsub.s32 %v6000, %v6002
    %v6004 = vrot.slane %v5996, %v6003
    %v6006 = vunpack.c.l.s4 1934713408
    %v6007 = vunpack.c.0.s8 %v6006
    %v6008 = vlaneseq
    %v6009 = vshrl.u32 %v6008, 7
    %v6010 = vsub.s32 %v6007, %v6009
    %v6011 = vrot.slane %v5997, %v6010
    %v6012 = vcombine.low %v5947, %v5963
    %v6013 = vcombine.high %v5947, %v5963
    %v6015 = vunpack.c.l.s4 1934713408
    %v6016 = vunpack.c.0.s8 %v6015
    %v6017 = vlaneseq
    %v6018 = vshrl.u32 %v6017, 7
    %v6019 = vsub.s32 %v6016, %v6018
    %v6020 = vrot.slane %v6012, %v6019
    %v6022 = vunpack.c.l.s4 1934713408
    %v6023 = vunpack.c.0.s8 %v6022
    %v6024 = vlaneseq
    %v6025 = vshrl.u32 %v6024, 7
    %v6026 = vsub.s32 %v6023, %v6025
    %v6027 = vrot.slane %v6013, %v6026
    %v6028 = vcombine.low %v5972, %v5988
    %v6029 = vcombine.high %v5972, %v5988
    %v6031 = vunpack.c.l.s4 1934713408
    %v6032 = vunpack.c.0.s8 %v6031
    %v6033 = vlaneseq
    %v6034 = vshrl.u32 %v6033, 7
    %v6035 = vsub.s32 %v6032, %v6034
    %v6036 = vrot.slane %v6028, %v6035
    %v6038 = vunpack.c.l.s4 1934713408
    %v6039 = vunpack.c.0.s8 %v6038
    %v6040 = vlaneseq
    %v6041 = vshrl.u32 %v6040, 7
    %v6042 = vsub.s32 %v6039, %v6041
    %v6043 = vrot.slane %v6029, %v6042
    %v6044 = vcombine.low %v5979, %v5995
    %v6045 = vcombine.high %v5979, %v5995
    %v6047 = vunpack.c.l.s4 1934713408
    %v6048 = vunpack.c.0.s8 %v6047
    %v6049 = vlaneseq
    %v6050 = vshrl.u32 %v6049, 7
    %v6051 = vsub.s32 %v6048, %v6050
    %v6052 = vrot.slane %v6044, %v6051
    %v6054 = vunpack.c.l.s4 1934713408
    %v6055 = vunpack.c.0.s8 %v6054
    %v6056 = vlaneseq
    %v6057 = vshrl.u32 %v6056, 7
    %v6058 = vsub.s32 %v6055, %v6057
    %v6059 = vrot.slane %v6045, %v6058
    %v6060 = vcombine.low %v6004, %v6036
    %v6061 = vcombine.high %v6004, %v6036
    %v6062 = vcombine.low %v6011, %v6043
    %v6063 = vcombine.high %v6011, %v6043
    %v6064 = vcombine.low %v6020, %v6052
    %v6065 = vcombine.high %v6020, %v6052
    %v6066 = vcombine.low %v6027, %v6059
    %v6067 = vcombine.high %v6027, %v6059
    %v6068 = vcombine.low %v5683, %v5707
    %v6069 = vcombine.high %v5683, %v5707
    %v6071 = vunpack.c.l.s4 1983009808
    %v6072 = vunpack.c.0.s8 %v6071
    %v6073 = vlaneseq
    %v6074 = vshrl.u32 %v6073, 7
    %v6075 = vsub.s32 %v6072, %v6074
    %v6076 = vrot.slane %v6068, %v6075
    %v6078 = vunpack.c.l.s4 1983009808
    %v6079 = vunpack.c.0.s8 %v6078
    %v6080 = vlaneseq
    %v6081 = vshrl.u32 %v6080, 7
    %v6082 = vsub.s32 %v6079, %v6081
    %v6083 = vrot.slane %v6069, %v6082
    %v6084 = vcombine.low %v5695, %v5719
    %v6085 = vcombine.high %v5695, %v5719
    %v6087 = vunpack.c.l.s4 1983009808
    %v6088 = vunpack.c.0.s8 %v6087
    %v6089 = vlaneseq
    %v6090 = vshrl.u32 %v6089, 7
    %v6091 = vsub.s32 %v6088, %v6090
    %v6092 = vrot.slane %v6084, %v6091
    %v6094 = vunpack.c.l.s4 1983009808
    %v6095 = vunpack.c.0.s8 %v6094
    %v6096 = vlaneseq
    %v6097 = vshrl.u32 %v6096, 7
    %v6098 = vsub.s32 %v6095, %v6097
    %v6099 = vrot.slane %v6085, %v6098
    %v6100 = vcombine.low %v6076, %v6092
    %v6101 = vcombine.high %v6076, %v6092
    %v6103 = vunpack.c.l.s4 1934713408
    %v6104 = vunpack.c.0.s8 %v6103
    %v6105 = vlaneseq
    %v6106 = vshrl.u32 %v6105, 7
    %v6107 = vsub.s32 %v6104, %v6106
    %v6108 = vrot.slane %v6100, %v6107
    %v6110 = vunpack.c.l.s4 1934713408
    %v6111 = vunpack.c.0.s8 %v6110
    %v6112 = vlaneseq
    %v6113 = vshrl.u32 %v6112, 7
    %v6114 = vsub.s32 %v6111, %v6113
    %v6115 = vrot.slane %v6101, %v6114
    %v6116 = vcombine.low %v6083, %v6099
    %v6117 = vcombine.high %v6083, %v6099
    %v6119 = vunpack.c.l.s4 1934713408
    %v6120 = vunpack.c.0.s8 %v6119
    %v6121 = vlaneseq
    %v6122 = vshrl.u32 %v6121, 7
    %v6123 = vsub.s32 %v6120, %v6122
    %v6124 = vrot.slane %v6116, %v6123
    %v6126 = vunpack.c.l.s4 1934713408
    %v6127 = vunpack.c.0.s8 %v6126
    %v6128 = vlaneseq
    %v6129 = vshrl.u32 %v6128, 7
    %v6130 = vsub.s32 %v6127, %v6129
    %v6131 = vrot.slane %v6117, %v6130
    %v6132 = vcombine.high %v6108, 0.0
    %v6133 = vcombine.high %v6115, 0.0
    %v6134 = vcombine.high %v6124, 0.0
    %v6135 = vcombine.high %v6131, 0.0
    %v6136 = vcombine.low %v5586, %v5613
    %v6137 = vcombine.high %v5586, %v5613
    %v6139 = vunpack.c.l.s4 1983009808
    %v6140 = vunpack.c.0.s8 %v6139
    %v6141 = vlaneseq
    %v6142 = vshrl.u32 %v6141, 7
    %v6143 = vsub.s32 %v6140, %v6142
    %v6144 = vrot.slane %v6136, %v6143
    %v6146 = vunpack.c.l.s4 1983009808
    %v6147 = vunpack.c.0.s8 %v6146
    %v6148 = vlaneseq
    %v6149 = vshrl.u32 %v6148, 7
    %v6150 = vsub.s32 %v6147, %v6149
    %v6151 = vrot.slane %v6137, %v6150
    %v6152 = vcombine.low %v5601, %v5625
    %v6153 = vcombine.high %v5601, %v5625
    %v6155 = vunpack.c.l.s4 1983009808
    %v6156 = vunpack.c.0.s8 %v6155
    %v6157 = vlaneseq
    %v6158 = vshrl.u32 %v6157, 7
    %v6159 = vsub.s32 %v6156, %v6158
    %v6160 = vrot.slane %v6152, %v6159
    %v6162 = vunpack.c.l.s4 1983009808
    %v6163 = vunpack.c.0.s8 %v6162
    %v6164 = vlaneseq
    %v6165 = vshrl.u32 %v6164, 7
    %v6166 = vsub.s32 %v6163, %v6165
    %v6167 = vrot.slane %v6153, %v6166
    %v6168 = vcombine.low %v5637, %v5661
    %v6169 = vcombine.high %v5637, %v5661
    %v6171 = vunpack.c.l.s4 1983009808
    %v6172 = vunpack.c.0.s8 %v6171
    %v6173 = vlaneseq
    %v6174 = vshrl.u32 %v6173, 7
    %v6175 = vsub.s32 %v6172, %v6174
    %v6176 = vrot.slane %v6168, %v6175
    %v6178 = vunpack.c.l.s4 1983009808
    %v6179 = vunpack.c.0.s8 %v6178
    %v6180 = vlaneseq
    %v6181 = vshrl.u32 %v6180, 7
    %v6182 = vsub.s32 %v6179, %v6181
    %v6183 = vrot.slane %v6169, %v6182
    %v6184 = vcombine.low %v5649, %v5673
    %v6185 = vcombine.high %v5649, %v5673
    %v6187 = vunpack.c.l.s4 1983009808
    %v6188 = vunpack.c.0.s8 %v6187
    %v6189 = vlaneseq
    %v6190 = vshrl.u32 %v6189, 7
    %v6191 = vsub.s32 %v6188, %v6190
    %v6192 = vrot.slane %v6184, %v6191
    %v6194 = vunpack.c.l.s4 1983009808
    %v6195 = vunpack.c.0.s8 %v6194
    %v6196 = vlaneseq
    %v6197 = vshrl.u32 %v6196, 7
    %v6198 = vsub.s32 %v6195, %v6197
    %v6199 = vrot.slane %v6185, %v6198
    %v6200 = vcombine.low %v6144, %v6160
    %v6201 = vcombine.high %v6144, %v6160
    %v6203 = vunpack.c.l.s4 1934713408
    %v6204 = vunpack.c.0.s8 %v6203
    %v6205 = vlaneseq
    %v6206 = vshrl.u32 %v6205, 7
    %v6207 = vsub.s32 %v6204, %v6206
    %v6208 = vrot.slane %v6200, %v6207
    %v6210 = vunpack.c.l.s4 1934713408
    %v6211 = vunpack.c.0.s8 %v6210
    %v6212 = vlaneseq
    %v6213 = vshrl.u32 %v6212, 7
    %v6214 = vsub.s32 %v6211, %v6213
    %v6215 = vrot.slane %v6201, %v6214
    %v6216 = vcombine.low %v6151, %v6167
    %v6217 = vcombine.high %v6151, %v6167
    %v6219 = vunpack.c.l.s4 1934713408
    %v6220 = vunpack.c.0.s8 %v6219
    %v6221 = vlaneseq
    %v6222 = vshrl.u32 %v6221, 7
    %v6223 = vsub.s32 %v6220, %v6222
    %v6224 = vrot.slane %v6216, %v6223
    %v6226 = vunpack.c.l.s4 1934713408
    %v6227 = vunpack.c.0.s8 %v6226
    %v6228 = vlaneseq
    %v6229 = vshrl.u32 %v6228, 7
    %v6230 = vsub.s32 %v6227, %v6229
    %v6231 = vrot.slane %v6217, %v6230
    %v6232 = vcombine.low %v6176, %v6192
    %v6233 = vcombine.high %v6176, %v6192
    %v6235 = vunpack.c.l.s4 1934713408
    %v6236 = vunpack.c.0.s8 %v6235
    %v6237 = vlaneseq
    %v6238 = vshrl.u32 %v6237, 7
    %v6239 = vsub.s32 %v6236, %v6238
    %v6240 = vrot.slane %v6232, %v6239
    %v6242 = vunpack.c.l.s4 1934713408
    %v6243 = vunpack.c.0.s8 %v6242
    %v6244 = vlaneseq
    %v6245 = vshrl.u32 %v6244, 7
    %v6246 = vsub.s32 %v6243, %v6245
    %v6247 = vrot.slane %v6233, %v6246
    %v6248 = vcombine.low %v6183, %v6199
    %v6249 = vcombine.high %v6183, %v6199
    %v6251 = vunpack.c.l.s4 1934713408
    %v6252 = vunpack.c.0.s8 %v6251
    %v6253 = vlaneseq
    %v6254 = vshrl.u32 %v6253, 7
    %v6255 = vsub.s32 %v6252, %v6254
    %v6256 = vrot.slane %v6248, %v6255
    %v6258 = vunpack.c.l.s4 1934713408
    %v6259 = vunpack.c.0.s8 %v6258
    %v6260 = vlaneseq
    %v6261 = vshrl.u32 %v6260, 7
    %v6262 = vsub.s32 %v6259, %v6261
    %v6263 = vrot.slane %v6249, %v6262
    %v6264 = vcombine.low %v6208, %v6240
    %v6265 = vcombine.high %v6208, %v6240
    %v6266 = vcombine.low %v6215, %v6247
    %v6267 = vcombine.high %v6215, %v6247
    %v6268 = vcombine.low %v6224, %v6256
    %v6269 = vcombine.high %v6224, %v6256
    %v6270 = vcombine.low %v6231, %v6263
    %v6271 = vcombine.high %v6231, %v6263
    %v6272 = vcombine.low %v5685, %v5709
    %v6273 = vcombine.high %v5685, %v5709
    %v6275 = vunpack.c.l.s4 1983009808
    %v6276 = vunpack.c.0.s8 %v6275
    %v6277 = vlaneseq
    %v6278 = vshrl.u32 %v6277, 7
    %v6279 = vsub.s32 %v6276, %v6278
    %v6280 = vrot.slane %v6272, %v6279
    %v6282 = vunpack.c.l.s4 1983009808
    %v6283 = vunpack.c.0.s8 %v6282
    %v6284 = vlaneseq
    %v6285 = vshrl.u32 %v6284, 7
    %v6286 = vsub.s32 %v6283, %v6285
    %v6287 = vrot.slane %v6273, %v6286
    %v6288 = vcombine.low %v5697, %v5721
    %v6289 = vcombine.high %v5697, %v5721
    %v6291 = vunpack.c.l.s4 1983009808
    %v6292 = vunpack.c.0.s8 %v6291
    %v6293 = vlaneseq
    %v6294 = vshrl.u32 %v6293, 7
    %v6295 = vsub.s32 %v6292, %v6294
    %v6296 = vrot.slane %v6288, %v6295
    %v6298 = vunpack.c.l.s4 1983009808
    %v6299 = vunpack.c.0.s8 %v6298
    %v6300 = vlaneseq
    %v6301 = vshrl.u32 %v6300, 7
    %v6302 = vsub.s32 %v6299, %v6301
    %v6303 = vrot.slane %v6289, %v6302
    %v6304 = vcombine.low %v6280, %v6296
    %v6305 = vcombine.high %v6280, %v6296
    %v6307 = vunpack.c.l.s4 1934713408
    %v6308 = vunpack.c.0.s8 %v6307
    %v6309 = vlaneseq
    %v6310 = vshrl.u32 %v6309, 7
    %v6311 = vsub.s32 %v6308, %v6310
    %v6312 = vrot.slane %v6304, %v6311
    %v6314 = vunpack.c.l.s4 1934713408
    %v6315 = vunpack.c.0.s8 %v6314
    %v6316 = vlaneseq
    %v6317 = vshrl.u32 %v6316, 7
    %v6318 = vsub.s32 %v6315, %v6317
    %v6319 = vrot.slane %v6305, %v6318
    %v6320 = vcombine.low %v6287, %v6303
    %v6321 = vcombine.high %v6287, %v6303
    %v6323 = vunpack.c.l.s4 1934713408
    %v6324 = vunpack.c.0.s8 %v6323
    %v6325 = vlaneseq
    %v6326 = vshrl.u32 %v6325, 7
    %v6327 = vsub.s32 %v6324, %v6326
    %v6328 = vrot.slane %v6320, %v6327
    %v6330 = vunpack.c.l.s4 1934713408
    %v6331 = vunpack.c.0.s8 %v6330
    %v6332 = vlaneseq
    %v6333 = vshrl.u32 %v6332, 7
    %v6334 = vsub.s32 %v6331, %v6333
    %v6335 = vrot.slane %v6321, %v6334
    %v6336 = vcombine.high %v6312, 0.0
    %v6337 = vcombine.high %v6319, 0.0
    %v6338 = vcombine.high %v6328, 0.0
    %v6339 = vcombine.high %v6335, 0.0
    %v6340 = vcombine.low %v5589, %v5615
    %v6341 = vcombine.high %v5589, %v5615
    %v6343 = vunpack.c.l.s4 1983009808
    %v6344 = vunpack.c.0.s8 %v6343
    %v6345 = vlaneseq
    %v6346 = vshrl.u32 %v6345, 7
    %v6347 = vsub.s32 %v6344, %v6346
    %v6348 = vrot.slane %v6340, %v6347
    %v6350 = vunpack.c.l.s4 1983009808
    %v6351 = vunpack.c.0.s8 %v6350
    %v6352 = vlaneseq
    %v6353 = vshrl.u32 %v6352, 7
    %v6354 = vsub.s32 %v6351, %v6353
    %v6355 = vrot.slane %v6341, %v6354
    %v6356 = vcombine.low %v5603, %v5627
    %v6357 = vcombine.high %v5603, %v5627
    %v6359 = vunpack.c.l.s4 1983009808
    %v6360 = vunpack.c.0.s8 %v6359
    %v6361 = vlaneseq
    %v6362 = vshrl.u32 %v6361, 7
    %v6363 = vsub.s32 %v6360, %v6362
    %v6364 = vrot.slane %v6356, %v6363
    %v6366 = vunpack.c.l.s4 1983009808
    %v6367 = vunpack.c.0.s8 %v6366
    %v6368 = vlaneseq
    %v6369 = vshrl.u32 %v6368, 7
    %v6370 = vsub.s32 %v6367, %v6369
    %v6371 = vrot.slane %v6357, %v6370
    %v6372 = vcombine.low %v5639, %v5663
    %v6373 = vcombine.high %v5639, %v5663
    %v6375 = vunpack.c.l.s4 1983009808
    %v6376 = vunpack.c.0.s8 %v6375
    %v6377 = vlaneseq
    %v6378 = vshrl.u32 %v6377, 7
    %v6379 = vsub.s32 %v6376, %v6378
    %v6380 = vrot.slane %v6372, %v6379
    %v6382 = vunpack.c.l.s4 1983009808
    %v6383 = vunpack.c.0.s8 %v6382
    %v6384 = vlaneseq
    %v6385 = vshrl.u32 %v6384, 7
    %v6386 = vsub.s32 %v6383, %v6385
    %v6387 = vrot.slane %v6373, %v6386
    %v6388 = vcombine.low %v5651, %v5675
    %v6389 = vcombine.high %v5651, %v5675
    %v6391 = vunpack.c.l.s4 1983009808
    %v6392 = vunpack.c.0.s8 %v6391
    %v6393 = vlaneseq
    %v6394 = vshrl.u32 %v6393, 7
    %v6395 = vsub.s32 %v6392, %v6394
    %v6396 = vrot.slane %v6388, %v6395
    %v6398 = vunpack.c.l.s4 1983009808
    %v6399 = vunpack.c.0.s8 %v6398
    %v6400 = vlaneseq
    %v6401 = vshrl.u32 %v6400, 7
    %v6402 = vsub.s32 %v6399, %v6401
    %v6403 = vrot.slane %v6389, %v6402
    %v6404 = vcombine.low %v6348, %v6364
    %v6405 = vcombine.high %v6348, %v6364
    %v6407 = vunpack.c.l.s4 1934713408
    %v6408 = vunpack.c.0.s8 %v6407
    %v6409 = vlaneseq
    %v6410 = vshrl.u32 %v6409, 7
    %v6411 = vsub.s32 %v6408, %v6410
    %v6412 = vrot.slane %v6404, %v6411
    %v6414 = vunpack.c.l.s4 1934713408
    %v6415 = vunpack.c.0.s8 %v6414
    %v6416 = vlaneseq
    %v6417 = vshrl.u32 %v6416, 7
    %v6418 = vsub.s32 %v6415, %v6417
    %v6419 = vrot.slane %v6405, %v6418
    %v6420 = vcombine.low %v6355, %v6371
    %v6421 = vcombine.high %v6355, %v6371
    %v6423 = vunpack.c.l.s4 1934713408
    %v6424 = vunpack.c.0.s8 %v6423
    %v6425 = vlaneseq
    %v6426 = vshrl.u32 %v6425, 7
    %v6427 = vsub.s32 %v6424, %v6426
    %v6428 = vrot.slane %v6420, %v6427
    %v6430 = vunpack.c.l.s4 1934713408
    %v6431 = vunpack.c.0.s8 %v6430
    %v6432 = vlaneseq
    %v6433 = vshrl.u32 %v6432, 7
    %v6434 = vsub.s32 %v6431, %v6433
    %v6435 = vrot.slane %v6421, %v6434
    %v6436 = vcombine.low %v6380, %v6396
    %v6437 = vcombine.high %v6380, %v6396
    %v6439 = vunpack.c.l.s4 1934713408
    %v6440 = vunpack.c.0.s8 %v6439
    %v6441 = vlaneseq
    %v6442 = vshrl.u32 %v6441, 7
    %v6443 = vsub.s32 %v6440, %v6442
    %v6444 = vrot.slane %v6436, %v6443
    %v6446 = vunpack.c.l.s4 1934713408
    %v6447 = vunpack.c.0.s8 %v6446
    %v6448 = vlaneseq
    %v6449 = vshrl.u32 %v6448, 7
    %v6450 = vsub.s32 %v6447, %v6449
    %v6451 = vrot.slane %v6437, %v6450
    %v6452 = vcombine.low %v6387, %v6403
    %v6453 = vcombine.high %v6387, %v6403
    %v6455 = vunpack.c.l.s4 1934713408
    %v6456 = vunpack.c.0.s8 %v6455
    %v6457 = vlaneseq
    %v6458 = vshrl.u32 %v6457, 7
    %v6459 = vsub.s32 %v6456, %v6458
    %v6460 = vrot.slane %v6452, %v6459
    %v6462 = vunpack.c.l.s4 1934713408
    %v6463 = vunpack.c.0.s8 %v6462
    %v6464 = vlaneseq
    %v6465 = vshrl.u32 %v6464, 7
    %v6466 = vsub.s32 %v6463, %v6465
    %v6467 = vrot.slane %v6453, %v6466
    %v6468 = vcombine.low %v6412, %v6444
    %v6469 = vcombine.high %v6412, %v6444
    %v6470 = vcombine.low %v6419, %v6451
    %v6471 = vcombine.high %v6419, %v6451
    %v6472 = vcombine.low %v6428, %v6460
    %v6473 = vcombine.high %v6428, %v6460
    %v6474 = vcombine.low %v6435, %v6467
    %v6475 = vcombine.high %v6435, %v6467
    %v6476 = vcombine.low %v5687, %v5711
    %v6477 = vcombine.high %v5687, %v5711
    %v6479 = vunpack.c.l.s4 1983009808
    %v6480 = vunpack.c.0.s8 %v6479
    %v6481 = vlaneseq
    %v6482 = vshrl.u32 %v6481, 7
    %v6483 = vsub.s32 %v6480, %v6482
    %v6484 = vrot.slane %v6476, %v6483
    %v6486 = vunpack.c.l.s4 1983009808
    %v6487 = vunpack.c.0.s8 %v6486
    %v6488 = vlaneseq
    %v6489 = vshrl.u32 %v6488, 7
    %v6490 = vsub.s32 %v6487, %v6489
    %v6491 = vrot.slane %v6477, %v6490
    %v6492 = vcombine.low %v5699, %v5723
    %v6493 = vcombine.high %v5699, %v5723
    %v6495 = vunpack.c.l.s4 1983009808
    %v6496 = vunpack.c.0.s8 %v6495
    %v6497 = vlaneseq
    %v6498 = vshrl.u32 %v6497, 7
    %v6499 = vsub.s32 %v6496, %v6498
    %v6500 = vrot.slane %v6492, %v6499
    %v6502 = vunpack.c.l.s4 1983009808
    %v6503 = vunpack.c.0.s8 %v6502
    %v6504 = vlaneseq
    %v6505 = vshrl.u32 %v6504, 7
    %v6506 = vsub.s32 %v6503, %v6505
    %v6507 = vrot.slane %v6493, %v6506
    %v6508 = vcombine.low %v6484, %v6500
    %v6509 = vcombine.high %v6484, %v6500
    %v6511 = vunpack.c.l.s4 1934713408
    %v6512 = vunpack.c.0.s8 %v6511
    %v6513 = vlaneseq
    %v6514 = vshrl.u32 %v6513, 7
    %v6515 = vsub.s32 %v6512, %v6514
    %v6516 = vrot.slane %v6508, %v6515
    %v6518 = vunpack.c.l.s4 1934713408
    %v6519 = vunpack.c.0.s8 %v6518
    %v6520 = vlaneseq
    %v6521 = vshrl.u32 %v6520, 7
    %v6522 = vsub.s32 %v6519, %v6521
    %v6523 = vrot.slane %v6509, %v6522
    %v6524 = vcombine.low %v6491, %v6507
    %v6525 = vcombine.high %v6491, %v6507
    %v6527 = vunpack.c.l.s4 1934713408
    %v6528 = vunpack.c.0.s8 %v6527
    %v6529 = vlaneseq
    %v6530 = vshrl.u32 %v6529, 7
    %v6531 = vsub.s32 %v6528, %v6530
    %v6532 = vrot.slane %v6524, %v6531
    %v6534 = vunpack.c.l.s4 1934713408
    %v6535 = vunpack.c.0.s8 %v6534
    %v6536 = vlaneseq
    %v6537 = vshrl.u32 %v6536, 7
    %v6538 = vsub.s32 %v6535, %v6537
    %v6539 = vrot.slane %v6525, %v6538
    %v6540 = vcombine.high %v6516, 0.0
    %v6541 = vcombine.high %v6523, 0.0
    %v6542 = vcombine.high %v6532, 0.0
    %v6543 = vcombine.high %v6539, 0.0
    %v6544 = vcombine.low %v5856, %v5858
    %v6545 = vcombine.high %v5856, %v5858
    %v6547 = vunpack.c.l.s4 1983009808
    %v6548 = vunpack.c.0.s8 %v6547
    %v6549 = vlaneseq
    %v6550 = vshrl.u32 %v6549, 7
    %v6551 = vsub.s32 %v6548, %v6550
    %v6552 = vrot.slane %v6544, %v6551
    %v6554 = vunpack.c.l.s4 1983009808
    %v6555 = vunpack.c.0.s8 %v6554
    %v6556 = vlaneseq
    %v6557 = vshrl.u32 %v6556, 7
    %v6558 = vsub.s32 %v6555, %v6557
    %v6559 = vrot.slane %v6545, %v6558
    %v6560 = vcombine.low %v5857, %v5859
    %v6561 = vcombine.high %v5857, %v5859
    %v6563 = vunpack.c.l.s4 1983009808
    %v6564 = vunpack.c.0.s8 %v6563
    %v6565 = vlaneseq
    %v6566 = vshrl.u32 %v6565, 7
    %v6567 = vsub.s32 %v6564, %v6566
    %v6568 = vrot.slane %v6560, %v6567
    %v6570 = vunpack.c.l.s4 1983009808
    %v6571 = vunpack.c.0.s8 %v6570
    %v6572 = vlaneseq
    %v6573 = vshrl.u32 %v6572, 7
    %v6574 = vsub.s32 %v6571, %v6573
    %v6575 = vrot.slane %v6561, %v6574
    %v6576 = vcombine.low %v5860, %v5862
    %v6577 = vcombine.high %v5860, %v5862
    %v6579 = vunpack.c.l.s4 1983009808
    %v6580 = vunpack.c.0.s8 %v6579
    %v6581 = vlaneseq
    %v6582 = vshrl.u32 %v6581, 7
    %v6583 = vsub.s32 %v6580, %v6582
    %v6584 = vrot.slane %v6576, %v6583
    %v6586 = vunpack.c.l.s4 1983009808
    %v6587 = vunpack.c.0.s8 %v6586
    %v6588 = vlaneseq
    %v6589 = vshrl.u32 %v6588, 7
    %v6590 = vsub.s32 %v6587, %v6589
    %v6591 = vrot.slane %v6577, %v6590
    %v6592 = vcombine.low %v5861, %v5863
    %v6593 = vcombine.high %v5861, %v5863
    %v6595 = vunpack.c.l.s4 1983009808
    %v6596 = vunpack.c.0.s8 %v6595
    %v6597 = vlaneseq
    %v6598 = vshrl.u32 %v6597, 7
    %v6599 = vsub.s32 %v6596, %v6598
    %v6600 = vrot.slane %v6592, %v6599
    %v6602 = vunpack.c.l.s4 1983009808
    %v6603 = vunpack.c.0.s8 %v6602
    %v6604 = vlaneseq
    %v6605 = vshrl.u32 %v6604, 7
    %v6606 = vsub.s32 %v6603, %v6605
    %v6607 = vrot.slane %v6593, %v6606
    %v6608 = vcombine.low %v6552, %v6568
    %v6609 = vcombine.high %v6552, %v6568
    %v6611 = vunpack.c.l.s4 1934713408
    %v6612 = vunpack.c.0.s8 %v6611
    %v6613 = vlaneseq
    %v6614 = vshrl.u32 %v6613, 7
    %v6615 = vsub.s32 %v6612, %v6614
    %v6616 = vrot.slane %v6608, %v6615
    %v6618 = vunpack.c.l.s4 1934713408
    %v6619 = vunpack.c.0.s8 %v6618
    %v6620 = vlaneseq
    %v6621 = vshrl.u32 %v6620, 7
    %v6622 = vsub.s32 %v6619, %v6621
    %v6623 = vrot.slane %v6609, %v6622
    %v6624 = vcombine.low %v6559, %v6575
    %v6625 = vcombine.high %v6559, %v6575
    %v6627 = vunpack.c.l.s4 1934713408
    %v6628 = vunpack.c.0.s8 %v6627
    %v6629 = vlaneseq
    %v6630 = vshrl.u32 %v6629, 7
    %v6631 = vsub.s32 %v6628, %v6630
    %v6632 = vrot.slane %v6624, %v6631
    %v6634 = vunpack.c.l.s4 1934713408
    %v6635 = vunpack.c.0.s8 %v6634
    %v6636 = vlaneseq
    %v6637 = vshrl.u32 %v6636, 7
    %v6638 = vsub.s32 %v6635, %v6637
    %v6639 = vrot.slane %v6625, %v6638
    %v6640 = vcombine.low %v6584, %v6600
    %v6641 = vcombine.high %v6584, %v6600
    %v6643 = vunpack.c.l.s4 1934713408
    %v6644 = vunpack.c.0.s8 %v6643
    %v6645 = vlaneseq
    %v6646 = vshrl.u32 %v6645, 7
    %v6647 = vsub.s32 %v6644, %v6646
    %v6648 = vrot.slane %v6640, %v6647
    %v6650 = vunpack.c.l.s4 1934713408
    %v6651 = vunpack.c.0.s8 %v6650
    %v6652 = vlaneseq
    %v6653 = vshrl.u32 %v6652, 7
    %v6654 = vsub.s32 %v6651, %v6653
    %v6655 = vrot.slane %v6641, %v6654
    %v6656 = vcombine.low %v6591, %v6607
    %v6657 = vcombine.high %v6591, %v6607
    %v6659 = vunpack.c.l.s4 1934713408
    %v6660 = vunpack.c.0.s8 %v6659
    %v6661 = vlaneseq
    %v6662 = vshrl.u32 %v6661, 7
    %v6663 = vsub.s32 %v6660, %v6662
    %v6664 = vrot.slane %v6656, %v6663
    %v6666 = vunpack.c.l.s4 1934713408
    %v6667 = vunpack.c.0.s8 %v6666
    %v6668 = vlaneseq
    %v6669 = vshrl.u32 %v6668, 7
    %v6670 = vsub.s32 %v6667, %v6669
    %v6671 = vrot.slane %v6657, %v6670
    %v6672 = vcombine.low %v6616, %v6648
    %v6673 = vcombine.high %v6616, %v6648
    %v6674 = vcombine.low %v6623, %v6655
    %v6675 = vcombine.high %v6623, %v6655
    %v6676 = vcombine.low %v6632, %v6664
    %v6677 = vcombine.high %v6632, %v6664
    %v6678 = vcombine.low %v6639, %v6671
    %v6679 = vcombine.high %v6639, %v6671
    %v6680 = vcombine.low %v6060, %v6062
    %v6681 = vcombine.high %v6060, %v6062
    %v6683 = vunpack.c.l.s4 1983009808
    %v6684 = vunpack.c.0.s8 %v6683
    %v6685 = vlaneseq
    %v6686 = vshrl.u32 %v6685, 7
    %v6687 = vsub.s32 %v6684, %v6686
    %v6688 = vrot.slane %v6680, %v6687
    %v6690 = vunpack.c.l.s4 1983009808
    %v6691 = vunpack.c.0.s8 %v6690
    %v6692 = vlaneseq
    %v6693 = vshrl.u32 %v6692, 7
    %v6694 = vsub.s32 %v6691, %v6693
    %v6695 = vrot.slane %v6681, %v6694
    %v6696 = vcombine.low %v6061, %v6063
    %v6697 = vcombine.high %v6061, %v6063
    %v6699 = vunpack.c.l.s4 1983009808
    %v6700 = vunpack.c.0.s8 %v6699
    %v6701 = vlaneseq
    %v6702 = vshrl.u32 %v6701, 7
    %v6703 = vsub.s32 %v6700, %v6702
    %v6704 = vrot.slane %v6696, %v6703
    %v6706 = vunpack.c.l.s4 1983009808
    %v6707 = vunpack.c.0.s8 %v6706
    %v6708 = vlaneseq
    %v6709 = vshrl.u32 %v6708, 7
    %v6710 = vsub.s32 %v6707, %v6709
    %v6711 = vrot.slane %v6697, %v6710
    %v6712 = vcombine.low %v6064, %v6066
    %v6713 = vcombine.high %v6064, %v6066
    %v6715 = vunpack.c.l.s4 1983009808
    %v6716 = vunpack.c.0.s8 %v6715
    %v6717 = vlaneseq
    %v6718 = vshrl.u32 %v6717, 7
    %v6719 = vsub.s32 %v6716, %v6718
    %v6720 = vrot.slane %v6712, %v6719
    %v6722 = vunpack.c.l.s4 1983009808
    %v6723 = vunpack.c.0.s8 %v6722
    %v6724 = vlaneseq
    %v6725 = vshrl.u32 %v6724, 7
    %v6726 = vsub.s32 %v6723, %v6725
    %v6727 = vrot.slane %v6713, %v6726
    %v6728 = vcombine.low %v6065, %v6067
    %v6729 = vcombine.high %v6065, %v6067
    %v6731 = vunpack.c.l.s4 1983009808
    %v6732 = vunpack.c.0.s8 %v6731
    %v6733 = vlaneseq
    %v6734 = vshrl.u32 %v6733, 7
    %v6735 = vsub.s32 %v6732, %v6734
    %v6736 = vrot.slane %v6728, %v6735
    %v6738 = vunpack.c.l.s4 1983009808
    %v6739 = vunpack.c.0.s8 %v6738
    %v6740 = vlaneseq
    %v6741 = vshrl.u32 %v6740, 7
    %v6742 = vsub.s32 %v6739, %v6741
    %v6743 = vrot.slane %v6729, %v6742
    %v6744 = vcombine.low %v6688, %v6704
    %v6745 = vcombine.high %v6688, %v6704
    %v6747 = vunpack.c.l.s4 1934713408
    %v6748 = vunpack.c.0.s8 %v6747
    %v6749 = vlaneseq
    %v6750 = vshrl.u32 %v6749, 7
    %v6751 = vsub.s32 %v6748, %v6750
    %v6752 = vrot.slane %v6744, %v6751
    %v6754 = vunpack.c.l.s4 1934713408
    %v6755 = vunpack.c.0.s8 %v6754
    %v6756 = vlaneseq
    %v6757 = vshrl.u32 %v6756, 7
    %v6758 = vsub.s32 %v6755, %v6757
    %v6759 = vrot.slane %v6745, %v6758
    %v6760 = vcombine.low %v6695, %v6711
    %v6761 = vcombine.high %v6695, %v6711
    %v6763 = vunpack.c.l.s4 1934713408
    %v6764 = vunpack.c.0.s8 %v6763
    %v6765 = vlaneseq
    %v6766 = vshrl.u32 %v6765, 7
    %v6767 = vsub.s32 %v6764, %v6766
    %v6768 = vrot.slane %v6760, %v6767
    %v6770 = vunpack.c.l.s4 1934713408
    %v6771 = vunpack.c.0.s8 %v6770
    %v6772 = vlaneseq
    %v6773 = vshrl.u32 %v6772, 7
    %v6774 = vsub.s32 %v6771, %v6773
    %v6775 = vrot.slane %v6761, %v6774
    %v6776 = vcombine.low %v6720, %v6736
    %v6777 = vcombine.high %v6720, %v6736
    %v6779 = vunpack.c.l.s4 1934713408
    %v6780 = vunpack.c.0.s8 %v6779
    %v6781 = vlaneseq
    %v6782 = vshrl.u32 %v6781, 7
    %v6783 = vsub.s32 %v6780, %v6782
    %v6784 = vrot.slane %v6776, %v6783
    %v6786 = vunpack.c.l.s4 1934713408
    %v6787 = vunpack.c.0.s8 %v6786
    %v6788 = vlaneseq
    %v6789 = vshrl.u32 %v6788, 7
    %v6790 = vsub.s32 %v6787, %v6789
    %v6791 = vrot.slane %v6777, %v6790
    %v6792 = vcombine.low %v6727, %v6743
    %v6793 = vcombine.high %v6727, %v6743
    %v6795 = vunpack.c.l.s4 1934713408
    %v6796 = vunpack.c.0.s8 %v6795
    %v6797 = vlaneseq
    %v6798 = vshrl.u32 %v6797, 7
    %v6799 = vsub.s32 %v6796, %v6798
    %v6800 = vrot.slane %v6792, %v6799
    %v6802 = vunpack.c.l.s4 1934713408
    %v6803 = vunpack.c.0.s8 %v6802
    %v6804 = vlaneseq
    %v6805 = vshrl.u32 %v6804, 7
    %v6806 = vsub.s32 %v6803, %v6805
    %v6807 = vrot.slane %v6793, %v6806
    %v6808 = vcombine.low %v6752, %v6784
    %v6809 = vcombine.high %v6752, %v6784
    %v6810 = vcombine.low %v6759, %v6791
    %v6811 = vcombine.high %v6759, %v6791
    %v6812 = vcombine.low %v6768, %v6800
    %v6813 = vcombine.high %v6768, %v6800
    %v6814 = vcombine.low %v6775, %v6807
    %v6815 = vcombine.high %v6775, %v6807
    %v6816 = vcombine.low %v6264, %v6266
    %v6817 = vcombine.high %v6264, %v6266
    %v6819 = vunpack.c.l.s4 1983009808
    %v6820 = vunpack.c.0.s8 %v6819
    %v6821 = vlaneseq
    %v6822 = vshrl.u32 %v6821, 7
    %v6823 = vsub.s32 %v6820, %v6822
    %v6824 = vrot.slane %v6816, %v6823
    %v6826 = vunpack.c.l.s4 1983009808
    %v6827 = vunpack.c.0.s8 %v6826
    %v6828 = vlaneseq
    %v6829 = vshrl.u32 %v6828, 7
    %v6830 = vsub.s32 %v6827, %v6829
    %v6831 = vrot.slane %v6817, %v6830
    %v6832 = vcombine.low %v6265, %v6267
    %v6833 = vcombine.high %v6265, %v6267
    %v6835 = vunpack.c.l.s4 1983009808
    %v6836 = vunpack.c.0.s8 %v6835
    %v6837 = vlaneseq
    %v6838 = vshrl.u32 %v6837, 7
    %v6839 = vsub.s32 %v6836, %v6838
    %v6840 = vrot.slane %v6832, %v6839
    %v6842 = vunpack.c.l.s4 1983009808
    %v6843 = vunpack.c.0.s8 %v6842
    %v6844 = vlaneseq
    %v6845 = vshrl.u32 %v6844, 7
    %v6846 = vsub.s32 %v6843, %v6845
    %v6847 = vrot.slane %v6833, %v6846
    %v6848 = vcombine.low %v6268, %v6270
    %v6849 = vcombine.high %v6268, %v6270
    %v6851 = vunpack.c.l.s4 1983009808
    %v6852 = vunpack.c.0.s8 %v6851
    %v6853 = vlaneseq
    %v6854 = vshrl.u32 %v6853, 7
    %v6855 = vsub.s32 %v6852, %v6854
    %v6856 = vrot.slane %v6848, %v6855
    %v6858 = vunpack.c.l.s4 1983009808
    %v6859 = vunpack.c.0.s8 %v6858
    %v6860 = vlaneseq
    %v6861 = vshrl.u32 %v6860, 7
    %v6862 = vsub.s32 %v6859, %v6861
    %v6863 = vrot.slane %v6849, %v6862
    %v6864 = vcombine.low %v6269, %v6271
    %v6865 = vcombine.high %v6269, %v6271
    %v6867 = vunpack.c.l.s4 1983009808
    %v6868 = vunpack.c.0.s8 %v6867
    %v6869 = vlaneseq
    %v6870 = vshrl.u32 %v6869, 7
    %v6871 = vsub.s32 %v6868, %v6870
    %v6872 = vrot.slane %v6864, %v6871
    %v6874 = vunpack.c.l.s4 1983009808
    %v6875 = vunpack.c.0.s8 %v6874
    %v6876 = vlaneseq
    %v6877 = vshrl.u32 %v6876, 7
    %v6878 = vsub.s32 %v6875, %v6877
    %v6879 = vrot.slane %v6865, %v6878
    %v6880 = vcombine.low %v6824, %v6840
    %v6881 = vcombine.high %v6824, %v6840
    %v6883 = vunpack.c.l.s4 1934713408
    %v6884 = vunpack.c.0.s8 %v6883
    %v6885 = vlaneseq
    %v6886 = vshrl.u32 %v6885, 7
    %v6887 = vsub.s32 %v6884, %v6886
    %v6888 = vrot.slane %v6880, %v6887
    %v6890 = vunpack.c.l.s4 1934713408
    %v6891 = vunpack.c.0.s8 %v6890
    %v6892 = vlaneseq
    %v6893 = vshrl.u32 %v6892, 7
    %v6894 = vsub.s32 %v6891, %v6893
    %v6895 = vrot.slane %v6881, %v6894
    %v6896 = vcombine.low %v6831, %v6847
    %v6897 = vcombine.high %v6831, %v6847
    %v6899 = vunpack.c.l.s4 1934713408
    %v6900 = vunpack.c.0.s8 %v6899
    %v6901 = vlaneseq
    %v6902 = vshrl.u32 %v6901, 7
    %v6903 = vsub.s32 %v6900, %v6902
    %v6904 = vrot.slane %v6896, %v6903
    %v6906 = vunpack.c.l.s4 1934713408
    %v6907 = vunpack.c.0.s8 %v6906
    %v6908 = vlaneseq
    %v6909 = vshrl.u32 %v6908, 7
    %v6910 = vsub.s32 %v6907, %v6909
    %v6911 = vrot.slane %v6897, %v6910
    %v6912 = vcombine.low %v6856, %v6872
    %v6913 = vcombine.high %v6856, %v6872
    %v6915 = vunpack.c.l.s4 1934713408
    %v6916 = vunpack.c.0.s8 %v6915
    %v6917 = vlaneseq
    %v6918 = vshrl.u32 %v6917, 7
    %v6919 = vsub.s32 %v6916, %v6918
    %v6920 = vrot.slane %v6912, %v6919
    %v6922 = vunpack.c.l.s4 1934713408
    %v6923 = vunpack.c.0.s8 %v6922
    %v6924 = vlaneseq
    %v6925 = vshrl.u32 %v6924, 7
    %v6926 = vsub.s32 %v6923, %v6925
    %v6927 = vrot.slane %v6913, %v6926
    %v6928 = vcombine.low %v6863, %v6879
    %v6929 = vcombine.high %v6863, %v6879
    %v6931 = vunpack.c.l.s4 1934713408
    %v6932 = vunpack.c.0.s8 %v6931
    %v6933 = vlaneseq
    %v6934 = vshrl.u32 %v6933, 7
    %v6935 = vsub.s32 %v6932, %v6934
    %v6936 = vrot.slane %v6928, %v6935
    %v6938 = vunpack.c.l.s4 1934713408
    %v6939 = vunpack.c.0.s8 %v6938
    %v6940 = vlaneseq
    %v6941 = vshrl.u32 %v6940, 7
    %v6942 = vsub.s32 %v6939, %v6941
    %v6943 = vrot.slane %v6929, %v6942
    %v6944 = vcombine.low %v6888, %v6920
    %v6945 = vcombine.high %v6888, %v6920
    %v6946 = vcombine.low %v6895, %v6927
    %v6947 = vcombine.high %v6895, %v6927
    %v6948 = vcombine.low %v6904, %v6936
    %v6949 = vcombine.high %v6904, %v6936
    %v6950 = vcombine.low %v6911, %v6943
    %v6951 = vcombine.high %v6911, %v6943
    %v6952 = vcombine.low %v6468, %v6470
    %v6953 = vcombine.high %v6468, %v6470
    %v6955 = vunpack.c.l.s4 1983009808
    %v6956 = vunpack.c.0.s8 %v6955
    %v6957 = vlaneseq
    %v6958 = vshrl.u32 %v6957, 7
    %v6959 = vsub.s32 %v6956, %v6958
    %v6960 = vrot.slane %v6952, %v6959
    %v6962 = vunpack.c.l.s4 1983009808
    %v6963 = vunpack.c.0.s8 %v6962
    %v6964 = vlaneseq
    %v6965 = vshrl.u32 %v6964, 7
    %v6966 = vsub.s32 %v6963, %v6965
    %v6967 = vrot.slane %v6953, %v6966
    %v6968 = vcombine.low %v6469, %v6471
    %v6969 = vcombine.high %v6469, %v6471
    %v6971 = vunpack.c.l.s4 1983009808
    %v6972 = vunpack.c.0.s8 %v6971
    %v6973 = vlaneseq
    %v6974 = vshrl.u32 %v6973, 7
    %v6975 = vsub.s32 %v6972, %v6974
    %v6976 = vrot.slane %v6968, %v6975
    %v6978 = vunpack.c.l.s4 1983009808
    %v6979 = vunpack.c.0.s8 %v6978
    %v6980 = vlaneseq
    %v6981 = vshrl.u32 %v6980, 7
    %v6982 = vsub.s32 %v6979, %v6981
    %v6983 = vrot.slane %v6969, %v6982
    %v6984 = vcombine.low %v6472, %v6474
    %v6985 = vcombine.high %v6472, %v6474
    %v6987 = vunpack.c.l.s4 1983009808
    %v6988 = vunpack.c.0.s8 %v6987
    %v6989 = vlaneseq
    %v6990 = vshrl.u32 %v6989, 7
    %v6991 = vsub.s32 %v6988, %v6990
    %v6992 = vrot.slane %v6984, %v6991
    %v6994 = vunpack.c.l.s4 1983009808
    %v6995 = vunpack.c.0.s8 %v6994
    %v6996 = vlaneseq
    %v6997 = vshrl.u32 %v6996, 7
    %v6998 = vsub.s32 %v6995, %v6997
    %v6999 = vrot.slane %v6985, %v6998
    %v7000 = vcombine.low %v6473, %v6475
    %v7001 = vcombine.high %v6473, %v6475
    %v7003 = vunpack.c.l.s4 1983009808
    %v7004 = vunpack.c.0.s8 %v7003
    %v7005 = vlaneseq
    %v7006 = vshrl.u32 %v7005, 7
    %v7007 = vsub.s32 %v7004, %v7006
    %v7008 = vrot.slane %v7000, %v7007
    %v7010 = vunpack.c.l.s4 1983009808
    %v7011 = vunpack.c.0.s8 %v7010
    %v7012 = vlaneseq
    %v7013 = vshrl.u32 %v7012, 7
    %v7014 = vsub.s32 %v7011, %v7013
    %v7015 = vrot.slane %v7001, %v7014
    %v7016 = vcombine.low %v6960, %v6976
    %v7017 = vcombine.high %v6960, %v6976
    %v7019 = vunpack.c.l.s4 1934713408
    %v7020 = vunpack.c.0.s8 %v7019
    %v7021 = vlaneseq
    %v7022 = vshrl.u32 %v7021, 7
    %v7023 = vsub.s32 %v7020, %v7022
    %v7024 = vrot.slane %v7016, %v7023
    %v7026 = vunpack.c.l.s4 1934713408
    %v7027 = vunpack.c.0.s8 %v7026
    %v7028 = vlaneseq
    %v7029 = vshrl.u32 %v7028, 7
    %v7030 = vsub.s32 %v7027, %v7029
    %v7031 = vrot.slane %v7017, %v7030
    %v7032 = vcombine.low %v6967, %v6983
    %v7033 = vcombine.high %v6967, %v6983
    %v7035 = vunpack.c.l.s4 1934713408
    %v7036 = vunpack.c.0.s8 %v7035
    %v7037 = vlaneseq
    %v7038 = vshrl.u32 %v7037, 7
    %v7039 = vsub.s32 %v7036, %v7038
    %v7040 = vrot.slane %v7032, %v7039
    %v7042 = vunpack.c.l.s4 1934713408
    %v7043 = vunpack.c.0.s8 %v7042
    %v7044 = vlaneseq
    %v7045 = vshrl.u32 %v7044, 7
    %v7046 = vsub.s32 %v7043, %v7045
    %v7047 = vrot.slane %v7033, %v7046
    %v7048 = vcombine.low %v6992, %v7008
    %v7049 = vcombine.high %v6992, %v7008
    %v7051 = vunpack.c.l.s4 1934713408
    %v7052 = vunpack.c.0.s8 %v7051
    %v7053 = vlaneseq
    %v7054 = vshrl.u32 %v7053, 7
    %v7055 = vsub.s32 %v7052, %v7054
    %v7056 = vrot.slane %v7048, %v7055
    %v7058 = vunpack.c.l.s4 1934713408
    %v7059 = vunpack.c.0.s8 %v7058
    %v7060 = vlaneseq
    %v7061 = vshrl.u32 %v7060, 7
    %v7062 = vsub.s32 %v7059, %v7061
    %v7063 = vrot.slane %v7049, %v7062
    %v7064 = vcombine.low %v6999, %v7015
    %v7065 = vcombine.high %v6999, %v7015
    %v7067 = vunpack.c.l.s4 1934713408
    %v7068 = vunpack.c.0.s8 %v7067
    %v7069 = vlaneseq
    %v7070 = vshrl.u32 %v7069, 7
    %v7071 = vsub.s32 %v7068, %v7070
    %v7072 = vrot.slane %v7064, %v7071
    %v7074 = vunpack.c.l.s4 1934713408
    %v7075 = vunpack.c.0.s8 %v7074
    %v7076 = vlaneseq
    %v7077 = vshrl.u32 %v7076, 7
    %v7078 = vsub.s32 %v7075, %v7077
    %v7079 = vrot.slane %v7065, %v7078
    %v7080 = vcombine.low %v7024, %v7056
    %v7081 = vcombine.high %v7024, %v7056
    %v7082 = vcombine.low %v7031, %v7063
    %v7083 = vcombine.high %v7031, %v7063
    %v7084 = vcombine.low %v7040, %v7072
    %v7085 = vcombine.high %v7040, %v7072
    %v7086 = vcombine.low %v7047, %v7079
    %v7087 = vcombine.high %v7047, %v7079
    %v7088 = vcombine.low %v5904, %v5911
    %v7090 = vunpack.c.l.s4 1983009808
    %v7091 = vunpack.c.0.s8 %v7090
    %v7092 = vlaneseq
    %v7093 = vshrl.u32 %v7092, 7
    %v7094 = vsub.s32 %v7091, %v7093
    %v7095 = vrot.slane %v7088, %v7094
    %v7096 = vcombine.low %v5928, %v5929
    %v7098 = vunpack.c.l.s4 1983009808
    %v7099 = vunpack.c.0.s8 %v7098
    %v7100 = vlaneseq
    %v7101 = vshrl.u32 %v7100, 7
    %v7102 = vsub.s32 %v7099, %v7101
    %v7103 = vrot.slane %v7096, %v7102
    %v7104 = vcombine.low %v5920, %v5927
    %v7106 = vunpack.c.l.s4 1983009808
    %v7107 = vunpack.c.0.s8 %v7106
    %v7108 = vlaneseq
    %v7109 = vshrl.u32 %v7108, 7
    %v7110 = vsub.s32 %v7107, %v7109
    %v7111 = vrot.slane %v7104, %v7110
    %v7112 = vcombine.low %v5930, %v5931
    %v7114 = vunpack.c.l.s4 1983009808
    %v7115 = vunpack.c.0.s8 %v7114
    %v7116 = vlaneseq
    %v7117 = vshrl.u32 %v7116, 7
    %v7118 = vsub.s32 %v7115, %v7117
    %v7119 = vrot.slane %v7112, %v7118
    %v7120 = vcombine.low %v7095, %v7103
    %v7121 = vcombine.high %v7095, %v7103
    %v7123 = vunpack.c.l.s4 1934713408
    %v7124 = vunpack.c.0.s8 %v7123
    %v7125 = vlaneseq
    %v7126 = vshrl.u32 %v7125, 7
    %v7127 = vsub.s32 %v7124, %v7126
    %v7128 = vrot.slane %v7120, %v7127
    %v7130 = vunpack.c.l.s4 1934713408
    %v7131 = vunpack.c.0.s8 %v7130
    %v7132 = vlaneseq
    %v7133 = vshrl.u32 %v7132, 7
    %v7134 = vsub.s32 %v7131, %v7133
    %v7135 = vrot.slane %v7121, %v7134
    %v7136 = vcombine.low %v7111, %v7119
    %v7137 = vcombine.high %v7111, %v7119
    %v7139 = vunpack.c.l.s4 1934713408
    %v7140 = vunpack.c.0.s8 %v7139
    %v7141 = vlaneseq
    %v7142 = vshrl.u32 %v7141, 7
    %v7143 = vsub.s32 %v7140, %v7142
    %v7144 = vrot.slane %v7136, %v7143
    %v7146 = vunpack.c.l.s4 1934713408
    %v7147 = vunpack.c.0.s8 %v7146
    %v7148 = vlaneseq
    %v7149 = vshrl.u32 %v7148, 7
    %v7150 = vsub.s32 %v7147, %v7149
    %v7151 = vrot.slane %v7137, %v7150
    %v7152 = vcombine.low %v7128, %v7144
    %v7153 = vcombine.high %v7128, %v7144
    %v7154 = vcombine.low %v7135, %v7151
    %v7155 = vcombine.high %v7135, %v7151
    %v7156 = vcombine.low %v6108, %v6115
    %v7158 = vunpack.c.l.s4 1983009808
    %v7159 = vunpack.c.0.s8 %v7158
    %v7160 = vlaneseq
    %v7161 = vshrl.u32 %v7160, 7
    %v7162 = vsub.s32 %v7159, %v7161
    %v7163 = vrot.slane %v7156, %v7162
    %v7164 = vcombine.low %v6132, %v6133
    %v7166 = vunpack.c.l.s4 1983009808
    %v7167 = vunpack.c.0.s8 %v7166
    %v7168 = vlaneseq
    %v7169 = vshrl.u32 %v7168, 7
    %v7170 = vsub.s32 %v7167, %v7169
    %v7171 = vrot.slane %v7164, %v7170
    %v7172 = vcombine.low %v6124, %v6131
    %v7174 = vunpack.c.l.s4 1983009808
    %v7175 = vunpack.c.0.s8 %v7174
    %v7176 = vlaneseq
    %v7177 = vshrl.u32 %v7176, 7
    %v7178 = vsub.s32 %v7175, %v7177
    %v7179 = vrot.slane %v7172, %v7178
    %v7180 = vcombine.low %v6134, %v6135
    %v7182 = vunpack.c.l.s4 1983009808
    %v7183 = vunpack.c.0.s8 %v7182
    %v7184 = vlaneseq
    %v7185 = vshrl.u32 %v7184, 7
    %v7186 = vsub.s32 %v7183, %v7185
    %v7187 = vrot.slane %v7180, %v7186
    %v7188 = vcombine.low %v7163, %v7171
    %v7189 = vcombine.high %v7163, %v7171
    %v7191 = vunpack.c.l.s4 1934713408
    %v7192 = vunpack.c.0.s8 %v7191
    %v7193 = vlaneseq
    %v7194 = vshrl.u32 %v7193, 7
    %v7195 = vsub.s32 %v7192, %v7194
    %v7196 = vrot.slane %v7188, %v7195
    %v7198 = vunpack.c.l.s4 1934713408
    %v7199 = vunpack.c.0.s8 %v7198
    %v7200 = vlaneseq
    %v7201 = vshrl.u32 %v7200, 7
    %v7202 = vsub.s32 %v7199, %v7201
    %v7203 = vrot.slane %v7189, %v7202
    %v7204 = vcombine.low %v7179, %v7187
    %v7205 = vcombine.high %v7179, %v7187
    %v7207 = vunpack.c.l.s4 1934713408
    %v7208 = vunpack.c.0.s8 %v7207
    %v7209 = vlaneseq
    %v7210 = vshrl.u32 %v7209, 7
    %v7211 = vsub.s32 %v7208, %v7210
    %v7212 = vrot.slane %v7204, %v7211
    %v7214 = vunpack.c.l.s4 1934713408
    %v7215 = vunpack.c.0.s8 %v7214
    %v7216 = vlaneseq
    %v7217 = vshrl.u32 %v7216, 7
    %v7218 = vsub.s32 %v7215, %v7217
    %v7219 = vrot.slane %v7205, %v7218
    %v7220 = vcombine.low %v7196, %v7212
    %v7221 = vcombine.high %v7196, %v7212
    %v7222 = vcombine.low %v7203, %v7219
    %v7223 = vcombine.high %v7203, %v7219
    %v7224 = vcombine.low %v6312, %v6319
    %v7226 = vunpack.c.l.s4 1983009808
    %v7227 = vunpack.c.0.s8 %v7226
    %v7228 = vlaneseq
    %v7229 = vshrl.u32 %v7228, 7
    %v7230 = vsub.s32 %v7227, %v7229
    %v7231 = vrot.slane %v7224, %v7230
    %v7232 = vcombine.low %v6336, %v6337
    %v7234 = vunpack.c.l.s4 1983009808
    %v7235 = vunpack.c.0.s8 %v7234
    %v7236 = vlaneseq
    %v7237 = vshrl.u32 %v7236, 7
    %v7238 = vsub.s32 %v7235, %v7237
    %v7239 = vrot.slane %v7232, %v7238
    %v7240 = vcombine.low %v6328, %v6335
    %v7242 = vunpack.c.l.s4 1983009808
    %v7243 = vunpack.c.0.s8 %v7242
    %v7244 = vlaneseq
    %v7245 = vshrl.u32 %v7244, 7
    %v7246 = vsub.s32 %v7243, %v7245
    %v7247 = vrot.slane %v7240, %v7246
    %v7248 = vcombine.low %v6338, %v6339
    %v7250 = vunpack.c.l.s4 1983009808
    %v7251 = vunpack.c.0.s8 %v7250
    %v7252 = vlaneseq
    %v7253 = vshrl.u32 %v7252, 7
    %v7254 = vsub.s32 %v7251, %v7253
    %v7255 = vrot.slane %v7248, %v7254
    %v7256 = vcombine.low %v7231, %v7239
    %v7257 = vcombine.high %v7231, %v7239
    %v7259 = vunpack.c.l.s4 1934713408
    %v7260 = vunpack.c.0.s8 %v7259
    %v7261 = vlaneseq
    %v7262 = vshrl.u32 %v7261, 7
    %v7263 = vsub.s32 %v7260, %v7262
    %v7264 = vrot.slane %v7256, %v7263
    %v7266 = vunpack.c.l.s4 1934713408
    %v7267 = vunpack.c.0.s8 %v7266
    %v7268 = vlaneseq
    %v7269 = vshrl.u32 %v7268, 7
    %v7270 = vsub.s32 %v7267, %v7269
    %v7271 = vrot.slane %v7257, %v7270
    %v7272 = vcombine.low %v7247, %v7255
    %v7273 = vcombine.high %v7247, %v7255
    %v7275 = vunpack.c.l.s4 1934713408
    %v7276 = vunpack.c.0.s8 %v7275
    %v7277 = vlaneseq
    %v7278 = vshrl.u32 %v7277, 7
    %v7279 = vsub.s32 %v7276, %v7278
    %v7280 = vrot.slane %v7272, %v7279
    %v7282 = vunpack.c.l.s4 1934713408
    %v7283 = vunpack.c.0.s8 %v7282
    %v7284 = vlaneseq
    %v7285 = vshrl.u32 %v7284, 7
    %v7286 = vsub.s32 %v7283, %v7285
    %v7287 = vrot.slane %v7273, %v7286
    %v7288 = vcombine.low %v7264, %v7280
    %v7289 = vcombine.high %v7264, %v7280
    %v7290 = vcombine.low %v7271, %v7287
    %v7291 = vcombine.high %v7271, %v7287
    %v7292 = vcombine.low %v6516, %v6523
    %v7294 = vunpack.c.l.s4 1983009808
    %v7295 = vunpack.c.0.s8 %v7294
    %v7296 = vlaneseq
    %v7297 = vshrl.u32 %v7296, 7
    %v7298 = vsub.s32 %v7295, %v7297
    %v7299 = vrot.slane %v7292, %v7298
    %v7300 = vcombine.low %v6540, %v6541
    %v7302 = vunpack.c.l.s4 1983009808
    %v7303 = vunpack.c.0.s8 %v7302
    %v7304 = vlaneseq
    %v7305 = vshrl.u32 %v7304, 7
    %v7306 = vsub.s32 %v7303, %v7305
    %v7307 = vrot.slane %v7300, %v7306
    %v7308 = vcombine.low %v6532, %v6539
    %v7310 = vunpack.c.l.s4 1983009808
    %v7311 = vunpack.c.0.s8 %v7310
    %v7312 = vlaneseq
    %v7313 = vshrl.u32 %v7312, 7
    %v7314 = vsub.s32 %v7311, %v7313
    %v7315 = vrot.slane %v7308, %v7314
    %v7316 = vcombine.low %v6542, %v6543
    %v7318 = vunpack.c.l.s4 1983009808
    %v7319 = vunpack.c.0.s8 %v7318
    %v7320 = vlaneseq
    %v7321 = vshrl.u32 %v7320, 7
    %v7322 = vsub.s32 %v7319, %v7321
    %v7323 = vrot.slane %v7316, %v7322
    %v7324 = vcombine.low %v7299, %v7307
    %v7325 = vcombine.high %v7299, %v7307
    %v7327 = vunpack.c.l.s4 1934713408
    %v7328 = vunpack.c.0.s8 %v7327
    %v7329 = vlaneseq
    %v7330 = vshrl.u32 %v7329, 7
    %v7331 = vsub.s32 %v7328, %v7330
    %v7332 = vrot.slane %v7324, %v7331
    %v7334 = vunpack.c.l.s4 1934713408
    %v7335 = vunpack.c.0.s8 %v7334
    %v7336 = vlaneseq
    %v7337 = vshrl.u32 %v7336, 7
    %v7338 = vsub.s32 %v7335, %v7337
    %v7339 = vrot.slane %v7325, %v7338
    %v7340 = vcombine.low %v7315, %v7323
    %v7341 = vcombine.high %v7315, %v7323
    %v7343 = vunpack.c.l.s4 1934713408
    %v7344 = vunpack.c.0.s8 %v7343
    %v7345 = vlaneseq
    %v7346 = vshrl.u32 %v7345, 7
    %v7347 = vsub.s32 %v7344, %v7346
    %v7348 = vrot.slane %v7340, %v7347
    %v7350 = vunpack.c.l.s4 1934713408
    %v7351 = vunpack.c.0.s8 %v7350
    %v7352 = vlaneseq
    %v7353 = vshrl.u32 %v7352, 7
    %v7354 = vsub.s32 %v7351, %v7353
    %v7355 = vrot.slane %v7341, %v7354
    %v7356 = vcombine.low %v7332, %v7348
    %v7357 = vcombine.high %v7332, %v7348
    %v7358 = vcombine.low %v7339, %v7355
    %v7359 = vcombine.high %v7339, %v7355
    %v7361 = vsel %vm1967, %v6672, 0
    %v7364 = vsel %vm1967, %v6676, 0
    %7366 = vmatprep.subr.mxu0 0.0
    %7367 = vmatpush1.xpose.msra.mxu0 0.0
    %7368 = vmatprep.subr.mxu0 0.0
    %7369 = vmatpush1.xpose.msra.mxu0 0.0
    %7370 = vmatprep.subr.mxu0 0.0
    %7371 = vmatpush1.xpose.msra.mxu0 0.0
    %7372 = vmatprep.subr.mxu0 0.0
    %7373 = vmatpush1.xpose.msra.mxu0 0.0
    %7374 = vmatprep.subr.mxu0 0.0
    %7375 = vmatpush1.xpose.msra.mxu0 0.0
    %7376 = vmatprep.subr.mxu0 0.0
    %7377 = vmatpush1.xpose.msra.mxu0 0.0
    %7378 = vmatprep.subr.mxu0 0.0
    %7379 = vmatpush1.xpose.msra.mxu0 0.0
    %7380 = vmatprep.subr.mxu0 0.0
    %7381 = vmatpush1.xpose.msra.mxu0 0.0
    %7382 = vmatprep.subr.mxu0 0.0
    %7383 = vmatpush1.xpose.msra.mxu0 0.0
    %7384 = vmatprep.subr.mxu0 0.0
    %7385 = vmatpush1.xpose.msra.mxu0 0.0
    %7386 = vmatprep.subr.mxu0 0.0
    %7387 = vmatpush1.xpose.msra.mxu0 0.0
    %7388 = vmatprep.subr.mxu0 0.0
    %7389 = vmatpush1.xpose.msra.mxu0 0.0
    %7390 = vmatprep.subr.mxu0 0.0
    %7391 = vmatpush1.xpose.msra.mxu0 0.0
    %7392 = vmatprep.subr.mxu0 0.0
    %7393 = vmatpush1.xpose.msra.mxu0 0.0
    %7394 = vmatprep.subr.mxu0 0.0
    %7395 = vmatpush1.xpose.msra.mxu0 0.0
    %7396 = vmatprep.subr.mxu0 0.0
    %7397 = vmatpush1.xpose.msra.mxu0 %v7364
    %7398 = vmatprep.subr.mxu0 0.0
    %7399 = vmatpush2.xpose.msra.mxu0 0.0
    %7400 = vmatprep.subr.mxu0 0.0
    %7401 = vmatpush2.xpose.msra.mxu0 0.0
    %7402 = vmatprep.subr.mxu0 0.0
    %7403 = vmatpush2.xpose.msra.mxu0 0.0
    %7404 = vmatprep.subr.mxu0 0.0
    %7405 = vmatpush2.xpose.msra.mxu0 0.0
    %7406 = vmatprep.subr.mxu0 0.0
    %7407 = vmatpush2.xpose.msra.mxu0 0.0
    %7408 = vmatprep.subr.mxu0 0.0
    %7409 = vmatpush2.xpose.msra.mxu0 0.0
    %7410 = vmatprep.subr.mxu0 0.0
    %7411 = vmatpush2.xpose.msra.mxu0 0.0
    %7412 = vmatprep.subr.mxu0 0.0
    %7413 = vmatpush2.xpose.msra.mxu0 0.0
    %7414 = vmatprep.subr.mxu0 0.0
    %7415 = vmatpush2.xpose.msra.mxu0 0.0
    %7416 = vmatprep.subr.mxu0 0.0
    %7417 = vmatpush2.xpose.msra.mxu0 0.0
    %7418 = vmatprep.subr.mxu0 0.0
    %7419 = vmatpush2.xpose.msra.mxu0 0.0
    %7420 = vmatprep.subr.mxu0 0.0
    %7421 = vmatpush2.xpose.msra.mxu0 0.0
    %7422 = vmatprep.subr.mxu0 0.0
    %7423 = vmatpush2.xpose.msra.mxu0 0.0
    %7424 = vmatprep.subr.mxu0 0.0
    %7425 = vmatpush2.xpose.msra.mxu0 0.0
    %7426 = vmatprep.subr.mxu0 0.0
    %7427 = vmatpush2.xpose.msra.mxu0 0.0
    %7428 = vmatprep.subr.mxu0 0.0
    %7429 = vmatpush2.xpose.msra.mxu0 0.0
    %7430 = vmatprep.mubr.f32.mxu0 0.0
    %7431 = vmatmul.mubr.f32.gmra.mxu0 %v7361
    %v7432 = vpop.f32.mrf.mxu0
    %v7433 = vadd.f32 %v80, %v7432
    %v7434 = vpop.f32.mrf.mxu0
    %7435 = vdwg.mxu0
    %v7437 = vsel %vm1967, %v6808, 0
    %v7440 = vsel %vm1967, %v6812, 0
    %7442 = vmatprep.subr.mxu0 0.0
    %7443 = vmatpush1.xpose.msra.mxu0 0.0
    %7444 = vmatprep.subr.mxu0 0.0
    %7445 = vmatpush1.xpose.msra.mxu0 0.0
    %7446 = vmatprep.subr.mxu0 0.0
    %7447 = vmatpush1.xpose.msra.mxu0 0.0
    %7448 = vmatprep.subr.mxu0 0.0
    %7449 = vmatpush1.xpose.msra.mxu0 0.0
    %7450 = vmatprep.subr.mxu0 0.0
    %7451 = vmatpush1.xpose.msra.mxu0 0.0
    %7452 = vmatprep.subr.mxu0 0.0
    %7453 = vmatpush1.xpose.msra.mxu0 0.0
    %7454 = vmatprep.subr.mxu0 0.0
    %7455 = vmatpush1.xpose.msra.mxu0 0.0
    %7456 = vmatprep.subr.mxu0 0.0
    %7457 = vmatpush1.xpose.msra.mxu0 0.0
    %7458 = vmatprep.subr.mxu0 0.0
    %7459 = vmatpush1.xpose.msra.mxu0 0.0
    %7460 = vmatprep.subr.mxu0 0.0
    %7461 = vmatpush1.xpose.msra.mxu0 0.0
    %7462 = vmatprep.subr.mxu0 0.0
    %7463 = vmatpush1.xpose.msra.mxu0 0.0
    %7464 = vmatprep.subr.mxu0 0.0
    %7465 = vmatpush1.xpose.msra.mxu0 0.0
    %7466 = vmatprep.subr.mxu0 0.0
    %7467 = vmatpush1.xpose.msra.mxu0 0.0
    %7468 = vmatprep.subr.mxu0 0.0
    %7469 = vmatpush1.xpose.msra.mxu0 0.0
    %7470 = vmatprep.subr.mxu0 0.0
    %7471 = vmatpush1.xpose.msra.mxu0 0.0
    %7472 = vmatprep.subr.mxu0 0.0
    %7473 = vmatpush1.xpose.msra.mxu0 %v7440
    %7474 = vmatprep.subr.mxu0 0.0
    %7475 = vmatpush2.xpose.msra.mxu0 0.0
    %7476 = vmatprep.subr.mxu0 0.0
    %7477 = vmatpush2.xpose.msra.mxu0 0.0
    %7478 = vmatprep.subr.mxu0 0.0
    %7479 = vmatpush2.xpose.msra.mxu0 0.0
    %7480 = vmatprep.subr.mxu0 0.0
    %7481 = vmatpush2.xpose.msra.mxu0 0.0
    %7482 = vmatprep.subr.mxu0 0.0
    %7483 = vmatpush2.xpose.msra.mxu0 0.0
    %7484 = vmatprep.subr.mxu0 0.0
    %7485 = vmatpush2.xpose.msra.mxu0 0.0
    %7486 = vmatprep.subr.mxu0 0.0
    %7487 = vmatpush2.xpose.msra.mxu0 0.0
    %7488 = vmatprep.subr.mxu0 0.0
    %7489 = vmatpush2.xpose.msra.mxu0 0.0
    %7490 = vmatprep.subr.mxu0 0.0
    %7491 = vmatpush2.xpose.msra.mxu0 0.0
    %7492 = vmatprep.subr.mxu0 0.0
    %7493 = vmatpush2.xpose.msra.mxu0 0.0
    %7494 = vmatprep.subr.mxu0 0.0
    %7495 = vmatpush2.xpose.msra.mxu0 0.0
    %7496 = vmatprep.subr.mxu0 0.0
    %7497 = vmatpush2.xpose.msra.mxu0 0.0
    %7498 = vmatprep.subr.mxu0 0.0
    %7499 = vmatpush2.xpose.msra.mxu0 0.0
    %7500 = vmatprep.subr.mxu0 0.0
    %7501 = vmatpush2.xpose.msra.mxu0 0.0
    %7502 = vmatprep.subr.mxu0 0.0
    %7503 = vmatpush2.xpose.msra.mxu0 0.0
    %7504 = vmatprep.subr.mxu0 0.0
    %7505 = vmatpush2.xpose.msra.mxu0 0.0
    %7506 = vmatprep.mubr.f32.mxu0 0.0
    %7507 = vmatmul.mubr.f32.gmra.mxu0 %v7437
    %v7508 = vpop.f32.mrf.mxu0
    %v7509 = vadd.f32 %v80, %v7508
    %v7510 = vpop.f32.mrf.mxu0
    %7511 = vdwg.mxu0
    %v7513 = vsel %vm1967, %v6944, 0
    %v7516 = vsel %vm1967, %v6948, 0
    %7518 = vmatprep.subr.mxu0 0.0
    %7519 = vmatpush1.xpose.msra.mxu0 0.0
    %7520 = vmatprep.subr.mxu0 0.0
    %7521 = vmatpush1.xpose.msra.mxu0 0.0
    %7522 = vmatprep.subr.mxu0 0.0
    %7523 = vmatpush1.xpose.msra.mxu0 0.0
    %7524 = vmatprep.subr.mxu0 0.0
    %7525 = vmatpush1.xpose.msra.mxu0 0.0
    %7526 = vmatprep.subr.mxu0 0.0
    %7527 = vmatpush1.xpose.msra.mxu0 0.0
    %7528 = vmatprep.subr.mxu0 0.0
    %7529 = vmatpush1.xpose.msra.mxu0 0.0
    %7530 = vmatprep.subr.mxu0 0.0
    %7531 = vmatpush1.xpose.msra.mxu0 0.0
    %7532 = vmatprep.subr.mxu0 0.0
    %7533 = vmatpush1.xpose.msra.mxu0 0.0
    %7534 = vmatprep.subr.mxu0 0.0
    %7535 = vmatpush1.xpose.msra.mxu0 0.0
    %7536 = vmatprep.subr.mxu0 0.0
    %7537 = vmatpush1.xpose.msra.mxu0 0.0
    %7538 = vmatprep.subr.mxu0 0.0
    %7539 = vmatpush1.xpose.msra.mxu0 0.0
    %7540 = vmatprep.subr.mxu0 0.0
    %7541 = vmatpush1.xpose.msra.mxu0 0.0
    %7542 = vmatprep.subr.mxu0 0.0
    %7543 = vmatpush1.xpose.msra.mxu0 0.0
    %7544 = vmatprep.subr.mxu0 0.0
    %7545 = vmatpush1.xpose.msra.mxu0 0.0
    %7546 = vmatprep.subr.mxu0 0.0
    %7547 = vmatpush1.xpose.msra.mxu0 0.0
    %7548 = vmatprep.subr.mxu0 0.0
    %7549 = vmatpush1.xpose.msra.mxu0 %v7516
    %7550 = vmatprep.subr.mxu0 0.0
    %7551 = vmatpush2.xpose.msra.mxu0 0.0
    %7552 = vmatprep.subr.mxu0 0.0
    %7553 = vmatpush2.xpose.msra.mxu0 0.0
    %7554 = vmatprep.subr.mxu0 0.0
    %7555 = vmatpush2.xpose.msra.mxu0 0.0
    %7556 = vmatprep.subr.mxu0 0.0
    %7557 = vmatpush2.xpose.msra.mxu0 0.0
    %7558 = vmatprep.subr.mxu0 0.0
    %7559 = vmatpush2.xpose.msra.mxu0 0.0
    %7560 = vmatprep.subr.mxu0 0.0
    %7561 = vmatpush2.xpose.msra.mxu0 0.0
    %7562 = vmatprep.subr.mxu0 0.0
    %7563 = vmatpush2.xpose.msra.mxu0 0.0
    %7564 = vmatprep.subr.mxu0 0.0
    %7565 = vmatpush2.xpose.msra.mxu0 0.0
    %7566 = vmatprep.subr.mxu0 0.0
    %7567 = vmatpush2.xpose.msra.mxu0 0.0
    %7568 = vmatprep.subr.mxu0 0.0
    %7569 = vmatpush2.xpose.msra.mxu0 0.0
    %7570 = vmatprep.subr.mxu0 0.0
    %7571 = vmatpush2.xpose.msra.mxu0 0.0
    %7572 = vmatprep.subr.mxu0 0.0
    %7573 = vmatpush2.xpose.msra.mxu0 0.0
    %7574 = vmatprep.subr.mxu0 0.0
    %7575 = vmatpush2.xpose.msra.mxu0 0.0
    %7576 = vmatprep.subr.mxu0 0.0
    %7577 = vmatpush2.xpose.msra.mxu0 0.0
    %7578 = vmatprep.subr.mxu0 0.0
    %7579 = vmatpush2.xpose.msra.mxu0 0.0
    %7580 = vmatprep.subr.mxu0 0.0
    %7581 = vmatpush2.xpose.msra.mxu0 0.0
    %7582 = vmatprep.mubr.f32.mxu0 0.0
    %7583 = vmatmul.mubr.f32.gmra.mxu0 %v7513
    %v7584 = vpop.f32.mrf.mxu0
    %v7585 = vadd.f32 %v80, %v7584
    %v7586 = vpop.f32.mrf.mxu0
    %7587 = vdwg.mxu0
    %v7589 = vsel %vm1967, %v7080, 0
    %v7592 = vsel %vm1967, %v7084, 0
    %7594 = vmatprep.subr.mxu0 0.0
    %7595 = vmatpush1.xpose.msra.mxu0 0.0
    %7596 = vmatprep.subr.mxu0 0.0
    %7597 = vmatpush1.xpose.msra.mxu0 0.0
    %7598 = vmatprep.subr.mxu0 0.0
    %7599 = vmatpush1.xpose.msra.mxu0 0.0
    %7600 = vmatprep.subr.mxu0 0.0
    %7601 = vmatpush1.xpose.msra.mxu0 0.0
    %7602 = vmatprep.subr.mxu0 0.0
    %7603 = vmatpush1.xpose.msra.mxu0 0.0
    %7604 = vmatprep.subr.mxu0 0.0
    %7605 = vmatpush1.xpose.msra.mxu0 0.0
    %7606 = vmatprep.subr.mxu0 0.0
    %7607 = vmatpush1.xpose.msra.mxu0 0.0
    %7608 = vmatprep.subr.mxu0 0.0
    %7609 = vmatpush1.xpose.msra.mxu0 0.0
    %7610 = vmatprep.subr.mxu0 0.0
    %7611 = vmatpush1.xpose.msra.mxu0 0.0
    %7612 = vmatprep.subr.mxu0 0.0
    %7613 = vmatpush1.xpose.msra.mxu0 0.0
    %7614 = vmatprep.subr.mxu0 0.0
    %7615 = vmatpush1.xpose.msra.mxu0 0.0
    %7616 = vmatprep.subr.mxu0 0.0
    %7617 = vmatpush1.xpose.msra.mxu0 0.0
    %7618 = vmatprep.subr.mxu0 0.0
    %7619 = vmatpush1.xpose.msra.mxu0 0.0
    %7620 = vmatprep.subr.mxu0 0.0
    %7621 = vmatpush1.xpose.msra.mxu0 0.0
    %7622 = vmatprep.subr.mxu0 0.0
    %7623 = vmatpush1.xpose.msra.mxu0 0.0
    %7624 = vmatprep.subr.mxu0 0.0
    %7625 = vmatpush1.xpose.msra.mxu0 %v7592
    %7626 = vmatprep.subr.mxu0 0.0
    %7627 = vmatpush2.xpose.msra.mxu0 0.0
    %7628 = vmatprep.subr.mxu0 0.0
    %7629 = vmatpush2.xpose.msra.mxu0 0.0
    %7630 = vmatprep.subr.mxu0 0.0
    %7631 = vmatpush2.xpose.msra.mxu0 0.0
    %7632 = vmatprep.subr.mxu0 0.0
    %7633 = vmatpush2.xpose.msra.mxu0 0.0
    %7634 = vmatprep.subr.mxu0 0.0
    %7635 = vmatpush2.xpose.msra.mxu0 0.0
    %7636 = vmatprep.subr.mxu0 0.0
    %7637 = vmatpush2.xpose.msra.mxu0 0.0
    %7638 = vmatprep.subr.mxu0 0.0
    %7639 = vmatpush2.xpose.msra.mxu0 0.0
    %7640 = vmatprep.subr.mxu0 0.0
    %7641 = vmatpush2.xpose.msra.mxu0 0.0
    %7642 = vmatprep.subr.mxu0 0.0
    %7643 = vmatpush2.xpose.msra.mxu0 0.0
    %7644 = vmatprep.subr.mxu0 0.0
    %7645 = vmatpush2.xpose.msra.mxu0 0.0
    %7646 = vmatprep.subr.mxu0 0.0
    %7647 = vmatpush2.xpose.msra.mxu0 0.0
    %7648 = vmatprep.subr.mxu0 0.0
    %7649 = vmatpush2.xpose.msra.mxu0 0.0
    %7650 = vmatprep.subr.mxu0 0.0
    %7651 = vmatpush2.xpose.msra.mxu0 0.0
    %7652 = vmatprep.subr.mxu0 0.0
    %7653 = vmatpush2.xpose.msra.mxu0 0.0
    %7654 = vmatprep.subr.mxu0 0.0
    %7655 = vmatpush2.xpose.msra.mxu0 0.0
    %7656 = vmatprep.subr.mxu0 0.0
    %7657 = vmatpush2.xpose.msra.mxu0 0.0
    %7658 = vmatprep.mubr.f32.mxu0 0.0
    %7659 = vmatmul.mubr.f32.gmra.mxu0 %v7589
    %v7660 = vpop.f32.mrf.mxu0
    %v7661 = vadd.f32 %v80, %v7660
    %v7662 = vpop.f32.mrf.mxu0
    %7663 = vdwg.mxu0
    %v7665 = vsel %vm1967, %v6673, 0
    %v7668 = vsel %vm1967, %v6677, 0
    %7670 = vmatprep.subr.mxu0 0.0
    %7671 = vmatpush1.xpose.msra.mxu0 0.0
    %7672 = vmatprep.subr.mxu0 0.0
    %7673 = vmatpush1.xpose.msra.mxu0 0.0
    %7674 = vmatprep.subr.mxu0 0.0
    %7675 = vmatpush1.xpose.msra.mxu0 0.0
    %7676 = vmatprep.subr.mxu0 0.0
    %7677 = vmatpush1.xpose.msra.mxu0 0.0
    %7678 = vmatprep.subr.mxu0 0.0
    %7679 = vmatpush1.xpose.msra.mxu0 0.0
    %7680 = vmatprep.subr.mxu0 0.0
    %7681 = vmatpush1.xpose.msra.mxu0 0.0
    %7682 = vmatprep.subr.mxu0 0.0
    %7683 = vmatpush1.xpose.msra.mxu0 0.0
    %7684 = vmatprep.subr.mxu0 0.0
    %7685 = vmatpush1.xpose.msra.mxu0 0.0
    %7686 = vmatprep.subr.mxu0 0.0
    %7687 = vmatpush1.xpose.msra.mxu0 0.0
    %7688 = vmatprep.subr.mxu0 0.0
    %7689 = vmatpush1.xpose.msra.mxu0 0.0
    %7690 = vmatprep.subr.mxu0 0.0
    %7691 = vmatpush1.xpose.msra.mxu0 0.0
    %7692 = vmatprep.subr.mxu0 0.0
    %7693 = vmatpush1.xpose.msra.mxu0 0.0
    %7694 = vmatprep.subr.mxu0 0.0
    %7695 = vmatpush1.xpose.msra.mxu0 0.0
    %7696 = vmatprep.subr.mxu0 0.0
    %7697 = vmatpush1.xpose.msra.mxu0 0.0
    %7698 = vmatprep.subr.mxu0 0.0
    %7699 = vmatpush1.xpose.msra.mxu0 0.0
    %7700 = vmatprep.subr.mxu0 0.0
    %7701 = vmatpush1.xpose.msra.mxu0 %v7668
    %7702 = vmatprep.subr.mxu0 0.0
    %7703 = vmatpush2.xpose.msra.mxu0 0.0
    %7704 = vmatprep.subr.mxu0 0.0
    %7705 = vmatpush2.xpose.msra.mxu0 0.0
    %7706 = vmatprep.subr.mxu0 0.0
    %7707 = vmatpush2.xpose.msra.mxu0 0.0
    %7708 = vmatprep.subr.mxu0 0.0
    %7709 = vmatpush2.xpose.msra.mxu0 0.0
    %7710 = vmatprep.subr.mxu0 0.0
    %7711 = vmatpush2.xpose.msra.mxu0 0.0
    %7712 = vmatprep.subr.mxu0 0.0
    %7713 = vmatpush2.xpose.msra.mxu0 0.0
    %7714 = vmatprep.subr.mxu0 0.0
    %7715 = vmatpush2.xpose.msra.mxu0 0.0
    %7716 = vmatprep.subr.mxu0 0.0
    %7717 = vmatpush2.xpose.msra.mxu0 0.0
    %7718 = vmatprep.subr.mxu0 0.0
    %7719 = vmatpush2.xpose.msra.mxu0 0.0
    %7720 = vmatprep.subr.mxu0 0.0
    %7721 = vmatpush2.xpose.msra.mxu0 0.0
    %7722 = vmatprep.subr.mxu0 0.0
    %7723 = vmatpush2.xpose.msra.mxu0 0.0
    %7724 = vmatprep.subr.mxu0 0.0
    %7725 = vmatpush2.xpose.msra.mxu0 0.0
    %7726 = vmatprep.subr.mxu0 0.0
    %7727 = vmatpush2.xpose.msra.mxu0 0.0
    %7728 = vmatprep.subr.mxu0 0.0
    %7729 = vmatpush2.xpose.msra.mxu0 0.0
    %7730 = vmatprep.subr.mxu0 0.0
    %7731 = vmatpush2.xpose.msra.mxu0 0.0
    %7732 = vmatprep.subr.mxu0 0.0
    %7733 = vmatpush2.xpose.msra.mxu0 0.0
    %7734 = vmatprep.mubr.f32.mxu0 0.0
    %7735 = vmatmul.mubr.f32.gmra.mxu0 %v7665
    %v7736 = vpop.f32.mrf.mxu0
    %v7737 = vadd.f32 %v80, %v7736
    %v7738 = vpop.f32.mrf.mxu0
    %7739 = vdwg.mxu0
    %v7741 = vsel %vm1967, %v6809, 0
    %v7744 = vsel %vm1967, %v6813, 0
    %7746 = vmatprep.subr.mxu0 0.0
    %7747 = vmatpush1.xpose.msra.mxu0 0.0
    %7748 = vmatprep.subr.mxu0 0.0
    %7749 = vmatpush1.xpose.msra.mxu0 0.0
    %7750 = vmatprep.subr.mxu0 0.0
    %7751 = vmatpush1.xpose.msra.mxu0 0.0
    %7752 = vmatprep.subr.mxu0 0.0
    %7753 = vmatpush1.xpose.msra.mxu0 0.0
    %7754 = vmatprep.subr.mxu0 0.0
    %7755 = vmatpush1.xpose.msra.mxu0 0.0
    %7756 = vmatprep.subr.mxu0 0.0
    %7757 = vmatpush1.xpose.msra.mxu0 0.0
    %7758 = vmatprep.subr.mxu0 0.0
    %7759 = vmatpush1.xpose.msra.mxu0 0.0
    %7760 = vmatprep.subr.mxu0 0.0
    %7761 = vmatpush1.xpose.msra.mxu0 0.0
    %7762 = vmatprep.subr.mxu0 0.0
    %7763 = vmatpush1.xpose.msra.mxu0 0.0
    %7764 = vmatprep.subr.mxu0 0.0
    %7765 = vmatpush1.xpose.msra.mxu0 0.0
    %7766 = vmatprep.subr.mxu0 0.0
    %7767 = vmatpush1.xpose.msra.mxu0 0.0
    %7768 = vmatprep.subr.mxu0 0.0
    %7769 = vmatpush1.xpose.msra.mxu0 0.0
    %7770 = vmatprep.subr.mxu0 0.0
    %7771 = vmatpush1.xpose.msra.mxu0 0.0
    %7772 = vmatprep.subr.mxu0 0.0
    %7773 = vmatpush1.xpose.msra.mxu0 0.0
    %7774 = vmatprep.subr.mxu0 0.0
    %7775 = vmatpush1.xpose.msra.mxu0 0.0
    %7776 = vmatprep.subr.mxu0 0.0
    %7777 = vmatpush1.xpose.msra.mxu0 %v7744
    %7778 = vmatprep.subr.mxu0 0.0
    %7779 = vmatpush2.xpose.msra.mxu0 0.0
    %7780 = vmatprep.subr.mxu0 0.0
    %7781 = vmatpush2.xpose.msra.mxu0 0.0
    %7782 = vmatprep.subr.mxu0 0.0
    %7783 = vmatpush2.xpose.msra.mxu0 0.0
    %7784 = vmatprep.subr.mxu0 0.0
    %7785 = vmatpush2.xpose.msra.mxu0 0.0
    %7786 = vmatprep.subr.mxu0 0.0
    %7787 = vmatpush2.xpose.msra.mxu0 0.0
    %7788 = vmatprep.subr.mxu0 0.0
    %7789 = vmatpush2.xpose.msra.mxu0 0.0
    %7790 = vmatprep.subr.mxu0 0.0
    %7791 = vmatpush2.xpose.msra.mxu0 0.0
    %7792 = vmatprep.subr.mxu0 0.0
    %7793 = vmatpush2.xpose.msra.mxu0 0.0
    %7794 = vmatprep.subr.mxu0 0.0
    %7795 = vmatpush2.xpose.msra.mxu0 0.0
    %7796 = vmatprep.subr.mxu0 0.0
    %7797 = vmatpush2.xpose.msra.mxu0 0.0
    %7798 = vmatprep.subr.mxu0 0.0
    %7799 = vmatpush2.xpose.msra.mxu0 0.0
    %7800 = vmatprep.subr.mxu0 0.0
    %7801 = vmatpush2.xpose.msra.mxu0 0.0
    %7802 = vmatprep.subr.mxu0 0.0
    %7803 = vmatpush2.xpose.msra.mxu0 0.0
    %7804 = vmatprep.subr.mxu0 0.0
    %7805 = vmatpush2.xpose.msra.mxu0 0.0
    %7806 = vmatprep.subr.mxu0 0.0
    %7807 = vmatpush2.xpose.msra.mxu0 0.0
    %7808 = vmatprep.subr.mxu0 0.0
    %7809 = vmatpush2.xpose.msra.mxu0 0.0
    %7810 = vmatprep.mubr.f32.mxu0 0.0
    %7811 = vmatmul.mubr.f32.gmra.mxu0 %v7741
    %v7812 = vpop.f32.mrf.mxu0
    %v7813 = vadd.f32 %v80, %v7812
    %v7814 = vpop.f32.mrf.mxu0
    %7815 = vdwg.mxu0
    %v7817 = vsel %vm1967, %v6945, 0
    %v7820 = vsel %vm1967, %v6949, 0
    %7822 = vmatprep.subr.mxu0 0.0
    %7823 = vmatpush1.xpose.msra.mxu0 0.0
    %7824 = vmatprep.subr.mxu0 0.0
    %7825 = vmatpush1.xpose.msra.mxu0 0.0
    %7826 = vmatprep.subr.mxu0 0.0
    %7827 = vmatpush1.xpose.msra.mxu0 0.0
    %7828 = vmatprep.subr.mxu0 0.0
    %7829 = vmatpush1.xpose.msra.mxu0 0.0
    %7830 = vmatprep.subr.mxu0 0.0
    %7831 = vmatpush1.xpose.msra.mxu0 0.0
    %7832 = vmatprep.subr.mxu0 0.0
    %7833 = vmatpush1.xpose.msra.mxu0 0.0
    %7834 = vmatprep.subr.mxu0 0.0
    %7835 = vmatpush1.xpose.msra.mxu0 0.0
    %7836 = vmatprep.subr.mxu0 0.0
    %7837 = vmatpush1.xpose.msra.mxu0 0.0
    %7838 = vmatprep.subr.mxu0 0.0
    %7839 = vmatpush1.xpose.msra.mxu0 0.0
    %7840 = vmatprep.subr.mxu0 0.0
    %7841 = vmatpush1.xpose.msra.mxu0 0.0
    %7842 = vmatprep.subr.mxu0 0.0
    %7843 = vmatpush1.xpose.msra.mxu0 0.0
    %7844 = vmatprep.subr.mxu0 0.0
    %7845 = vmatpush1.xpose.msra.mxu0 0.0
    %7846 = vmatprep.subr.mxu0 0.0
    %7847 = vmatpush1.xpose.msra.mxu0 0.0
    %7848 = vmatprep.subr.mxu0 0.0
    %7849 = vmatpush1.xpose.msra.mxu0 0.0
    %7850 = vmatprep.subr.mxu0 0.0
    %7851 = vmatpush1.xpose.msra.mxu0 0.0
    %7852 = vmatprep.subr.mxu0 0.0
    %7853 = vmatpush1.xpose.msra.mxu0 %v7820
    %7854 = vmatprep.subr.mxu0 0.0
    %7855 = vmatpush2.xpose.msra.mxu0 0.0
    %7856 = vmatprep.subr.mxu0 0.0
    %7857 = vmatpush2.xpose.msra.mxu0 0.0
    %7858 = vmatprep.subr.mxu0 0.0
    %7859 = vmatpush2.xpose.msra.mxu0 0.0
    %7860 = vmatprep.subr.mxu0 0.0
    %7861 = vmatpush2.xpose.msra.mxu0 0.0
    %7862 = vmatprep.subr.mxu0 0.0
    %7863 = vmatpush2.xpose.msra.mxu0 0.0
    %7864 = vmatprep.subr.mxu0 0.0
    %7865 = vmatpush2.xpose.msra.mxu0 0.0
    %7866 = vmatprep.subr.mxu0 0.0
    %7867 = vmatpush2.xpose.msra.mxu0 0.0
    %7868 = vmatprep.subr.mxu0 0.0
    %7869 = vmatpush2.xpose.msra.mxu0 0.0
    %7870 = vmatprep.subr.mxu0 0.0
    %7871 = vmatpush2.xpose.msra.mxu0 0.0
    %7872 = vmatprep.subr.mxu0 0.0
    %7873 = vmatpush2.xpose.msra.mxu0 0.0
    %7874 = vmatprep.subr.mxu0 0.0
    %7875 = vmatpush2.xpose.msra.mxu0 0.0
    %7876 = vmatprep.subr.mxu0 0.0
    %7877 = vmatpush2.xpose.msra.mxu0 0.0
    %7878 = vmatprep.subr.mxu0 0.0
    %7879 = vmatpush2.xpose.msra.mxu0 0.0
    %7880 = vmatprep.subr.mxu0 0.0
    %7881 = vmatpush2.xpose.msra.mxu0 0.0
    %7882 = vmatprep.subr.mxu0 0.0
    %7883 = vmatpush2.xpose.msra.mxu0 0.0
    %7884 = vmatprep.subr.mxu0 0.0
    %7885 = vmatpush2.xpose.msra.mxu0 0.0
    %7886 = vmatprep.mubr.f32.mxu0 0.0
    %7887 = vmatmul.mubr.f32.gmra.mxu0 %v7817
    %v7888 = vpop.f32.mrf.mxu0
    %v7889 = vadd.f32 %v80, %v7888
    %v7890 = vpop.f32.mrf.mxu0
    %7891 = vdwg.mxu0
    %v7893 = vsel %vm1967, %v7081, 0
    %v7896 = vsel %vm1967, %v7085, 0
    %7898 = vmatprep.subr.mxu0 0.0
    %7899 = vmatpush1.xpose.msra.mxu0 0.0
    %7900 = vmatprep.subr.mxu0 0.0
    %7901 = vmatpush1.xpose.msra.mxu0 0.0
    %7902 = vmatprep.subr.mxu0 0.0
    %7903 = vmatpush1.xpose.msra.mxu0 0.0
    %7904 = vmatprep.subr.mxu0 0.0
    %7905 = vmatpush1.xpose.msra.mxu0 0.0
    %7906 = vmatprep.subr.mxu0 0.0
    %7907 = vmatpush1.xpose.msra.mxu0 0.0
    %7908 = vmatprep.subr.mxu0 0.0
    %7909 = vmatpush1.xpose.msra.mxu0 0.0
    %7910 = vmatprep.subr.mxu0 0.0
    %7911 = vmatpush1.xpose.msra.mxu0 0.0
    %7912 = vmatprep.subr.mxu0 0.0
    %7913 = vmatpush1.xpose.msra.mxu0 0.0
    %7914 = vmatprep.subr.mxu0 0.0
    %7915 = vmatpush1.xpose.msra.mxu0 0.0
    %7916 = vmatprep.subr.mxu0 0.0
    %7917 = vmatpush1.xpose.msra.mxu0 0.0
    %7918 = vmatprep.subr.mxu0 0.0
    %7919 = vmatpush1.xpose.msra.mxu0 0.0
    %7920 = vmatprep.subr.mxu0 0.0
    %7921 = vmatpush1.xpose.msra.mxu0 0.0
    %7922 = vmatprep.subr.mxu0 0.0
    %7923 = vmatpush1.xpose.msra.mxu0 0.0
    %7924 = vmatprep.subr.mxu0 0.0
    %7925 = vmatpush1.xpose.msra.mxu0 0.0
    %7926 = vmatprep.subr.mxu0 0.0
    %7927 = vmatpush1.xpose.msra.mxu0 0.0
    %7928 = vmatprep.subr.mxu0 0.0
    %7929 = vmatpush1.xpose.msra.mxu0 %v7896
    %7930 = vmatprep.subr.mxu0 0.0
    %7931 = vmatpush2.xpose.msra.mxu0 0.0
    %7932 = vmatprep.subr.mxu0 0.0
    %7933 = vmatpush2.xpose.msra.mxu0 0.0
    %7934 = vmatprep.subr.mxu0 0.0
    %7935 = vmatpush2.xpose.msra.mxu0 0.0
    %7936 = vmatprep.subr.mxu0 0.0
    %7937 = vmatpush2.xpose.msra.mxu0 0.0
    %7938 = vmatprep.subr.mxu0 0.0
    %7939 = vmatpush2.xpose.msra.mxu0 0.0
    %7940 = vmatprep.subr.mxu0 0.0
    %7941 = vmatpush2.xpose.msra.mxu0 0.0
    %7942 = vmatprep.subr.mxu0 0.0
    %7943 = vmatpush2.xpose.msra.mxu0 0.0
    %7944 = vmatprep.subr.mxu0 0.0
    %7945 = vmatpush2.xpose.msra.mxu0 0.0
    %7946 = vmatprep.subr.mxu0 0.0
    %7947 = vmatpush2.xpose.msra.mxu0 0.0
    %7948 = vmatprep.subr.mxu0 0.0
    %7949 = vmatpush2.xpose.msra.mxu0 0.0
    %7950 = vmatprep.subr.mxu0 0.0
    %7951 = vmatpush2.xpose.msra.mxu0 0.0
    %7952 = vmatprep.subr.mxu0 0.0
    %7953 = vmatpush2.xpose.msra.mxu0 0.0
    %7954 = vmatprep.subr.mxu0 0.0
    %7955 = vmatpush2.xpose.msra.mxu0 0.0
    %7956 = vmatprep.subr.mxu0 0.0
    %7957 = vmatpush2.xpose.msra.mxu0 0.0
    %7958 = vmatprep.subr.mxu0 0.0
    %7959 = vmatpush2.xpose.msra.mxu0 0.0
    %7960 = vmatprep.subr.mxu0 0.0
    %7961 = vmatpush2.xpose.msra.mxu0 0.0
    %7962 = vmatprep.mubr.f32.mxu0 0.0
    %7963 = vmatmul.mubr.f32.gmra.mxu0 %v7893
    %v7964 = vpop.f32.mrf.mxu0
    %v7965 = vadd.f32 %v80, %v7964
    %v7966 = vpop.f32.mrf.mxu0
    %7967 = vdwg.mxu0
    %v7969 = vsel %vm1967, %v6674, 0
    %v7972 = vsel %vm1967, %v6678, 0
    %7974 = vmatprep.subr.mxu0 0.0
    %7975 = vmatpush1.xpose.msra.mxu0 0.0
    %7976 = vmatprep.subr.mxu0 0.0
    %7977 = vmatpush1.xpose.msra.mxu0 0.0
    %7978 = vmatprep.subr.mxu0 0.0
    %7979 = vmatpush1.xpose.msra.mxu0 0.0
    %7980 = vmatprep.subr.mxu0 0.0
    %7981 = vmatpush1.xpose.msra.mxu0 0.0
    %7982 = vmatprep.subr.mxu0 0.0
    %7983 = vmatpush1.xpose.msra.mxu0 0.0
    %7984 = vmatprep.subr.mxu0 0.0
    %7985 = vmatpush1.xpose.msra.mxu0 0.0
    %7986 = vmatprep.subr.mxu0 0.0
    %7987 = vmatpush1.xpose.msra.mxu0 0.0
    %7988 = vmatprep.subr.mxu0 0.0
    %7989 = vmatpush1.xpose.msra.mxu0 0.0
    %7990 = vmatprep.subr.mxu0 0.0
    %7991 = vmatpush1.xpose.msra.mxu0 0.0
    %7992 = vmatprep.subr.mxu0 0.0
    %7993 = vmatpush1.xpose.msra.mxu0 0.0
    %7994 = vmatprep.subr.mxu0 0.0
    %7995 = vmatpush1.xpose.msra.mxu0 0.0
    %7996 = vmatprep.subr.mxu0 0.0
    %7997 = vmatpush1.xpose.msra.mxu0 0.0
    %7998 = vmatprep.subr.mxu0 0.0
    %7999 = vmatpush1.xpose.msra.mxu0 0.0
    %8000 = vmatprep.subr.mxu0 0.0
    %8001 = vmatpush1.xpose.msra.mxu0 0.0
    %8002 = vmatprep.subr.mxu0 0.0
    %8003 = vmatpush1.xpose.msra.mxu0 0.0
    %8004 = vmatprep.subr.mxu0 0.0
    %8005 = vmatpush1.xpose.msra.mxu0 %v7972
    %8006 = vmatprep.subr.mxu0 0.0
    %8007 = vmatpush2.xpose.msra.mxu0 0.0
    %8008 = vmatprep.subr.mxu0 0.0
    %8009 = vmatpush2.xpose.msra.mxu0 0.0
    %8010 = vmatprep.subr.mxu0 0.0
    %8011 = vmatpush2.xpose.msra.mxu0 0.0
    %8012 = vmatprep.subr.mxu0 0.0
    %8013 = vmatpush2.xpose.msra.mxu0 0.0
    %8014 = vmatprep.subr.mxu0 0.0
    %8015 = vmatpush2.xpose.msra.mxu0 0.0
    %8016 = vmatprep.subr.mxu0 0.0
    %8017 = vmatpush2.xpose.msra.mxu0 0.0
    %8018 = vmatprep.subr.mxu0 0.0
    %8019 = vmatpush2.xpose.msra.mxu0 0.0
    %8020 = vmatprep.subr.mxu0 0.0
    %8021 = vmatpush2.xpose.msra.mxu0 0.0
    %8022 = vmatprep.subr.mxu0 0.0
    %8023 = vmatpush2.xpose.msra.mxu0 0.0
    %8024 = vmatprep.subr.mxu0 0.0
    %8025 = vmatpush2.xpose.msra.mxu0 0.0
    %8026 = vmatprep.subr.mxu0 0.0
    %8027 = vmatpush2.xpose.msra.mxu0 0.0
    %8028 = vmatprep.subr.mxu0 0.0
    %8029 = vmatpush2.xpose.msra.mxu0 0.0
    %8030 = vmatprep.subr.mxu0 0.0
    %8031 = vmatpush2.xpose.msra.mxu0 0.0
    %8032 = vmatprep.subr.mxu0 0.0
    %8033 = vmatpush2.xpose.msra.mxu0 0.0
    %8034 = vmatprep.subr.mxu0 0.0
    %8035 = vmatpush2.xpose.msra.mxu0 0.0
    %8036 = vmatprep.subr.mxu0 0.0
    %8037 = vmatpush2.xpose.msra.mxu0 0.0
    %8038 = vmatprep.mubr.f32.mxu0 0.0
    %8039 = vmatmul.mubr.f32.gmra.mxu0 %v7969
    %v8040 = vpop.f32.mrf.mxu0
    %v8041 = vadd.f32 %v80, %v8040
    %v8042 = vpop.f32.mrf.mxu0
    %8043 = vdwg.mxu0
    %v8045 = vsel %vm1967, %v6810, 0
    %v8048 = vsel %vm1967, %v6814, 0
    %8050 = vmatprep.subr.mxu0 0.0
    %8051 = vmatpush1.xpose.msra.mxu0 0.0
    %8052 = vmatprep.subr.mxu0 0.0
    %8053 = vmatpush1.xpose.msra.mxu0 0.0
    %8054 = vmatprep.subr.mxu0 0.0
    %8055 = vmatpush1.xpose.msra.mxu0 0.0
    %8056 = vmatprep.subr.mxu0 0.0
    %8057 = vmatpush1.xpose.msra.mxu0 0.0
    %8058 = vmatprep.subr.mxu0 0.0
    %8059 = vmatpush1.xpose.msra.mxu0 0.0
    %8060 = vmatprep.subr.mxu0 0.0
    %8061 = vmatpush1.xpose.msra.mxu0 0.0
    %8062 = vmatprep.subr.mxu0 0.0
    %8063 = vmatpush1.xpose.msra.mxu0 0.0
    %8064 = vmatprep.subr.mxu0 0.0
    %8065 = vmatpush1.xpose.msra.mxu0 0.0
    %8066 = vmatprep.subr.mxu0 0.0
    %8067 = vmatpush1.xpose.msra.mxu0 0.0
    %8068 = vmatprep.subr.mxu0 0.0
    %8069 = vmatpush1.xpose.msra.mxu0 0.0
    %8070 = vmatprep.subr.mxu0 0.0
    %8071 = vmatpush1.xpose.msra.mxu0 0.0
    %8072 = vmatprep.subr.mxu0 0.0
    %8073 = vmatpush1.xpose.msra.mxu0 0.0
    %8074 = vmatprep.subr.mxu0 0.0
    %8075 = vmatpush1.xpose.msra.mxu0 0.0
    %8076 = vmatprep.subr.mxu0 0.0
    %8077 = vmatpush1.xpose.msra.mxu0 0.0
    %8078 = vmatprep.subr.mxu0 0.0
    %8079 = vmatpush1.xpose.msra.mxu0 0.0
    %8080 = vmatprep.subr.mxu0 0.0
    %8081 = vmatpush1.xpose.msra.mxu0 %v8048
    %8082 = vmatprep.subr.mxu0 0.0
    %8083 = vmatpush2.xpose.msra.mxu0 0.0
    %8084 = vmatprep.subr.mxu0 0.0
    %8085 = vmatpush2.xpose.msra.mxu0 0.0
    %8086 = vmatprep.subr.mxu0 0.0
    %8087 = vmatpush2.xpose.msra.mxu0 0.0
    %8088 = vmatprep.subr.mxu0 0.0
    %8089 = vmatpush2.xpose.msra.mxu0 0.0
    %8090 = vmatprep.subr.mxu0 0.0
    %8091 = vmatpush2.xpose.msra.mxu0 0.0
    %8092 = vmatprep.subr.mxu0 0.0
    %8093 = vmatpush2.xpose.msra.mxu0 0.0
    %8094 = vmatprep.subr.mxu0 0.0
    %8095 = vmatpush2.xpose.msra.mxu0 0.0
    %8096 = vmatprep.subr.mxu0 0.0
    %8097 = vmatpush2.xpose.msra.mxu0 0.0
    %8098 = vmatprep.subr.mxu0 0.0
    %8099 = vmatpush2.xpose.msra.mxu0 0.0
    %8100 = vmatprep.subr.mxu0 0.0
    %8101 = vmatpush2.xpose.msra.mxu0 0.0
    %8102 = vmatprep.subr.mxu0 0.0
    %8103 = vmatpush2.xpose.msra.mxu0 0.0
    %8104 = vmatprep.subr.mxu0 0.0
    %8105 = vmatpush2.xpose.msra.mxu0 0.0
    %8106 = vmatprep.subr.mxu0 0.0
    %8107 = vmatpush2.xpose.msra.mxu0 0.0
    %8108 = vmatprep.subr.mxu0 0.0
    %8109 = vmatpush2.xpose.msra.mxu0 0.0
    %8110 = vmatprep.subr.mxu0 0.0
    %8111 = vmatpush2.xpose.msra.mxu0 0.0
    %8112 = vmatprep.subr.mxu0 0.0
    %8113 = vmatpush2.xpose.msra.mxu0 0.0
    %8114 = vmatprep.mubr.f32.mxu0 0.0
    %8115 = vmatmul.mubr.f32.gmra.mxu0 %v8045
    %v8116 = vpop.f32.mrf.mxu0
    %v8117 = vadd.f32 %v80, %v8116
    %v8118 = vpop.f32.mrf.mxu0
    %8119 = vdwg.mxu0
    %v8121 = vsel %vm1967, %v6946, 0
    %v8124 = vsel %vm1967, %v6950, 0
    %8126 = vmatprep.subr.mxu0 0.0
    %8127 = vmatpush1.xpose.msra.mxu0 0.0
    %8128 = vmatprep.subr.mxu0 0.0
    %8129 = vmatpush1.xpose.msra.mxu0 0.0
    %8130 = vmatprep.subr.mxu0 0.0
    %8131 = vmatpush1.xpose.msra.mxu0 0.0
    %8132 = vmatprep.subr.mxu0 0.0
    %8133 = vmatpush1.xpose.msra.mxu0 0.0
    %8134 = vmatprep.subr.mxu0 0.0
    %8135 = vmatpush1.xpose.msra.mxu0 0.0
    %8136 = vmatprep.subr.mxu0 0.0
    %8137 = vmatpush1.xpose.msra.mxu0 0.0
    %8138 = vmatprep.subr.mxu0 0.0
    %8139 = vmatpush1.xpose.msra.mxu0 0.0
    %8140 = vmatprep.subr.mxu0 0.0
    %8141 = vmatpush1.xpose.msra.mxu0 0.0
    %8142 = vmatprep.subr.mxu0 0.0
    %8143 = vmatpush1.xpose.msra.mxu0 0.0
    %8144 = vmatprep.subr.mxu0 0.0
    %8145 = vmatpush1.xpose.msra.mxu0 0.0
    %8146 = vmatprep.subr.mxu0 0.0
    %8147 = vmatpush1.xpose.msra.mxu0 0.0
    %8148 = vmatprep.subr.mxu0 0.0
    %8149 = vmatpush1.xpose.msra.mxu0 0.0
    %8150 = vmatprep.subr.mxu0 0.0
    %8151 = vmatpush1.xpose.msra.mxu0 0.0
    %8152 = vmatprep.subr.mxu0 0.0
    %8153 = vmatpush1.xpose.msra.mxu0 0.0
    %8154 = vmatprep.subr.mxu0 0.0
    %8155 = vmatpush1.xpose.msra.mxu0 0.0
    %8156 = vmatprep.subr.mxu0 0.0
    %8157 = vmatpush1.xpose.msra.mxu0 %v8124
    %8158 = vmatprep.subr.mxu0 0.0
    %8159 = vmatpush2.xpose.msra.mxu0 0.0
    %8160 = vmatprep.subr.mxu0 0.0
    %8161 = vmatpush2.xpose.msra.mxu0 0.0
    %8162 = vmatprep.subr.mxu0 0.0
    %8163 = vmatpush2.xpose.msra.mxu0 0.0
    %8164 = vmatprep.subr.mxu0 0.0
    %8165 = vmatpush2.xpose.msra.mxu0 0.0
    %8166 = vmatprep.subr.mxu0 0.0
    %8167 = vmatpush2.xpose.msra.mxu0 0.0
    %8168 = vmatprep.subr.mxu0 0.0
    %8169 = vmatpush2.xpose.msra.mxu0 0.0
    %8170 = vmatprep.subr.mxu0 0.0
    %8171 = vmatpush2.xpose.msra.mxu0 0.0
    %8172 = vmatprep.subr.mxu0 0.0
    %8173 = vmatpush2.xpose.msra.mxu0 0.0
    %8174 = vmatprep.subr.mxu0 0.0
    %8175 = vmatpush2.xpose.msra.mxu0 0.0
    %8176 = vmatprep.subr.mxu0 0.0
    %8177 = vmatpush2.xpose.msra.mxu0 0.0
    %8178 = vmatprep.subr.mxu0 0.0
    %8179 = vmatpush2.xpose.msra.mxu0 0.0
    %8180 = vmatprep.subr.mxu0 0.0
    %8181 = vmatpush2.xpose.msra.mxu0 0.0
    %8182 = vmatprep.subr.mxu0 0.0
    %8183 = vmatpush2.xpose.msra.mxu0 0.0
    %8184 = vmatprep.subr.mxu0 0.0
    %8185 = vmatpush2.xpose.msra.mxu0 0.0
    %8186 = vmatprep.subr.mxu0 0.0
    %8187 = vmatpush2.xpose.msra.mxu0 0.0
    %8188 = vmatprep.subr.mxu0 0.0
    %8189 = vmatpush2.xpose.msra.mxu0 0.0
    %8190 = vmatprep.mubr.f32.mxu0 0.0
    %8191 = vmatmul.mubr.f32.gmra.mxu0 %v8121
    %v8192 = vpop.f32.mrf.mxu0
    %v8193 = vadd.f32 %v80, %v8192
    %v8194 = vpop.f32.mrf.mxu0
    %8195 = vdwg.mxu0
    %v8197 = vsel %vm1967, %v7082, 0
    %v8200 = vsel %vm1967, %v7086, 0
    %8202 = vmatprep.subr.mxu0 0.0
    %8203 = vmatpush1.xpose.msra.mxu0 0.0
    %8204 = vmatprep.subr.mxu0 0.0
    %8205 = vmatpush1.xpose.msra.mxu0 0.0
    %8206 = vmatprep.subr.mxu0 0.0
    %8207 = vmatpush1.xpose.msra.mxu0 0.0
    %8208 = vmatprep.subr.mxu0 0.0
    %8209 = vmatpush1.xpose.msra.mxu0 0.0
    %8210 = vmatprep.subr.mxu0 0.0
    %8211 = vmatpush1.xpose.msra.mxu0 0.0
    %8212 = vmatprep.subr.mxu0 0.0
    %8213 = vmatpush1.xpose.msra.mxu0 0.0
    %8214 = vmatprep.subr.mxu0 0.0
    %8215 = vmatpush1.xpose.msra.mxu0 0.0
    %8216 = vmatprep.subr.mxu0 0.0
    %8217 = vmatpush1.xpose.msra.mxu0 0.0
    %8218 = vmatprep.subr.mxu0 0.0
    %8219 = vmatpush1.xpose.msra.mxu0 0.0
    %8220 = vmatprep.subr.mxu0 0.0
    %8221 = vmatpush1.xpose.msra.mxu0 0.0
    %8222 = vmatprep.subr.mxu0 0.0
    %8223 = vmatpush1.xpose.msra.mxu0 0.0
    %8224 = vmatprep.subr.mxu0 0.0
    %8225 = vmatpush1.xpose.msra.mxu0 0.0
    %8226 = vmatprep.subr.mxu0 0.0
    %8227 = vmatpush1.xpose.msra.mxu0 0.0
    %8228 = vmatprep.subr.mxu0 0.0
    %8229 = vmatpush1.xpose.msra.mxu0 0.0
    %8230 = vmatprep.subr.mxu0 0.0
    %8231 = vmatpush1.xpose.msra.mxu0 0.0
    %8232 = vmatprep.subr.mxu0 0.0
    %8233 = vmatpush1.xpose.msra.mxu0 %v8200
    %8234 = vmatprep.subr.mxu0 0.0
    %8235 = vmatpush2.xpose.msra.mxu0 0.0
    %8236 = vmatprep.subr.mxu0 0.0
    %8237 = vmatpush2.xpose.msra.mxu0 0.0
    %8238 = vmatprep.subr.mxu0 0.0
    %8239 = vmatpush2.xpose.msra.mxu0 0.0
    %8240 = vmatprep.subr.mxu0 0.0
    %8241 = vmatpush2.xpose.msra.mxu0 0.0
    %8242 = vmatprep.subr.mxu0 0.0
    %8243 = vmatpush2.xpose.msra.mxu0 0.0
    %8244 = vmatprep.subr.mxu0 0.0
    %8245 = vmatpush2.xpose.msra.mxu0 0.0
    %8246 = vmatprep.subr.mxu0 0.0
    %8247 = vmatpush2.xpose.msra.mxu0 0.0
    %8248 = vmatprep.subr.mxu0 0.0
    %8249 = vmatpush2.xpose.msra.mxu0 0.0
    %8250 = vmatprep.subr.mxu0 0.0
    %8251 = vmatpush2.xpose.msra.mxu0 0.0
    %8252 = vmatprep.subr.mxu0 0.0
    %8253 = vmatpush2.xpose.msra.mxu0 0.0
    %8254 = vmatprep.subr.mxu0 0.0
    %8255 = vmatpush2.xpose.msra.mxu0 0.0
    %8256 = vmatprep.subr.mxu0 0.0
    %8257 = vmatpush2.xpose.msra.mxu0 0.0
    %8258 = vmatprep.subr.mxu0 0.0
    %8259 = vmatpush2.xpose.msra.mxu0 0.0
    %8260 = vmatprep.subr.mxu0 0.0
    %8261 = vmatpush2.xpose.msra.mxu0 0.0
    %8262 = vmatprep.subr.mxu0 0.0
    %8263 = vmatpush2.xpose.msra.mxu0 0.0
    %8264 = vmatprep.subr.mxu0 0.0
    %8265 = vmatpush2.xpose.msra.mxu0 0.0
    %8266 = vmatprep.mubr.f32.mxu0 0.0
    %8267 = vmatmul.mubr.f32.gmra.mxu0 %v8197
    %v8268 = vpop.f32.mrf.mxu0
    %v8269 = vadd.f32 %v80, %v8268
    %v8270 = vpop.f32.mrf.mxu0
    %8271 = vdwg.mxu0
    %v8273 = vsel %vm1967, %v6675, 0
    %v8276 = vsel %vm1967, %v6679, 0
    %8278 = vmatprep.subr.mxu0 0.0
    %8279 = vmatpush1.xpose.msra.mxu0 0.0
    %8280 = vmatprep.subr.mxu0 0.0
    %8281 = vmatpush1.xpose.msra.mxu0 0.0
    %8282 = vmatprep.subr.mxu0 0.0
    %8283 = vmatpush1.xpose.msra.mxu0 0.0
    %8284 = vmatprep.subr.mxu0 0.0
    %8285 = vmatpush1.xpose.msra.mxu0 0.0
    %8286 = vmatprep.subr.mxu0 0.0
    %8287 = vmatpush1.xpose.msra.mxu0 0.0
    %8288 = vmatprep.subr.mxu0 0.0
    %8289 = vmatpush1.xpose.msra.mxu0 0.0
    %8290 = vmatprep.subr.mxu0 0.0
    %8291 = vmatpush1.xpose.msra.mxu0 0.0
    %8292 = vmatprep.subr.mxu0 0.0
    %8293 = vmatpush1.xpose.msra.mxu0 0.0
    %8294 = vmatprep.subr.mxu0 0.0
    %8295 = vmatpush1.xpose.msra.mxu0 0.0
    %8296 = vmatprep.subr.mxu0 0.0
    %8297 = vmatpush1.xpose.msra.mxu0 0.0
    %8298 = vmatprep.subr.mxu0 0.0
    %8299 = vmatpush1.xpose.msra.mxu0 0.0
    %8300 = vmatprep.subr.mxu0 0.0
    %8301 = vmatpush1.xpose.msra.mxu0 0.0
    %8302 = vmatprep.subr.mxu0 0.0
    %8303 = vmatpush1.xpose.msra.mxu0 0.0
    %8304 = vmatprep.subr.mxu0 0.0
    %8305 = vmatpush1.xpose.msra.mxu0 0.0
    %8306 = vmatprep.subr.mxu0 0.0
    %8307 = vmatpush1.xpose.msra.mxu0 0.0
    %8308 = vmatprep.subr.mxu0 0.0
    %8309 = vmatpush1.xpose.msra.mxu0 %v8276
    %8310 = vmatprep.subr.mxu0 0.0
    %8311 = vmatpush2.xpose.msra.mxu0 0.0
    %8312 = vmatprep.subr.mxu0 0.0
    %8313 = vmatpush2.xpose.msra.mxu0 0.0
    %8314 = vmatprep.subr.mxu0 0.0
    %8315 = vmatpush2.xpose.msra.mxu0 0.0
    %8316 = vmatprep.subr.mxu0 0.0
    %8317 = vmatpush2.xpose.msra.mxu0 0.0
    %8318 = vmatprep.subr.mxu0 0.0
    %8319 = vmatpush2.xpose.msra.mxu0 0.0
    %8320 = vmatprep.subr.mxu0 0.0
    %8321 = vmatpush2.xpose.msra.mxu0 0.0
    %8322 = vmatprep.subr.mxu0 0.0
    %8323 = vmatpush2.xpose.msra.mxu0 0.0
    %8324 = vmatprep.subr.mxu0 0.0
    %8325 = vmatpush2.xpose.msra.mxu0 0.0
    %8326 = vmatprep.subr.mxu0 0.0
    %8327 = vmatpush2.xpose.msra.mxu0 0.0
    %8328 = vmatprep.subr.mxu0 0.0
    %8329 = vmatpush2.xpose.msra.mxu0 0.0
    %8330 = vmatprep.subr.mxu0 0.0
    %8331 = vmatpush2.xpose.msra.mxu0 0.0
    %8332 = vmatprep.subr.mxu0 0.0
    %8333 = vmatpush2.xpose.msra.mxu0 0.0
    %8334 = vmatprep.subr.mxu0 0.0
    %8335 = vmatpush2.xpose.msra.mxu0 0.0
    %8336 = vmatprep.subr.mxu0 0.0
    %8337 = vmatpush2.xpose.msra.mxu0 0.0
    %8338 = vmatprep.subr.mxu0 0.0
    %8339 = vmatpush2.xpose.msra.mxu0 0.0
    %8340 = vmatprep.subr.mxu0 0.0
    %8341 = vmatpush2.xpose.msra.mxu0 0.0
    %8342 = vmatprep.mubr.f32.mxu0 0.0
    %8343 = vmatmul.mubr.f32.gmra.mxu0 %v8273
    %v8344 = vpop.f32.mrf.mxu0
    %v8345 = vadd.f32 %v80, %v8344
    %v8346 = vpop.f32.mrf.mxu0
    %8347 = vdwg.mxu0
    %v8349 = vsel %vm1967, %v6811, 0
    %v8352 = vsel %vm1967, %v6815, 0
    %8354 = vmatprep.subr.mxu0 0.0
    %8355 = vmatpush1.xpose.msra.mxu0 0.0
    %8356 = vmatprep.subr.mxu0 0.0
    %8357 = vmatpush1.xpose.msra.mxu0 0.0
    %8358 = vmatprep.subr.mxu0 0.0
    %8359 = vmatpush1.xpose.msra.mxu0 0.0
    %8360 = vmatprep.subr.mxu0 0.0
    %8361 = vmatpush1.xpose.msra.mxu0 0.0
    %8362 = vmatprep.subr.mxu0 0.0
    %8363 = vmatpush1.xpose.msra.mxu0 0.0
    %8364 = vmatprep.subr.mxu0 0.0
    %8365 = vmatpush1.xpose.msra.mxu0 0.0
    %8366 = vmatprep.subr.mxu0 0.0
    %8367 = vmatpush1.xpose.msra.mxu0 0.0
    %8368 = vmatprep.subr.mxu0 0.0
    %8369 = vmatpush1.xpose.msra.mxu0 0.0
    %8370 = vmatprep.subr.mxu0 0.0
    %8371 = vmatpush1.xpose.msra.mxu0 0.0
    %8372 = vmatprep.subr.mxu0 0.0
    %8373 = vmatpush1.xpose.msra.mxu0 0.0
    %8374 = vmatprep.subr.mxu0 0.0
    %8375 = vmatpush1.xpose.msra.mxu0 0.0
    %8376 = vmatprep.subr.mxu0 0.0
    %8377 = vmatpush1.xpose.msra.mxu0 0.0
    %8378 = vmatprep.subr.mxu0 0.0
    %8379 = vmatpush1.xpose.msra.mxu0 0.0
    %8380 = vmatprep.subr.mxu0 0.0
    %8381 = vmatpush1.xpose.msra.mxu0 0.0
    %8382 = vmatprep.subr.mxu0 0.0
    %8383 = vmatpush1.xpose.msra.mxu0 0.0
    %8384 = vmatprep.subr.mxu0 0.0
    %8385 = vmatpush1.xpose.msra.mxu0 %v8352
    %8386 = vmatprep.subr.mxu0 0.0
    %8387 = vmatpush2.xpose.msra.mxu0 0.0
    %8388 = vmatprep.subr.mxu0 0.0
    %8389 = vmatpush2.xpose.msra.mxu0 0.0
    %8390 = vmatprep.subr.mxu0 0.0
    %8391 = vmatpush2.xpose.msra.mxu0 0.0
    %8392 = vmatprep.subr.mxu0 0.0
    %8393 = vmatpush2.xpose.msra.mxu0 0.0
    %8394 = vmatprep.subr.mxu0 0.0
    %8395 = vmatpush2.xpose.msra.mxu0 0.0
    %8396 = vmatprep.subr.mxu0 0.0
    %8397 = vmatpush2.xpose.msra.mxu0 0.0
    %8398 = vmatprep.subr.mxu0 0.0
    %8399 = vmatpush2.xpose.msra.mxu0 0.0
    %8400 = vmatprep.subr.mxu0 0.0
    %8401 = vmatpush2.xpose.msra.mxu0 0.0
    %8402 = vmatprep.subr.mxu0 0.0
    %8403 = vmatpush2.xpose.msra.mxu0 0.0
    %8404 = vmatprep.subr.mxu0 0.0
    %8405 = vmatpush2.xpose.msra.mxu0 0.0
    %8406 = vmatprep.subr.mxu0 0.0
    %8407 = vmatpush2.xpose.msra.mxu0 0.0
    %8408 = vmatprep.subr.mxu0 0.0
    %8409 = vmatpush2.xpose.msra.mxu0 0.0
    %8410 = vmatprep.subr.mxu0 0.0
    %8411 = vmatpush2.xpose.msra.mxu0 0.0
    %8412 = vmatprep.subr.mxu0 0.0
    %8413 = vmatpush2.xpose.msra.mxu0 0.0
    %8414 = vmatprep.subr.mxu0 0.0
    %8415 = vmatpush2.xpose.msra.mxu0 0.0
    %8416 = vmatprep.subr.mxu0 0.0
    %8417 = vmatpush2.xpose.msra.mxu0 0.0
    %8418 = vmatprep.mubr.f32.mxu0 0.0
    %8419 = vmatmul.mubr.f32.gmra.mxu0 %v8349
    %v8420 = vpop.f32.mrf.mxu0
    %v8421 = vadd.f32 %v80, %v8420
    %v8422 = vpop.f32.mrf.mxu0
    %8423 = vdwg.mxu0
    %v8425 = vsel %vm1967, %v6947, 0
    %v8428 = vsel %vm1967, %v6951, 0
    %8430 = vmatprep.subr.mxu0 0.0
    %8431 = vmatpush1.xpose.msra.mxu0 0.0
    %8432 = vmatprep.subr.mxu0 0.0
    %8433 = vmatpush1.xpose.msra.mxu0 0.0
    %8434 = vmatprep.subr.mxu0 0.0
    %8435 = vmatpush1.xpose.msra.mxu0 0.0
    %8436 = vmatprep.subr.mxu0 0.0
    %8437 = vmatpush1.xpose.msra.mxu0 0.0
    %8438 = vmatprep.subr.mxu0 0.0
    %8439 = vmatpush1.xpose.msra.mxu0 0.0
    %8440 = vmatprep.subr.mxu0 0.0
    %8441 = vmatpush1.xpose.msra.mxu0 0.0
    %8442 = vmatprep.subr.mxu0 0.0
    %8443 = vmatpush1.xpose.msra.mxu0 0.0
    %8444 = vmatprep.subr.mxu0 0.0
    %8445 = vmatpush1.xpose.msra.mxu0 0.0
    %8446 = vmatprep.subr.mxu0 0.0
    %8447 = vmatpush1.xpose.msra.mxu0 0.0
    %8448 = vmatprep.subr.mxu0 0.0
    %8449 = vmatpush1.xpose.msra.mxu0 0.0
    %8450 = vmatprep.subr.mxu0 0.0
    %8451 = vmatpush1.xpose.msra.mxu0 0.0
    %8452 = vmatprep.subr.mxu0 0.0
    %8453 = vmatpush1.xpose.msra.mxu0 0.0
    %8454 = vmatprep.subr.mxu0 0.0
    %8455 = vmatpush1.xpose.msra.mxu0 0.0
    %8456 = vmatprep.subr.mxu0 0.0
    %8457 = vmatpush1.xpose.msra.mxu0 0.0
    %8458 = vmatprep.subr.mxu0 0.0
    %8459 = vmatpush1.xpose.msra.mxu0 0.0
    %8460 = vmatprep.subr.mxu0 0.0
    %8461 = vmatpush1.xpose.msra.mxu0 %v8428
    %8462 = vmatprep.subr.mxu0 0.0
    %8463 = vmatpush2.xpose.msra.mxu0 0.0
    %8464 = vmatprep.subr.mxu0 0.0
    %8465 = vmatpush2.xpose.msra.mxu0 0.0
    %8466 = vmatprep.subr.mxu0 0.0
    %8467 = vmatpush2.xpose.msra.mxu0 0.0
    %8468 = vmatprep.subr.mxu0 0.0
    %8469 = vmatpush2.xpose.msra.mxu0 0.0
    %8470 = vmatprep.subr.mxu0 0.0
    %8471 = vmatpush2.xpose.msra.mxu0 0.0
    %8472 = vmatprep.subr.mxu0 0.0
    %8473 = vmatpush2.xpose.msra.mxu0 0.0
    %8474 = vmatprep.subr.mxu0 0.0
    %8475 = vmatpush2.xpose.msra.mxu0 0.0
    %8476 = vmatprep.subr.mxu0 0.0
    %8477 = vmatpush2.xpose.msra.mxu0 0.0
    %8478 = vmatprep.subr.mxu0 0.0
    %8479 = vmatpush2.xpose.msra.mxu0 0.0
    %8480 = vmatprep.subr.mxu0 0.0
    %8481 = vmatpush2.xpose.msra.mxu0 0.0
    %8482 = vmatprep.subr.mxu0 0.0
    %8483 = vmatpush2.xpose.msra.mxu0 0.0
    %8484 = vmatprep.subr.mxu0 0.0
    %8485 = vmatpush2.xpose.msra.mxu0 0.0
    %8486 = vmatprep.subr.mxu0 0.0
    %8487 = vmatpush2.xpose.msra.mxu0 0.0
    %8488 = vmatprep.subr.mxu0 0.0
    %8489 = vmatpush2.xpose.msra.mxu0 0.0
    %8490 = vmatprep.subr.mxu0 0.0
    %8491 = vmatpush2.xpose.msra.mxu0 0.0
    %8492 = vmatprep.subr.mxu0 0.0
    %8493 = vmatpush2.xpose.msra.mxu0 0.0
    %8494 = vmatprep.mubr.f32.mxu0 0.0
    %8495 = vmatmul.mubr.f32.gmra.mxu0 %v8425
    %v8496 = vpop.f32.mrf.mxu0
    %v8497 = vadd.f32 %v80, %v8496
    %v8498 = vpop.f32.mrf.mxu0
    %8499 = vdwg.mxu0
    %v8501 = vsel %vm1967, %v7083, 0
    %v8504 = vsel %vm1967, %v7087, 0
    %8506 = vmatprep.subr.mxu0 0.0
    %8507 = vmatpush1.xpose.msra.mxu0 0.0
    %8508 = vmatprep.subr.mxu0 0.0
    %8509 = vmatpush1.xpose.msra.mxu0 0.0
    %8510 = vmatprep.subr.mxu0 0.0
    %8511 = vmatpush1.xpose.msra.mxu0 0.0
    %8512 = vmatprep.subr.mxu0 0.0
    %8513 = vmatpush1.xpose.msra.mxu0 0.0
    %8514 = vmatprep.subr.mxu0 0.0
    %8515 = vmatpush1.xpose.msra.mxu0 0.0
    %8516 = vmatprep.subr.mxu0 0.0
    %8517 = vmatpush1.xpose.msra.mxu0 0.0
    %8518 = vmatprep.subr.mxu0 0.0
    %8519 = vmatpush1.xpose.msra.mxu0 0.0
    %8520 = vmatprep.subr.mxu0 0.0
    %8521 = vmatpush1.xpose.msra.mxu0 0.0
    %8522 = vmatprep.subr.mxu0 0.0
    %8523 = vmatpush1.xpose.msra.mxu0 0.0
    %8524 = vmatprep.subr.mxu0 0.0
    %8525 = vmatpush1.xpose.msra.mxu0 0.0
    %8526 = vmatprep.subr.mxu0 0.0
    %8527 = vmatpush1.xpose.msra.mxu0 0.0
    %8528 = vmatprep.subr.mxu0 0.0
    %8529 = vmatpush1.xpose.msra.mxu0 0.0
    %8530 = vmatprep.subr.mxu0 0.0
    %8531 = vmatpush1.xpose.msra.mxu0 0.0
    %8532 = vmatprep.subr.mxu0 0.0
    %8533 = vmatpush1.xpose.msra.mxu0 0.0
    %8534 = vmatprep.subr.mxu0 0.0
    %8535 = vmatpush1.xpose.msra.mxu0 0.0
    %8536 = vmatprep.subr.mxu0 0.0
    %8537 = vmatpush1.xpose.msra.mxu0 %v8504
    %8538 = vmatprep.subr.mxu0 0.0
    %8539 = vmatpush2.xpose.msra.mxu0 0.0
    %8540 = vmatprep.subr.mxu0 0.0
    %8541 = vmatpush2.xpose.msra.mxu0 0.0
    %8542 = vmatprep.subr.mxu0 0.0
    %8543 = vmatpush2.xpose.msra.mxu0 0.0
    %8544 = vmatprep.subr.mxu0 0.0
    %8545 = vmatpush2.xpose.msra.mxu0 0.0
    %8546 = vmatprep.subr.mxu0 0.0
    %8547 = vmatpush2.xpose.msra.mxu0 0.0
    %8548 = vmatprep.subr.mxu0 0.0
    %8549 = vmatpush2.xpose.msra.mxu0 0.0
    %8550 = vmatprep.subr.mxu0 0.0
    %8551 = vmatpush2.xpose.msra.mxu0 0.0
    %8552 = vmatprep.subr.mxu0 0.0
    %8553 = vmatpush2.xpose.msra.mxu0 0.0
    %8554 = vmatprep.subr.mxu0 0.0
    %8555 = vmatpush2.xpose.msra.mxu0 0.0
    %8556 = vmatprep.subr.mxu0 0.0
    %8557 = vmatpush2.xpose.msra.mxu0 0.0
    %8558 = vmatprep.subr.mxu0 0.0
    %8559 = vmatpush2.xpose.msra.mxu0 0.0
    %8560 = vmatprep.subr.mxu0 0.0
    %8561 = vmatpush2.xpose.msra.mxu0 0.0
    %8562 = vmatprep.subr.mxu0 0.0
    %8563 = vmatpush2.xpose.msra.mxu0 0.0
    %8564 = vmatprep.subr.mxu0 0.0
    %8565 = vmatpush2.xpose.msra.mxu0 0.0
    %8566 = vmatprep.subr.mxu0 0.0
    %8567 = vmatpush2.xpose.msra.mxu0 0.0
    %8568 = vmatprep.subr.mxu0 0.0
    %8569 = vmatpush2.xpose.msra.mxu0 0.0
    %8570 = vmatprep.mubr.f32.mxu0 0.0
    %8571 = vmatmul.mubr.f32.gmra.mxu0 %v8501
    %v8572 = vpop.f32.mrf.mxu0
    %v8573 = vadd.f32 %v80, %v8572
    %v8574 = vpop.f32.mrf.mxu0
    %8575 = vdwg.mxu0
    %v8576 = vsel %vm1967, %v7433, -inf
    %8577 = vmax.xlane.f32.xlu0 %v8576
    %v8578 = vpop.xlane.xlu0 %8577
    %v8579 = vsel %vm1967, %v7509, -inf
    %8580 = vmax.xlane.f32.xlu0 %v8579
    %v8581 = vpop.xlane.xlu0 %8580
    %v8582 = vsel %vm1967, %v7585, -inf
    %8583 = vmax.xlane.f32.xlu0 %v8582
    %v8584 = vpop.xlane.xlu0 %8583
    %v8585 = vsel %vm1967, %v7661, -inf
    %8586 = vmax.xlane.f32.xlu0 %v8585
    %v8587 = vpop.xlane.xlu0 %8586
    %v8588 = vsel %vm1967, %v7737, -inf
    %8589 = vmax.xlane.f32.xlu0 %v8588
    %v8590 = vpop.xlane.xlu0 %8589
    %v8591 = vsel %vm1967, %v7813, -inf
    %8592 = vmax.xlane.f32.xlu0 %v8591
    %v8593 = vpop.xlane.xlu0 %8592
    %v8594 = vsel %vm1967, %v7889, -inf
    %8595 = vmax.xlane.f32.xlu0 %v8594
    %v8596 = vpop.xlane.xlu0 %8595
    %v8597 = vsel %vm1967, %v7965, -inf
    %8598 = vmax.xlane.f32.xlu0 %v8597
    %v8599 = vpop.xlane.xlu0 %8598
    %v8600 = vsel %vm1967, %v8041, -inf
    %8601 = vmax.xlane.f32.xlu0 %v8600
    %v8602 = vpop.xlane.xlu0 %8601
    %v8603 = vsel %vm1967, %v8117, -inf
    %8604 = vmax.xlane.f32.xlu0 %v8603
    %v8605 = vpop.xlane.xlu0 %8604
    %v8606 = vsel %vm1967, %v8193, -inf
    %8607 = vmax.xlane.f32.xlu0 %v8606
    %v8608 = vpop.xlane.xlu0 %8607
    %v8609 = vsel %vm1967, %v8269, -inf
    %8610 = vmax.xlane.f32.xlu0 %v8609
    %v8611 = vpop.xlane.xlu0 %8610
    %v8612 = vsel %vm1967, %v8345, -inf
    %8613 = vmax.xlane.f32.xlu0 %v8612
    %v8614 = vpop.xlane.xlu0 %8613
    %v8615 = vsel %vm1967, %v8421, -inf
    %8616 = vmax.xlane.f32.xlu0 %v8615
    %v8617 = vpop.xlane.xlu0 %8616
    %v8618 = vsel %vm1967, %v8497, -inf
    %8619 = vmax.xlane.f32.xlu0 %v8618
    %v8620 = vpop.xlane.xlu0 %8619
    %v8621 = vsel %vm1967, %v8573, -inf
    %8622 = vmax.xlane.f32.xlu0 %v8621
    %v8623 = vpop.xlane.xlu0 %8622
    %v8624 = vsub.f32 %v7433, %v8578
    %v8625 = vsub.f32 %v7509, %v8581
    %v8626 = vsub.f32 %v7585, %v8584
    %v8627 = vsub.f32 %v7661, %v8587
    %v8628 = vsub.f32 %v7737, %v8590
    %v8629 = vsub.f32 %v7813, %v8593
    %v8630 = vsub.f32 %v7889, %v8596
    %v8631 = vsub.f32 %v7965, %v8599
    %v8632 = vsub.f32 %v8041, %v8602
    %v8633 = vsub.f32 %v8117, %v8605
    %v8634 = vsub.f32 %v8193, %v8608
    %v8635 = vsub.f32 %v8269, %v8611
    %v8636 = vsub.f32 %v8345, %v8614
    %v8637 = vsub.f32 %v8421, %v8617
    %v8638 = vsub.f32 %v8497, %v8620
    %v8639 = vsub.f32 %v8573, %v8623
    %v8640 = vmul.f32 %v8624, 1.442695
    %v8641 = vpow.pop %v8640
    %v8642 = vmul.f32 %v8625, 1.442695
    %v8643 = vpow.pop %v8642
    %v8644 = vmul.f32 %v8626, 1.442695
    %v8645 = vpow.pop %v8644
    %v8646 = vmul.f32 %v8627, 1.442695
    %v8647 = vpow.pop %v8646
    %v8648 = vmul.f32 %v8628, 1.442695
    %v8649 = vpow.pop %v8648
    %v8650 = vmul.f32 %v8629, 1.442695
    %v8651 = vpow.pop %v8650
    %v8652 = vmul.f32 %v8630, 1.442695
    %v8653 = vpow.pop %v8652
    %v8654 = vmul.f32 %v8631, 1.442695
    %v8655 = vpow.pop %v8654
    %v8656 = vmul.f32 %v8632, 1.442695
    %v8657 = vpow.pop %v8656
    %v8658 = vmul.f32 %v8633, 1.442695
    %v8659 = vpow.pop %v8658
    %v8660 = vmul.f32 %v8634, 1.442695
    %v8661 = vpow.pop %v8660
    %v8662 = vmul.f32 %v8635, 1.442695
    %v8663 = vpow.pop %v8662
    %v8664 = vmul.f32 %v8636, 1.442695
    %v8665 = vpow.pop %v8664
    %v8666 = vmul.f32 %v8637, 1.442695
    %v8667 = vpow.pop %v8666
    %v8668 = vmul.f32 %v8638, 1.442695
    %v8669 = vpow.pop %v8668
    %v8670 = vmul.f32 %v8639, 1.442695
    %v8671 = vpow.pop %v8670
    %v8672 = vsel %vm1967, %v8641, 0.0
    %8673 = vadd.xlane.f32.xlu0 %v8672
    %v8674 = vpop.xlane.xlu0 %8673
    %v8675 = vsel %vm1967, %v8643, 0.0
    %8676 = vadd.xlane.f32.xlu0 %v8675
    %v8677 = vpop.xlane.xlu0 %8676
    %v8678 = vsel %vm1967, %v8645, 0.0
    %8679 = vadd.xlane.f32.xlu0 %v8678
    %v8680 = vpop.xlane.xlu0 %8679
    %v8681 = vsel %vm1967, %v8647, 0.0
    %8682 = vadd.xlane.f32.xlu0 %v8681
    %v8683 = vpop.xlane.xlu0 %8682
    %v8684 = vsel %vm1967, %v8649, 0.0
    %8685 = vadd.xlane.f32.xlu0 %v8684
    %v8686 = vpop.xlane.xlu0 %8685
    %v8687 = vsel %vm1967, %v8651, 0.0
    %8688 = vadd.xlane.f32.xlu0 %v8687
    %v8689 = vpop.xlane.xlu0 %8688
    %v8690 = vsel %vm1967, %v8653, 0.0
    %8691 = vadd.xlane.f32.xlu0 %v8690
    %v8692 = vpop.xlane.xlu0 %8691
    %v8693 = vsel %vm1967, %v8655, 0.0
    %8694 = vadd.xlane.f32.xlu0 %v8693
    %v8695 = vpop.xlane.xlu0 %8694
    %v8696 = vsel %vm1967, %v8657, 0.0
    %8697 = vadd.xlane.f32.xlu0 %v8696
    %v8698 = vpop.xlane.xlu0 %8697
    %v8699 = vsel %vm1967, %v8659, 0.0
    %8700 = vadd.xlane.f32.xlu0 %v8699
    %v8701 = vpop.xlane.xlu0 %8700
    %v8702 = vsel %vm1967, %v8661, 0.0
    %8703 = vadd.xlane.f32.xlu0 %v8702
    %v8704 = vpop.xlane.xlu0 %8703
    %v8705 = vsel %vm1967, %v8663, 0.0
    %8706 = vadd.xlane.f32.xlu0 %v8705
    %v8707 = vpop.xlane.xlu0 %8706
    %v8708 = vsel %vm1967, %v8665, 0.0
    %8709 = vadd.xlane.f32.xlu0 %v8708
    %v8710 = vpop.xlane.xlu0 %8709
    %v8711 = vsel %vm1967, %v8667, 0.0
    %8712 = vadd.xlane.f32.xlu0 %v8711
    %v8713 = vpop.xlane.xlu0 %8712
    %v8714 = vsel %vm1967, %v8669, 0.0
    %8715 = vadd.xlane.f32.xlu0 %v8714
    %v8716 = vpop.xlane.xlu0 %8715
    %v8717 = vsel %vm1967, %v8671, 0.0
    %8718 = vadd.xlane.f32.xlu0 %v8717
    %v8719 = vpop.xlane.xlu0 %8718
    %v8720 = vrcp.pop %v8674
    %v8721 = vrcp.pop %v8677
    %v8722 = vrcp.pop %v8680
    %v8723 = vrcp.pop %v8683
    %v8724 = vrcp.pop %v8686
    %v8725 = vrcp.pop %v8689
    %v8726 = vrcp.pop %v8692
    %v8727 = vrcp.pop %v8695
    %v8728 = vrcp.pop %v8698
    %v8729 = vrcp.pop %v8701
    %v8730 = vrcp.pop %v8704
    %v8731 = vrcp.pop %v8707
    %v8732 = vrcp.pop %v8710
    %v8733 = vrcp.pop %v8713
    %v8734 = vrcp.pop %v8716
    %v8735 = vrcp.pop %v8719
    %v8736 = vmul.f32 %v8641, %v8720
    %v8737 = vmul.f32 %v8643, %v8721
    %v8738 = vmul.f32 %v8645, %v8722
    %v8739 = vmul.f32 %v8647, %v8723
    %v8740 = vmul.f32 %v8649, %v8724
    %v8741 = vmul.f32 %v8651, %v8725
    %v8742 = vmul.f32 %v8653, %v8726
    %v8743 = vmul.f32 %v8655, %v8727
    %v8744 = vmul.f32 %v8657, %v8728
    %v8745 = vmul.f32 %v8659, %v8729
    %v8746 = vmul.f32 %v8661, %v8730
    %v8747 = vmul.f32 %v8663, %v8731
    %v8748 = vmul.f32 %v8665, %v8732
    %v8749 = vmul.f32 %v8667, %v8733
    %v8750 = vmul.f32 %v8669, %v8734
    %v8751 = vmul.f32 %v8671, %v8735
    %v8753 = vsel %vm1967, %v8736, 0
    %8755 = vmatprep.subr.mxu0 0.0
    %8756 = vmatpush1.msra.mxu0 0.0
    %8757 = vmatprep.subr.mxu0 0.0
    %8758 = vmatpush1.msra.mxu0 0.0
    %8759 = vmatprep.subr.mxu0 0.0
    %8760 = vmatpush1.msra.mxu0 0.0
    %8761 = vmatprep.subr.mxu0 0.0
    %8762 = vmatpush1.msra.mxu0 0.0
    %8763 = vmatprep.subr.mxu0 0.0
    %8764 = vmatpush1.msra.mxu0 0.0
    %8765 = vmatprep.subr.mxu0 0.0
    %8766 = vmatpush1.msra.mxu0 0.0
    %8767 = vmatprep.subr.mxu0 0.0
    %8768 = vmatpush1.msra.mxu0 0.0
    %8769 = vmatprep.subr.mxu0 0.0
    %8770 = vmatpush1.msra.mxu0 0.0
    %8771 = vmatprep.subr.mxu0 0.0
    %8772 = vmatpush1.msra.mxu0 0.0
    %8773 = vmatprep.subr.mxu0 0.0
    %8774 = vmatpush1.msra.mxu0 0.0
    %8775 = vmatprep.subr.mxu0 0.0
    %8776 = vmatpush1.msra.mxu0 0.0
    %8777 = vmatprep.subr.mxu0 0.0
    %8778 = vmatpush1.msra.mxu0 0.0
    %8779 = vmatprep.subr.mxu0 0.0
    %8780 = vmatpush1.msra.mxu0 0.0
    %8781 = vmatprep.subr.mxu0 0.0
    %8782 = vmatpush1.msra.mxu0 0.0
    %8783 = vmatprep.subr.mxu0 0.0
    %8784 = vmatpush1.msra.mxu0 0.0
    %8785 = vmatprep.subr.mxu0 0.0
    %8786 = vmatpush1.msra.mxu0 %v7152
    %8787 = vmatprep.subr.mxu0 0.0
    %8788 = vmatpush2.msra.mxu0 0.0
    %8789 = vmatprep.subr.mxu0 0.0
    %8790 = vmatpush2.msra.mxu0 0.0
    %8791 = vmatprep.subr.mxu0 0.0
    %8792 = vmatpush2.msra.mxu0 0.0
    %8793 = vmatprep.subr.mxu0 0.0
    %8794 = vmatpush2.msra.mxu0 0.0
    %8795 = vmatprep.subr.mxu0 0.0
    %8796 = vmatpush2.msra.mxu0 0.0
    %8797 = vmatprep.subr.mxu0 0.0
    %8798 = vmatpush2.msra.mxu0 0.0
    %8799 = vmatprep.subr.mxu0 0.0
    %8800 = vmatpush2.msra.mxu0 0.0
    %8801 = vmatprep.subr.mxu0 0.0
    %8802 = vmatpush2.msra.mxu0 0.0
    %8803 = vmatprep.subr.mxu0 0.0
    %8804 = vmatpush2.msra.mxu0 0.0
    %8805 = vmatprep.subr.mxu0 0.0
    %8806 = vmatpush2.msra.mxu0 0.0
    %8807 = vmatprep.subr.mxu0 0.0
    %8808 = vmatpush2.msra.mxu0 0.0
    %8809 = vmatprep.subr.mxu0 0.0
    %8810 = vmatpush2.msra.mxu0 0.0
    %8811 = vmatprep.subr.mxu0 0.0
    %8812 = vmatpush2.msra.mxu0 0.0
    %8813 = vmatprep.subr.mxu0 0.0
    %8814 = vmatpush2.msra.mxu0 0.0
    %8815 = vmatprep.subr.mxu0 0.0
    %8816 = vmatpush2.msra.mxu0 0.0
    %8817 = vmatprep.subr.mxu0 0.0
    %8818 = vmatpush2.msra.mxu0 0.0
    %8819 = vmatprep.mubr.f32.mxu0 0.0
    %8820 = vmatmul.mubr.f32.gmra.mxu0 %v8753
    %v8821 = vpop.f32.mrf.mxu0
    %v8822 = vadd.f32 0.0, %v8821
    %v8823 = vpop.f32.mrf.mxu0
    %8824 = vdwg.mxu0
    %v8826 = vsel %vm1967, %v8737, 0
    %8828 = vmatprep.subr.mxu0 0.0
    %8829 = vmatpush1.msra.mxu0 0.0
    %8830 = vmatprep.subr.mxu0 0.0
    %8831 = vmatpush1.msra.mxu0 0.0
    %8832 = vmatprep.subr.mxu0 0.0
    %8833 = vmatpush1.msra.mxu0 0.0
    %8834 = vmatprep.subr.mxu0 0.0
    %8835 = vmatpush1.msra.mxu0 0.0
    %8836 = vmatprep.subr.mxu0 0.0
    %8837 = vmatpush1.msra.mxu0 0.0
    %8838 = vmatprep.subr.mxu0 0.0
    %8839 = vmatpush1.msra.mxu0 0.0
    %8840 = vmatprep.subr.mxu0 0.0
    %8841 = vmatpush1.msra.mxu0 0.0
    %8842 = vmatprep.subr.mxu0 0.0
    %8843 = vmatpush1.msra.mxu0 0.0
    %8844 = vmatprep.subr.mxu0 0.0
    %8845 = vmatpush1.msra.mxu0 0.0
    %8846 = vmatprep.subr.mxu0 0.0
    %8847 = vmatpush1.msra.mxu0 0.0
    %8848 = vmatprep.subr.mxu0 0.0
    %8849 = vmatpush1.msra.mxu0 0.0
    %8850 = vmatprep.subr.mxu0 0.0
    %8851 = vmatpush1.msra.mxu0 0.0
    %8852 = vmatprep.subr.mxu0 0.0
    %8853 = vmatpush1.msra.mxu0 0.0
    %8854 = vmatprep.subr.mxu0 0.0
    %8855 = vmatpush1.msra.mxu0 0.0
    %8856 = vmatprep.subr.mxu0 0.0
    %8857 = vmatpush1.msra.mxu0 0.0
    %8858 = vmatprep.subr.mxu0 0.0
    %8859 = vmatpush1.msra.mxu0 %v7220
    %8860 = vmatprep.subr.mxu0 0.0
    %8861 = vmatpush2.msra.mxu0 0.0
    %8862 = vmatprep.subr.mxu0 0.0
    %8863 = vmatpush2.msra.mxu0 0.0
    %8864 = vmatprep.subr.mxu0 0.0
    %8865 = vmatpush2.msra.mxu0 0.0
    %8866 = vmatprep.subr.mxu0 0.0
    %8867 = vmatpush2.msra.mxu0 0.0
    %8868 = vmatprep.subr.mxu0 0.0
    %8869 = vmatpush2.msra.mxu0 0.0
    %8870 = vmatprep.subr.mxu0 0.0
    %8871 = vmatpush2.msra.mxu0 0.0
    %8872 = vmatprep.subr.mxu0 0.0
    %8873 = vmatpush2.msra.mxu0 0.0
    %8874 = vmatprep.subr.mxu0 0.0
    %8875 = vmatpush2.msra.mxu0 0.0
    %8876 = vmatprep.subr.mxu0 0.0
    %8877 = vmatpush2.msra.mxu0 0.0
    %8878 = vmatprep.subr.mxu0 0.0
    %8879 = vmatpush2.msra.mxu0 0.0
    %8880 = vmatprep.subr.mxu0 0.0
    %8881 = vmatpush2.msra.mxu0 0.0
    %8882 = vmatprep.subr.mxu0 0.0
    %8883 = vmatpush2.msra.mxu0 0.0
    %8884 = vmatprep.subr.mxu0 0.0
    %8885 = vmatpush2.msra.mxu0 0.0
    %8886 = vmatprep.subr.mxu0 0.0
    %8887 = vmatpush2.msra.mxu0 0.0
    %8888 = vmatprep.subr.mxu0 0.0
    %8889 = vmatpush2.msra.mxu0 0.0
    %8890 = vmatprep.subr.mxu0 0.0
    %8891 = vmatpush2.msra.mxu0 0.0
    %8892 = vmatprep.mubr.f32.mxu0 0.0
    %8893 = vmatmul.mubr.f32.gmra.mxu0 %v8826
    %v8894 = vpop.f32.mrf.mxu0
    %v8895 = vadd.f32 0.0, %v8894
    %v8896 = vpop.f32.mrf.mxu0
    %8897 = vdwg.mxu0
    %v8899 = vsel %vm1967, %v8738, 0
    %8901 = vmatprep.subr.mxu0 0.0
    %8902 = vmatpush1.msra.mxu0 0.0
    %8903 = vmatprep.subr.mxu0 0.0
    %8904 = vmatpush1.msra.mxu0 0.0
    %8905 = vmatprep.subr.mxu0 0.0
    %8906 = vmatpush1.msra.mxu0 0.0
    %8907 = vmatprep.subr.mxu0 0.0
    %8908 = vmatpush1.msra.mxu0 0.0
    %8909 = vmatprep.subr.mxu0 0.0
    %8910 = vmatpush1.msra.mxu0 0.0
    %8911 = vmatprep.subr.mxu0 0.0
    %8912 = vmatpush1.msra.mxu0 0.0
    %8913 = vmatprep.subr.mxu0 0.0
    %8914 = vmatpush1.msra.mxu0 0.0
    %8915 = vmatprep.subr.mxu0 0.0
    %8916 = vmatpush1.msra.mxu0 0.0
    %8917 = vmatprep.subr.mxu0 0.0
    %8918 = vmatpush1.msra.mxu0 0.0
    %8919 = vmatprep.subr.mxu0 0.0
    %8920 = vmatpush1.msra.mxu0 0.0
    %8921 = vmatprep.subr.mxu0 0.0
    %8922 = vmatpush1.msra.mxu0 0.0
    %8923 = vmatprep.subr.mxu0 0.0
    %8924 = vmatpush1.msra.mxu0 0.0
    %8925 = vmatprep.subr.mxu0 0.0
    %8926 = vmatpush1.msra.mxu0 0.0
    %8927 = vmatprep.subr.mxu0 0.0
    %8928 = vmatpush1.msra.mxu0 0.0
    %8929 = vmatprep.subr.mxu0 0.0
    %8930 = vmatpush1.msra.mxu0 0.0
    %8931 = vmatprep.subr.mxu0 0.0
    %8932 = vmatpush1.msra.mxu0 %v7288
    %8933 = vmatprep.subr.mxu0 0.0
    %8934 = vmatpush2.msra.mxu0 0.0
    %8935 = vmatprep.subr.mxu0 0.0
    %8936 = vmatpush2.msra.mxu0 0.0
    %8937 = vmatprep.subr.mxu0 0.0
    %8938 = vmatpush2.msra.mxu0 0.0
    %8939 = vmatprep.subr.mxu0 0.0
    %8940 = vmatpush2.msra.mxu0 0.0
    %8941 = vmatprep.subr.mxu0 0.0
    %8942 = vmatpush2.msra.mxu0 0.0
    %8943 = vmatprep.subr.mxu0 0.0
    %8944 = vmatpush2.msra.mxu0 0.0
    %8945 = vmatprep.subr.mxu0 0.0
    %8946 = vmatpush2.msra.mxu0 0.0
    %8947 = vmatprep.subr.mxu0 0.0
    %8948 = vmatpush2.msra.mxu0 0.0
    %8949 = vmatprep.subr.mxu0 0.0
    %8950 = vmatpush2.msra.mxu0 0.0
    %8951 = vmatprep.subr.mxu0 0.0
    %8952 = vmatpush2.msra.mxu0 0.0
    %8953 = vmatprep.subr.mxu0 0.0
    %8954 = vmatpush2.msra.mxu0 0.0
    %8955 = vmatprep.subr.mxu0 0.0
    %8956 = vmatpush2.msra.mxu0 0.0
    %8957 = vmatprep.subr.mxu0 0.0
    %8958 = vmatpush2.msra.mxu0 0.0
    %8959 = vmatprep.subr.mxu0 0.0
    %8960 = vmatpush2.msra.mxu0 0.0
    %8961 = vmatprep.subr.mxu0 0.0
    %8962 = vmatpush2.msra.mxu0 0.0
    %8963 = vmatprep.subr.mxu0 0.0
    %8964 = vmatpush2.msra.mxu0 0.0
    %8965 = vmatprep.mubr.f32.mxu0 0.0
    %8966 = vmatmul.mubr.f32.gmra.mxu0 %v8899
    %v8967 = vpop.f32.mrf.mxu0
    %v8968 = vadd.f32 0.0, %v8967
    %v8969 = vpop.f32.mrf.mxu0
    %8970 = vdwg.mxu0
    %v8972 = vsel %vm1967, %v8739, 0
    %8974 = vmatprep.subr.mxu0 0.0
    %8975 = vmatpush1.msra.mxu0 0.0
    %8976 = vmatprep.subr.mxu0 0.0
    %8977 = vmatpush1.msra.mxu0 0.0
    %8978 = vmatprep.subr.mxu0 0.0
    %8979 = vmatpush1.msra.mxu0 0.0
    %8980 = vmatprep.subr.mxu0 0.0
    %8981 = vmatpush1.msra.mxu0 0.0
    %8982 = vmatprep.subr.mxu0 0.0
    %8983 = vmatpush1.msra.mxu0 0.0
    %8984 = vmatprep.subr.mxu0 0.0
    %8985 = vmatpush1.msra.mxu0 0.0
    %8986 = vmatprep.subr.mxu0 0.0
    %8987 = vmatpush1.msra.mxu0 0.0
    %8988 = vmatprep.subr.mxu0 0.0
    %8989 = vmatpush1.msra.mxu0 0.0
    %8990 = vmatprep.subr.mxu0 0.0
    %8991 = vmatpush1.msra.mxu0 0.0
    %8992 = vmatprep.subr.mxu0 0.0
    %8993 = vmatpush1.msra.mxu0 0.0
    %8994 = vmatprep.subr.mxu0 0.0
    %8995 = vmatpush1.msra.mxu0 0.0
    %8996 = vmatprep.subr.mxu0 0.0
    %8997 = vmatpush1.msra.mxu0 0.0
    %8998 = vmatprep.subr.mxu0 0.0
    %8999 = vmatpush1.msra.mxu0 0.0
    %9000 = vmatprep.subr.mxu0 0.0
    %9001 = vmatpush1.msra.mxu0 0.0
    %9002 = vmatprep.subr.mxu0 0.0
    %9003 = vmatpush1.msra.mxu0 0.0
    %9004 = vmatprep.subr.mxu0 0.0
    %9005 = vmatpush1.msra.mxu0 %v7356
    %9006 = vmatprep.subr.mxu0 0.0
    %9007 = vmatpush2.msra.mxu0 0.0
    %9008 = vmatprep.subr.mxu0 0.0
    %9009 = vmatpush2.msra.mxu0 0.0
    %9010 = vmatprep.subr.mxu0 0.0
    %9011 = vmatpush2.msra.mxu0 0.0
    %9012 = vmatprep.subr.mxu0 0.0
    %9013 = vmatpush2.msra.mxu0 0.0
    %9014 = vmatprep.subr.mxu0 0.0
    %9015 = vmatpush2.msra.mxu0 0.0
    %9016 = vmatprep.subr.mxu0 0.0
    %9017 = vmatpush2.msra.mxu0 0.0
    %9018 = vmatprep.subr.mxu0 0.0
    %9019 = vmatpush2.msra.mxu0 0.0
    %9020 = vmatprep.subr.mxu0 0.0
    %9021 = vmatpush2.msra.mxu0 0.0
    %9022 = vmatprep.subr.mxu0 0.0
    %9023 = vmatpush2.msra.mxu0 0.0
    %9024 = vmatprep.subr.mxu0 0.0
    %9025 = vmatpush2.msra.mxu0 0.0
    %9026 = vmatprep.subr.mxu0 0.0
    %9027 = vmatpush2.msra.mxu0 0.0
    %9028 = vmatprep.subr.mxu0 0.0
    %9029 = vmatpush2.msra.mxu0 0.0
    %9030 = vmatprep.subr.mxu0 0.0
    %9031 = vmatpush2.msra.mxu0 0.0
    %9032 = vmatprep.subr.mxu0 0.0
    %9033 = vmatpush2.msra.mxu0 0.0
    %9034 = vmatprep.subr.mxu0 0.0
    %9035 = vmatpush2.msra.mxu0 0.0
    %9036 = vmatprep.subr.mxu0 0.0
    %9037 = vmatpush2.msra.mxu0 0.0
    %9038 = vmatprep.mubr.f32.mxu0 0.0
    %9039 = vmatmul.mubr.f32.gmra.mxu0 %v8972
    %v9040 = vpop.f32.mrf.mxu0
    %v9041 = vadd.f32 0.0, %v9040
    %v9042 = vpop.f32.mrf.mxu0
    %9043 = vdwg.mxu0
    %v9045 = vsel %vm1967, %v8740, 0
    %9047 = vmatprep.subr.mxu0 0.0
    %9048 = vmatpush1.msra.mxu0 0.0
    %9049 = vmatprep.subr.mxu0 0.0
    %9050 = vmatpush1.msra.mxu0 0.0
    %9051 = vmatprep.subr.mxu0 0.0
    %9052 = vmatpush1.msra.mxu0 0.0
    %9053 = vmatprep.subr.mxu0 0.0
    %9054 = vmatpush1.msra.mxu0 0.0
    %9055 = vmatprep.subr.mxu0 0.0
    %9056 = vmatpush1.msra.mxu0 0.0
    %9057 = vmatprep.subr.mxu0 0.0
    %9058 = vmatpush1.msra.mxu0 0.0
    %9059 = vmatprep.subr.mxu0 0.0
    %9060 = vmatpush1.msra.mxu0 0.0
    %9061 = vmatprep.subr.mxu0 0.0
    %9062 = vmatpush1.msra.mxu0 0.0
    %9063 = vmatprep.subr.mxu0 0.0
    %9064 = vmatpush1.msra.mxu0 0.0
    %9065 = vmatprep.subr.mxu0 0.0
    %9066 = vmatpush1.msra.mxu0 0.0
    %9067 = vmatprep.subr.mxu0 0.0
    %9068 = vmatpush1.msra.mxu0 0.0
    %9069 = vmatprep.subr.mxu0 0.0
    %9070 = vmatpush1.msra.mxu0 0.0
    %9071 = vmatprep.subr.mxu0 0.0
    %9072 = vmatpush1.msra.mxu0 0.0
    %9073 = vmatprep.subr.mxu0 0.0
    %9074 = vmatpush1.msra.mxu0 0.0
    %9075 = vmatprep.subr.mxu0 0.0
    %9076 = vmatpush1.msra.mxu0 0.0
    %9077 = vmatprep.subr.mxu0 0.0
    %9078 = vmatpush1.msra.mxu0 %v7153
    %9079 = vmatprep.subr.mxu0 0.0
    %9080 = vmatpush2.msra.mxu0 0.0
    %9081 = vmatprep.subr.mxu0 0.0
    %9082 = vmatpush2.msra.mxu0 0.0
    %9083 = vmatprep.subr.mxu0 0.0
    %9084 = vmatpush2.msra.mxu0 0.0
    %9085 = vmatprep.subr.mxu0 0.0
    %9086 = vmatpush2.msra.mxu0 0.0
    %9087 = vmatprep.subr.mxu0 0.0
    %9088 = vmatpush2.msra.mxu0 0.0
    %9089 = vmatprep.subr.mxu0 0.0
    %9090 = vmatpush2.msra.mxu0 0.0
    %9091 = vmatprep.subr.mxu0 0.0
    %9092 = vmatpush2.msra.mxu0 0.0
    %9093 = vmatprep.subr.mxu0 0.0
    %9094 = vmatpush2.msra.mxu0 0.0
    %9095 = vmatprep.subr.mxu0 0.0
    %9096 = vmatpush2.msra.mxu0 0.0
    %9097 = vmatprep.subr.mxu0 0.0
    %9098 = vmatpush2.msra.mxu0 0.0
    %9099 = vmatprep.subr.mxu0 0.0
    %9100 = vmatpush2.msra.mxu0 0.0
    %9101 = vmatprep.subr.mxu0 0.0
    %9102 = vmatpush2.msra.mxu0 0.0
    %9103 = vmatprep.subr.mxu0 0.0
    %9104 = vmatpush2.msra.mxu0 0.0
    %9105 = vmatprep.subr.mxu0 0.0
    %9106 = vmatpush2.msra.mxu0 0.0
    %9107 = vmatprep.subr.mxu0 0.0
    %9108 = vmatpush2.msra.mxu0 0.0
    %9109 = vmatprep.subr.mxu0 0.0
    %9110 = vmatpush2.msra.mxu0 0.0
    %9111 = vmatprep.mubr.f32.mxu0 0.0
    %9112 = vmatmul.mubr.f32.gmra.mxu0 %v9045
    %v9113 = vpop.f32.mrf.mxu0
    %v9114 = vadd.f32 0.0, %v9113
    %v9115 = vpop.f32.mrf.mxu0
    %9116 = vdwg.mxu0
    %v9118 = vsel %vm1967, %v8741, 0
    %9120 = vmatprep.subr.mxu0 0.0
    %9121 = vmatpush1.msra.mxu0 0.0
    %9122 = vmatprep.subr.mxu0 0.0
    %9123 = vmatpush1.msra.mxu0 0.0
    %9124 = vmatprep.subr.mxu0 0.0
    %9125 = vmatpush1.msra.mxu0 0.0
    %9126 = vmatprep.subr.mxu0 0.0
    %9127 = vmatpush1.msra.mxu0 0.0
    %9128 = vmatprep.subr.mxu0 0.0
    %9129 = vmatpush1.msra.mxu0 0.0
    %9130 = vmatprep.subr.mxu0 0.0
    %9131 = vmatpush1.msra.mxu0 0.0
    %9132 = vmatprep.subr.mxu0 0.0
    %9133 = vmatpush1.msra.mxu0 0.0
    %9134 = vmatprep.subr.mxu0 0.0
    %9135 = vmatpush1.msra.mxu0 0.0
    %9136 = vmatprep.subr.mxu0 0.0
    %9137 = vmatpush1.msra.mxu0 0.0
    %9138 = vmatprep.subr.mxu0 0.0
    %9139 = vmatpush1.msra.mxu0 0.0
    %9140 = vmatprep.subr.mxu0 0.0
    %9141 = vmatpush1.msra.mxu0 0.0
    %9142 = vmatprep.subr.mxu0 0.0
    %9143 = vmatpush1.msra.mxu0 0.0
    %9144 = vmatprep.subr.mxu0 0.0
    %9145 = vmatpush1.msra.mxu0 0.0
    %9146 = vmatprep.subr.mxu0 0.0
    %9147 = vmatpush1.msra.mxu0 0.0
    %9148 = vmatprep.subr.mxu0 0.0
    %9149 = vmatpush1.msra.mxu0 0.0
    %9150 = vmatprep.subr.mxu0 0.0
    %9151 = vmatpush1.msra.mxu0 %v7221
    %9152 = vmatprep.subr.mxu0 0.0
    %9153 = vmatpush2.msra.mxu0 0.0
    %9154 = vmatprep.subr.mxu0 0.0
    %9155 = vmatpush2.msra.mxu0 0.0
    %9156 = vmatprep.subr.mxu0 0.0
    %9157 = vmatpush2.msra.mxu0 0.0
    %9158 = vmatprep.subr.mxu0 0.0
    %9159 = vmatpush2.msra.mxu0 0.0
    %9160 = vmatprep.subr.mxu0 0.0
    %9161 = vmatpush2.msra.mxu0 0.0
    %9162 = vmatprep.subr.mxu0 0.0
    %9163 = vmatpush2.msra.mxu0 0.0
    %9164 = vmatprep.subr.mxu0 0.0
    %9165 = vmatpush2.msra.mxu0 0.0
    %9166 = vmatprep.subr.mxu0 0.0
    %9167 = vmatpush2.msra.mxu0 0.0
    %9168 = vmatprep.subr.mxu0 0.0
    %9169 = vmatpush2.msra.mxu0 0.0
    %9170 = vmatprep.subr.mxu0 0.0
    %9171 = vmatpush2.msra.mxu0 0.0
    %9172 = vmatprep.subr.mxu0 0.0
    %9173 = vmatpush2.msra.mxu0 0.0
    %9174 = vmatprep.subr.mxu0 0.0
    %9175 = vmatpush2.msra.mxu0 0.0
    %9176 = vmatprep.subr.mxu0 0.0
    %9177 = vmatpush2.msra.mxu0 0.0
    %9178 = vmatprep.subr.mxu0 0.0
    %9179 = vmatpush2.msra.mxu0 0.0
    %9180 = vmatprep.subr.mxu0 0.0
    %9181 = vmatpush2.msra.mxu0 0.0
    %9182 = vmatprep.subr.mxu0 0.0
    %9183 = vmatpush2.msra.mxu0 0.0
    %9184 = vmatprep.mubr.f32.mxu0 0.0
    %9185 = vmatmul.mubr.f32.gmra.mxu0 %v9118
    %v9186 = vpop.f32.mrf.mxu0
    %v9187 = vadd.f32 0.0, %v9186
    %v9188 = vpop.f32.mrf.mxu0
    %9189 = vdwg.mxu0
    %v9191 = vsel %vm1967, %v8742, 0
    %9193 = vmatprep.subr.mxu0 0.0
    %9194 = vmatpush1.msra.mxu0 0.0
    %9195 = vmatprep.subr.mxu0 0.0
    %9196 = vmatpush1.msra.mxu0 0.0
    %9197 = vmatprep.subr.mxu0 0.0
    %9198 = vmatpush1.msra.mxu0 0.0
    %9199 = vmatprep.subr.mxu0 0.0
    %9200 = vmatpush1.msra.mxu0 0.0
    %9201 = vmatprep.subr.mxu0 0.0
    %9202 = vmatpush1.msra.mxu0 0.0
    %9203 = vmatprep.subr.mxu0 0.0
    %9204 = vmatpush1.msra.mxu0 0.0
    %9205 = vmatprep.subr.mxu0 0.0
    %9206 = vmatpush1.msra.mxu0 0.0
    %9207 = vmatprep.subr.mxu0 0.0
    %9208 = vmatpush1.msra.mxu0 0.0
    %9209 = vmatprep.subr.mxu0 0.0
    %9210 = vmatpush1.msra.mxu0 0.0
    %9211 = vmatprep.subr.mxu0 0.0
    %9212 = vmatpush1.msra.mxu0 0.0
    %9213 = vmatprep.subr.mxu0 0.0
    %9214 = vmatpush1.msra.mxu0 0.0
    %9215 = vmatprep.subr.mxu0 0.0
    %9216 = vmatpush1.msra.mxu0 0.0
    %9217 = vmatprep.subr.mxu0 0.0
    %9218 = vmatpush1.msra.mxu0 0.0
    %9219 = vmatprep.subr.mxu0 0.0
    %9220 = vmatpush1.msra.mxu0 0.0
    %9221 = vmatprep.subr.mxu0 0.0
    %9222 = vmatpush1.msra.mxu0 0.0
    %9223 = vmatprep.subr.mxu0 0.0
    %9224 = vmatpush1.msra.mxu0 %v7289
    %9225 = vmatprep.subr.mxu0 0.0
    %9226 = vmatpush2.msra.mxu0 0.0
    %9227 = vmatprep.subr.mxu0 0.0
    %9228 = vmatpush2.msra.mxu0 0.0
    %9229 = vmatprep.subr.mxu0 0.0
    %9230 = vmatpush2.msra.mxu0 0.0
    %9231 = vmatprep.subr.mxu0 0.0
    %9232 = vmatpush2.msra.mxu0 0.0
    %9233 = vmatprep.subr.mxu0 0.0
    %9234 = vmatpush2.msra.mxu0 0.0
    %9235 = vmatprep.subr.mxu0 0.0
    %9236 = vmatpush2.msra.mxu0 0.0
    %9237 = vmatprep.subr.mxu0 0.0
    %9238 = vmatpush2.msra.mxu0 0.0
    %9239 = vmatprep.subr.mxu0 0.0
    %9240 = vmatpush2.msra.mxu0 0.0
    %9241 = vmatprep.subr.mxu0 0.0
    %9242 = vmatpush2.msra.mxu0 0.0
    %9243 = vmatprep.subr.mxu0 0.0
    %9244 = vmatpush2.msra.mxu0 0.0
    %9245 = vmatprep.subr.mxu0 0.0
    %9246 = vmatpush2.msra.mxu0 0.0
    %9247 = vmatprep.subr.mxu0 0.0
    %9248 = vmatpush2.msra.mxu0 0.0
    %9249 = vmatprep.subr.mxu0 0.0
    %9250 = vmatpush2.msra.mxu0 0.0
    %9251 = vmatprep.subr.mxu0 0.0
    %9252 = vmatpush2.msra.mxu0 0.0
    %9253 = vmatprep.subr.mxu0 0.0
    %9254 = vmatpush2.msra.mxu0 0.0
    %9255 = vmatprep.subr.mxu0 0.0
    %9256 = vmatpush2.msra.mxu0 0.0
    %9257 = vmatprep.mubr.f32.mxu0 0.0
    %9258 = vmatmul.mubr.f32.gmra.mxu0 %v9191
    %v9259 = vpop.f32.mrf.mxu0
    %v9260 = vadd.f32 0.0, %v9259
    %v9261 = vpop.f32.mrf.mxu0
    %9262 = vdwg.mxu0
    %v9264 = vsel %vm1967, %v8743, 0
    %9266 = vmatprep.subr.mxu0 0.0
    %9267 = vmatpush1.msra.mxu0 0.0
    %9268 = vmatprep.subr.mxu0 0.0
    %9269 = vmatpush1.msra.mxu0 0.0
    %9270 = vmatprep.subr.mxu0 0.0
    %9271 = vmatpush1.msra.mxu0 0.0
    %9272 = vmatprep.subr.mxu0 0.0
    %9273 = vmatpush1.msra.mxu0 0.0
    %9274 = vmatprep.subr.mxu0 0.0
    %9275 = vmatpush1.msra.mxu0 0.0
    %9276 = vmatprep.subr.mxu0 0.0
    %9277 = vmatpush1.msra.mxu0 0.0
    %9278 = vmatprep.subr.mxu0 0.0
    %9279 = vmatpush1.msra.mxu0 0.0
    %9280 = vmatprep.subr.mxu0 0.0
    %9281 = vmatpush1.msra.mxu0 0.0
    %9282 = vmatprep.subr.mxu0 0.0
    %9283 = vmatpush1.msra.mxu0 0.0
    %9284 = vmatprep.subr.mxu0 0.0
    %9285 = vmatpush1.msra.mxu0 0.0
    %9286 = vmatprep.subr.mxu0 0.0
    %9287 = vmatpush1.msra.mxu0 0.0
    %9288 = vmatprep.subr.mxu0 0.0
    %9289 = vmatpush1.msra.mxu0 0.0
    %9290 = vmatprep.subr.mxu0 0.0
    %9291 = vmatpush1.msra.mxu0 0.0
    %9292 = vmatprep.subr.mxu0 0.0
    %9293 = vmatpush1.msra.mxu0 0.0
    %9294 = vmatprep.subr.mxu0 0.0
    %9295 = vmatpush1.msra.mxu0 0.0
    %9296 = vmatprep.subr.mxu0 0.0
    %9297 = vmatpush1.msra.mxu0 %v7357
    %9298 = vmatprep.subr.mxu0 0.0
    %9299 = vmatpush2.msra.mxu0 0.0
    %9300 = vmatprep.subr.mxu0 0.0
    %9301 = vmatpush2.msra.mxu0 0.0
    %9302 = vmatprep.subr.mxu0 0.0
    %9303 = vmatpush2.msra.mxu0 0.0
    %9304 = vmatprep.subr.mxu0 0.0
    %9305 = vmatpush2.msra.mxu0 0.0
    %9306 = vmatprep.subr.mxu0 0.0
    %9307 = vmatpush2.msra.mxu0 0.0
    %9308 = vmatprep.subr.mxu0 0.0
    %9309 = vmatpush2.msra.mxu0 0.0
    %9310 = vmatprep.subr.mxu0 0.0
    %9311 = vmatpush2.msra.mxu0 0.0
    %9312 = vmatprep.subr.mxu0 0.0
    %9313 = vmatpush2.msra.mxu0 0.0
    %9314 = vmatprep.subr.mxu0 0.0
    %9315 = vmatpush2.msra.mxu0 0.0
    %9316 = vmatprep.subr.mxu0 0.0
    %9317 = vmatpush2.msra.mxu0 0.0
    %9318 = vmatprep.subr.mxu0 0.0
    %9319 = vmatpush2.msra.mxu0 0.0
    %9320 = vmatprep.subr.mxu0 0.0
    %9321 = vmatpush2.msra.mxu0 0.0
    %9322 = vmatprep.subr.mxu0 0.0
    %9323 = vmatpush2.msra.mxu0 0.0
    %9324 = vmatprep.subr.mxu0 0.0
    %9325 = vmatpush2.msra.mxu0 0.0
    %9326 = vmatprep.subr.mxu0 0.0
    %9327 = vmatpush2.msra.mxu0 0.0
    %9328 = vmatprep.subr.mxu0 0.0
    %9329 = vmatpush2.msra.mxu0 0.0
    %9330 = vmatprep.mubr.f32.mxu0 0.0
    %9331 = vmatmul.mubr.f32.gmra.mxu0 %v9264
    %v9332 = vpop.f32.mrf.mxu0
    %v9333 = vadd.f32 0.0, %v9332
    %v9334 = vpop.f32.mrf.mxu0
    %9335 = vdwg.mxu0
    %v9337 = vsel %vm1967, %v8744, 0
    %9339 = vmatprep.subr.mxu0 0.0
    %9340 = vmatpush1.msra.mxu0 0.0
    %9341 = vmatprep.subr.mxu0 0.0
    %9342 = vmatpush1.msra.mxu0 0.0
    %9343 = vmatprep.subr.mxu0 0.0
    %9344 = vmatpush1.msra.mxu0 0.0
    %9345 = vmatprep.subr.mxu0 0.0
    %9346 = vmatpush1.msra.mxu0 0.0
    %9347 = vmatprep.subr.mxu0 0.0
    %9348 = vmatpush1.msra.mxu0 0.0
    %9349 = vmatprep.subr.mxu0 0.0
    %9350 = vmatpush1.msra.mxu0 0.0
    %9351 = vmatprep.subr.mxu0 0.0
    %9352 = vmatpush1.msra.mxu0 0.0
    %9353 = vmatprep.subr.mxu0 0.0
    %9354 = vmatpush1.msra.mxu0 0.0
    %9355 = vmatprep.subr.mxu0 0.0
    %9356 = vmatpush1.msra.mxu0 0.0
    %9357 = vmatprep.subr.mxu0 0.0
    %9358 = vmatpush1.msra.mxu0 0.0
    %9359 = vmatprep.subr.mxu0 0.0
    %9360 = vmatpush1.msra.mxu0 0.0
    %9361 = vmatprep.subr.mxu0 0.0
    %9362 = vmatpush1.msra.mxu0 0.0
    %9363 = vmatprep.subr.mxu0 0.0
    %9364 = vmatpush1.msra.mxu0 0.0
    %9365 = vmatprep.subr.mxu0 0.0
    %9366 = vmatpush1.msra.mxu0 0.0
    %9367 = vmatprep.subr.mxu0 0.0
    %9368 = vmatpush1.msra.mxu0 0.0
    %9369 = vmatprep.subr.mxu0 0.0
    %9370 = vmatpush1.msra.mxu0 %v7154
    %9371 = vmatprep.subr.mxu0 0.0
    %9372 = vmatpush2.msra.mxu0 0.0
    %9373 = vmatprep.subr.mxu0 0.0
    %9374 = vmatpush2.msra.mxu0 0.0
    %9375 = vmatprep.subr.mxu0 0.0
    %9376 = vmatpush2.msra.mxu0 0.0
    %9377 = vmatprep.subr.mxu0 0.0
    %9378 = vmatpush2.msra.mxu0 0.0
    %9379 = vmatprep.subr.mxu0 0.0
    %9380 = vmatpush2.msra.mxu0 0.0
    %9381 = vmatprep.subr.mxu0 0.0
    %9382 = vmatpush2.msra.mxu0 0.0
    %9383 = vmatprep.subr.mxu0 0.0
    %9384 = vmatpush2.msra.mxu0 0.0
    %9385 = vmatprep.subr.mxu0 0.0
    %9386 = vmatpush2.msra.mxu0 0.0
    %9387 = vmatprep.subr.mxu0 0.0
    %9388 = vmatpush2.msra.mxu0 0.0
    %9389 = vmatprep.subr.mxu0 0.0
    %9390 = vmatpush2.msra.mxu0 0.0
    %9391 = vmatprep.subr.mxu0 0.0
    %9392 = vmatpush2.msra.mxu0 0.0
    %9393 = vmatprep.subr.mxu0 0.0
    %9394 = vmatpush2.msra.mxu0 0.0
    %9395 = vmatprep.subr.mxu0 0.0
    %9396 = vmatpush2.msra.mxu0 0.0
    %9397 = vmatprep.subr.mxu0 0.0
    %9398 = vmatpush2.msra.mxu0 0.0
    %9399 = vmatprep.subr.mxu0 0.0
    %9400 = vmatpush2.msra.mxu0 0.0
    %9401 = vmatprep.subr.mxu0 0.0
    %9402 = vmatpush2.msra.mxu0 0.0
    %9403 = vmatprep.mubr.f32.mxu0 0.0
    %9404 = vmatmul.mubr.f32.gmra.mxu0 %v9337
    %v9405 = vpop.f32.mrf.mxu0
    %v9406 = vadd.f32 0.0, %v9405
    %v9407 = vpop.f32.mrf.mxu0
    %9408 = vdwg.mxu0
    %v9410 = vsel %vm1967, %v8745, 0
    %9412 = vmatprep.subr.mxu0 0.0
    %9413 = vmatpush1.msra.mxu0 0.0
    %9414 = vmatprep.subr.mxu0 0.0
    %9415 = vmatpush1.msra.mxu0 0.0
    %9416 = vmatprep.subr.mxu0 0.0
    %9417 = vmatpush1.msra.mxu0 0.0
    %9418 = vmatprep.subr.mxu0 0.0
    %9419 = vmatpush1.msra.mxu0 0.0
    %9420 = vmatprep.subr.mxu0 0.0
    %9421 = vmatpush1.msra.mxu0 0.0
    %9422 = vmatprep.subr.mxu0 0.0
    %9423 = vmatpush1.msra.mxu0 0.0
    %9424 = vmatprep.subr.mxu0 0.0
    %9425 = vmatpush1.msra.mxu0 0.0
    %9426 = vmatprep.subr.mxu0 0.0
    %9427 = vmatpush1.msra.mxu0 0.0
    %9428 = vmatprep.subr.mxu0 0.0
    %9429 = vmatpush1.msra.mxu0 0.0
    %9430 = vmatprep.subr.mxu0 0.0
    %9431 = vmatpush1.msra.mxu0 0.0
    %9432 = vmatprep.subr.mxu0 0.0
    %9433 = vmatpush1.msra.mxu0 0.0
    %9434 = vmatprep.subr.mxu0 0.0
    %9435 = vmatpush1.msra.mxu0 0.0
    %9436 = vmatprep.subr.mxu0 0.0
    %9437 = vmatpush1.msra.mxu0 0.0
    %9438 = vmatprep.subr.mxu0 0.0
    %9439 = vmatpush1.msra.mxu0 0.0
    %9440 = vmatprep.subr.mxu0 0.0
    %9441 = vmatpush1.msra.mxu0 0.0
    %9442 = vmatprep.subr.mxu0 0.0
    %9443 = vmatpush1.msra.mxu0 %v7222
    %9444 = vmatprep.subr.mxu0 0.0
    %9445 = vmatpush2.msra.mxu0 0.0
    %9446 = vmatprep.subr.mxu0 0.0
    %9447 = vmatpush2.msra.mxu0 0.0
    %9448 = vmatprep.subr.mxu0 0.0
    %9449 = vmatpush2.msra.mxu0 0.0
    %9450 = vmatprep.subr.mxu0 0.0
    %9451 = vmatpush2.msra.mxu0 0.0
    %9452 = vmatprep.subr.mxu0 0.0
    %9453 = vmatpush2.msra.mxu0 0.0
    %9454 = vmatprep.subr.mxu0 0.0
    %9455 = vmatpush2.msra.mxu0 0.0
    %9456 = vmatprep.subr.mxu0 0.0
    %9457 = vmatpush2.msra.mxu0 0.0
    %9458 = vmatprep.subr.mxu0 0.0
    %9459 = vmatpush2.msra.mxu0 0.0
    %9460 = vmatprep.subr.mxu0 0.0
    %9461 = vmatpush2.msra.mxu0 0.0
    %9462 = vmatprep.subr.mxu0 0.0
    %9463 = vmatpush2.msra.mxu0 0.0
    %9464 = vmatprep.subr.mxu0 0.0
    %9465 = vmatpush2.msra.mxu0 0.0
    %9466 = vmatprep.subr.mxu0 0.0
    %9467 = vmatpush2.msra.mxu0 0.0
    %9468 = vmatprep.subr.mxu0 0.0
    %9469 = vmatpush2.msra.mxu0 0.0
    %9470 = vmatprep.subr.mxu0 0.0
    %9471 = vmatpush2.msra.mxu0 0.0
    %9472 = vmatprep.subr.mxu0 0.0
    %9473 = vmatpush2.msra.mxu0 0.0
    %9474 = vmatprep.subr.mxu0 0.0
    %9475 = vmatpush2.msra.mxu0 0.0
    %9476 = vmatprep.mubr.f32.mxu0 0.0
    %9477 = vmatmul.mubr.f32.gmra.mxu0 %v9410
    %v9478 = vpop.f32.mrf.mxu0
    %v9479 = vadd.f32 0.0, %v9478
    %v9480 = vpop.f32.mrf.mxu0
    %9481 = vdwg.mxu0
    %v9483 = vsel %vm1967, %v8746, 0
    %9485 = vmatprep.subr.mxu0 0.0
    %9486 = vmatpush1.msra.mxu0 0.0
    %9487 = vmatprep.subr.mxu0 0.0
    %9488 = vmatpush1.msra.mxu0 0.0
    %9489 = vmatprep.subr.mxu0 0.0
    %9490 = vmatpush1.msra.mxu0 0.0
    %9491 = vmatprep.subr.mxu0 0.0
    %9492 = vmatpush1.msra.mxu0 0.0
    %9493 = vmatprep.subr.mxu0 0.0
    %9494 = vmatpush1.msra.mxu0 0.0
    %9495 = vmatprep.subr.mxu0 0.0
    %9496 = vmatpush1.msra.mxu0 0.0
    %9497 = vmatprep.subr.mxu0 0.0
    %9498 = vmatpush1.msra.mxu0 0.0
    %9499 = vmatprep.subr.mxu0 0.0
    %9500 = vmatpush1.msra.mxu0 0.0
    %9501 = vmatprep.subr.mxu0 0.0
    %9502 = vmatpush1.msra.mxu0 0.0
    %9503 = vmatprep.subr.mxu0 0.0
    %9504 = vmatpush1.msra.mxu0 0.0
    %9505 = vmatprep.subr.mxu0 0.0
    %9506 = vmatpush1.msra.mxu0 0.0
    %9507 = vmatprep.subr.mxu0 0.0
    %9508 = vmatpush1.msra.mxu0 0.0
    %9509 = vmatprep.subr.mxu0 0.0
    %9510 = vmatpush1.msra.mxu0 0.0
    %9511 = vmatprep.subr.mxu0 0.0
    %9512 = vmatpush1.msra.mxu0 0.0
    %9513 = vmatprep.subr.mxu0 0.0
    %9514 = vmatpush1.msra.mxu0 0.0
    %9515 = vmatprep.subr.mxu0 0.0
    %9516 = vmatpush1.msra.mxu0 %v7290
    %9517 = vmatprep.subr.mxu0 0.0
    %9518 = vmatpush2.msra.mxu0 0.0
    %9519 = vmatprep.subr.mxu0 0.0
    %9520 = vmatpush2.msra.mxu0 0.0
    %9521 = vmatprep.subr.mxu0 0.0
    %9522 = vmatpush2.msra.mxu0 0.0
    %9523 = vmatprep.subr.mxu0 0.0
    %9524 = vmatpush2.msra.mxu0 0.0
    %9525 = vmatprep.subr.mxu0 0.0
    %9526 = vmatpush2.msra.mxu0 0.0
    %9527 = vmatprep.subr.mxu0 0.0
    %9528 = vmatpush2.msra.mxu0 0.0
    %9529 = vmatprep.subr.mxu0 0.0
    %9530 = vmatpush2.msra.mxu0 0.0
    %9531 = vmatprep.subr.mxu0 0.0
    %9532 = vmatpush2.msra.mxu0 0.0
    %9533 = vmatprep.subr.mxu0 0.0
    %9534 = vmatpush2.msra.mxu0 0.0
    %9535 = vmatprep.subr.mxu0 0.0
    %9536 = vmatpush2.msra.mxu0 0.0
    %9537 = vmatprep.subr.mxu0 0.0
    %9538 = vmatpush2.msra.mxu0 0.0
    %9539 = vmatprep.subr.mxu0 0.0
    %9540 = vmatpush2.msra.mxu0 0.0
    %9541 = vmatprep.subr.mxu0 0.0
    %9542 = vmatpush2.msra.mxu0 0.0
    %9543 = vmatprep.subr.mxu0 0.0
    %9544 = vmatpush2.msra.mxu0 0.0
    %9545 = vmatprep.subr.mxu0 0.0
    %9546 = vmatpush2.msra.mxu0 0.0
    %9547 = vmatprep.subr.mxu0 0.0
    %9548 = vmatpush2.msra.mxu0 0.0
    %9549 = vmatprep.mubr.f32.mxu0 0.0
    %9550 = vmatmul.mubr.f32.gmra.mxu0 %v9483
    %v9551 = vpop.f32.mrf.mxu0
    %v9552 = vadd.f32 0.0, %v9551
    %v9553 = vpop.f32.mrf.mxu0
    %9554 = vdwg.mxu0
    %v9556 = vsel %vm1967, %v8747, 0
    %9558 = vmatprep.subr.mxu0 0.0
    %9559 = vmatpush1.msra.mxu0 0.0
    %9560 = vmatprep.subr.mxu0 0.0
    %9561 = vmatpush1.msra.mxu0 0.0
    %9562 = vmatprep.subr.mxu0 0.0
    %9563 = vmatpush1.msra.mxu0 0.0
    %9564 = vmatprep.subr.mxu0 0.0
    %9565 = vmatpush1.msra.mxu0 0.0
    %9566 = vmatprep.subr.mxu0 0.0
    %9567 = vmatpush1.msra.mxu0 0.0
    %9568 = vmatprep.subr.mxu0 0.0
    %9569 = vmatpush1.msra.mxu0 0.0
    %9570 = vmatprep.subr.mxu0 0.0
    %9571 = vmatpush1.msra.mxu0 0.0
    %9572 = vmatprep.subr.mxu0 0.0
    %9573 = vmatpush1.msra.mxu0 0.0
    %9574 = vmatprep.subr.mxu0 0.0
    %9575 = vmatpush1.msra.mxu0 0.0
    %9576 = vmatprep.subr.mxu0 0.0
    %9577 = vmatpush1.msra.mxu0 0.0
    %9578 = vmatprep.subr.mxu0 0.0
    %9579 = vmatpush1.msra.mxu0 0.0
    %9580 = vmatprep.subr.mxu0 0.0
    %9581 = vmatpush1.msra.mxu0 0.0
    %9582 = vmatprep.subr.mxu0 0.0
    %9583 = vmatpush1.msra.mxu0 0.0
    %9584 = vmatprep.subr.mxu0 0.0
    %9585 = vmatpush1.msra.mxu0 0.0
    %9586 = vmatprep.subr.mxu0 0.0
    %9587 = vmatpush1.msra.mxu0 0.0
    %9588 = vmatprep.subr.mxu0 0.0
    %9589 = vmatpush1.msra.mxu0 %v7358
    %9590 = vmatprep.subr.mxu0 0.0
    %9591 = vmatpush2.msra.mxu0 0.0
    %9592 = vmatprep.subr.mxu0 0.0
    %9593 = vmatpush2.msra.mxu0 0.0
    %9594 = vmatprep.subr.mxu0 0.0
    %9595 = vmatpush2.msra.mxu0 0.0
    %9596 = vmatprep.subr.mxu0 0.0
    %9597 = vmatpush2.msra.mxu0 0.0
    %9598 = vmatprep.subr.mxu0 0.0
    %9599 = vmatpush2.msra.mxu0 0.0
    %9600 = vmatprep.subr.mxu0 0.0
    %9601 = vmatpush2.msra.mxu0 0.0
    %9602 = vmatprep.subr.mxu0 0.0
    %9603 = vmatpush2.msra.mxu0 0.0
    %9604 = vmatprep.subr.mxu0 0.0
    %9605 = vmatpush2.msra.mxu0 0.0
    %9606 = vmatprep.subr.mxu0 0.0
    %9607 = vmatpush2.msra.mxu0 0.0
    %9608 = vmatprep.subr.mxu0 0.0
    %9609 = vmatpush2.msra.mxu0 0.0
    %9610 = vmatprep.subr.mxu0 0.0
    %9611 = vmatpush2.msra.mxu0 0.0
    %9612 = vmatprep.subr.mxu0 0.0
    %9613 = vmatpush2.msra.mxu0 0.0
    %9614 = vmatprep.subr.mxu0 0.0
    %9615 = vmatpush2.msra.mxu0 0.0
    %9616 = vmatprep.subr.mxu0 0.0
    %9617 = vmatpush2.msra.mxu0 0.0
    %9618 = vmatprep.subr.mxu0 0.0
    %9619 = vmatpush2.msra.mxu0 0.0
    %9620 = vmatprep.subr.mxu0 0.0
    %9621 = vmatpush2.msra.mxu0 0.0
    %9622 = vmatprep.mubr.f32.mxu0 0.0
    %9623 = vmatmul.mubr.f32.gmra.mxu0 %v9556
    %v9624 = vpop.f32.mrf.mxu0
    %v9625 = vadd.f32 0.0, %v9624
    %v9626 = vpop.f32.mrf.mxu0
    %9627 = vdwg.mxu0
    %v9629 = vsel %vm1967, %v8748, 0
    %9631 = vmatprep.subr.mxu0 0.0
    %9632 = vmatpush1.msra.mxu0 0.0
    %9633 = vmatprep.subr.mxu0 0.0
    %9634 = vmatpush1.msra.mxu0 0.0
    %9635 = vmatprep.subr.mxu0 0.0
    %9636 = vmatpush1.msra.mxu0 0.0
    %9637 = vmatprep.subr.mxu0 0.0
    %9638 = vmatpush1.msra.mxu0 0.0
    %9639 = vmatprep.subr.mxu0 0.0
    %9640 = vmatpush1.msra.mxu0 0.0
    %9641 = vmatprep.subr.mxu0 0.0
    %9642 = vmatpush1.msra.mxu0 0.0
    %9643 = vmatprep.subr.mxu0 0.0
    %9644 = vmatpush1.msra.mxu0 0.0
    %9645 = vmatprep.subr.mxu0 0.0
    %9646 = vmatpush1.msra.mxu0 0.0
    %9647 = vmatprep.subr.mxu0 0.0
    %9648 = vmatpush1.msra.mxu0 0.0
    %9649 = vmatprep.subr.mxu0 0.0
    %9650 = vmatpush1.msra.mxu0 0.0
    %9651 = vmatprep.subr.mxu0 0.0
    %9652 = vmatpush1.msra.mxu0 0.0
    %9653 = vmatprep.subr.mxu0 0.0
    %9654 = vmatpush1.msra.mxu0 0.0
    %9655 = vmatprep.subr.mxu0 0.0
    %9656 = vmatpush1.msra.mxu0 0.0
    %9657 = vmatprep.subr.mxu0 0.0
    %9658 = vmatpush1.msra.mxu0 0.0
    %9659 = vmatprep.subr.mxu0 0.0
    %9660 = vmatpush1.msra.mxu0 0.0
    %9661 = vmatprep.subr.mxu0 0.0
    %9662 = vmatpush1.msra.mxu0 %v7155
    %9663 = vmatprep.subr.mxu0 0.0
    %9664 = vmatpush2.msra.mxu0 0.0
    %9665 = vmatprep.subr.mxu0 0.0
    %9666 = vmatpush2.msra.mxu0 0.0
    %9667 = vmatprep.subr.mxu0 0.0
    %9668 = vmatpush2.msra.mxu0 0.0
    %9669 = vmatprep.subr.mxu0 0.0
    %9670 = vmatpush2.msra.mxu0 0.0
    %9671 = vmatprep.subr.mxu0 0.0
    %9672 = vmatpush2.msra.mxu0 0.0
    %9673 = vmatprep.subr.mxu0 0.0
    %9674 = vmatpush2.msra.mxu0 0.0
    %9675 = vmatprep.subr.mxu0 0.0
    %9676 = vmatpush2.msra.mxu0 0.0
    %9677 = vmatprep.subr.mxu0 0.0
    %9678 = vmatpush2.msra.mxu0 0.0
    %9679 = vmatprep.subr.mxu0 0.0
    %9680 = vmatpush2.msra.mxu0 0.0
    %9681 = vmatprep.subr.mxu0 0.0
    %9682 = vmatpush2.msra.mxu0 0.0
    %9683 = vmatprep.subr.mxu0 0.0
    %9684 = vmatpush2.msra.mxu0 0.0
    %9685 = vmatprep.subr.mxu0 0.0
    %9686 = vmatpush2.msra.mxu0 0.0
    %9687 = vmatprep.subr.mxu0 0.0
    %9688 = vmatpush2.msra.mxu0 0.0
    %9689 = vmatprep.subr.mxu0 0.0
    %9690 = vmatpush2.msra.mxu0 0.0
    %9691 = vmatprep.subr.mxu0 0.0
    %9692 = vmatpush2.msra.mxu0 0.0
    %9693 = vmatprep.subr.mxu0 0.0
    %9694 = vmatpush2.msra.mxu0 0.0
    %9695 = vmatprep.mubr.f32.mxu0 0.0
    %9696 = vmatmul.mubr.f32.gmra.mxu0 %v9629
    %v9697 = vpop.f32.mrf.mxu0
    %v9698 = vadd.f32 0.0, %v9697
    %v9699 = vpop.f32.mrf.mxu0
    %9700 = vdwg.mxu0
    %v9702 = vsel %vm1967, %v8749, 0
    %9704 = vmatprep.subr.mxu0 0.0
    %9705 = vmatpush1.msra.mxu0 0.0
    %9706 = vmatprep.subr.mxu0 0.0
    %9707 = vmatpush1.msra.mxu0 0.0
    %9708 = vmatprep.subr.mxu0 0.0
    %9709 = vmatpush1.msra.mxu0 0.0
    %9710 = vmatprep.subr.mxu0 0.0
    %9711 = vmatpush1.msra.mxu0 0.0
    %9712 = vmatprep.subr.mxu0 0.0
    %9713 = vmatpush1.msra.mxu0 0.0
    %9714 = vmatprep.subr.mxu0 0.0
    %9715 = vmatpush1.msra.mxu0 0.0
    %9716 = vmatprep.subr.mxu0 0.0
    %9717 = vmatpush1.msra.mxu0 0.0
    %9718 = vmatprep.subr.mxu0 0.0
    %9719 = vmatpush1.msra.mxu0 0.0
    %9720 = vmatprep.subr.mxu0 0.0
    %9721 = vmatpush1.msra.mxu0 0.0
    %9722 = vmatprep.subr.mxu0 0.0
    %9723 = vmatpush1.msra.mxu0 0.0
    %9724 = vmatprep.subr.mxu0 0.0
    %9725 = vmatpush1.msra.mxu0 0.0
    %9726 = vmatprep.subr.mxu0 0.0
    %9727 = vmatpush1.msra.mxu0 0.0
    %9728 = vmatprep.subr.mxu0 0.0
    %9729 = vmatpush1.msra.mxu0 0.0
    %9730 = vmatprep.subr.mxu0 0.0
    %9731 = vmatpush1.msra.mxu0 0.0
    %9732 = vmatprep.subr.mxu0 0.0
    %9733 = vmatpush1.msra.mxu0 0.0
    %9734 = vmatprep.subr.mxu0 0.0
    %9735 = vmatpush1.msra.mxu0 %v7223
    %9736 = vmatprep.subr.mxu0 0.0
    %9737 = vmatpush2.msra.mxu0 0.0
    %9738 = vmatprep.subr.mxu0 0.0
    %9739 = vmatpush2.msra.mxu0 0.0
    %9740 = vmatprep.subr.mxu0 0.0
    %9741 = vmatpush2.msra.mxu0 0.0
    %9742 = vmatprep.subr.mxu0 0.0
    %9743 = vmatpush2.msra.mxu0 0.0
    %9744 = vmatprep.subr.mxu0 0.0
    %9745 = vmatpush2.msra.mxu0 0.0
    %9746 = vmatprep.subr.mxu0 0.0
    %9747 = vmatpush2.msra.mxu0 0.0
    %9748 = vmatprep.subr.mxu0 0.0
    %9749 = vmatpush2.msra.mxu0 0.0
    %9750 = vmatprep.subr.mxu0 0.0
    %9751 = vmatpush2.msra.mxu0 0.0
    %9752 = vmatprep.subr.mxu0 0.0
    %9753 = vmatpush2.msra.mxu0 0.0
    %9754 = vmatprep.subr.mxu0 0.0
    %9755 = vmatpush2.msra.mxu0 0.0
    %9756 = vmatprep.subr.mxu0 0.0
    %9757 = vmatpush2.msra.mxu0 0.0
    %9758 = vmatprep.subr.mxu0 0.0
    %9759 = vmatpush2.msra.mxu0 0.0
    %9760 = vmatprep.subr.mxu0 0.0
    %9761 = vmatpush2.msra.mxu0 0.0
    %9762 = vmatprep.subr.mxu0 0.0
    %9763 = vmatpush2.msra.mxu0 0.0
    %9764 = vmatprep.subr.mxu0 0.0
    %9765 = vmatpush2.msra.mxu0 0.0
    %9766 = vmatprep.subr.mxu0 0.0
    %9767 = vmatpush2.msra.mxu0 0.0
    %9768 = vmatprep.mubr.f32.mxu0 0.0
    %9769 = vmatmul.mubr.f32.gmra.mxu0 %v9702
    %v9770 = vpop.f32.mrf.mxu0
    %v9771 = vadd.f32 0.0, %v9770
    %v9772 = vpop.f32.mrf.mxu0
    %9773 = vdwg.mxu0
    %v9775 = vsel %vm1967, %v8750, 0
    %9777 = vmatprep.subr.mxu0 0.0
    %9778 = vmatpush1.msra.mxu0 0.0
    %9779 = vmatprep.subr.mxu0 0.0
    %9780 = vmatpush1.msra.mxu0 0.0
    %9781 = vmatprep.subr.mxu0 0.0
    %9782 = vmatpush1.msra.mxu0 0.0
    %9783 = vmatprep.subr.mxu0 0.0
    %9784 = vmatpush1.msra.mxu0 0.0
    %9785 = vmatprep.subr.mxu0 0.0
    %9786 = vmatpush1.msra.mxu0 0.0
    %9787 = vmatprep.subr.mxu0 0.0
    %9788 = vmatpush1.msra.mxu0 0.0
    %9789 = vmatprep.subr.mxu0 0.0
    %9790 = vmatpush1.msra.mxu0 0.0
    %9791 = vmatprep.subr.mxu0 0.0
    %9792 = vmatpush1.msra.mxu0 0.0
    %9793 = vmatprep.subr.mxu0 0.0
    %9794 = vmatpush1.msra.mxu0 0.0
    %9795 = vmatprep.subr.mxu0 0.0
    %9796 = vmatpush1.msra.mxu0 0.0
    %9797 = vmatprep.subr.mxu0 0.0
    %9798 = vmatpush1.msra.mxu0 0.0
    %9799 = vmatprep.subr.mxu0 0.0
    %9800 = vmatpush1.msra.mxu0 0.0
    %9801 = vmatprep.subr.mxu0 0.0
    %9802 = vmatpush1.msra.mxu0 0.0
    %9803 = vmatprep.subr.mxu0 0.0
    %9804 = vmatpush1.msra.mxu0 0.0
    %9805 = vmatprep.subr.mxu0 0.0
    %9806 = vmatpush1.msra.mxu0 0.0
    %9807 = vmatprep.subr.mxu0 0.0
    %9808 = vmatpush1.msra.mxu0 %v7291
    %9809 = vmatprep.subr.mxu0 0.0
    %9810 = vmatpush2.msra.mxu0 0.0
    %9811 = vmatprep.subr.mxu0 0.0
    %9812 = vmatpush2.msra.mxu0 0.0
    %9813 = vmatprep.subr.mxu0 0.0
    %9814 = vmatpush2.msra.mxu0 0.0
    %9815 = vmatprep.subr.mxu0 0.0
    %9816 = vmatpush2.msra.mxu0 0.0
    %9817 = vmatprep.subr.mxu0 0.0
    %9818 = vmatpush2.msra.mxu0 0.0
    %9819 = vmatprep.subr.mxu0 0.0
    %9820 = vmatpush2.msra.mxu0 0.0
    %9821 = vmatprep.subr.mxu0 0.0
    %9822 = vmatpush2.msra.mxu0 0.0
    %9823 = vmatprep.subr.mxu0 0.0
    %9824 = vmatpush2.msra.mxu0 0.0
    %9825 = vmatprep.subr.mxu0 0.0
    %9826 = vmatpush2.msra.mxu0 0.0
    %9827 = vmatprep.subr.mxu0 0.0
    %9828 = vmatpush2.msra.mxu0 0.0
    %9829 = vmatprep.subr.mxu0 0.0
    %9830 = vmatpush2.msra.mxu0 0.0
    %9831 = vmatprep.subr.mxu0 0.0
    %9832 = vmatpush2.msra.mxu0 0.0
    %9833 = vmatprep.subr.mxu0 0.0
    %9834 = vmatpush2.msra.mxu0 0.0
    %9835 = vmatprep.subr.mxu0 0.0
    %9836 = vmatpush2.msra.mxu0 0.0
    %9837 = vmatprep.subr.mxu0 0.0
    %9838 = vmatpush2.msra.mxu0 0.0
    %9839 = vmatprep.subr.mxu0 0.0
    %9840 = vmatpush2.msra.mxu0 0.0
    %9841 = vmatprep.mubr.f32.mxu0 0.0
    %9842 = vmatmul.mubr.f32.gmra.mxu0 %v9775
    %v9843 = vpop.f32.mrf.mxu0
    %v9844 = vadd.f32 0.0, %v9843
    %v9845 = vpop.f32.mrf.mxu0
    %9846 = vdwg.mxu0
    %v9848 = vsel %vm1967, %v8751, 0
    %9850 = vmatprep.subr.mxu0 0.0
    %9851 = vmatpush1.msra.mxu0 0.0
    %9852 = vmatprep.subr.mxu0 0.0
    %9853 = vmatpush1.msra.mxu0 0.0
    %9854 = vmatprep.subr.mxu0 0.0
    %9855 = vmatpush1.msra.mxu0 0.0
    %9856 = vmatprep.subr.mxu0 0.0
    %9857 = vmatpush1.msra.mxu0 0.0
    %9858 = vmatprep.subr.mxu0 0.0
    %9859 = vmatpush1.msra.mxu0 0.0
    %9860 = vmatprep.subr.mxu0 0.0
    %9861 = vmatpush1.msra.mxu0 0.0
    %9862 = vmatprep.subr.mxu0 0.0
    %9863 = vmatpush1.msra.mxu0 0.0
    %9864 = vmatprep.subr.mxu0 0.0
    %9865 = vmatpush1.msra.mxu0 0.0
    %9866 = vmatprep.subr.mxu0 0.0
    %9867 = vmatpush1.msra.mxu0 0.0
    %9868 = vmatprep.subr.mxu0 0.0
    %9869 = vmatpush1.msra.mxu0 0.0
    %9870 = vmatprep.subr.mxu0 0.0
    %9871 = vmatpush1.msra.mxu0 0.0
    %9872 = vmatprep.subr.mxu0 0.0
    %9873 = vmatpush1.msra.mxu0 0.0
    %9874 = vmatprep.subr.mxu0 0.0
    %9875 = vmatpush1.msra.mxu0 0.0
    %9876 = vmatprep.subr.mxu0 0.0
    %9877 = vmatpush1.msra.mxu0 0.0
    %9878 = vmatprep.subr.mxu0 0.0
    %9879 = vmatpush1.msra.mxu0 0.0
    %9880 = vmatprep.subr.mxu0 0.0
    %9881 = vmatpush1.msra.mxu0 %v7359
    %9882 = vmatprep.subr.mxu0 0.0
    %9883 = vmatpush2.msra.mxu0 0.0
    %9884 = vmatprep.subr.mxu0 0.0
    %9885 = vmatpush2.msra.mxu0 0.0
    %9886 = vmatprep.subr.mxu0 0.0
    %9887 = vmatpush2.msra.mxu0 0.0
    %9888 = vmatprep.subr.mxu0 0.0
    %9889 = vmatpush2.msra.mxu0 0.0
    %9890 = vmatprep.subr.mxu0 0.0
    %9891 = vmatpush2.msra.mxu0 0.0
    %9892 = vmatprep.subr.mxu0 0.0
    %9893 = vmatpush2.msra.mxu0 0.0
    %9894 = vmatprep.subr.mxu0 0.0
    %9895 = vmatpush2.msra.mxu0 0.0
    %9896 = vmatprep.subr.mxu0 0.0
    %9897 = vmatpush2.msra.mxu0 0.0
    %9898 = vmatprep.subr.mxu0 0.0
    %9899 = vmatpush2.msra.mxu0 0.0
    %9900 = vmatprep.subr.mxu0 0.0
    %9901 = vmatpush2.msra.mxu0 0.0
    %9902 = vmatprep.subr.mxu0 0.0
    %9903 = vmatpush2.msra.mxu0 0.0
    %9904 = vmatprep.subr.mxu0 0.0
    %9905 = vmatpush2.msra.mxu0 0.0
    %9906 = vmatprep.subr.mxu0 0.0
    %9907 = vmatpush2.msra.mxu0 0.0
    %9908 = vmatprep.subr.mxu0 0.0
    %9909 = vmatpush2.msra.mxu0 0.0
    %9910 = vmatprep.subr.mxu0 0.0
    %9911 = vmatpush2.msra.mxu0 0.0
    %9912 = vmatprep.subr.mxu0 0.0
    %9913 = vmatpush2.msra.mxu0 0.0
    %9914 = vmatprep.mubr.f32.mxu0 0.0
    %9915 = vmatmul.mubr.f32.gmra.mxu0 %v9848
    %v9916 = vpop.f32.mrf.mxu0
    %v9917 = vadd.f32 0.0, %v9916
    %v9918 = vpop.f32.mrf.mxu0
    %9919 = vdwg.mxu0
    %v9920 = vcombine.low %v8822, %v9406
    %v9921 = vcombine.high %v8822, %v9406
    %v9923 = vunpack.c.l.s4 1983009808
    %v9924 = vunpack.c.0.s8 %v9923
    %v9925 = vlaneseq
    %v9926 = vshrl.u32 %v9925, 7
    %v9927 = vsub.s32 %v9924, %v9926
    %v9928 = vrot.slane %v9920, %v9927
    %v9930 = vunpack.c.l.s4 1983009808
    %v9931 = vunpack.c.0.s8 %v9930
    %v9932 = vlaneseq
    %v9933 = vshrl.u32 %v9932, 7
    %v9934 = vsub.s32 %v9931, %v9933
    %v9935 = vrot.slane %v9921, %v9934
    %v9936 = vcombine.low %v9114, %v9698
    %v9937 = vcombine.high %v9114, %v9698
    %v9939 = vunpack.c.l.s4 1983009808
    %v9940 = vunpack.c.0.s8 %v9939
    %v9941 = vlaneseq
    %v9942 = vshrl.u32 %v9941, 7
    %v9943 = vsub.s32 %v9940, %v9942
    %v9944 = vrot.slane %v9936, %v9943
    %v9946 = vunpack.c.l.s4 1983009808
    %v9947 = vunpack.c.0.s8 %v9946
    %v9948 = vlaneseq
    %v9949 = vshrl.u32 %v9948, 7
    %v9950 = vsub.s32 %v9947, %v9949
    %v9951 = vrot.slane %v9937, %v9950
    %v9952 = vcombine.low %v9928, %v9944
    %v9953 = vcombine.high %v9928, %v9944
    %v9955 = vunpack.c.l.s4 1934713408
    %v9956 = vunpack.c.0.s8 %v9955
    %v9957 = vlaneseq
    %v9958 = vshrl.u32 %v9957, 7
    %v9959 = vsub.s32 %v9956, %v9958
    %v9960 = vrot.slane %v9952, %v9959
    %v9962 = vunpack.c.l.s4 1934713408
    %v9963 = vunpack.c.0.s8 %v9962
    %v9964 = vlaneseq
    %v9965 = vshrl.u32 %v9964, 7
    %v9966 = vsub.s32 %v9963, %v9965
    %v9967 = vrot.slane %v9953, %v9966
    %v9968 = vcombine.low %v9935, %v9951
    %v9969 = vcombine.high %v9935, %v9951
    %v9971 = vunpack.c.l.s4 1934713408
    %v9972 = vunpack.c.0.s8 %v9971
    %v9973 = vlaneseq
    %v9974 = vshrl.u32 %v9973, 7
    %v9975 = vsub.s32 %v9972, %v9974
    %v9976 = vrot.slane %v9968, %v9975
    %v9978 = vunpack.c.l.s4 1934713408
    %v9979 = vunpack.c.0.s8 %v9978
    %v9980 = vlaneseq
    %v9981 = vshrl.u32 %v9980, 7
    %v9982 = vsub.s32 %v9979, %v9981
    %v9983 = vrot.slane %v9969, %v9982
    %v9984 = vcombine.high %v9960, 0.0
    %v9985 = vcombine.high %v9967, 0.0
    %v9986 = vcombine.high %v9976, 0.0
    %v9987 = vcombine.high %v9983, 0.0
    %v9988 = vcombine.low %v8895, %v9479
    %v9989 = vcombine.high %v8895, %v9479
    %v9991 = vunpack.c.l.s4 1983009808
    %v9992 = vunpack.c.0.s8 %v9991
    %v9993 = vlaneseq
    %v9994 = vshrl.u32 %v9993, 7
    %v9995 = vsub.s32 %v9992, %v9994
    %v9996 = vrot.slane %v9988, %v9995
    %v9998 = vunpack.c.l.s4 1983009808
    %v9999 = vunpack.c.0.s8 %v9998
    %v10000 = vlaneseq
    %v10001 = vshrl.u32 %v10000, 7
    %v10002 = vsub.s32 %v9999, %v10001
    %v10003 = vrot.slane %v9989, %v10002
    %v10004 = vcombine.low %v9187, %v9771
    %v10005 = vcombine.high %v9187, %v9771
    %v10007 = vunpack.c.l.s4 1983009808
    %v10008 = vunpack.c.0.s8 %v10007
    %v10009 = vlaneseq
    %v10010 = vshrl.u32 %v10009, 7
    %v10011 = vsub.s32 %v10008, %v10010
    %v10012 = vrot.slane %v10004, %v10011
    %v10014 = vunpack.c.l.s4 1983009808
    %v10015 = vunpack.c.0.s8 %v10014
    %v10016 = vlaneseq
    %v10017 = vshrl.u32 %v10016, 7
    %v10018 = vsub.s32 %v10015, %v10017
    %v10019 = vrot.slane %v10005, %v10018
    %v10020 = vcombine.low %v9996, %v10012
    %v10021 = vcombine.high %v9996, %v10012
    %v10023 = vunpack.c.l.s4 1934713408
    %v10024 = vunpack.c.0.s8 %v10023
    %v10025 = vlaneseq
    %v10026 = vshrl.u32 %v10025, 7
    %v10027 = vsub.s32 %v10024, %v10026
    %v10028 = vrot.slane %v10020, %v10027
    %v10030 = vunpack.c.l.s4 1934713408
    %v10031 = vunpack.c.0.s8 %v10030
    %v10032 = vlaneseq
    %v10033 = vshrl.u32 %v10032, 7
    %v10034 = vsub.s32 %v10031, %v10033
    %v10035 = vrot.slane %v10021, %v10034
    %v10036 = vcombine.low %v10003, %v10019
    %v10037 = vcombine.high %v10003, %v10019
    %v10039 = vunpack.c.l.s4 1934713408
    %v10040 = vunpack.c.0.s8 %v10039
    %v10041 = vlaneseq
    %v10042 = vshrl.u32 %v10041, 7
    %v10043 = vsub.s32 %v10040, %v10042
    %v10044 = vrot.slane %v10036, %v10043
    %v10046 = vunpack.c.l.s4 1934713408
    %v10047 = vunpack.c.0.s8 %v10046
    %v10048 = vlaneseq
    %v10049 = vshrl.u32 %v10048, 7
    %v10050 = vsub.s32 %v10047, %v10049
    %v10051 = vrot.slane %v10037, %v10050
    %v10052 = vcombine.high %v10028, 0.0
    %v10053 = vcombine.high %v10035, 0.0
    %v10054 = vcombine.high %v10044, 0.0
    %v10055 = vcombine.high %v10051, 0.0
    %v10056 = vcombine.low %v8968, %v9552
    %v10057 = vcombine.high %v8968, %v9552
    %v10059 = vunpack.c.l.s4 1983009808
    %v10060 = vunpack.c.0.s8 %v10059
    %v10061 = vlaneseq
    %v10062 = vshrl.u32 %v10061, 7
    %v10063 = vsub.s32 %v10060, %v10062
    %v10064 = vrot.slane %v10056, %v10063
    %v10066 = vunpack.c.l.s4 1983009808
    %v10067 = vunpack.c.0.s8 %v10066
    %v10068 = vlaneseq
    %v10069 = vshrl.u32 %v10068, 7
    %v10070 = vsub.s32 %v10067, %v10069
    %v10071 = vrot.slane %v10057, %v10070
    %v10072 = vcombine.low %v9260, %v9844
    %v10073 = vcombine.high %v9260, %v9844
    %v10075 = vunpack.c.l.s4 1983009808
    %v10076 = vunpack.c.0.s8 %v10075
    %v10077 = vlaneseq
    %v10078 = vshrl.u32 %v10077, 7
    %v10079 = vsub.s32 %v10076, %v10078
    %v10080 = vrot.slane %v10072, %v10079
    %v10082 = vunpack.c.l.s4 1983009808
    %v10083 = vunpack.c.0.s8 %v10082
    %v10084 = vlaneseq
    %v10085 = vshrl.u32 %v10084, 7
    %v10086 = vsub.s32 %v10083, %v10085
    %v10087 = vrot.slane %v10073, %v10086
    %v10088 = vcombine.low %v10064, %v10080
    %v10089 = vcombine.high %v10064, %v10080
    %v10091 = vunpack.c.l.s4 1934713408
    %v10092 = vunpack.c.0.s8 %v10091
    %v10093 = vlaneseq
    %v10094 = vshrl.u32 %v10093, 7
    %v10095 = vsub.s32 %v10092, %v10094
    %v10096 = vrot.slane %v10088, %v10095
    %v10098 = vunpack.c.l.s4 1934713408
    %v10099 = vunpack.c.0.s8 %v10098
    %v10100 = vlaneseq
    %v10101 = vshrl.u32 %v10100, 7
    %v10102 = vsub.s32 %v10099, %v10101
    %v10103 = vrot.slane %v10089, %v10102
    %v10104 = vcombine.low %v10071, %v10087
    %v10105 = vcombine.high %v10071, %v10087
    %v10107 = vunpack.c.l.s4 1934713408
    %v10108 = vunpack.c.0.s8 %v10107
    %v10109 = vlaneseq
    %v10110 = vshrl.u32 %v10109, 7
    %v10111 = vsub.s32 %v10108, %v10110
    %v10112 = vrot.slane %v10104, %v10111
    %v10114 = vunpack.c.l.s4 1934713408
    %v10115 = vunpack.c.0.s8 %v10114
    %v10116 = vlaneseq
    %v10117 = vshrl.u32 %v10116, 7
    %v10118 = vsub.s32 %v10115, %v10117
    %v10119 = vrot.slane %v10105, %v10118
    %v10120 = vcombine.high %v10096, 0.0
    %v10121 = vcombine.high %v10103, 0.0
    %v10122 = vcombine.high %v10112, 0.0
    %v10123 = vcombine.high %v10119, 0.0
    %v10124 = vcombine.low %v9041, %v9625
    %v10125 = vcombine.high %v9041, %v9625
    %v10127 = vunpack.c.l.s4 1983009808
    %v10128 = vunpack.c.0.s8 %v10127
    %v10129 = vlaneseq
    %v10130 = vshrl.u32 %v10129, 7
    %v10131 = vsub.s32 %v10128, %v10130
    %v10132 = vrot.slane %v10124, %v10131
    %v10134 = vunpack.c.l.s4 1983009808
    %v10135 = vunpack.c.0.s8 %v10134
    %v10136 = vlaneseq
    %v10137 = vshrl.u32 %v10136, 7
    %v10138 = vsub.s32 %v10135, %v10137
    %v10139 = vrot.slane %v10125, %v10138
    %v10140 = vcombine.low %v9333, %v9917
    %v10141 = vcombine.high %v9333, %v9917
    %v10143 = vunpack.c.l.s4 1983009808
    %v10144 = vunpack.c.0.s8 %v10143
    %v10145 = vlaneseq
    %v10146 = vshrl.u32 %v10145, 7
    %v10147 = vsub.s32 %v10144, %v10146
    %v10148 = vrot.slane %v10140, %v10147
    %v10150 = vunpack.c.l.s4 1983009808
    %v10151 = vunpack.c.0.s8 %v10150
    %v10152 = vlaneseq
    %v10153 = vshrl.u32 %v10152, 7
    %v10154 = vsub.s32 %v10151, %v10153
    %v10155 = vrot.slane %v10141, %v10154
    %v10156 = vcombine.low %v10132, %v10148
    %v10157 = vcombine.high %v10132, %v10148
    %v10159 = vunpack.c.l.s4 1934713408
    %v10160 = vunpack.c.0.s8 %v10159
    %v10161 = vlaneseq
    %v10162 = vshrl.u32 %v10161, 7
    %v10163 = vsub.s32 %v10160, %v10162
    %v10164 = vrot.slane %v10156, %v10163
    %v10166 = vunpack.c.l.s4 1934713408
    %v10167 = vunpack.c.0.s8 %v10166
    %v10168 = vlaneseq
    %v10169 = vshrl.u32 %v10168, 7
    %v10170 = vsub.s32 %v10167, %v10169
    %v10171 = vrot.slane %v10157, %v10170
    %v10172 = vcombine.low %v10139, %v10155
    %v10173 = vcombine.high %v10139, %v10155
    %v10175 = vunpack.c.l.s4 1934713408
    %v10176 = vunpack.c.0.s8 %v10175
    %v10177 = vlaneseq
    %v10178 = vshrl.u32 %v10177, 7
    %v10179 = vsub.s32 %v10176, %v10178
    %v10180 = vrot.slane %v10172, %v10179
    %v10182 = vunpack.c.l.s4 1934713408
    %v10183 = vunpack.c.0.s8 %v10182
    %v10184 = vlaneseq
    %v10185 = vshrl.u32 %v10184, 7
    %v10186 = vsub.s32 %v10183, %v10185
    %v10187 = vrot.slane %v10173, %v10186
    %v10188 = vcombine.high %v10164, 0.0
    %v10189 = vcombine.high %v10171, 0.0
    %v10190 = vcombine.high %v10180, 0.0
    %v10191 = vcombine.high %v10187, 0.0
    %v10192 = vcombine.low %v9960, %v9967
    %v10194 = vunpack.c.l.s4 1983009808
    %v10195 = vunpack.c.0.s8 %v10194
    %v10196 = vlaneseq
    %v10197 = vshrl.u32 %v10196, 7
    %v10198 = vsub.s32 %v10195, %v10197
    %v10199 = vrot.slane %v10192, %v10198
    %v10200 = vcombine.low %v9984, %v9985
    %v10202 = vunpack.c.l.s4 1983009808
    %v10203 = vunpack.c.0.s8 %v10202
    %v10204 = vlaneseq
    %v10205 = vshrl.u32 %v10204, 7
    %v10206 = vsub.s32 %v10203, %v10205
    %v10207 = vrot.slane %v10200, %v10206
    %v10208 = vcombine.low %v9976, %v9983
    %v10210 = vunpack.c.l.s4 1983009808
    %v10211 = vunpack.c.0.s8 %v10210
    %v10212 = vlaneseq
    %v10213 = vshrl.u32 %v10212, 7
    %v10214 = vsub.s32 %v10211, %v10213
    %v10215 = vrot.slane %v10208, %v10214
    %v10216 = vcombine.low %v9986, %v9987
    %v10218 = vunpack.c.l.s4 1983009808
    %v10219 = vunpack.c.0.s8 %v10218
    %v10220 = vlaneseq
    %v10221 = vshrl.u32 %v10220, 7
    %v10222 = vsub.s32 %v10219, %v10221
    %v10223 = vrot.slane %v10216, %v10222
    %v10224 = vcombine.low %v10199, %v10207
    %v10225 = vcombine.high %v10199, %v10207
    %v10227 = vunpack.c.l.s4 1934713408
    %v10228 = vunpack.c.0.s8 %v10227
    %v10229 = vlaneseq
    %v10230 = vshrl.u32 %v10229, 7
    %v10231 = vsub.s32 %v10228, %v10230
    %v10232 = vrot.slane %v10224, %v10231
    %v10234 = vunpack.c.l.s4 1934713408
    %v10235 = vunpack.c.0.s8 %v10234
    %v10236 = vlaneseq
    %v10237 = vshrl.u32 %v10236, 7
    %v10238 = vsub.s32 %v10235, %v10237
    %v10239 = vrot.slane %v10225, %v10238
    %v10240 = vcombine.low %v10215, %v10223
    %v10241 = vcombine.high %v10215, %v10223
    %v10243 = vunpack.c.l.s4 1934713408
    %v10244 = vunpack.c.0.s8 %v10243
    %v10245 = vlaneseq
    %v10246 = vshrl.u32 %v10245, 7
    %v10247 = vsub.s32 %v10244, %v10246
    %v10248 = vrot.slane %v10240, %v10247
    %v10250 = vunpack.c.l.s4 1934713408
    %v10251 = vunpack.c.0.s8 %v10250
    %v10252 = vlaneseq
    %v10253 = vshrl.u32 %v10252, 7
    %v10254 = vsub.s32 %v10251, %v10253
    %v10255 = vrot.slane %v10241, %v10254
    %v10256 = vcombine.low %v10232, %v10248
    %v10257 = vcombine.high %v10232, %v10248
    %v10258 = vcombine.low %v10239, %v10255
    %v10259 = vcombine.high %v10239, %v10255
    %v10260 = vcombine.low %v10028, %v10035
    %v10262 = vunpack.c.l.s4 1983009808
    %v10263 = vunpack.c.0.s8 %v10262
    %v10264 = vlaneseq
    %v10265 = vshrl.u32 %v10264, 7
    %v10266 = vsub.s32 %v10263, %v10265
    %v10267 = vrot.slane %v10260, %v10266
    %v10268 = vcombine.low %v10052, %v10053
    %v10270 = vunpack.c.l.s4 1983009808
    %v10271 = vunpack.c.0.s8 %v10270
    %v10272 = vlaneseq
    %v10273 = vshrl.u32 %v10272, 7
    %v10274 = vsub.s32 %v10271, %v10273
    %v10275 = vrot.slane %v10268, %v10274
    %v10276 = vcombine.low %v10044, %v10051
    %v10278 = vunpack.c.l.s4 1983009808
    %v10279 = vunpack.c.0.s8 %v10278
    %v10280 = vlaneseq
    %v10281 = vshrl.u32 %v10280, 7
    %v10282 = vsub.s32 %v10279, %v10281
    %v10283 = vrot.slane %v10276, %v10282
    %v10284 = vcombine.low %v10054, %v10055
    %v10286 = vunpack.c.l.s4 1983009808
    %v10287 = vunpack.c.0.s8 %v10286
    %v10288 = vlaneseq
    %v10289 = vshrl.u32 %v10288, 7
    %v10290 = vsub.s32 %v10287, %v10289
    %v10291 = vrot.slane %v10284, %v10290
    %v10292 = vcombine.low %v10267, %v10275
    %v10293 = vcombine.high %v10267, %v10275
    %v10295 = vunpack.c.l.s4 1934713408
    %v10296 = vunpack.c.0.s8 %v10295
    %v10297 = vlaneseq
    %v10298 = vshrl.u32 %v10297, 7
    %v10299 = vsub.s32 %v10296, %v10298
    %v10300 = vrot.slane %v10292, %v10299
    %v10302 = vunpack.c.l.s4 1934713408
    %v10303 = vunpack.c.0.s8 %v10302
    %v10304 = vlaneseq
    %v10305 = vshrl.u32 %v10304, 7
    %v10306 = vsub.s32 %v10303, %v10305
    %v10307 = vrot.slane %v10293, %v10306
    %v10308 = vcombine.low %v10283, %v10291
    %v10309 = vcombine.high %v10283, %v10291
    %v10311 = vunpack.c.l.s4 1934713408
    %v10312 = vunpack.c.0.s8 %v10311
    %v10313 = vlaneseq
    %v10314 = vshrl.u32 %v10313, 7
    %v10315 = vsub.s32 %v10312, %v10314
    %v10316 = vrot.slane %v10308, %v10315
    %v10318 = vunpack.c.l.s4 1934713408
    %v10319 = vunpack.c.0.s8 %v10318
    %v10320 = vlaneseq
    %v10321 = vshrl.u32 %v10320, 7
    %v10322 = vsub.s32 %v10319, %v10321
    %v10323 = vrot.slane %v10309, %v10322
    %v10324 = vcombine.low %v10300, %v10316
    %v10325 = vcombine.high %v10300, %v10316
    %v10326 = vcombine.low %v10307, %v10323
    %v10327 = vcombine.high %v10307, %v10323
    %v10328 = vcombine.low %v10096, %v10103
    %v10330 = vunpack.c.l.s4 1983009808
    %v10331 = vunpack.c.0.s8 %v10330
    %v10332 = vlaneseq
    %v10333 = vshrl.u32 %v10332, 7
    %v10334 = vsub.s32 %v10331, %v10333
    %v10335 = vrot.slane %v10328, %v10334
    %v10336 = vcombine.low %v10120, %v10121
    %v10338 = vunpack.c.l.s4 1983009808
    %v10339 = vunpack.c.0.s8 %v10338
    %v10340 = vlaneseq
    %v10341 = vshrl.u32 %v10340, 7
    %v10342 = vsub.s32 %v10339, %v10341
    %v10343 = vrot.slane %v10336, %v10342
    %v10344 = vcombine.low %v10112, %v10119
    %v10346 = vunpack.c.l.s4 1983009808
    %v10347 = vunpack.c.0.s8 %v10346
    %v10348 = vlaneseq
    %v10349 = vshrl.u32 %v10348, 7
    %v10350 = vsub.s32 %v10347, %v10349
    %v10351 = vrot.slane %v10344, %v10350
    %v10352 = vcombine.low %v10122, %v10123
    %v10354 = vunpack.c.l.s4 1983009808
    %v10355 = vunpack.c.0.s8 %v10354
    %v10356 = vlaneseq
    %v10357 = vshrl.u32 %v10356, 7
    %v10358 = vsub.s32 %v10355, %v10357
    %v10359 = vrot.slane %v10352, %v10358
    %v10360 = vcombine.low %v10335, %v10343
    %v10361 = vcombine.high %v10335, %v10343
    %v10363 = vunpack.c.l.s4 1934713408
    %v10364 = vunpack.c.0.s8 %v10363
    %v10365 = vlaneseq
    %v10366 = vshrl.u32 %v10365, 7
    %v10367 = vsub.s32 %v10364, %v10366
    %v10368 = vrot.slane %v10360, %v10367
    %v10370 = vunpack.c.l.s4 1934713408
    %v10371 = vunpack.c.0.s8 %v10370
    %v10372 = vlaneseq
    %v10373 = vshrl.u32 %v10372, 7
    %v10374 = vsub.s32 %v10371, %v10373
    %v10375 = vrot.slane %v10361, %v10374
    %v10376 = vcombine.low %v10351, %v10359
    %v10377 = vcombine.high %v10351, %v10359
    %v10379 = vunpack.c.l.s4 1934713408
    %v10380 = vunpack.c.0.s8 %v10379
    %v10381 = vlaneseq
    %v10382 = vshrl.u32 %v10381, 7
    %v10383 = vsub.s32 %v10380, %v10382
    %v10384 = vrot.slane %v10376, %v10383
    %v10386 = vunpack.c.l.s4 1934713408
    %v10387 = vunpack.c.0.s8 %v10386
    %v10388 = vlaneseq
    %v10389 = vshrl.u32 %v10388, 7
    %v10390 = vsub.s32 %v10387, %v10389
    %v10391 = vrot.slane %v10377, %v10390
    %v10392 = vcombine.low %v10368, %v10384
    %v10393 = vcombine.high %v10368, %v10384
    %v10394 = vcombine.low %v10375, %v10391
    %v10395 = vcombine.high %v10375, %v10391
    %v10396 = vcombine.low %v10164, %v10171
    %v10398 = vunpack.c.l.s4 1983009808
    %v10399 = vunpack.c.0.s8 %v10398
    %v10400 = vlaneseq
    %v10401 = vshrl.u32 %v10400, 7
    %v10402 = vsub.s32 %v10399, %v10401
    %v10403 = vrot.slane %v10396, %v10402
    %v10404 = vcombine.low %v10188, %v10189
    %v10406 = vunpack.c.l.s4 1983009808
    %v10407 = vunpack.c.0.s8 %v10406
    %v10408 = vlaneseq
    %v10409 = vshrl.u32 %v10408, 7
    %v10410 = vsub.s32 %v10407, %v10409
    %v10411 = vrot.slane %v10404, %v10410
    %v10412 = vcombine.low %v10180, %v10187
    %v10414 = vunpack.c.l.s4 1983009808
    %v10415 = vunpack.c.0.s8 %v10414
    %v10416 = vlaneseq
    %v10417 = vshrl.u32 %v10416, 7
    %v10418 = vsub.s32 %v10415, %v10417
    %v10419 = vrot.slane %v10412, %v10418
    %v10420 = vcombine.low %v10190, %v10191
    %v10422 = vunpack.c.l.s4 1983009808
    %v10423 = vunpack.c.0.s8 %v10422
    %v10424 = vlaneseq
    %v10425 = vshrl.u32 %v10424, 7
    %v10426 = vsub.s32 %v10423, %v10425
    %v10427 = vrot.slane %v10420, %v10426
    %v10428 = vcombine.low %v10403, %v10411
    %v10429 = vcombine.high %v10403, %v10411
    %v10431 = vunpack.c.l.s4 1934713408
    %v10432 = vunpack.c.0.s8 %v10431
    %v10433 = vlaneseq
    %v10434 = vshrl.u32 %v10433, 7
    %v10435 = vsub.s32 %v10432, %v10434
    %v10436 = vrot.slane %v10428, %v10435
    %v10438 = vunpack.c.l.s4 1934713408
    %v10439 = vunpack.c.0.s8 %v10438
    %v10440 = vlaneseq
    %v10441 = vshrl.u32 %v10440, 7
    %v10442 = vsub.s32 %v10439, %v10441
    %v10443 = vrot.slane %v10429, %v10442
    %v10444 = vcombine.low %v10419, %v10427
    %v10445 = vcombine.high %v10419, %v10427
    %v10447 = vunpack.c.l.s4 1934713408
    %v10448 = vunpack.c.0.s8 %v10447
    %v10449 = vlaneseq
    %v10450 = vshrl.u32 %v10449, 7
    %v10451 = vsub.s32 %v10448, %v10450
    %v10452 = vrot.slane %v10444, %v10451
    %v10454 = vunpack.c.l.s4 1934713408
    %v10455 = vunpack.c.0.s8 %v10454
    %v10456 = vlaneseq
    %v10457 = vshrl.u32 %v10456, 7
    %v10458 = vsub.s32 %v10455, %v10457
    %v10459 = vrot.slane %v10445, %v10458
    %v10460 = vcombine.low %v10436, %v10452
    %v10461 = vcombine.high %v10436, %v10452
    %v10462 = vcombine.low %v10443, %v10459
    %v10463 = vcombine.high %v10443, %v10459
    %10468 = vrot.lane.b32.xlu0 %v10257, 8
    %v10469 = vpop.permute.xlu0 %10468
    %10470 = vrot.lane.b32.xlu0 %v10325, 8
    %v10471 = vpop.permute.xlu0 %10470
    %10472 = vrot.lane.b32.xlu0 %v10393, 8
    %v10473 = vpop.permute.xlu0 %10472
    %10474 = vrot.lane.b32.xlu0 %v10461, 8
    %v10475 = vpop.permute.xlu0 %10474
    %10484 = vrot.lane.b32.xlu0 %v10258, 16
    %v10485 = vpop.permute.xlu0 %10484
    %10486 = vrot.lane.b32.xlu0 %v10326, 16
    %v10487 = vpop.permute.xlu0 %10486
    %10488 = vrot.lane.b32.xlu0 %v10394, 16
    %v10489 = vpop.permute.xlu0 %10488
    %10490 = vrot.lane.b32.xlu0 %v10462, 16
    %v10491 = vpop.permute.xlu0 %10490
    %10500 = vrot.lane.b32.xlu0 %v10259, 24
    %v10501 = vpop.permute.xlu0 %10500
    %10502 = vrot.lane.b32.xlu0 %v10327, 24
    %v10503 = vpop.permute.xlu0 %10502
    %10504 = vrot.lane.b32.xlu0 %v10395, 24
    %v10505 = vpop.permute.xlu0 %10504
    %10506 = vrot.lane.b32.xlu0 %v10463, 24
    %v10507 = vpop.permute.xlu0 %10506
    %v10512 = vsel %vm1967, %v10256, %v10469
    %v10513 = vsel %vm1967, %v10324, %v10471
    %v10514 = vsel %vm1967, %v10392, %v10473
    %v10515 = vsel %vm1967, %v10460, %v10475
    %v10516 = vsel %vm5124, %v10512, %v10485
    %v10517 = vsel %vm5124, %v10513, %v10487
    %v10518 = vsel %vm5124, %v10514, %v10489
    %v10519 = vsel %vm5124, %v10515, %v10491
    %v10520 = vsel %vm5129, %v10516, %v10501
    %v10521 = vsel %vm5129, %v10517, %v10503
    %v10522 = vsel %vm5129, %v10518, %v10505
    %v10523 = vsel %vm5129, %v10519, %v10507
    %v10524 = vpack.c.bf16 %v10521, %v10520
    %v10525 = vpack.c.bf16 %v10523, %v10522
    %s10526 = scalar_lea.vmem %s4, 16
    %v10527 = vld [vmem:[%s10526] sm:$0xf]
    %v10528 = vld [vmem:[%s10526 + $0x4] sm:$0xf]
    %v10529 = vld [vmem:[%s10526 + $0x8] sm:$0xf]
    %v10530 = vld [vmem:[%s10526 + $0xc] sm:$0xf]
    %v10535 = vunpack.c.l.b16 %v10527
    %v10536 = vunpack.c.l.b16 %v10528
    %v10537 = vunpack.c.l.b16 %v10529
    %v10538 = vunpack.c.l.b16 %v10530
    %v10539 = vpack.c.b16 %v10536, %v10535
    %v10540 = vpack.c.b16 %v10538, %v10537
    %v10544 = vsel %vm86, %v10524, 0
    %v10547 = vsel %vm86, %v10525, 0
    %10549 = vmatprep.subr.bf16.mxu0 0
    %10550 = vmatpush1.bf16.msra.mxu0 0
    %10551 = vmatprep.subr.bf16.mxu0 0
    %10552 = vmatpush1.bf16.msra.mxu0 0
    %10553 = vmatprep.subr.bf16.mxu0 0
    %10554 = vmatpush1.bf16.msra.mxu0 0
    %10555 = vmatprep.subr.bf16.mxu0 0
    %10556 = vmatpush1.bf16.msra.mxu0 0
    %10557 = vmatprep.subr.bf16.mxu0 0
    %10558 = vmatpush1.bf16.msra.mxu0 0
    %10559 = vmatprep.subr.bf16.mxu0 0
    %10560 = vmatpush1.bf16.msra.mxu0 0
    %10561 = vmatprep.subr.bf16.mxu0 0
    %10562 = vmatpush1.bf16.msra.mxu0 %v10540
    %10563 = vmatprep.subr.bf16.mxu0 0
    %10564 = vmatpush1.bf16.msra.mxu0 %v10539
    %10565 = vmatprep.subr.bf16.mxu0 0
    %10566 = vmatpush2.bf16.msra.mxu0 0
    %10567 = vmatprep.subr.bf16.mxu0 0
    %10568 = vmatpush2.bf16.msra.mxu0 0
    %10569 = vmatprep.subr.bf16.mxu0 0
    %10570 = vmatpush2.bf16.msra.mxu0 0
    %10571 = vmatprep.subr.bf16.mxu0 0
    %10572 = vmatpush2.bf16.msra.mxu0 0
    %10573 = vmatprep.subr.bf16.mxu0 0
    %10574 = vmatpush2.bf16.msra.mxu0 0
    %10575 = vmatprep.subr.bf16.mxu0 0
    %10576 = vmatpush2.bf16.msra.mxu0 0
    %10577 = vmatprep.subr.bf16.mxu0 0
    %10578 = vmatpush2.bf16.msra.mxu0 0
    %10579 = vmatprep.subr.bf16.mxu0 0
    %10580 = vmatpush2.bf16.msra.mxu0 0
    %10581 = vmatprep.mubr.bf16.mxu0 0
    %10582 = vmatmul.mubr.bf16.gmra.mxu0 %v10544
    %v10583 = vpop.f32.mrf.mxu0
    %v10584 = vadd.f32 0.0, %v10583
    %v10585 = vpop.f32.mrf.mxu0
    %v10586 = vpop.f32.mrf.mxu0
    %v10587 = vadd.f32 0.0, %v10586
    %v10588 = vpop.f32.mrf.mxu0
    %10589 = vmatprep.mubr.bf16.mxu0 0
    %10590 = vmatmul.mubr.bf16.gmra.mxu0 %v10547
    %v10591 = vpop.f32.mrf.mxu0
    %v10592 = vadd.f32 0.0, %v10591
    %v10593 = vpop.f32.mrf.mxu0
    %v10594 = vpop.f32.mrf.mxu0
    %v10595 = vadd.f32 0.0, %v10594
    %v10596 = vpop.f32.mrf.mxu0
    %10597 = vdwg.mxu0
    %v10598 = vadd.f32 %v5470, %v10584
    %v10599 = vadd.f32 %v5471, %v10587
    %v10600 = vadd.f32 %v5472, %v10592
    %v10601 = vadd.f32 %v5473, %v10595
    %s10602 = scalar_lea.vmem %s8, 1
    %v10603 = vld [vmem:[%s10602] sm:$0x1]
    %v10604 = vmul.f32 %v10598, %v10598
    %v10605 = vmul.f32 %v10599, %v10599
    %v10606 = vmul.f32 %v10600, %v10600
    %v10607 = vmul.f32 %v10601, %v10601
    %v10608 = vsel %vm86, %v10604, 0.0
    %10609 = vadd.xlane.f32.xlu0 %v10608
    %v10610 = vpop.xlane.xlu0 %10609
    %v10611 = vsel %vm86, %v10605, 0.0
    %10612 = vadd.xlane.f32.xlu0 %v10611
    %v10613 = vpop.xlane.xlu0 %10612
    %v10614 = vsel %vm86, %v10606, 0.0
    %10615 = vadd.xlane.f32.xlu0 %v10614
    %v10616 = vpop.xlane.xlu0 %10615
    %v10617 = vsel %vm86, %v10607, 0.0
    %10618 = vadd.xlane.f32.xlu0 %v10617
    %v10619 = vpop.xlane.xlu0 %10618
    %v10620 = vmul.f32 %v10610, %v99
    %v10621 = vmul.f32 %v10613, %v99
    %v10622 = vmul.f32 %v10616, %v99
    %v10623 = vmul.f32 %v10619, %v99
    %v10624 = vadd.f32 %v10620, 1e-06
    %v10625 = vadd.f32 %v10621, 1e-06
    %v10626 = vadd.f32 %v10622, 1e-06
    %v10627 = vadd.f32 %v10623, 1e-06
    %v10628 = vrsqrt.pop %v10624
    %v10629 = vrsqrt.pop %v10625
    %v10630 = vrsqrt.pop %v10626
    %v10631 = vrsqrt.pop %v10627
    %v10632 = vmul.f32 %v10598, %v10628
    %v10633 = vmul.f32 %v10599, %v10629
    %v10634 = vmul.f32 %v10600, %v10630
    %v10635 = vmul.f32 %v10601, %v10631
    %v10637 = vlaneseq
    %v10638 = vshrl.u32 %v10637, 7
    %v10639 = vsub.s32 0, %v10638
    %v10640 = vrot.slane %v10603, %v10639
    %v10642 = vmul.f32 %v10632, %v10640
    %v10643 = vmul.f32 %v10633, %v10640
    %v10644 = vmul.f32 %v10634, %v10640
    %v10645 = vmul.f32 %v10635, %v10640
    %v10646 = vpack.c.bf16 %v10643, %v10642
    %v10647 = vpack.c.bf16 %v10645, %v10644
    %s10648 = scalar_lea.vmem %s5, 16
    %v10649 = vld [vmem:[%s10648] sm:$0xf]
    %v10650 = vld [vmem:[%s10648 + $0x4] sm:$0xf]
    %v10651 = vld [vmem:[%s10648 + $0x8] sm:$0xf]
    %v10652 = vld [vmem:[%s10648 + $0xc] sm:$0xf]
    %v10657 = vunpack.c.l.b16 %v10649
    %v10658 = vunpack.c.l.b16 %v10650
    %v10659 = vunpack.c.l.b16 %v10651
    %v10660 = vunpack.c.l.b16 %v10652
    %v10661 = vpack.c.b16 %v10658, %v10657
    %v10662 = vpack.c.b16 %v10660, %v10659
    %v10666 = vsel %vm86, %v10646, 0
    %v10669 = vsel %vm86, %v10647, 0
    %10671 = vmatprep.subr.bf16.mxu0 0
    %10672 = vmatpush1.bf16.msra.mxu0 0
    %10673 = vmatprep.subr.bf16.mxu0 0
    %10674 = vmatpush1.bf16.msra.mxu0 0
    %10675 = vmatprep.subr.bf16.mxu0 0
    %10676 = vmatpush1.bf16.msra.mxu0 0
    %10677 = vmatprep.subr.bf16.mxu0 0
    %10678 = vmatpush1.bf16.msra.mxu0 0
    %10679 = vmatprep.subr.bf16.mxu0 0
    %10680 = vmatpush1.bf16.msra.mxu0 0
    %10681 = vmatprep.subr.bf16.mxu0 0
    %10682 = vmatpush1.bf16.msra.mxu0 0
    %10683 = vmatprep.subr.bf16.mxu0 0
    %10684 = vmatpush1.bf16.msra.mxu0 %v10662
    %10685 = vmatprep.subr.bf16.mxu0 0
    %10686 = vmatpush1.bf16.msra.mxu0 %v10661
    %10687 = vmatprep.subr.bf16.mxu0 0
    %10688 = vmatpush2.bf16.msra.mxu0 0
    %10689 = vmatprep.subr.bf16.mxu0 0
    %10690 = vmatpush2.bf16.msra.mxu0 0
    %10691 = vmatprep.subr.bf16.mxu0 0
    %10692 = vmatpush2.bf16.msra.mxu0 0
    %10693 = vmatprep.subr.bf16.mxu0 0
    %10694 = vmatpush2.bf16.msra.mxu0 0
    %10695 = vmatprep.subr.bf16.mxu0 0
    %10696 = vmatpush2.bf16.msra.mxu0 0
    %10697 = vmatprep.subr.bf16.mxu0 0
    %10698 = vmatpush2.bf16.msra.mxu0 0
    %10699 = vmatprep.subr.bf16.mxu0 0
    %10700 = vmatpush2.bf16.msra.mxu0 0
    %10701 = vmatprep.subr.bf16.mxu0 0
    %10702 = vmatpush2.bf16.msra.mxu0 0
    %10703 = vmatprep.mubr.bf16.mxu0 0
    %10704 = vmatmul.mubr.bf16.gmra.mxu0 %v10666
    %v10705 = vpop.f32.mrf.mxu0
    %v10706 = vadd.f32 0.0, %v10705
    %v10707 = vpop.f32.mrf.mxu0
    %v10708 = vpop.f32.mrf.mxu0
    %v10709 = vadd.f32 0.0, %v10708
    %v10710 = vpop.f32.mrf.mxu0
    %10711 = vmatprep.mubr.bf16.mxu0 0
    %10712 = vmatmul.mubr.bf16.gmra.mxu0 %v10669
    %v10713 = vpop.f32.mrf.mxu0
    %v10714 = vadd.f32 0.0, %v10713
    %v10715 = vpop.f32.mrf.mxu0
    %v10716 = vpop.f32.mrf.mxu0
    %v10717 = vadd.f32 0.0, %v10716
    %v10718 = vpop.f32.mrf.mxu0
    %10719 = vdwg.mxu0
    %v10720 = vxor.u32 %v10706, 2147483648
    %v10721 = vxor.u32 %v10709, 2147483648
    %v10722 = vxor.u32 %v10714, 2147483648
    %v10723 = vxor.u32 %v10717, 2147483648
    %v10724 = vmul.f32 %v10720, 1.442695
    %v10725 = vpow.pop %v10724
    %v10726 = vmul.f32 %v10721, 1.442695
    %v10727 = vpow.pop %v10726
    %v10728 = vmul.f32 %v10722, 1.442695
    %v10729 = vpow.pop %v10728
    %v10730 = vmul.f32 %v10723, 1.442695
    %v10731 = vpow.pop %v10730
    %v10732 = vadd.f32 %v10725, 1.0
    %v10733 = vadd.f32 %v10727, 1.0
    %v10734 = vadd.f32 %v10729, 1.0
    %v10735 = vadd.f32 %v10731, 1.0
    %v10736 = vrcp.pop %v10732
    %v10737 = vmul.f32 1.0, %v10736
    %v10738 = vrcp.pop %v10733
    %v10739 = vmul.f32 1.0, %v10738
    %v10740 = vrcp.pop %v10734
    %v10741 = vmul.f32 1.0, %v10740
    %v10742 = vrcp.pop %v10735
    %v10743 = vmul.f32 1.0, %v10742
    %v10744 = vmul.f32 %v10706, %v10737
    %v10745 = vmul.f32 %v10709, %v10739
    %v10746 = vmul.f32 %v10714, %v10741
    %v10747 = vmul.f32 %v10717, %v10743
    %v10748 = vpack.c.bf16 %v10745, %v10744
    %v10749 = vpack.c.bf16 %v10747, %v10746
    %s10750 = scalar_lea.vmem %s6, 64
    %v10751 = vld [vmem:[%s10750] sm:$0xf]
    %v10752 = vld [vmem:[%s10750 + $0x4] sm:$0xf]
    %v10753 = vld [vmem:[%s10750 + $0x8] sm:$0xf]
    %v10754 = vld [vmem:[%s10750 + $0xc] sm:$0xf]
    %v10755 = vld [vmem:[%s10750 + $0x10] sm:$0xf]
    %v10756 = vld [vmem:[%s10750 + $0x14] sm:$0xf]
    %v10757 = vld [vmem:[%s10750 + $0x18] sm:$0xf]
    %v10758 = vld [vmem:[%s10750 + $0x1c] sm:$0xf]
    %v10759 = vld [vmem:[%s10750 + $0x20] sm:$0xf]
    %v10760 = vld [vmem:[%s10750 + $0x24] sm:$0xf]
    %v10761 = vld [vmem:[%s10750 + $0x28] sm:$0xf]
    %v10762 = vld [vmem:[%s10750 + $0x2c] sm:$0xf]
    %v10763 = vld [vmem:[%s10750 + $0x30] sm:$0xf]
    %v10764 = vld [vmem:[%s10750 + $0x34] sm:$0xf]
    %v10765 = vld [vmem:[%s10750 + $0x38] sm:$0xf]
    %v10766 = vld [vmem:[%s10750 + $0x3c] sm:$0xf]
    %v10783 = vunpack.c.l.b16 %v10751
    %v10784 = vunpack.c.l.b16 %v10752
    %v10785 = vunpack.c.l.b16 %v10753
    %v10786 = vunpack.c.l.b16 %v10754
    %v10787 = vunpack.c.l.b16 %v10755
    %v10788 = vunpack.c.l.b16 %v10756
    %v10789 = vunpack.c.l.b16 %v10757
    %v10790 = vunpack.c.l.b16 %v10758
    %v10791 = vunpack.c.l.b16 %v10759
    %v10792 = vunpack.c.l.b16 %v10760
    %v10793 = vunpack.c.l.b16 %v10761
    %v10794 = vunpack.c.l.b16 %v10762
    %v10795 = vunpack.c.l.b16 %v10763
    %v10796 = vunpack.c.l.b16 %v10764
    %v10797 = vunpack.c.l.b16 %v10765
    %v10798 = vunpack.c.l.b16 %v10766
    %v10799 = vpack.c.b16 %v10784, %v10783
    %v10800 = vpack.c.b16 %v10786, %v10785
    %v10801 = vpack.c.b16 %v10788, %v10787
    %v10802 = vpack.c.b16 %v10790, %v10789
    %v10803 = vpack.c.b16 %v10792, %v10791
    %v10804 = vpack.c.b16 %v10794, %v10793
    %v10805 = vpack.c.b16 %v10796, %v10795
    %v10806 = vpack.c.b16 %v10798, %v10797
    %10815 = vmatprep.subr.bf16.mxu0 0
    %10816 = vmatpush1.bf16.msra.mxu0 %v10806
    %10817 = vmatprep.subr.bf16.mxu0 0
    %10818 = vmatpush1.bf16.msra.mxu0 %v10805
    %10819 = vmatprep.subr.bf16.mxu0 0
    %10820 = vmatpush1.bf16.msra.mxu0 %v10804
    %10821 = vmatprep.subr.bf16.mxu0 0
    %10822 = vmatpush1.bf16.msra.mxu0 %v10803
    %10823 = vmatprep.subr.bf16.mxu0 0
    %10824 = vmatpush1.bf16.msra.mxu0 %v10802
    %10825 = vmatprep.subr.bf16.mxu0 0
    %10826 = vmatpush1.bf16.msra.mxu0 %v10801
    %10827 = vmatprep.subr.bf16.mxu0 0
    %10828 = vmatpush1.bf16.msra.mxu0 %v10800
    %10829 = vmatprep.subr.bf16.mxu0 0
    %10830 = vmatpush1.bf16.msra.mxu0 %v10799
    %10831 = vmatprep.subr.bf16.mxu0 0
    %10832 = vmatpush2.bf16.msra.mxu0 0
    %10833 = vmatprep.subr.bf16.mxu0 0
    %10834 = vmatpush2.bf16.msra.mxu0 0
    %10835 = vmatprep.subr.bf16.mxu0 0
    %10836 = vmatpush2.bf16.msra.mxu0 0
    %10837 = vmatprep.subr.bf16.mxu0 0
    %10838 = vmatpush2.bf16.msra.mxu0 0
    %10839 = vmatprep.subr.bf16.mxu0 0
    %10840 = vmatpush2.bf16.msra.mxu0 0
    %10841 = vmatprep.subr.bf16.mxu0 0
    %10842 = vmatpush2.bf16.msra.mxu0 0
    %10843 = vmatprep.subr.bf16.mxu0 0
    %10844 = vmatpush2.bf16.msra.mxu0 0
    %10845 = vmatprep.subr.bf16.mxu0 0
    %10846 = vmatpush2.bf16.msra.mxu0 0
    %10847 = vmatprep.mubr.bf16.mxu0 0
    %10848 = vmatmul.mubr.bf16.gmra.mxu0 %v10748
    %v10849 = vpop.f32.mrf.mxu0
    %v10850 = vadd.f32 0.0, %v10849
    %v10851 = vpop.f32.mrf.mxu0
    %v10852 = vpop.f32.mrf.mxu0
    %v10853 = vadd.f32 0.0, %v10852
    %v10854 = vpop.f32.mrf.mxu0
    %10855 = vmatprep.mubr.bf16.mxu0 0
    %10856 = vmatmul.mubr.bf16.gmra.mxu0 %v10749
    %v10857 = vpop.f32.mrf.mxu0
    %v10858 = vadd.f32 0.0, %v10857
    %v10859 = vpop.f32.mrf.mxu0
    %v10860 = vpop.f32.mrf.mxu0
    %v10861 = vadd.f32 0.0, %v10860
    %v10862 = vpop.f32.mrf.mxu0
    %10863 = vdwg.mxu0
    %v10864 = vadd.f32 %v10598, %v10850
    %v10865 = vadd.f32 %v10599, %v10853
    %v10866 = vadd.f32 %v10600, %v10858
    %v10867 = vadd.f32 %v10601, %v10861
    %v10868 = vld [vmem:[%s9] sm:$0x1]
    %v10869 = vmul.f32 %v10864, %v10864
    %v10870 = vmul.f32 %v10865, %v10865
    %v10871 = vmul.f32 %v10866, %v10866
    %v10872 = vmul.f32 %v10867, %v10867
    %v10873 = vsel %vm86, %v10869, 0.0
    %10874 = vadd.xlane.f32.xlu0 %v10873
    %v10875 = vpop.xlane.xlu0 %10874
    %v10876 = vsel %vm86, %v10870, 0.0
    %10877 = vadd.xlane.f32.xlu0 %v10876
    %v10878 = vpop.xlane.xlu0 %10877
    %v10879 = vsel %vm86, %v10871, 0.0
    %10880 = vadd.xlane.f32.xlu0 %v10879
    %v10881 = vpop.xlane.xlu0 %10880
    %v10882 = vsel %vm86, %v10872, 0.0
    %10883 = vadd.xlane.f32.xlu0 %v10882
    %v10884 = vpop.xlane.xlu0 %10883
    %v10885 = vmul.f32 %v10875, %v99
    %v10886 = vmul.f32 %v10878, %v99
    %v10887 = vmul.f32 %v10881, %v99
    %v10888 = vmul.f32 %v10884, %v99
    %v10889 = vadd.f32 %v10885, 1e-06
    %v10890 = vadd.f32 %v10886, 1e-06
    %v10891 = vadd.f32 %v10887, 1e-06
    %v10892 = vadd.f32 %v10888, 1e-06
    %v10893 = vrsqrt.pop %v10889
    %v10894 = vrsqrt.pop %v10890
    %v10895 = vrsqrt.pop %v10891
    %v10896 = vrsqrt.pop %v10892
    %v10897 = vmul.f32 %v10864, %v10893
    %v10898 = vmul.f32 %v10865, %v10894
    %v10899 = vmul.f32 %v10866, %v10895
    %v10900 = vmul.f32 %v10867, %v10896
    %v10902 = vlaneseq
    %v10903 = vshrl.u32 %v10902, 7
    %v10904 = vsub.s32 0, %v10903
    %v10905 = vrot.slane %v10868, %v10904
    %v10907 = vmul.f32 %v10897, %v10905
    %v10908 = vmul.f32 %v10898, %v10905
    %v10909 = vmul.f32 %v10899, %v10905
    %v10910 = vmul.f32 %v10900, %v10905
    %v10911 = vld [vmem:[#allocation5] sm:$0xff]
    %v10912 = vld [vmem:[#allocation5 + $0x8] sm:$0xff]
    %v10913 = vld [vmem:[#allocation5 + $0x10] sm:$0xff]
    %v10914 = vld [vmem:[#allocation5 + $0x18] sm:$0xff]
    %v10916 = vsel %vm86, %v10907, 0
    %v10919 = vsel %vm86, %v10908, 0
    %v10922 = vsel %vm86, %v10909, 0
    %v10925 = vsel %vm86, %v10910, 0
    %10927 = vmatprep.subr.mxu0 0.0
    %10928 = vmatpush1.msra.mxu0 0.0
    %10929 = vmatprep.subr.mxu0 0.0
    %10930 = vmatpush1.msra.mxu0 0.0
    %10931 = vmatprep.subr.mxu0 0.0
    %10932 = vmatpush1.msra.mxu0 0.0
    %10933 = vmatprep.subr.mxu0 0.0
    %10934 = vmatpush1.msra.mxu0 0.0
    %10935 = vmatprep.subr.mxu0 0.0
    %10936 = vmatpush1.msra.mxu0 0.0
    %10937 = vmatprep.subr.mxu0 0.0
    %10938 = vmatpush1.msra.mxu0 0.0
    %10939 = vmatprep.subr.mxu0 0.0
    %10940 = vmatpush1.msra.mxu0 0.0
    %10941 = vmatprep.subr.mxu0 0.0
    %10942 = vmatpush1.msra.mxu0 0.0
    %10943 = vmatprep.subr.mxu0 0.0
    %10944 = vmatpush1.msra.mxu0 0.0
    %10945 = vmatprep.subr.mxu0 0.0
    %10946 = vmatpush1.msra.mxu0 0.0
    %10947 = vmatprep.subr.mxu0 0.0
    %10948 = vmatpush1.msra.mxu0 0.0
    %10949 = vmatprep.subr.mxu0 0.0
    %10950 = vmatpush1.msra.mxu0 0.0
    %10951 = vmatprep.subr.mxu0 0.0
    %10952 = vmatpush1.msra.mxu0 %v10914
    %10953 = vmatprep.subr.mxu0 0.0
    %10954 = vmatpush1.msra.mxu0 %v10913
    %10955 = vmatprep.subr.mxu0 0.0
    %10956 = vmatpush1.msra.mxu0 %v10912
    %10957 = vmatprep.subr.mxu0 0.0
    %10958 = vmatpush1.msra.mxu0 %v10911
    %10959 = vmatprep.subr.mxu0 0.0
    %10960 = vmatpush2.msra.mxu0 0.0
    %10961 = vmatprep.subr.mxu0 0.0
    %10962 = vmatpush2.msra.mxu0 0.0
    %10963 = vmatprep.subr.mxu0 0.0
    %10964 = vmatpush2.msra.mxu0 0.0
    %10965 = vmatprep.subr.mxu0 0.0
    %10966 = vmatpush2.msra.mxu0 0.0
    %10967 = vmatprep.subr.mxu0 0.0
    %10968 = vmatpush2.msra.mxu0 0.0
    %10969 = vmatprep.subr.mxu0 0.0
    %10970 = vmatpush2.msra.mxu0 0.0
    %10971 = vmatprep.subr.mxu0 0.0
    %10972 = vmatpush2.msra.mxu0 0.0
    %10973 = vmatprep.subr.mxu0 0.0
    %10974 = vmatpush2.msra.mxu0 0.0
    %10975 = vmatprep.subr.mxu0 0.0
    %10976 = vmatpush2.msra.mxu0 0.0
    %10977 = vmatprep.subr.mxu0 0.0
    %10978 = vmatpush2.msra.mxu0 0.0
    %10979 = vmatprep.subr.mxu0 0.0
    %10980 = vmatpush2.msra.mxu0 0.0
    %10981 = vmatprep.subr.mxu0 0.0
    %10982 = vmatpush2.msra.mxu0 0.0
    %10983 = vmatprep.subr.mxu0 0.0
    %10984 = vmatpush2.msra.mxu0 0.0
    %10985 = vmatprep.subr.mxu0 0.0
    %10986 = vmatpush2.msra.mxu0 0.0
    %10987 = vmatprep.subr.mxu0 0.0
    %10988 = vmatpush2.msra.mxu0 0.0
    %10989 = vmatprep.subr.mxu0 0.0
    %10990 = vmatpush2.msra.mxu0 0.0
    %10991 = vmatprep.mubr.f32.mxu0 0.0
    %10992 = vmatmul.mubr.f32.gmra.mxu0 %v10916
    %v10993 = vpop.f32.mrf.mxu0
    %v10994 = vadd.f32 0.0, %v10993
    %v10995 = vpop.f32.mrf.mxu0
    %10996 = vmatprep.mubr.f32.mxu0 0.0
    %10997 = vmatmul.mubr.f32.gmra.mxu0 %v10919
    %v10998 = vpop.f32.mrf.mxu0
    %v10999 = vadd.f32 0.0, %v10998
    %v11000 = vpop.f32.mrf.mxu0
    %11001 = vmatprep.mubr.f32.mxu0 0.0
    %11002 = vmatmul.mubr.f32.gmra.mxu0 %v10922
    %v11003 = vpop.f32.mrf.mxu0
    %v11004 = vadd.f32 0.0, %v11003
    %v11005 = vpop.f32.mrf.mxu0
    %11006 = vmatprep.mubr.f32.mxu0 0.0
    %11007 = vmatmul.mubr.f32.gmra.mxu0 %v10925
    %v11008 = vpop.f32.mrf.mxu0
    %v11009 = vadd.f32 0.0, %v11008
    %v11010 = vpop.f32.mrf.mxu0
    %11011 = vdwg.mxu0
    %v11012 = vsel %vm5124, %v10994, -inf
    %11013 = vmax.xlane.f32.xlu0 %v11012
    %v11014 = vpop.xlane.xlu0 %11013
    %v11015 = vsel %vm5124, %v10999, -inf
    %11016 = vmax.xlane.f32.xlu0 %v11015
    %v11017 = vpop.xlane.xlu0 %11016
    %v11018 = vsel %vm5124, %v11004, -inf
    %11019 = vmax.xlane.f32.xlu0 %v11018
    %v11020 = vpop.xlane.xlu0 %11019
    %v11021 = vsel %vm5124, %v11009, -inf
    %11022 = vmax.xlane.f32.xlu0 %v11021
    %v11023 = vpop.xlane.xlu0 %11022
    %v11024 = vlaneseq
    %v11025 = vand.u32 %v11024, 127
    %v11026 = vcvt.s32.f32 %v11025
    %vm11027 = vcmp.eq.f32.partialorder %v10994, %v11014
    %vm11028 = vcmp.eq.f32.partialorder %v10999, %v11017
    %vm11029 = vcmp.eq.f32.partialorder %v11004, %v11020
    %vm11030 = vcmp.eq.f32.partialorder %v11009, %v11023
    %v11031 = vsel %vm11027, %v11026, 16.0
    %v11032 = vsel %vm11028, %v11026, 16.0
    %v11033 = vsel %vm11029, %v11026, 16.0
    %v11034 = vsel %vm11030, %v11026, 16.0
    %v11035 = vsel %vm5124, %v11031, inf
    %11036 = vmin.xlane.f32.xlu0 %v11035
    %v11037 = vpop.xlane.xlu0 %11036
    %v11038 = vsel %vm5124, %v11032, inf
    %11039 = vmin.xlane.f32.xlu0 %v11038
    %v11040 = vpop.xlane.xlu0 %11039
    %v11041 = vsel %vm5124, %v11033, inf
    %11042 = vmin.xlane.f32.xlu0 %v11041
    %v11043 = vpop.xlane.xlu0 %11042
    %v11044 = vsel %vm5124, %v11034, inf
    %11045 = vmin.xlane.f32.xlu0 %v11044
    %v11046 = vpop.xlane.xlu0 %11045
    %vm11047 = vcmask 261248
    %v11048 = vsel %vm11047, %v10994, -inf
    %11049 = vmax.xlane.f32.xlu0 %v11048
    %v11050 = vpop.xlane.xlu0 %11049
    %v11051 = vsel %vm11047, %v10999, -inf
    %11052 = vmax.xlane.f32.xlu0 %v11051
    %v11053 = vpop.xlane.xlu0 %11052
    %v11054 = vsel %vm11047, %v11004, -inf
    %11055 = vmax.xlane.f32.xlu0 %v11054
    %v11056 = vpop.xlane.xlu0 %11055
    %v11057 = vsel %vm11047, %v11009, -inf
    %11058 = vmax.xlane.f32.xlu0 %v11057
    %v11059 = vpop.xlane.xlu0 %11058
    %vm11060 = vcmp.eq.f32.partialorder %v10994, %v11050
    %vm11061 = vcmp.eq.f32.partialorder %v10999, %v11053
    %vm11062 = vcmp.eq.f32.partialorder %v11004, %v11056
    %vm11063 = vcmp.eq.f32.partialorder %v11009, %v11059
    %11065 = vrot.lane.b32.xlu0 %v11026, 16
    %v11066 = vpop.permute.xlu0 %11065
    %v11068 = vsel %vm11060, %v11066, 16.0
    %v11069 = vsel %vm11061, %v11066, 16.0
    %v11070 = vsel %vm11062, %v11066, 16.0
    %v11071 = vsel %vm11063, %v11066, 16.0
    %v11072 = vsel %vm11047, %v11068, inf
    %11073 = vmin.xlane.f32.xlu0 %v11072
    %v11074 = vpop.xlane.xlu0 %11073
    %v11075 = vsel %vm11047, %v11069, inf
    %11076 = vmin.xlane.f32.xlu0 %v11075
    %v11077 = vpop.xlane.xlu0 %11076
    %v11078 = vsel %vm11047, %v11070, inf
    %11079 = vmin.xlane.f32.xlu0 %v11078
    %v11080 = vpop.xlane.xlu0 %11079
    %v11081 = vsel %vm11047, %v11071, inf
    %11082 = vmin.xlane.f32.xlu0 %v11081
    %v11083 = vpop.xlane.xlu0 %11082
    %vm11084 = vcmask 7168
    %v11085 = vsel %vm11084, %v11037, %v11074
    %v11086 = vsel %vm11084, %v11040, %v11077
    %v11087 = vsel %vm11084, %v11043, %v11080
    %v11088 = vsel %vm11084, %v11046, %v11083
    %v11089 = vcvt.f32.s32.to.zero.pseudo %v11085
    %v11090 = vcvt.f32.s32.to.zero.pseudo %v11086
    %v11091 = vcvt.f32.s32.to.zero.pseudo %v11087
    %v11092 = vcvt.f32.s32.to.zero.pseudo %v11088
    %vm11093 = vcmask 15360
    %11094 = vst.msk [vmem:[%s11] sm:$0xff] %vm11093, %v11089
    %11095 = vst.msk [vmem:[%s11 + $0x8] sm:$0xff] %vm11093, %v11090
    %11096 = vst.msk [vmem:[%s11 + $0x10] sm:$0xff] %vm11093, %v11091
    %11097 = vst.msk [vmem:[%s11 + $0x18] sm:$0xff] %vm11093, %v11092
    %11098 = vst.msk [vmem:[#allocation7] sm:$0xff] %vm86, %v10907
    %11099 = vst.msk [vmem:[#allocation7 + $0x8] sm:$0xff] %vm86, %v10908
    %11100 = vst.msk [vmem:[#allocation7 + $0x10] sm:$0xff] %vm86, %v10909
    %11101 = vst.msk [vmem:[#allocation7 + $0x18] sm:$0xff] %vm86, %v10910
    // Predicated region
    $region54: #{tpu_custom_call.1} parent=1 // pred_check
      _
    $region55: #{tpu_custom_call.1} parent=1 // pred_check_branch
      %11103 = sbr.rel (0) target = $region57
    $region56: #{tpu_custom_call.1} parent=1 // pred_region
      _
    $region57: #{tpu_custom_call.1} parent=1 // pred_fallthru
      _
    // Predicated region
    $region58: #{tpu_custom_call.1} parent=1 // pred_check
      _
    $region59: #{tpu_custom_call.1} parent=1 // pred_check_branch
      %11105 = sbr.rel (0) target = $region61
    $region60: #{tpu_custom_call.1} parent=1 // pred_region
      %s11107 = ssub.s32 512, 512
      %11108 = vsyncadd [#allocation4], %s11107
      %s11109 = sshll.u32 [#allocation7], 4
      %s11110 = int_to_ptr.vmem [resolvable:$true] %s11109
      %11115 = dma.vmem_to_hbm [thread:$0]  %s11110, 512, %s12, [#allocation4], 128, 128, 8
    $region61: #{tpu_custom_call.1} parent=1 // pred_fallthru
      _
    // Predicated region
    $region62: #{tpu_custom_call.1} parent=1 // pred_check
      _
    $region63: #{tpu_custom_call.1} parent=1 // pred_check_branch
      %11117 = sbr.rel (0) target = $region65
    $region64: #{tpu_custom_call.1} parent=1 // pred_region
      _
    $region65: #{tpu_custom_call.1} parent=1 // pred_fallthru
      _
    // Predicated region
    $region66: #{tpu_custom_call.1} parent=1 // pred_check
      _
    $region67: #{tpu_custom_call.1} parent=1 // pred_check_branch
      %11119 = sbr.rel (0) target = $region69
    $region68: #{tpu_custom_call.1} parent=1 // pred_region
      %11120 = dma.done [#allocation4], 512
    $region69: #{tpu_custom_call.1} parent=1 // pred_fallthru
      _
    %11121 = vsyncpa [#allocation3], 1
    %11122 = vsyncpa [#allocation6], 1
    %11123 = vsyncpa [#allocation4], 1

</llo_original>
